<compile_context>
chip_gen: v6e
topology: v6e:2x2x1
jax: 0.10.0
libtpu: 0.0.40
codegen_flags: <defaults>
</compile_context>

<pallas_src>
import functools
import math

import jax
import jax.numpy as jnp
from jax.experimental import pallas as pl
from jax.experimental.pallas import tpu as pltpu

# ----------------------------- model config (small, synthetic) ---------------
VOCAB_SIZE = 100
MAX_POS = 16
TYPE_VOCAB = 2
HIDDEN = 32
NUM_HEADS = 2
HEAD_DIM = HIDDEN // NUM_HEADS
INTERMEDIATE = 64
NUM_LAYERS = 2
GRU_LAYERS = 3
NUM_CLASSES = 43
CLS_PAD = 128          # lane-dense classifier slab; real logits are [:, :NUM_CLASSES]
LN_EPS = 1e-12
DR_RATE = 0.2          # dropout is identity in eval mode


# ----------------------------- in-kernel helpers ------------------------------
def _layer_norm(x, gamma, beta, eps=LN_EPS):
    mu = jnp.mean(x, axis=-1, keepdims=True)
    var = jnp.mean(jnp.square(x - mu), axis=-1, keepdims=True)
    return (x - mu) * jax.lax.rsqrt(var + eps) * gamma + beta


def _sigmoid(x):
    # sigmoid(x) == 0.5*(1+tanh(x/2)): tanh goes to the EUP slot (no VPU divide
    # on the serial GRU recurrence path).
    return 0.5 * (jnp.tanh(0.5 * x) + 1.0)


# ----------------------------- fully fused model kernel -----------------------
def _model_kernel(x_ref, mask_ref, emb_ln_ref,
                  wqkv_ref, bqkv_ref, wo_ref, bo_ref, ln1_ref,
                  w1_ref, b1_ref, w2_ref, b2_ref, ln2_ref,
                  wih0_ref, wihN_ref, whh_ref, bih_ref, bhh_ref,
                  wc_ref, bc_ref,
                  o_ref,
                  seq_f_ref, seq_b_ref, *, batch, seq):
    """Single grid step: encoder (whole batch) + 3-layer biGRU + tanh + classifier.

    x_ref:    (S*B, H) pre-LN embeddings, TIME-MAJOR (row = t*B + b)
    mask_ref: (S*B, S*B) additive attention mask (block-diagonal across batches)
    seq_f_ref / seq_b_ref: VMEM scratch slabs (S*B, H) holding per-step GRU outputs
    o_ref:    (B, CLS_PAD) lane-dense logits slab
    """
    H, Dh = HIDDEN, HEAD_DIM
    B, S = batch, seq

    # ---------------- encoder --------------------------------------------------
    x = x_ref[...]                                   # (S*B, H)
    mask = mask_ref[...]                             # (S*B, S*B)

    eln = emb_ln_ref[...]
    x = _layer_norm(x, eln[0:1, :], eln[1:2, :])     # embedding LayerNorm fused in

    scale = 1.0 / math.sqrt(Dh)
    for l in range(NUM_LAYERS):
        # fused QKV matmul; per-head split by static lane slices
        qkv = jnp.dot(x, wqkv_ref[l], preferred_element_type=jnp.float32) + bqkv_ref[l]
        wo_l = wo_ref[l]                             # (H, H)
        attn = None
        for h in range(NUM_HEADS):
            c0 = h * Dh
            qh = qkv[:, c0:c0 + Dh]                  # (S*B, Dh)
            kh = qkv[:, H + c0:H + c0 + Dh]
            vh = qkv[:, 2 * H + c0:2 * H + c0 + Dh]
            s = jnp.dot(qh, kh.T, preferred_element_type=jnp.float32) * scale + mask
            s = s - jnp.max(s, axis=-1, keepdims=True)
            p = jnp.exp(s)
            p = p * pl.reciprocal(jnp.sum(p, axis=-1, keepdims=True), approx=True)
            ctx_h = jnp.dot(p, vh, preferred_element_type=jnp.float32)       # (S*B, Dh)
            # fold output projection per head: ctx @ Wo == sum_h ctx_h @ Wo[h-rows]
            proj = jnp.dot(ctx_h, wo_l[c0:c0 + Dh, :],
                           preferred_element_type=jnp.float32)               # (S*B, H)
            attn = proj if attn is None else attn + proj
        attn = attn + bo_ref[l]

        ln1 = ln1_ref[l]
        x = _layer_norm(x + attn, ln1[0:1, :], ln1[1:2, :])

        ff = jnp.dot(x, w1_ref[l], preferred_element_type=jnp.float32) + b1_ref[l]
        ff = jax.nn.gelu(ff)   # tanh approximation (see TODO at top)
        ff = jnp.dot(ff, w2_ref[l], preferred_element_type=jnp.float32) + b2_ref[l]

        ln2 = ln2_ref[l]
        x = _layer_norm(x + ff, ln2[0:1, :], ln2[1:2, :])
    # x: (S*B, H) == last_hidden_state, time-major

    # ---------------- 3-layer bidirectional GRU (directions merged) ------------
    # PyTorch gate order (r, z, n); state h_both = [h_fwd | h_bwd] of shape (B, 2H);
    # W_hh packed block-diagonally -> one (B,2H)@(2H,6H) matmul per step.
    h_both = jnp.zeros((B, 2 * H), jnp.float32)
    for l in range(GRU_LAYERS):
        b_ih = bih_ref[l]                            # (1, 6H)  [fwd 3H | bwd 3H]
        b_hh = bhh_ref[l]                            # (1, 6H)
        w_hh = whh_ref[l]                            # (2H, 6H) block-diagonal
        if l == 0:
            # batched input transform over all time steps: one lane-dense matmul
            gi_all = jnp.dot(x, wih0_ref[...], preferred_element_type=jnp.float32) + b_ih
        else:
            w_ih = wihN_ref[l - 1]                   # (2H, 6H); rows [:H] fwd slab, [H:] bwd
            gi_all = (jnp.dot(seq_f_ref[...], w_ih[:H, :], preferred_element_type=jnp.float32)
                      + jnp.dot(seq_b_ref[...], w_ih[H:, :], preferred_element_type=jnp.float32)
                      + b_ih)                        # (S*B, 6H), time-major rows

        h_both = jnp.zeros((B, 2 * H), jnp.float32)
        last_layer = (l == GRU_LAYERS - 1)
        for step in range(S):                        # static unroll; serial critical path
            tf = step                                # forward time index
            tb = S - 1 - step                        # backward time index
            gif = gi_all[tf * B:(tf + 1) * B, 0:3 * H]          # (B, 3H)
            gib = gi_all[tb * B:(tb + 1) * B, 3 * H:6 * H]      # (B, 3H)
            gh = jnp.dot(h_both, w_hh, preferred_element_type=jnp.float32) + b_hh  # (B, 6H)
            # forward direction gates
            r_f = _sigmoid(gif[:, 0:H] + gh[:, 0:H])
            z_f = _sigmoid(gif[:, H:2 * H] + gh[:, H:2 * H])
            n_f = jnp.tanh(gif[:, 2 * H:3 * H] + r_f * gh[:, 2 * H:3 * H])
            h_f = (1.0 - z_f) * n_f + z_f * h_both[:, 0:H]
            # backward direction gates
            r_b = _sigmoid(gib[:, 0:H] + gh[:, 3 * H:4 * H])
            z_b = _sigmoid(gib[:, H:2 * H] + gh[:, 4 * H:5 * H])
            n_b = jnp.tanh(gib[:, 2 * H:3 * H] + r_b * gh[:, 5 * H:6 * H])
            h_b = (1.0 - z_b) * n_b + z_b * h_both[:, H:2 * H]
            h_both = jnp.concatenate([h_f, h_b], axis=-1)
            if not last_layer:
                # per-step outputs go straight to VMEM scratch (time-major rows)
                seq_f_ref[pl.ds(tf * B, B), :] = h_f
                seq_b_ref[pl.ds(tb * B, B), :] = h_b

    # ---------------- head: cat([hidden[-1], hidden[-2]]) -> Tanh -> Linear ----
    # hidden[-1] == last layer backward final, hidden[-2] == last layer forward final.
    feat_f = jnp.tanh(h_both[:, 0:H])
    feat_b = jnp.tanh(h_both[:, H:2 * H])
    # Dropout(p=0.2) is identity in eval mode.
    wc = wc_ref[...]                                 # (2H, CLS_PAD); rows [:H] -> bwd half
    logits = (jnp.dot(feat_b, wc[:H, :], preferred_element_type=jnp.float32)
              + jnp.dot(feat_f, wc[H:, :], preferred_element_type=jnp.float32)
              + bc_ref[...])
    o_ref[...] = logits.astype(o_ref.dtype)          # (B, 128) lane-dense store


def _full_spec(a):
    nd = a.ndim
    return pl.BlockSpec(a.shape, lambda *_: (0,) * nd)


# ----------------------------- parameter init (deterministic) -----------------
def init_params(key):
    keys = iter(jax.random.split(key, 64))

    def nrm(shape, scale=0.02):
        return scale * jax.random.normal(next(keys), shape, dtype=jnp.float32)

    L, H, I = NUM_LAYERS, HIDDEN, INTERMEDIATE

    # ---- raw per-direction GRU weights (PyTorch layout, stacked [layer*2 + dir])
    gru_wih0 = nrm((2, H, 3 * H))            # layer 0: input size H
    gru_wihN = nrm((4, 2 * H, 3 * H))        # layers 1-2: input size 2H
    gru_whh = nrm((6, H, 3 * H))
    gru_bih = nrm((6, 1, 3 * H))
    gru_bhh = nrm((6, 1, 3 * H))
    cls_w = nrm((2 * H, NUM_CLASSES))
    cls_b = jnp.zeros((1, NUM_CLASSES), jnp.float32)

    # ---- pack for the kernel: merge fwd/bwd directions per layer ---------------
    # input transform: columns = [fwd gates 3H | bwd gates 3H]
    wih0_pack = jnp.concatenate([gru_wih0[0], gru_wih0[1]], axis=1)          # (H, 6H)
    wihN_pack = jnp.stack(
        [jnp.concatenate([gru_wihN[2 * l], gru_wihN[2 * l + 1]], axis=1)
         for l in range(GRU_LAYERS - 1)], axis=0)                            # (2, 2H, 6H)
    # recurrent transform: block-diagonal  [[Whh_f, 0], [0, Whh_b]]
    whh_blocks = []
    for l in range(GRU_LAYERS):
        blk = jnp.zeros((2 * H, 6 * H), jnp.float32)
        blk = blk.at[:H, :3 * H].set(gru_whh[2 * l])
        blk = blk.at[H:, 3 * H:].set(gru_whh[2 * l + 1])
        whh_blocks.append(blk)
    whh_pack = jnp.stack(whh_blocks, axis=0)                                 # (3, 2H, 6H)
    bih_pack = jnp.stack([jnp.concatenate([gru_bih[2 * l], gru_bih[2 * l + 1]], axis=1)
                          for l in range(GRU_LAYERS)], axis=0)               # (3, 1, 6H)
    bhh_pack = jnp.stack([jnp.concatenate([gru_bhh[2 * l], gru_bhh[2 * l + 1]], axis=1)
                          for l in range(GRU_LAYERS)], axis=0)               # (3, 1, 6H)
    # classifier padded to a lane-dense slab (extra columns are zero, sliced off later)
    cls_w_pad = jnp.zeros((2 * H, CLS_PAD), jnp.float32).at[:, :NUM_CLASSES].set(cls_w)
    cls_b_pad = jnp.zeros((1, CLS_PAD), jnp.float32).at[:, :NUM_CLASSES].set(cls_b)

    params = {
        "word_emb": nrm((VOCAB_SIZE, H)),
        "pos_emb": nrm((MAX_POS, H)),
        "type_emb": nrm((TYPE_VOCAB, H)),
        "emb_ln": jnp.stack([jnp.ones((H,)), jnp.zeros((H,))], axis=0).astype(jnp.float32),
        # encoder weights, packed per layer (QKV fused along the output axis)
        "enc_wqkv": nrm((L, H, 3 * H)),
        "enc_bqkv": jnp.zeros((L, 1, 3 * H), jnp.float32),
        "enc_wo": nrm((L, H, H)),
        "enc_bo": jnp.zeros((L, 1, H), jnp.float32),
        "enc_ln1": jnp.stack([jnp.ones((L, H)), jnp.zeros((L, H))], axis=1).astype(jnp.float32),
        "enc_w1": nrm((L, H, I)),
        "enc_b1": jnp.zeros((L, 1, I), jnp.float32),
        "enc_w2": nrm((L, I, H)),
        "enc_b2": jnp.zeros((L, 1, H), jnp.float32),
        "enc_ln2": jnp.stack([jnp.ones((L, H)), jnp.zeros((L, H))], axis=1).astype(jnp.float32),
        # packed GRU + classifier
        "gru_wih0_pack": wih0_pack,
        "gru_wihN_pack": wihN_pack,
        "gru_whh_pack": whh_pack,
        "gru_bih_pack": bih_pack,
        "gru_bhh_pack": bhh_pack,
        "cls_w_pad": cls_w_pad,
        "cls_b_pad": cls_b_pad,
    }
    return params


# ----------------------------- forward pass ------------------------------------
def custom_model_forward(params, input_ids, attention_mask):
    """input_ids: (B, S) int32, attention_mask: (B, S) {0,1} -> logits (B, 43)."""
    B, S = input_ids.shape
    H = HIDDEN
    assert S <= MAX_POS, "sequence length exceeds position-embedding table"

    # embeddings: tiny XLA gather glue, laid out TIME-MAJOR (row = t*B + b) so the
    # kernel's GRU per-step slices are contiguous (no in/between-kernel transpose).
    # TODO(synk): token_type_ids hard-wired to 0.
    ids_tm = input_ids.T.reshape(-1)                                      # (S*B,)
    x_tm = (jnp.take(params["word_emb"], ids_tm, axis=0)
            + jnp.repeat(params["pos_emb"][:S], B, axis=0)
            + params["type_emb"][0][None, :]).astype(jnp.float32)         # (S*B, H)

    # additive attention mask: block-diagonal across batches + key padding, (S*B, S*B)
    key_valid = attention_mask.T.reshape(-1).astype(jnp.float32)          # (S*B,)
    row_batch = jnp.tile(jnp.arange(B), S)                                # b of row t*B+b
    same_batch = row_batch[:, None] == row_batch[None, :]
    add_mask = jnp.where(same_batch & (key_valid[None, :] > 0),
                         0.0, -1e9).astype(jnp.float32)                   # (S*B, S*B)

    args = (x_tm, add_mask, params["emb_ln"],
            params["enc_wqkv"], params["enc_bqkv"], params["enc_wo"], params["enc_bo"],
            params["enc_ln1"], params["enc_w1"], params["enc_b1"], params["enc_w2"],
            params["enc_b2"], params["enc_ln2"],
            params["gru_wih0_pack"], params["gru_wihN_pack"], params["gru_whh_pack"],
            params["gru_bih_pack"], params["gru_bhh_pack"],
            params["cls_w_pad"], params["cls_b_pad"])

    kernel = functools.partial(_model_kernel, batch=B, seq=S)
    logits_pad = pl.pallas_call(
        kernel,
        out_shape=jax.ShapeDtypeStruct((B, CLS_PAD), jnp.float32),
        grid=(1,),
        in_specs=[_full_spec(a) for a in args],
        out_specs=pl.BlockSpec((B, CLS_PAD), lambda i: (0, 0)),
        scratch_shapes=[pltpu.VMEM((S * B, H), jnp.float32),   # fwd GRU layer outputs
                        pltpu.VMEM((S * B, H), jnp.float32)],  # bwd GRU layer outputs
        compiler_params=pltpu.CompilerParams(dimension_semantics=("arbitrary",)),
    )(*args)
    return logits_pad[:, :NUM_CLASSES]


# ----------------------------- main --------------------------------------------
if __name__ == "__main__":
    key = jax.random.PRNGKey(0)
    k_param, k_ids = jax.random.split(key)

    B, S = 2, 8
    params = init_params(k_param)
    input_ids = jax.random.randint(k_ids, (B, S), 0, VOCAB_SIZE, dtype=jnp.int32)
    attention_mask = jnp.ones((B, S), dtype=jnp.int32)
    attention_mask = attention_mask.at[1, -2:].set(0)  # pad the tail of sample 1

    logits = custom_model_forward(params, input_ids, attention_mask)
    jax.block_until_ready(logits)
    assert logits.shape == (B, NUM_CLASSES) and logits.dtype == jnp.float32
    print("KERNEL_OK")
</pallas_src>

<mosaic_0001>
module attributes {stable_mosaic.version = 11 : i64} {
  func.func @_model_kernel(%arg0: i32, %arg1: memref<16x32xf32, #tpu.memory_space<vmem>>, %arg2: memref<16x16xf32, #tpu.memory_space<vmem>>, %arg3: memref<2x32xf32, #tpu.memory_space<vmem>>, %arg4: memref<2x32x96xf32, #tpu.memory_space<vmem>>, %arg5: memref<2x1x96xf32, #tpu.memory_space<vmem>>, %arg6: memref<2x32x32xf32, #tpu.memory_space<vmem>>, %arg7: memref<2x1x32xf32, #tpu.memory_space<vmem>>, %arg8: memref<2x2x32xf32, #tpu.memory_space<vmem>>, %arg9: memref<2x32x64xf32, #tpu.memory_space<vmem>>, %arg10: memref<2x1x64xf32, #tpu.memory_space<vmem>>, %arg11: memref<2x64x32xf32, #tpu.memory_space<vmem>>, %arg12: memref<2x1x32xf32, #tpu.memory_space<vmem>>, %arg13: memref<2x2x32xf32, #tpu.memory_space<vmem>>, %arg14: memref<32x192xf32, #tpu.memory_space<vmem>>, %arg15: memref<2x64x192xf32, #tpu.memory_space<vmem>>, %arg16: memref<3x64x192xf32, #tpu.memory_space<vmem>>, %arg17: memref<3x1x192xf32, #tpu.memory_space<vmem>>, %arg18: memref<3x1x192xf32, #tpu.memory_space<vmem>>, %arg19: memref<64x128xf32, #tpu.memory_space<vmem>>, %arg20: memref<1x128xf32, #tpu.memory_space<vmem>>, %arg21: memref<2x128xf32, #tpu.memory_space<vmem>>, %arg22: memref<16x32xf32, #tpu.memory_space<vmem>>, %arg23: memref<16x32xf32, #tpu.memory_space<vmem>>) attributes {dimension_semantics = [#tpu.dimension_semantics<arbitrary>], iteration_bounds = array<i64: 1>, scalar_prefetch = 0 : i64, scratch_operands = 2 : i64, tpu.core_type = #tpu.core_type<tc>, window_params = [{pipeline_mode = #tpu.pipeline_mode<synchronous>, transform_indices = @transform_0, window_bounds = array<i64: 16, 32>}, {pipeline_mode = #tpu.pipeline_mode<synchronous>, transform_indices = @transform_1, window_bounds = array<i64: 16, 16>}, {pipeline_mode = #tpu.pipeline_mode<synchronous>, transform_indices = @transform_2, window_bounds = array<i64: 2, 32>}, {pipeline_mode = #tpu.pipeline_mode<synchronous>, transform_indices = @transform_3, window_bounds = array<i64: 2, 32, 96>}, {pipeline_mode = #tpu.pipeline_mode<synchronous>, transform_indices = @transform_4, window_bounds = array<i64: 2, 1, 96>}, {pipeline_mode = #tpu.pipeline_mode<synchronous>, transform_indices = @transform_5, window_bounds = array<i64: 2, 32, 32>}, {pipeline_mode = #tpu.pipeline_mode<synchronous>, transform_indices = @transform_6, window_bounds = array<i64: 2, 1, 32>}, {pipeline_mode = #tpu.pipeline_mode<synchronous>, transform_indices = @transform_7, window_bounds = array<i64: 2, 2, 32>}, {pipeline_mode = #tpu.pipeline_mode<synchronous>, transform_indices = @transform_8, window_bounds = array<i64: 2, 32, 64>}, {pipeline_mode = #tpu.pipeline_mode<synchronous>, transform_indices = @transform_9, window_bounds = array<i64: 2, 1, 64>}, {pipeline_mode = #tpu.pipeline_mode<synchronous>, transform_indices = @transform_10, window_bounds = array<i64: 2, 64, 32>}, {pipeline_mode = #tpu.pipeline_mode<synchronous>, transform_indices = @transform_11, window_bounds = array<i64: 2, 1, 32>}, {pipeline_mode = #tpu.pipeline_mode<synchronous>, transform_indices = @transform_12, window_bounds = array<i64: 2, 2, 32>}, {pipeline_mode = #tpu.pipeline_mode<synchronous>, transform_indices = @transform_13, window_bounds = array<i64: 32, 192>}, {pipeline_mode = #tpu.pipeline_mode<synchronous>, transform_indices = @transform_14, window_bounds = array<i64: 2, 64, 192>}, {pipeline_mode = #tpu.pipeline_mode<synchronous>, transform_indices = @transform_15, window_bounds = array<i64: 3, 64, 192>}, {pipeline_mode = #tpu.pipeline_mode<synchronous>, transform_indices = @transform_16, window_bounds = array<i64: 3, 1, 192>}, {pipeline_mode = #tpu.pipeline_mode<synchronous>, transform_indices = @transform_17, window_bounds = array<i64: 3, 1, 192>}, {pipeline_mode = #tpu.pipeline_mode<synchronous>, transform_indices = @transform_18, window_bounds = array<i64: 64, 128>}, {pipeline_mode = #tpu.pipeline_mode<synchronous>, transform_indices = @transform_19, window_bounds = array<i64: 1, 128>}, {pipeline_mode = #tpu.pipeline_mode<synchronous>, transform_indices = @transform_20, window_bounds = array<i64: 2, 128>}]} {
    %c0 = arith.constant 0 : index
    %c0_0 = arith.constant 0 : index
    %0 = vector.load %arg1[%c0, %c0_0] : memref<16x32xf32, #tpu.memory_space<vmem>>, vector<16x32xf32>
    %c0_1 = arith.constant 0 : index
    %c0_2 = arith.constant 0 : index
    %1 = vector.load %arg2[%c0_1, %c0_2] : memref<16x16xf32, #tpu.memory_space<vmem>>, vector<16x16xf32>
    %c0_3 = arith.constant 0 : index
    %c0_4 = arith.constant 0 : index
    %2 = vector.load %arg3[%c0_3, %c0_4] : memref<2x32xf32, #tpu.memory_space<vmem>>, vector<2x32xf32>
    %3 = vector.extract_strided_slice %2 {offsets = [0, 0], sizes = [1, 32], strides = [1, 1]} : vector<2x32xf32> to vector<1x32xf32>
    %4 = vector.extract_strided_slice %2 {offsets = [1, 0], sizes = [1, 32], strides = [1, 1]} : vector<2x32xf32> to vector<1x32xf32>
    %cst = arith.constant dense<0.000000e+00> : vector<16xf32>
    %5 = vector.multi_reduction <add>, %0, %cst [1] : vector<16x32xf32> to vector<16xf32>
    %6 = vector.shape_cast %5 : vector<16xf32> to vector<16x1xf32>
    %cst_5 = arith.constant 3.200000e+01 : f32
    %7 = vector.broadcast %cst_5 : f32 to vector<16x1xf32>
    %8 = arith.divf %6, %7 : vector<16x1xf32>
    %9 = vector.broadcast %8 : vector<16x1xf32> to vector<16x32xf32>
    %10 = arith.subf %0, %9 : vector<16x32xf32>
    %11 = arith.mulf %10, %10 : vector<16x32xf32>
    %cst_6 = arith.constant dense<0.000000e+00> : vector<16xf32>
    %12 = vector.multi_reduction <add>, %11, %cst_6 [1] : vector<16x32xf32> to vector<16xf32>
    %13 = vector.shape_cast %12 : vector<16xf32> to vector<16x1xf32>
    %cst_7 = arith.constant 3.200000e+01 : f32
    %14 = vector.broadcast %cst_7 : f32 to vector<16x1xf32>
    %15 = arith.divf %13, %14 : vector<16x1xf32>
    %16 = vector.broadcast %8 : vector<16x1xf32> to vector<16x32xf32>
    %17 = arith.subf %0, %16 : vector<16x32xf32>
    %cst_8 = arith.constant 9.99999996E-13 : f32
    %18 = vector.broadcast %cst_8 : f32 to vector<16x1xf32>
    %19 = arith.addf %15, %18 : vector<16x1xf32>
    %20 = math.rsqrt %19 : vector<16x1xf32>
    %21 = vector.broadcast %20 : vector<16x1xf32> to vector<16x32xf32>
    %22 = arith.mulf %17, %21 : vector<16x32xf32>
    %23 = vector.broadcast %3 : vector<1x32xf32> to vector<16x32xf32>
    %24 = arith.mulf %22, %23 : vector<16x32xf32>
    %25 = vector.broadcast %4 : vector<1x32xf32> to vector<16x32xf32>
    %26 = arith.addf %24, %25 : vector<16x32xf32>
    %c0_9 = arith.constant 0 : index
    %c0_10 = arith.constant 0 : index
    %c0_11 = arith.constant 0 : index
    %27 = vector.load %arg4[%c0_9, %c0_10, %c0_11] : memref<2x32x96xf32, #tpu.memory_space<vmem>>, vector<1x32x96xf32>
    %28 = vector.shape_cast %27 : vector<1x32x96xf32> to vector<32x96xf32>
    %cst_12 = arith.constant dense<0.000000e+00> : vector<16x96xf32>
    %29 = tpu.matmul %26, %28, %cst_12 {dimension_numbers = #tpu.dot_dimension_numbers<[1], [0], [0], [1], [0, 0, 1, 1], [], []>} : vector<16x32xf32>, vector<32x96xf32>, vector<16x96xf32> -> vector<16x96xf32>
    %c0_13 = arith.constant 0 : index
    %c0_14 = arith.constant 0 : index
    %c0_15 = arith.constant 0 : index
    %30 = vector.load %arg5[%c0_13, %c0_14, %c0_15] : memref<2x1x96xf32, #tpu.memory_space<vmem>>, vector<1x1x96xf32>
    %31 = vector.shape_cast %30 : vector<1x1x96xf32> to vector<1x96xf32>
    %32 = vector.broadcast %31 : vector<1x96xf32> to vector<16x96xf32>
    %33 = arith.addf %29, %32 : vector<16x96xf32>
    %c0_16 = arith.constant 0 : index
    %c0_17 = arith.constant 0 : index
    %c0_18 = arith.constant 0 : index
    %34 = vector.load %arg6[%c0_16, %c0_17, %c0_18] : memref<2x32x32xf32, #tpu.memory_space<vmem>>, vector<1x32x32xf32>
    %35 = vector.shape_cast %34 : vector<1x32x32xf32> to vector<32x32xf32>
    %36 = vector.extract_strided_slice %33 {offsets = [0, 0], sizes = [16, 16], strides = [1, 1]} : vector<16x96xf32> to vector<16x16xf32>
    %37 = vector.extract_strided_slice %33 {offsets = [0, 32], sizes = [16, 16], strides = [1, 1]} : vector<16x96xf32> to vector<16x16xf32>
    %38 = vector.extract_strided_slice %33 {offsets = [0, 64], sizes = [16, 16], strides = [1, 1]} : vector<16x96xf32> to vector<16x16xf32>
    %39 = tpu.transpose %37, [1, 0] : vector<16x16xf32> -> vector<16x16xf32>
    %cst_19 = arith.constant dense<0.000000e+00> : vector<16x16xf32>
    %40 = tpu.matmul %36, %39, %cst_19 {dimension_numbers = #tpu.dot_dimension_numbers<[1], [0], [0], [1], [0, 0, 1, 1], [], []>} : vector<16x16xf32>, vector<16x16xf32>, vector<16x16xf32> -> vector<16x16xf32>
    %cst_20 = arith.constant 2.500000e-01 : f32
    %41 = vector.broadcast %cst_20 : f32 to vector<16x16xf32>
    %42 = arith.mulf %40, %41 : vector<16x16xf32>
    %43 = arith.addf %42, %1 : vector<16x16xf32>
    %cst_21 = arith.constant dense<0xFF800000> : vector<16xf32>
    %44 = vector.multi_reduction <maximumf>, %43, %cst_21 [1] : vector<16x16xf32> to vector<16xf32>
    %45 = vector.shape_cast %44 : vector<16xf32> to vector<16x1xf32>
    %46 = vector.broadcast %45 : vector<16x1xf32> to vector<16x16xf32>
    %47 = arith.subf %43, %46 : vector<16x16xf32>
    %48 = math.exp %47 : vector<16x16xf32>
    %cst_22 = arith.constant dense<0.000000e+00> : vector<16xf32>
    %49 = vector.multi_reduction <add>, %48, %cst_22 [1] : vector<16x16xf32> to vector<16xf32>
    %50 = vector.shape_cast %49 : vector<16xf32> to vector<16x1xf32>
    %51 = tpu.reciprocal %50 {approx = true} : vector<16x1xf32> -> vector<16x1xf32>
    %52 = vector.broadcast %51 : vector<16x1xf32> to vector<16x16xf32>
    %53 = arith.mulf %48, %52 : vector<16x16xf32>
    %cst_23 = arith.constant dense<0.000000e+00> : vector<16x16xf32>
    %54 = tpu.matmul %53, %38, %cst_23 {dimension_numbers = #tpu.dot_dimension_numbers<[1], [0], [0], [1], [0, 0, 1, 1], [], []>} : vector<16x16xf32>, vector<16x16xf32>, vector<16x16xf32> -> vector<16x16xf32>
    %55 = vector.extract_strided_slice %35 {offsets = [0, 0], sizes = [16, 32], strides = [1, 1]} : vector<32x32xf32> to vector<16x32xf32>
    %cst_24 = arith.constant dense<0.000000e+00> : vector<16x32xf32>
    %56 = tpu.matmul %54, %55, %cst_24 {dimension_numbers = #tpu.dot_dimension_numbers<[1], [0], [0], [1], [0, 0, 1, 1], [], []>} : vector<16x16xf32>, vector<16x32xf32>, vector<16x32xf32> -> vector<16x32xf32>
    %57 = vector.extract_strided_slice %33 {offsets = [0, 16], sizes = [16, 16], strides = [1, 1]} : vector<16x96xf32> to vector<16x16xf32>
    %58 = vector.extract_strided_slice %33 {offsets = [0, 48], sizes = [16, 16], strides = [1, 1]} : vector<16x96xf32> to vector<16x16xf32>
    %59 = vector.extract_strided_slice %33 {offsets = [0, 80], sizes = [16, 16], strides = [1, 1]} : vector<16x96xf32> to vector<16x16xf32>
    %60 = tpu.transpose %58, [1, 0] : vector<16x16xf32> -> vector<16x16xf32>
    %cst_25 = arith.constant dense<0.000000e+00> : vector<16x16xf32>
    %61 = tpu.matmul %57, %60, %cst_25 {dimension_numbers = #tpu.dot_dimension_numbers<[1], [0], [0], [1], [0, 0, 1, 1], [], []>} : vector<16x16xf32>, vector<16x16xf32>, vector<16x16xf32> -> vector<16x16xf32>
    %cst_26 = arith.constant 2.500000e-01 : f32
    %62 = vector.broadcast %cst_26 : f32 to vector<16x16xf32>
    %63 = arith.mulf %61, %62 : vector<16x16xf32>
    %64 = arith.addf %63, %1 : vector<16x16xf32>
    %cst_27 = arith.constant dense<0xFF800000> : vector<16xf32>
    %65 = vector.multi_reduction <maximumf>, %64, %cst_27 [1] : vector<16x16xf32> to vector<16xf32>
    %66 = vector.shape_cast %65 : vector<16xf32> to vector<16x1xf32>
    %67 = vector.broadcast %66 : vector<16x1xf32> to vector<16x16xf32>
    %68 = arith.subf %64, %67 : vector<16x16xf32>
    %69 = math.exp %68 : vector<16x16xf32>
    %cst_28 = arith.constant dense<0.000000e+00> : vector<16xf32>
    %70 = vector.multi_reduction <add>, %69, %cst_28 [1] : vector<16x16xf32> to vector<16xf32>
    %71 = vector.shape_cast %70 : vector<16xf32> to vector<16x1xf32>
    %72 = tpu.reciprocal %71 {approx = true} : vector<16x1xf32> -> vector<16x1xf32>
    %73 = vector.broadcast %72 : vector<16x1xf32> to vector<16x16xf32>
    %74 = arith.mulf %69, %73 : vector<16x16xf32>
    %cst_29 = arith.constant dense<0.000000e+00> : vector<16x16xf32>
    %75 = tpu.matmul %74, %59, %cst_29 {dimension_numbers = #tpu.dot_dimension_numbers<[1], [0], [0], [1], [0, 0, 1, 1], [], []>} : vector<16x16xf32>, vector<16x16xf32>, vector<16x16xf32> -> vector<16x16xf32>
    %76 = vector.extract_strided_slice %35 {offsets = [16, 0], sizes = [16, 32], strides = [1, 1]} : vector<32x32xf32> to vector<16x32xf32>
    %cst_30 = arith.constant dense<0.000000e+00> : vector<16x32xf32>
    %77 = tpu.matmul %75, %76, %cst_30 {dimension_numbers = #tpu.dot_dimension_numbers<[1], [0], [0], [1], [0, 0, 1, 1], [], []>} : vector<16x16xf32>, vector<16x32xf32>, vector<16x32xf32> -> vector<16x32xf32>
    %78 = arith.addf %56, %77 : vector<16x32xf32>
    %c0_31 = arith.constant 0 : index
    %c0_32 = arith.constant 0 : index
    %c0_33 = arith.constant 0 : index
    %79 = vector.load %arg7[%c0_31, %c0_32, %c0_33] : memref<2x1x32xf32, #tpu.memory_space<vmem>>, vector<1x1x32xf32>
    %80 = vector.shape_cast %79 : vector<1x1x32xf32> to vector<1x32xf32>
    %81 = vector.broadcast %80 : vector<1x32xf32> to vector<16x32xf32>
    %82 = arith.addf %78, %81 : vector<16x32xf32>
    %c0_34 = arith.constant 0 : index
    %c0_35 = arith.constant 0 : index
    %c0_36 = arith.constant 0 : index
    %83 = vector.load %arg8[%c0_34, %c0_35, %c0_36] : memref<2x2x32xf32, #tpu.memory_space<vmem>>, vector<1x2x32xf32>
    %84 = vector.shape_cast %83 : vector<1x2x32xf32> to vector<2x32xf32>
    %85 = arith.addf %26, %82 : vector<16x32xf32>
    %86 = vector.extract_strided_slice %84 {offsets = [0, 0], sizes = [1, 32], strides = [1, 1]} : vector<2x32xf32> to vector<1x32xf32>
    %87 = vector.extract_strided_slice %84 {offsets = [1, 0], sizes = [1, 32], strides = [1, 1]} : vector<2x32xf32> to vector<1x32xf32>
    %cst_37 = arith.constant dense<0.000000e+00> : vector<16xf32>
    %88 = vector.multi_reduction <add>, %85, %cst_37 [1] : vector<16x32xf32> to vector<16xf32>
    %89 = vector.shape_cast %88 : vector<16xf32> to vector<16x1xf32>
    %cst_38 = arith.constant 3.200000e+01 : f32
    %90 = vector.broadcast %cst_38 : f32 to vector<16x1xf32>
    %91 = arith.divf %89, %90 : vector<16x1xf32>
    %92 = vector.broadcast %91 : vector<16x1xf32> to vector<16x32xf32>
    %93 = arith.subf %85, %92 : vector<16x32xf32>
    %94 = arith.mulf %93, %93 : vector<16x32xf32>
    %cst_39 = arith.constant dense<0.000000e+00> : vector<16xf32>
    %95 = vector.multi_reduction <add>, %94, %cst_39 [1] : vector<16x32xf32> to vector<16xf32>
    %96 = vector.shape_cast %95 : vector<16xf32> to vector<16x1xf32>
    %cst_40 = arith.constant 3.200000e+01 : f32
    %97 = vector.broadcast %cst_40 : f32 to vector<16x1xf32>
    %98 = arith.divf %96, %97 : vector<16x1xf32>
    %99 = vector.broadcast %91 : vector<16x1xf32> to vector<16x32xf32>
    %100 = arith.subf %85, %99 : vector<16x32xf32>
    %cst_41 = arith.constant 9.99999996E-13 : f32
    %101 = vector.broadcast %cst_41 : f32 to vector<16x1xf32>
    %102 = arith.addf %98, %101 : vector<16x1xf32>
    %103 = math.rsqrt %102 : vector<16x1xf32>
    %104 = vector.broadcast %103 : vector<16x1xf32> to vector<16x32xf32>
    %105 = arith.mulf %100, %104 : vector<16x32xf32>
    %106 = vector.broadcast %86 : vector<1x32xf32> to vector<16x32xf32>
    %107 = arith.mulf %105, %106 : vector<16x32xf32>
    %108 = vector.broadcast %87 : vector<1x32xf32> to vector<16x32xf32>
    %109 = arith.addf %107, %108 : vector<16x32xf32>
    %c0_42 = arith.constant 0 : index
    %c0_43 = arith.constant 0 : index
    %c0_44 = arith.constant 0 : index
    %110 = vector.load %arg9[%c0_42, %c0_43, %c0_44] : memref<2x32x64xf32, #tpu.memory_space<vmem>>, vector<1x32x64xf32>
    %111 = vector.shape_cast %110 : vector<1x32x64xf32> to vector<32x64xf32>
    %cst_45 = arith.constant dense<0.000000e+00> : vector<16x64xf32>
    %112 = tpu.matmul %109, %111, %cst_45 {dimension_numbers = #tpu.dot_dimension_numbers<[1], [0], [0], [1], [0, 0, 1, 1], [], []>} : vector<16x32xf32>, vector<32x64xf32>, vector<16x64xf32> -> vector<16x64xf32>
    %c0_46 = arith.constant 0 : index
    %c0_47 = arith.constant 0 : index
    %c0_48 = arith.constant 0 : index
    %113 = vector.load %arg10[%c0_46, %c0_47, %c0_48] : memref<2x1x64xf32, #tpu.memory_space<vmem>>, vector<1x1x64xf32>
    %114 = vector.shape_cast %113 : vector<1x1x64xf32> to vector<1x64xf32>
    %115 = vector.broadcast %114 : vector<1x64xf32> to vector<16x64xf32>
    %116 = arith.addf %112, %115 : vector<16x64xf32>
    %117 = arith.mulf %116, %116 : vector<16x64xf32>
    %118 = arith.mulf %116, %117 : vector<16x64xf32>
    %cst_49 = arith.constant 4.471500e-02 : f32
    %119 = vector.broadcast %cst_49 : f32 to vector<16x64xf32>
    %120 = arith.mulf %119, %118 : vector<16x64xf32>
    %121 = arith.addf %116, %120 : vector<16x64xf32>
    %cst_50 = arith.constant 0.797884583 : f32
    %122 = vector.broadcast %cst_50 : f32 to vector<16x64xf32>
    %123 = arith.mulf %122, %121 : vector<16x64xf32>
    %124 = math.tanh %123 : vector<16x64xf32>
    %cst_51 = arith.constant 1.000000e+00 : f32
    %125 = vector.broadcast %cst_51 : f32 to vector<16x64xf32>
    %126 = arith.addf %125, %124 : vector<16x64xf32>
    %cst_52 = arith.constant 5.000000e-01 : f32
    %127 = vector.broadcast %cst_52 : f32 to vector<16x64xf32>
    %128 = arith.mulf %127, %126 : vector<16x64xf32>
    %129 = arith.mulf %116, %128 : vector<16x64xf32>
    %c0_53 = arith.constant 0 : index
    %c0_54 = arith.constant 0 : index
    %c0_55 = arith.constant 0 : index
    %130 = vector.load %arg11[%c0_53, %c0_54, %c0_55] : memref<2x64x32xf32, #tpu.memory_space<vmem>>, vector<1x64x32xf32>
    %131 = vector.shape_cast %130 : vector<1x64x32xf32> to vector<64x32xf32>
    %cst_56 = arith.constant dense<0.000000e+00> : vector<16x32xf32>
    %132 = tpu.matmul %129, %131, %cst_56 {dimension_numbers = #tpu.dot_dimension_numbers<[1], [0], [0], [1], [0, 0, 1, 1], [], []>} : vector<16x64xf32>, vector<64x32xf32>, vector<16x32xf32> -> vector<16x32xf32>
    %c0_57 = arith.constant 0 : index
    %c0_58 = arith.constant 0 : index
    %c0_59 = arith.constant 0 : index
    %133 = vector.load %arg12[%c0_57, %c0_58, %c0_59] : memref<2x1x32xf32, #tpu.memory_space<vmem>>, vector<1x1x32xf32>
    %134 = vector.shape_cast %133 : vector<1x1x32xf32> to vector<1x32xf32>
    %135 = vector.broadcast %134 : vector<1x32xf32> to vector<16x32xf32>
    %136 = arith.addf %132, %135 : vector<16x32xf32>
    %c0_60 = arith.constant 0 : index
    %c0_61 = arith.constant 0 : index
    %c0_62 = arith.constant 0 : index
    %137 = vector.load %arg13[%c0_60, %c0_61, %c0_62] : memref<2x2x32xf32, #tpu.memory_space<vmem>>, vector<1x2x32xf32>
    %138 = vector.shape_cast %137 : vector<1x2x32xf32> to vector<2x32xf32>
    %139 = arith.addf %109, %136 : vector<16x32xf32>
    %140 = vector.extract_strided_slice %138 {offsets = [0, 0], sizes = [1, 32], strides = [1, 1]} : vector<2x32xf32> to vector<1x32xf32>
    %141 = vector.extract_strided_slice %138 {offsets = [1, 0], sizes = [1, 32], strides = [1, 1]} : vector<2x32xf32> to vector<1x32xf32>
    %cst_63 = arith.constant dense<0.000000e+00> : vector<16xf32>
    %142 = vector.multi_reduction <add>, %139, %cst_63 [1] : vector<16x32xf32> to vector<16xf32>
    %143 = vector.shape_cast %142 : vector<16xf32> to vector<16x1xf32>
    %cst_64 = arith.constant 3.200000e+01 : f32
    %144 = vector.broadcast %cst_64 : f32 to vector<16x1xf32>
    %145 = arith.divf %143, %144 : vector<16x1xf32>
    %146 = vector.broadcast %145 : vector<16x1xf32> to vector<16x32xf32>
    %147 = arith.subf %139, %146 : vector<16x32xf32>
    %148 = arith.mulf %147, %147 : vector<16x32xf32>
    %cst_65 = arith.constant dense<0.000000e+00> : vector<16xf32>
    %149 = vector.multi_reduction <add>, %148, %cst_65 [1] : vector<16x32xf32> to vector<16xf32>
    %150 = vector.shape_cast %149 : vector<16xf32> to vector<16x1xf32>
    %cst_66 = arith.constant 3.200000e+01 : f32
    %151 = vector.broadcast %cst_66 : f32 to vector<16x1xf32>
    %152 = arith.divf %150, %151 : vector<16x1xf32>
    %153 = vector.broadcast %145 : vector<16x1xf32> to vector<16x32xf32>
    %154 = arith.subf %139, %153 : vector<16x32xf32>
    %cst_67 = arith.constant 9.99999996E-13 : f32
    %155 = vector.broadcast %cst_67 : f32 to vector<16x1xf32>
    %156 = arith.addf %152, %155 : vector<16x1xf32>
    %157 = math.rsqrt %156 : vector<16x1xf32>
    %158 = vector.broadcast %157 : vector<16x1xf32> to vector<16x32xf32>
    %159 = arith.mulf %154, %158 : vector<16x32xf32>
    %160 = vector.broadcast %140 : vector<1x32xf32> to vector<16x32xf32>
    %161 = arith.mulf %159, %160 : vector<16x32xf32>
    %162 = vector.broadcast %141 : vector<1x32xf32> to vector<16x32xf32>
    %163 = arith.addf %161, %162 : vector<16x32xf32>
    %c1 = arith.constant 1 : index
    %c0_68 = arith.constant 0 : index
    %c0_69 = arith.constant 0 : index
    %164 = vector.load %arg4[%c1, %c0_68, %c0_69] : memref<2x32x96xf32, #tpu.memory_space<vmem>>, vector<1x32x96xf32>
    %165 = vector.shape_cast %164 : vector<1x32x96xf32> to vector<32x96xf32>
    %cst_70 = arith.constant dense<0.000000e+00> : vector<16x96xf32>
    %166 = tpu.matmul %163, %165, %cst_70 {dimension_numbers = #tpu.dot_dimension_numbers<[1], [0], [0], [1], [0, 0, 1, 1], [], []>} : vector<16x32xf32>, vector<32x96xf32>, vector<16x96xf32> -> vector<16x96xf32>
    %c1_71 = arith.constant 1 : index
    %c0_72 = arith.constant 0 : index
    %c0_73 = arith.constant 0 : index
    %167 = vector.load %arg5[%c1_71, %c0_72, %c0_73] : memref<2x1x96xf32, #tpu.memory_space<vmem>>, vector<1x1x96xf32>
    %168 = vector.shape_cast %167 : vector<1x1x96xf32> to vector<1x96xf32>
    %169 = vector.broadcast %168 : vector<1x96xf32> to vector<16x96xf32>
    %170 = arith.addf %166, %169 : vector<16x96xf32>
    %c1_74 = arith.constant 1 : index
    %c0_75 = arith.constant 0 : index
    %c0_76 = arith.constant 0 : index
    %171 = vector.load %arg6[%c1_74, %c0_75, %c0_76] : memref<2x32x32xf32, #tpu.memory_space<vmem>>, vector<1x32x32xf32>
    %172 = vector.shape_cast %171 : vector<1x32x32xf32> to vector<32x32xf32>
    %173 = vector.extract_strided_slice %170 {offsets = [0, 0], sizes = [16, 16], strides = [1, 1]} : vector<16x96xf32> to vector<16x16xf32>
    %174 = vector.extract_strided_slice %170 {offsets = [0, 32], sizes = [16, 16], strides = [1, 1]} : vector<16x96xf32> to vector<16x16xf32>
    %175 = vector.extract_strided_slice %170 {offsets = [0, 64], sizes = [16, 16], strides = [1, 1]} : vector<16x96xf32> to vector<16x16xf32>
    %176 = tpu.transpose %174, [1, 0] : vector<16x16xf32> -> vector<16x16xf32>
    %cst_77 = arith.constant dense<0.000000e+00> : vector<16x16xf32>
    %177 = tpu.matmul %173, %176, %cst_77 {dimension_numbers = #tpu.dot_dimension_numbers<[1], [0], [0], [1], [0, 0, 1, 1], [], []>} : vector<16x16xf32>, vector<16x16xf32>, vector<16x16xf32> -> vector<16x16xf32>
    %cst_78 = arith.constant 2.500000e-01 : f32
    %178 = vector.broadcast %cst_78 : f32 to vector<16x16xf32>
    %179 = arith.mulf %177, %178 : vector<16x16xf32>
    %180 = arith.addf %179, %1 : vector<16x16xf32>
    %cst_79 = arith.constant dense<0xFF800000> : vector<16xf32>
    %181 = vector.multi_reduction <maximumf>, %180, %cst_79 [1] : vector<16x16xf32> to vector<16xf32>
    %182 = vector.shape_cast %181 : vector<16xf32> to vector<16x1xf32>
    %183 = vector.broadcast %182 : vector<16x1xf32> to vector<16x16xf32>
    %184 = arith.subf %180, %183 : vector<16x16xf32>
    %185 = math.exp %184 : vector<16x16xf32>
    %cst_80 = arith.constant dense<0.000000e+00> : vector<16xf32>
    %186 = vector.multi_reduction <add>, %185, %cst_80 [1] : vector<16x16xf32> to vector<16xf32>
    %187 = vector.shape_cast %186 : vector<16xf32> to vector<16x1xf32>
    %188 = tpu.reciprocal %187 {approx = true} : vector<16x1xf32> -> vector<16x1xf32>
    %189 = vector.broadcast %188 : vector<16x1xf32> to vector<16x16xf32>
    %190 = arith.mulf %185, %189 : vector<16x16xf32>
    %cst_81 = arith.constant dense<0.000000e+00> : vector<16x16xf32>
    %191 = tpu.matmul %190, %175, %cst_81 {dimension_numbers = #tpu.dot_dimension_numbers<[1], [0], [0], [1], [0, 0, 1, 1], [], []>} : vector<16x16xf32>, vector<16x16xf32>, vector<16x16xf32> -> vector<16x16xf32>
    %192 = vector.extract_strided_slice %172 {offsets = [0, 0], sizes = [16, 32], strides = [1, 1]} : vector<32x32xf32> to vector<16x32xf32>
    %cst_82 = arith.constant dense<0.000000e+00> : vector<16x32xf32>
    %193 = tpu.matmul %191, %192, %cst_82 {dimension_numbers = #tpu.dot_dimension_numbers<[1], [0], [0], [1], [0, 0, 1, 1], [], []>} : vector<16x16xf32>, vector<16x32xf32>, vector<16x32xf32> -> vector<16x32xf32>
    %194 = vector.extract_strided_slice %170 {offsets = [0, 16], sizes = [16, 16], strides = [1, 1]} : vector<16x96xf32> to vector<16x16xf32>
    %195 = vector.extract_strided_slice %170 {offsets = [0, 48], sizes = [16, 16], strides = [1, 1]} : vector<16x96xf32> to vector<16x16xf32>
    %196 = vector.extract_strided_slice %170 {offsets = [0, 80], sizes = [16, 16], strides = [1, 1]} : vector<16x96xf32> to vector<16x16xf32>
    %197 = tpu.transpose %195, [1, 0] : vector<16x16xf32> -> vector<16x16xf32>
    %cst_83 = arith.constant dense<0.000000e+00> : vector<16x16xf32>
    %198 = tpu.matmul %194, %197, %cst_83 {dimension_numbers = #tpu.dot_dimension_numbers<[1], [0], [0], [1], [0, 0, 1, 1], [], []>} : vector<16x16xf32>, vector<16x16xf32>, vector<16x16xf32> -> vector<16x16xf32>
    %cst_84 = arith.constant 2.500000e-01 : f32
    %199 = vector.broadcast %cst_84 : f32 to vector<16x16xf32>
    %200 = arith.mulf %198, %199 : vector<16x16xf32>
    %201 = arith.addf %200, %1 : vector<16x16xf32>
    %cst_85 = arith.constant dense<0xFF800000> : vector<16xf32>
    %202 = vector.multi_reduction <maximumf>, %201, %cst_85 [1] : vector<16x16xf32> to vector<16xf32>
    %203 = vector.shape_cast %202 : vector<16xf32> to vector<16x1xf32>
    %204 = vector.broadcast %203 : vector<16x1xf32> to vector<16x16xf32>
    %205 = arith.subf %201, %204 : vector<16x16xf32>
    %206 = math.exp %205 : vector<16x16xf32>
    %cst_86 = arith.constant dense<0.000000e+00> : vector<16xf32>
    %207 = vector.multi_reduction <add>, %206, %cst_86 [1] : vector<16x16xf32> to vector<16xf32>
    %208 = vector.shape_cast %207 : vector<16xf32> to vector<16x1xf32>
    %209 = tpu.reciprocal %208 {approx = true} : vector<16x1xf32> -> vector<16x1xf32>
    %210 = vector.broadcast %209 : vector<16x1xf32> to vector<16x16xf32>
    %211 = arith.mulf %206, %210 : vector<16x16xf32>
    %cst_87 = arith.constant dense<0.000000e+00> : vector<16x16xf32>
    %212 = tpu.matmul %211, %196, %cst_87 {dimension_numbers = #tpu.dot_dimension_numbers<[1], [0], [0], [1], [0, 0, 1, 1], [], []>} : vector<16x16xf32>, vector<16x16xf32>, vector<16x16xf32> -> vector<16x16xf32>
    %213 = vector.extract_strided_slice %172 {offsets = [16, 0], sizes = [16, 32], strides = [1, 1]} : vector<32x32xf32> to vector<16x32xf32>
    %cst_88 = arith.constant dense<0.000000e+00> : vector<16x32xf32>
    %214 = tpu.matmul %212, %213, %cst_88 {dimension_numbers = #tpu.dot_dimension_numbers<[1], [0], [0], [1], [0, 0, 1, 1], [], []>} : vector<16x16xf32>, vector<16x32xf32>, vector<16x32xf32> -> vector<16x32xf32>
    %215 = arith.addf %193, %214 : vector<16x32xf32>
    %c1_89 = arith.constant 1 : index
    %c0_90 = arith.constant 0 : index
    %c0_91 = arith.constant 0 : index
    %216 = vector.load %arg7[%c1_89, %c0_90, %c0_91] : memref<2x1x32xf32, #tpu.memory_space<vmem>>, vector<1x1x32xf32>
    %217 = vector.shape_cast %216 : vector<1x1x32xf32> to vector<1x32xf32>
    %218 = vector.broadcast %217 : vector<1x32xf32> to vector<16x32xf32>
    %219 = arith.addf %215, %218 : vector<16x32xf32>
    %c1_92 = arith.constant 1 : index
    %c0_93 = arith.constant 0 : index
    %c0_94 = arith.constant 0 : index
    %220 = vector.load %arg8[%c1_92, %c0_93, %c0_94] : memref<2x2x32xf32, #tpu.memory_space<vmem>>, vector<1x2x32xf32>
    %221 = vector.shape_cast %220 : vector<1x2x32xf32> to vector<2x32xf32>
    %222 = arith.addf %163, %219 : vector<16x32xf32>
    %223 = vector.extract_strided_slice %221 {offsets = [0, 0], sizes = [1, 32], strides = [1, 1]} : vector<2x32xf32> to vector<1x32xf32>
    %224 = vector.extract_strided_slice %221 {offsets = [1, 0], sizes = [1, 32], strides = [1, 1]} : vector<2x32xf32> to vector<1x32xf32>
    %cst_95 = arith.constant dense<0.000000e+00> : vector<16xf32>
    %225 = vector.multi_reduction <add>, %222, %cst_95 [1] : vector<16x32xf32> to vector<16xf32>
    %226 = vector.shape_cast %225 : vector<16xf32> to vector<16x1xf32>
    %cst_96 = arith.constant 3.200000e+01 : f32
    %227 = vector.broadcast %cst_96 : f32 to vector<16x1xf32>
    %228 = arith.divf %226, %227 : vector<16x1xf32>
    %229 = vector.broadcast %228 : vector<16x1xf32> to vector<16x32xf32>
    %230 = arith.subf %222, %229 : vector<16x32xf32>
    %231 = arith.mulf %230, %230 : vector<16x32xf32>
    %cst_97 = arith.constant dense<0.000000e+00> : vector<16xf32>
    %232 = vector.multi_reduction <add>, %231, %cst_97 [1] : vector<16x32xf32> to vector<16xf32>
    %233 = vector.shape_cast %232 : vector<16xf32> to vector<16x1xf32>
    %cst_98 = arith.constant 3.200000e+01 : f32
    %234 = vector.broadcast %cst_98 : f32 to vector<16x1xf32>
    %235 = arith.divf %233, %234 : vector<16x1xf32>
    %236 = vector.broadcast %228 : vector<16x1xf32> to vector<16x32xf32>
    %237 = arith.subf %222, %236 : vector<16x32xf32>
    %cst_99 = arith.constant 9.99999996E-13 : f32
    %238 = vector.broadcast %cst_99 : f32 to vector<16x1xf32>
    %239 = arith.addf %235, %238 : vector<16x1xf32>
    %240 = math.rsqrt %239 : vector<16x1xf32>
    %241 = vector.broadcast %240 : vector<16x1xf32> to vector<16x32xf32>
    %242 = arith.mulf %237, %241 : vector<16x32xf32>
    %243 = vector.broadcast %223 : vector<1x32xf32> to vector<16x32xf32>
    %244 = arith.mulf %242, %243 : vector<16x32xf32>
    %245 = vector.broadcast %224 : vector<1x32xf32> to vector<16x32xf32>
    %246 = arith.addf %244, %245 : vector<16x32xf32>
    %c1_100 = arith.constant 1 : index
    %c0_101 = arith.constant 0 : index
    %c0_102 = arith.constant 0 : index
    %247 = vector.load %arg9[%c1_100, %c0_101, %c0_102] : memref<2x32x64xf32, #tpu.memory_space<vmem>>, vector<1x32x64xf32>
    %248 = vector.shape_cast %247 : vector<1x32x64xf32> to vector<32x64xf32>
    %cst_103 = arith.constant dense<0.000000e+00> : vector<16x64xf32>
    %249 = tpu.matmul %246, %248, %cst_103 {dimension_numbers = #tpu.dot_dimension_numbers<[1], [0], [0], [1], [0, 0, 1, 1], [], []>} : vector<16x32xf32>, vector<32x64xf32>, vector<16x64xf32> -> vector<16x64xf32>
    %c1_104 = arith.constant 1 : index
    %c0_105 = arith.constant 0 : index
    %c0_106 = arith.constant 0 : index
    %250 = vector.load %arg10[%c1_104, %c0_105, %c0_106] : memref<2x1x64xf32, #tpu.memory_space<vmem>>, vector<1x1x64xf32>
    %251 = vector.shape_cast %250 : vector<1x1x64xf32> to vector<1x64xf32>
    %252 = vector.broadcast %251 : vector<1x64xf32> to vector<16x64xf32>
    %253 = arith.addf %249, %252 : vector<16x64xf32>
    %254 = arith.mulf %253, %253 : vector<16x64xf32>
    %255 = arith.mulf %253, %254 : vector<16x64xf32>
    %cst_107 = arith.constant 4.471500e-02 : f32
    %256 = vector.broadcast %cst_107 : f32 to vector<16x64xf32>
    %257 = arith.mulf %256, %255 : vector<16x64xf32>
    %258 = arith.addf %253, %257 : vector<16x64xf32>
    %cst_108 = arith.constant 0.797884583 : f32
    %259 = vector.broadcast %cst_108 : f32 to vector<16x64xf32>
    %260 = arith.mulf %259, %258 : vector<16x64xf32>
    %261 = math.tanh %260 : vector<16x64xf32>
    %cst_109 = arith.constant 1.000000e+00 : f32
    %262 = vector.broadcast %cst_109 : f32 to vector<16x64xf32>
    %263 = arith.addf %262, %261 : vector<16x64xf32>
    %cst_110 = arith.constant 5.000000e-01 : f32
    %264 = vector.broadcast %cst_110 : f32 to vector<16x64xf32>
    %265 = arith.mulf %264, %263 : vector<16x64xf32>
    %266 = arith.mulf %253, %265 : vector<16x64xf32>
    %c1_111 = arith.constant 1 : index
    %c0_112 = arith.constant 0 : index
    %c0_113 = arith.constant 0 : index
    %267 = vector.load %arg11[%c1_111, %c0_112, %c0_113] : memref<2x64x32xf32, #tpu.memory_space<vmem>>, vector<1x64x32xf32>
    %268 = vector.shape_cast %267 : vector<1x64x32xf32> to vector<64x32xf32>
    %cst_114 = arith.constant dense<0.000000e+00> : vector<16x32xf32>
    %269 = tpu.matmul %266, %268, %cst_114 {dimension_numbers = #tpu.dot_dimension_numbers<[1], [0], [0], [1], [0, 0, 1, 1], [], []>} : vector<16x64xf32>, vector<64x32xf32>, vector<16x32xf32> -> vector<16x32xf32>
    %c1_115 = arith.constant 1 : index
    %c0_116 = arith.constant 0 : index
    %c0_117 = arith.constant 0 : index
    %270 = vector.load %arg12[%c1_115, %c0_116, %c0_117] : memref<2x1x32xf32, #tpu.memory_space<vmem>>, vector<1x1x32xf32>
    %271 = vector.shape_cast %270 : vector<1x1x32xf32> to vector<1x32xf32>
    %272 = vector.broadcast %271 : vector<1x32xf32> to vector<16x32xf32>
    %273 = arith.addf %269, %272 : vector<16x32xf32>
    %c1_118 = arith.constant 1 : index
    %c0_119 = arith.constant 0 : index
    %c0_120 = arith.constant 0 : index
    %274 = vector.load %arg13[%c1_118, %c0_119, %c0_120] : memref<2x2x32xf32, #tpu.memory_space<vmem>>, vector<1x2x32xf32>
    %275 = vector.shape_cast %274 : vector<1x2x32xf32> to vector<2x32xf32>
    %276 = arith.addf %246, %273 : vector<16x32xf32>
    %277 = vector.extract_strided_slice %275 {offsets = [0, 0], sizes = [1, 32], strides = [1, 1]} : vector<2x32xf32> to vector<1x32xf32>
    %278 = vector.extract_strided_slice %275 {offsets = [1, 0], sizes = [1, 32], strides = [1, 1]} : vector<2x32xf32> to vector<1x32xf32>
    %cst_121 = arith.constant dense<0.000000e+00> : vector<16xf32>
    %279 = vector.multi_reduction <add>, %276, %cst_121 [1] : vector<16x32xf32> to vector<16xf32>
    %280 = vector.shape_cast %279 : vector<16xf32> to vector<16x1xf32>
    %cst_122 = arith.constant 3.200000e+01 : f32
    %281 = vector.broadcast %cst_122 : f32 to vector<16x1xf32>
    %282 = arith.divf %280, %281 : vector<16x1xf32>
    %283 = vector.broadcast %282 : vector<16x1xf32> to vector<16x32xf32>
    %284 = arith.subf %276, %283 : vector<16x32xf32>
    %285 = arith.mulf %284, %284 : vector<16x32xf32>
    %cst_123 = arith.constant dense<0.000000e+00> : vector<16xf32>
    %286 = vector.multi_reduction <add>, %285, %cst_123 [1] : vector<16x32xf32> to vector<16xf32>
    %287 = vector.shape_cast %286 : vector<16xf32> to vector<16x1xf32>
    %cst_124 = arith.constant 3.200000e+01 : f32
    %288 = vector.broadcast %cst_124 : f32 to vector<16x1xf32>
    %289 = arith.divf %287, %288 : vector<16x1xf32>
    %290 = vector.broadcast %282 : vector<16x1xf32> to vector<16x32xf32>
    %291 = arith.subf %276, %290 : vector<16x32xf32>
    %cst_125 = arith.constant 9.99999996E-13 : f32
    %292 = vector.broadcast %cst_125 : f32 to vector<16x1xf32>
    %293 = arith.addf %289, %292 : vector<16x1xf32>
    %294 = math.rsqrt %293 : vector<16x1xf32>
    %295 = vector.broadcast %294 : vector<16x1xf32> to vector<16x32xf32>
    %296 = arith.mulf %291, %295 : vector<16x32xf32>
    %297 = vector.broadcast %277 : vector<1x32xf32> to vector<16x32xf32>
    %298 = arith.mulf %296, %297 : vector<16x32xf32>
    %299 = vector.broadcast %278 : vector<1x32xf32> to vector<16x32xf32>
    %300 = arith.addf %298, %299 : vector<16x32xf32>
    %c0_126 = arith.constant 0 : index
    %c0_127 = arith.constant 0 : index
    %c0_128 = arith.constant 0 : index
    %301 = vector.load %arg17[%c0_126, %c0_127, %c0_128] : memref<3x1x192xf32, #tpu.memory_space<vmem>>, vector<1x1x192xf32>
    %302 = vector.shape_cast %301 : vector<1x1x192xf32> to vector<1x192xf32>
    %c0_129 = arith.constant 0 : index
    %c0_130 = arith.constant 0 : index
    %c0_131 = arith.constant 0 : index
    %303 = vector.load %arg18[%c0_129, %c0_130, %c0_131] : memref<3x1x192xf32, #tpu.memory_space<vmem>>, vector<1x1x192xf32>
    %304 = vector.shape_cast %303 : vector<1x1x192xf32> to vector<1x192xf32>
    %c0_132 = arith.constant 0 : index
    %c0_133 = arith.constant 0 : index
    %c0_134 = arith.constant 0 : index
    %305 = vector.load %arg16[%c0_132, %c0_133, %c0_134] : memref<3x64x192xf32, #tpu.memory_space<vmem>>, vector<1x64x192xf32>
    %306 = vector.shape_cast %305 : vector<1x64x192xf32> to vector<64x192xf32>
    %c0_135 = arith.constant 0 : index
    %c0_136 = arith.constant 0 : index
    %307 = vector.load %arg14[%c0_135, %c0_136] : memref<32x192xf32, #tpu.memory_space<vmem>>, vector<32x192xf32>
    %cst_137 = arith.constant dense<0.000000e+00> : vector<16x192xf32>
    %308 = tpu.matmul %300, %307, %cst_137 {dimension_numbers = #tpu.dot_dimension_numbers<[1], [0], [0], [1], [0, 0, 1, 1], [], []>} : vector<16x32xf32>, vector<32x192xf32>, vector<16x192xf32> -> vector<16x192xf32>
    %309 = vector.broadcast %302 : vector<1x192xf32> to vector<16x192xf32>
    %310 = arith.addf %308, %309 : vector<16x192xf32>
    %cst_138 = arith.constant 0.000000e+00 : f32
    %311 = vector.broadcast %cst_138 : f32 to vector<2x64xf32>
    %312 = vector.extract_strided_slice %310 {offsets = [0, 0], sizes = [2, 96], strides = [1, 1]} : vector<16x192xf32> to vector<2x96xf32>
    %313 = vector.extract_strided_slice %310 {offsets = [14, 96], sizes = [2, 96], strides = [1, 1]} : vector<16x192xf32> to vector<2x96xf32>
    %cst_139 = arith.constant dense<0.000000e+00> : vector<2x192xf32>
    %314 = tpu.matmul %311, %306, %cst_139 {dimension_numbers = #tpu.dot_dimension_numbers<[1], [0], [0], [1], [0, 0, 1, 1], [], []>} : vector<2x64xf32>, vector<64x192xf32>, vector<2x192xf32> -> vector<2x192xf32>
    %315 = vector.broadcast %304 : vector<1x192xf32> to vector<2x192xf32>
    %316 = arith.addf %314, %315 : vector<2x192xf32>
    %317 = vector.extract_strided_slice %312 {offsets = [0, 0], sizes = [2, 32], strides = [1, 1]} : vector<2x96xf32> to vector<2x32xf32>
    %318 = vector.extract_strided_slice %316 {offsets = [0, 0], sizes = [2, 32], strides = [1, 1]} : vector<2x192xf32> to vector<2x32xf32>
    %319 = arith.addf %317, %318 : vector<2x32xf32>
    %cst_140 = arith.constant 5.000000e-01 : f32
    %320 = vector.broadcast %cst_140 : f32 to vector<2x32xf32>
    %321 = arith.mulf %320, %319 : vector<2x32xf32>
    %322 = math.tanh %321 : vector<2x32xf32>
    %cst_141 = arith.constant 1.000000e+00 : f32
    %323 = vector.broadcast %cst_141 : f32 to vector<2x32xf32>
    %324 = arith.addf %322, %323 : vector<2x32xf32>
    %cst_142 = arith.constant 5.000000e-01 : f32
    %325 = vector.broadcast %cst_142 : f32 to vector<2x32xf32>
    %326 = arith.mulf %325, %324 : vector<2x32xf32>
    %327 = vector.extract_strided_slice %312 {offsets = [0, 32], sizes = [2, 32], strides = [1, 1]} : vector<2x96xf32> to vector<2x32xf32>
    %328 = vector.extract_strided_slice %316 {offsets = [0, 32], sizes = [2, 32], strides = [1, 1]} : vector<2x192xf32> to vector<2x32xf32>
    %329 = arith.addf %327, %328 : vector<2x32xf32>
    %cst_143 = arith.constant 5.000000e-01 : f32
    %330 = vector.broadcast %cst_143 : f32 to vector<2x32xf32>
    %331 = arith.mulf %330, %329 : vector<2x32xf32>
    %332 = math.tanh %331 : vector<2x32xf32>
    %cst_144 = arith.constant 1.000000e+00 : f32
    %333 = vector.broadcast %cst_144 : f32 to vector<2x32xf32>
    %334 = arith.addf %332, %333 : vector<2x32xf32>
    %cst_145 = arith.constant 5.000000e-01 : f32
    %335 = vector.broadcast %cst_145 : f32 to vector<2x32xf32>
    %336 = arith.mulf %335, %334 : vector<2x32xf32>
    %337 = vector.extract_strided_slice %312 {offsets = [0, 64], sizes = [2, 32], strides = [1, 1]} : vector<2x96xf32> to vector<2x32xf32>
    %338 = vector.extract_strided_slice %316 {offsets = [0, 64], sizes = [2, 32], strides = [1, 1]} : vector<2x192xf32> to vector<2x32xf32>
    %339 = arith.mulf %326, %338 : vector<2x32xf32>
    %340 = arith.addf %337, %339 : vector<2x32xf32>
    %341 = math.tanh %340 : vector<2x32xf32>
    %cst_146 = arith.constant 1.000000e+00 : f32
    %342 = vector.broadcast %cst_146 : f32 to vector<2x32xf32>
    %343 = arith.subf %342, %336 : vector<2x32xf32>
    %344 = arith.mulf %343, %341 : vector<2x32xf32>
    %345 = vector.extract_strided_slice %311 {offsets = [0, 0], sizes = [2, 32], strides = [1, 1]} : vector<2x64xf32> to vector<2x32xf32>
    %346 = arith.mulf %336, %345 : vector<2x32xf32>
    %347 = arith.addf %344, %346 : vector<2x32xf32>
    %348 = vector.extract_strided_slice %313 {offsets = [0, 0], sizes = [2, 32], strides = [1, 1]} : vector<2x96xf32> to vector<2x32xf32>
    %349 = vector.extract_strided_slice %316 {offsets = [0, 96], sizes = [2, 32], strides = [1, 1]} : vector<2x192xf32> to vector<2x32xf32>
    %350 = arith.addf %348, %349 : vector<2x32xf32>
    %cst_147 = arith.constant 5.000000e-01 : f32
    %351 = vector.broadcast %cst_147 : f32 to vector<2x32xf32>
    %352 = arith.mulf %351, %350 : vector<2x32xf32>
    %353 = math.tanh %352 : vector<2x32xf32>
    %cst_148 = arith.constant 1.000000e+00 : f32
    %354 = vector.broadcast %cst_148 : f32 to vector<2x32xf32>
    %355 = arith.addf %353, %354 : vector<2x32xf32>
    %cst_149 = arith.constant 5.000000e-01 : f32
    %356 = vector.broadcast %cst_149 : f32 to vector<2x32xf32>
    %357 = arith.mulf %356, %355 : vector<2x32xf32>
    %358 = vector.extract_strided_slice %313 {offsets = [0, 32], sizes = [2, 32], strides = [1, 1]} : vector<2x96xf32> to vector<2x32xf32>
    %359 = vector.extract_strided_slice %316 {offsets = [0, 128], sizes = [2, 32], strides = [1, 1]} : vector<2x192xf32> to vector<2x32xf32>
    %360 = arith.addf %358, %359 : vector<2x32xf32>
    %cst_150 = arith.constant 5.000000e-01 : f32
    %361 = vector.broadcast %cst_150 : f32 to vector<2x32xf32>
    %362 = arith.mulf %361, %360 : vector<2x32xf32>
    %363 = math.tanh %362 : vector<2x32xf32>
    %cst_151 = arith.constant 1.000000e+00 : f32
    %364 = vector.broadcast %cst_151 : f32 to vector<2x32xf32>
    %365 = arith.addf %363, %364 : vector<2x32xf32>
    %cst_152 = arith.constant 5.000000e-01 : f32
    %366 = vector.broadcast %cst_152 : f32 to vector<2x32xf32>
    %367 = arith.mulf %366, %365 : vector<2x32xf32>
    %368 = vector.extract_strided_slice %313 {offsets = [0, 64], sizes = [2, 32], strides = [1, 1]} : vector<2x96xf32> to vector<2x32xf32>
    %369 = vector.extract_strided_slice %316 {offsets = [0, 160], sizes = [2, 32], strides = [1, 1]} : vector<2x192xf32> to vector<2x32xf32>
    %370 = arith.mulf %357, %369 : vector<2x32xf32>
    %371 = arith.addf %368, %370 : vector<2x32xf32>
    %372 = math.tanh %371 : vector<2x32xf32>
    %cst_153 = arith.constant 1.000000e+00 : f32
    %373 = vector.broadcast %cst_153 : f32 to vector<2x32xf32>
    %374 = arith.subf %373, %367 : vector<2x32xf32>
    %375 = arith.mulf %374, %372 : vector<2x32xf32>
    %376 = vector.extract_strided_slice %311 {offsets = [0, 32], sizes = [2, 32], strides = [1, 1]} : vector<2x64xf32> to vector<2x32xf32>
    %377 = arith.mulf %367, %376 : vector<2x32xf32>
    %378 = arith.addf %375, %377 : vector<2x32xf32>
    %379 = tpu.concatenate %347, %378 in 1 : vector<2x32xf32>, vector<2x32xf32> -> vector<2x64xf32>
    %c0_154 = arith.constant 0 : index
    %c0_155 = arith.constant 0 : index
    %380 = vector.load %arg22[%c0_154, %c0_155] : memref<16x32xf32, #tpu.memory_space<vmem>>, vector<2x32xf32>
    tpu.vector_store %arg22[%c0_154, %c0_155], %347 {strides = array<i32>} : memref<16x32xf32, #tpu.memory_space<vmem>>, vector<2x32xf32>,
    %c14 = arith.constant 14 : index
    %c0_156 = arith.constant 0 : index
    %381 = vector.load %arg23[%c14, %c0_156] : memref<16x32xf32, #tpu.memory_space<vmem>>, vector<2x32xf32>
    tpu.vector_store %arg23[%c14, %c0_156], %378 {strides = array<i32>} : memref<16x32xf32, #tpu.memory_space<vmem>>, vector<2x32xf32>,
    %382 = vector.extract_strided_slice %310 {offsets = [2, 0], sizes = [2, 96], strides = [1, 1]} : vector<16x192xf32> to vector<2x96xf32>
    %383 = vector.extract_strided_slice %310 {offsets = [12, 96], sizes = [2, 96], strides = [1, 1]} : vector<16x192xf32> to vector<2x96xf32>
    %cst_157 = arith.constant dense<0.000000e+00> : vector<2x192xf32>
    %384 = tpu.matmul %379, %306, %cst_157 {dimension_numbers = #tpu.dot_dimension_numbers<[1], [0], [0], [1], [0, 0, 1, 1], [], []>} : vector<2x64xf32>, vector<64x192xf32>, vector<2x192xf32> -> vector<2x192xf32>
    %385 = vector.broadcast %304 : vector<1x192xf32> to vector<2x192xf32>
    %386 = arith.addf %384, %385 : vector<2x192xf32>
    %387 = vector.extract_strided_slice %382 {offsets = [0, 0], sizes = [2, 32], strides = [1, 1]} : vector<2x96xf32> to vector<2x32xf32>
    %388 = vector.extract_strided_slice %386 {offsets = [0, 0], sizes = [2, 32], strides = [1, 1]} : vector<2x192xf32> to vector<2x32xf32>
    %389 = arith.addf %387, %388 : vector<2x32xf32>
    %cst_158 = arith.constant 5.000000e-01 : f32
    %390 = vector.broadcast %cst_158 : f32 to vector<2x32xf32>
    %391 = arith.mulf %390, %389 : vector<2x32xf32>
    %392 = math.tanh %391 : vector<2x32xf32>
    %cst_159 = arith.constant 1.000000e+00 : f32
    %393 = vector.broadcast %cst_159 : f32 to vector<2x32xf32>
    %394 = arith.addf %392, %393 : vector<2x32xf32>
    %cst_160 = arith.constant 5.000000e-01 : f32
    %395 = vector.broadcast %cst_160 : f32 to vector<2x32xf32>
    %396 = arith.mulf %395, %394 : vector<2x32xf32>
    %397 = vector.extract_strided_slice %382 {offsets = [0, 32], sizes = [2, 32], strides = [1, 1]} : vector<2x96xf32> to vector<2x32xf32>
    %398 = vector.extract_strided_slice %386 {offsets = [0, 32], sizes = [2, 32], strides = [1, 1]} : vector<2x192xf32> to vector<2x32xf32>
    %399 = arith.addf %397, %398 : vector<2x32xf32>
    %cst_161 = arith.constant 5.000000e-01 : f32
    %400 = vector.broadcast %cst_161 : f32 to vector<2x32xf32>
    %401 = arith.mulf %400, %399 : vector<2x32xf32>
    %402 = math.tanh %401 : vector<2x32xf32>
    %cst_162 = arith.constant 1.000000e+00 : f32
    %403 = vector.broadcast %cst_162 : f32 to vector<2x32xf32>
    %404 = arith.addf %402, %403 : vector<2x32xf32>
    %cst_163 = arith.constant 5.000000e-01 : f32
    %405 = vector.broadcast %cst_163 : f32 to vector<2x32xf32>
    %406 = arith.mulf %405, %404 : vector<2x32xf32>
    %407 = vector.extract_strided_slice %382 {offsets = [0, 64], sizes = [2, 32], strides = [1, 1]} : vector<2x96xf32> to vector<2x32xf32>
    %408 = vector.extract_strided_slice %386 {offsets = [0, 64], sizes = [2, 32], strides = [1, 1]} : vector<2x192xf32> to vector<2x32xf32>
    %409 = arith.mulf %396, %408 : vector<2x32xf32>
    %410 = arith.addf %407, %409 : vector<2x32xf32>
    %411 = math.tanh %410 : vector<2x32xf32>
    %cst_164 = arith.constant 1.000000e+00 : f32
    %412 = vector.broadcast %cst_164 : f32 to vector<2x32xf32>
    %413 = arith.subf %412, %406 : vector<2x32xf32>
    %414 = arith.mulf %413, %411 : vector<2x32xf32>
    %415 = vector.extract_strided_slice %379 {offsets = [0, 0], sizes = [2, 32], strides = [1, 1]} : vector<2x64xf32> to vector<2x32xf32>
    %416 = arith.mulf %406, %415 : vector<2x32xf32>
    %417 = arith.addf %414, %416 : vector<2x32xf32>
    %418 = vector.extract_strided_slice %383 {offsets = [0, 0], sizes = [2, 32], strides = [1, 1]} : vector<2x96xf32> to vector<2x32xf32>
    %419 = vector.extract_strided_slice %386 {offsets = [0, 96], sizes = [2, 32], strides = [1, 1]} : vector<2x192xf32> to vector<2x32xf32>
    %420 = arith.addf %418, %419 : vector<2x32xf32>
    %cst_165 = arith.constant 5.000000e-01 : f32
    %421 = vector.broadcast %cst_165 : f32 to vector<2x32xf32>
    %422 = arith.mulf %421, %420 : vector<2x32xf32>
    %423 = math.tanh %422 : vector<2x32xf32>
    %cst_166 = arith.constant 1.000000e+00 : f32
    %424 = vector.broadcast %cst_166 : f32 to vector<2x32xf32>
    %425 = arith.addf %423, %424 : vector<2x32xf32>
    %cst_167 = arith.constant 5.000000e-01 : f32
    %426 = vector.broadcast %cst_167 : f32 to vector<2x32xf32>
    %427 = arith.mulf %426, %425 : vector<2x32xf32>
    %428 = vector.extract_strided_slice %383 {offsets = [0, 32], sizes = [2, 32], strides = [1, 1]} : vector<2x96xf32> to vector<2x32xf32>
    %429 = vector.extract_strided_slice %386 {offsets = [0, 128], sizes = [2, 32], strides = [1, 1]} : vector<2x192xf32> to vector<2x32xf32>
    %430 = arith.addf %428, %429 : vector<2x32xf32>
    %cst_168 = arith.constant 5.000000e-01 : f32
    %431 = vector.broadcast %cst_168 : f32 to vector<2x32xf32>
    %432 = arith.mulf %431, %430 : vector<2x32xf32>
    %433 = math.tanh %432 : vector<2x32xf32>
    %cst_169 = arith.constant 1.000000e+00 : f32
    %434 = vector.broadcast %cst_169 : f32 to vector<2x32xf32>
    %435 = arith.addf %433, %434 : vector<2x32xf32>
    %cst_170 = arith.constant 5.000000e-01 : f32
    %436 = vector.broadcast %cst_170 : f32 to vector<2x32xf32>
    %437 = arith.mulf %436, %435 : vector<2x32xf32>
    %438 = vector.extract_strided_slice %383 {offsets = [0, 64], sizes = [2, 32], strides = [1, 1]} : vector<2x96xf32> to vector<2x32xf32>
    %439 = vector.extract_strided_slice %386 {offsets = [0, 160], sizes = [2, 32], strides = [1, 1]} : vector<2x192xf32> to vector<2x32xf32>
    %440 = arith.mulf %427, %439 : vector<2x32xf32>
    %441 = arith.addf %438, %440 : vector<2x32xf32>
    %442 = math.tanh %441 : vector<2x32xf32>
    %cst_171 = arith.constant 1.000000e+00 : f32
    %443 = vector.broadcast %cst_171 : f32 to vector<2x32xf32>
    %444 = arith.subf %443, %437 : vector<2x32xf32>
    %445 = arith.mulf %444, %442 : vector<2x32xf32>
    %446 = vector.extract_strided_slice %379 {offsets = [0, 32], sizes = [2, 32], strides = [1, 1]} : vector<2x64xf32> to vector<2x32xf32>
    %447 = arith.mulf %437, %446 : vector<2x32xf32>
    %448 = arith.addf %445, %447 : vector<2x32xf32>
    %449 = tpu.concatenate %417, %448 in 1 : vector<2x32xf32>, vector<2x32xf32> -> vector<2x64xf32>
    %c2 = arith.constant 2 : index
    %c0_172 = arith.constant 0 : index
    %450 = vector.load %arg22[%c2, %c0_172] : memref<16x32xf32, #tpu.memory_space<vmem>>, vector<2x32xf32>
    tpu.vector_store %arg22[%c2, %c0_172], %417 {strides = array<i32>} : memref<16x32xf32, #tpu.memory_space<vmem>>, vector<2x32xf32>,
    %c12 = arith.constant 12 : index
    %c0_173 = arith.constant 0 : index
    %451 = vector.load %arg23[%c12, %c0_173] : memref<16x32xf32, #tpu.memory_space<vmem>>, vector<2x32xf32>
    tpu.vector_store %arg23[%c12, %c0_173], %448 {strides = array<i32>} : memref<16x32xf32, #tpu.memory_space<vmem>>, vector<2x32xf32>,
    %452 = vector.extract_strided_slice %310 {offsets = [4, 0], sizes = [2, 96], strides = [1, 1]} : vector<16x192xf32> to vector<2x96xf32>
    %453 = vector.extract_strided_slice %310 {offsets = [10, 96], sizes = [2, 96], strides = [1, 1]} : vector<16x192xf32> to vector<2x96xf32>
    %cst_174 = arith.constant dense<0.000000e+00> : vector<2x192xf32>
    %454 = tpu.matmul %449, %306, %cst_174 {dimension_numbers = #tpu.dot_dimension_numbers<[1], [0], [0], [1], [0, 0, 1, 1], [], []>} : vector<2x64xf32>, vector<64x192xf32>, vector<2x192xf32> -> vector<2x192xf32>
    %455 = vector.broadcast %304 : vector<1x192xf32> to vector<2x192xf32>
    %456 = arith.addf %454, %455 : vector<2x192xf32>
    %457 = vector.extract_strided_slice %452 {offsets = [0, 0], sizes = [2, 32], strides = [1, 1]} : vector<2x96xf32> to vector<2x32xf32>
    %458 = vector.extract_strided_slice %456 {offsets = [0, 0], sizes = [2, 32], strides = [1, 1]} : vector<2x192xf32> to vector<2x32xf32>
    %459 = arith.addf %457, %458 : vector<2x32xf32>
    %cst_175 = arith.constant 5.000000e-01 : f32
    %460 = vector.broadcast %cst_175 : f32 to vector<2x32xf32>
    %461 = arith.mulf %460, %459 : vector<2x32xf32>
    %462 = math.tanh %461 : vector<2x32xf32>
    %cst_176 = arith.constant 1.000000e+00 : f32
    %463 = vector.broadcast %cst_176 : f32 to vector<2x32xf32>
    %464 = arith.addf %462, %463 : vector<2x32xf32>
    %cst_177 = arith.constant 5.000000e-01 : f32
    %465 = vector.broadcast %cst_177 : f32 to vector<2x32xf32>
    %466 = arith.mulf %465, %464 : vector<2x32xf32>
    %467 = vector.extract_strided_slice %452 {offsets = [0, 32], sizes = [2, 32], strides = [1, 1]} : vector<2x96xf32> to vector<2x32xf32>
    %468 = vector.extract_strided_slice %456 {offsets = [0, 32], sizes = [2, 32], strides = [1, 1]} : vector<2x192xf32> to vector<2x32xf32>
    %469 = arith.addf %467, %468 : vector<2x32xf32>
    %cst_178 = arith.constant 5.000000e-01 : f32
    %470 = vector.broadcast %cst_178 : f32 to vector<2x32xf32>
    %471 = arith.mulf %470, %469 : vector<2x32xf32>
    %472 = math.tanh %471 : vector<2x32xf32>
    %cst_179 = arith.constant 1.000000e+00 : f32
    %473 = vector.broadcast %cst_179 : f32 to vector<2x32xf32>
    %474 = arith.addf %472, %473 : vector<2x32xf32>
    %cst_180 = arith.constant 5.000000e-01 : f32
    %475 = vector.broadcast %cst_180 : f32 to vector<2x32xf32>
    %476 = arith.mulf %475, %474 : vector<2x32xf32>
    %477 = vector.extract_strided_slice %452 {offsets = [0, 64], sizes = [2, 32], strides = [1, 1]} : vector<2x96xf32> to vector<2x32xf32>
    %478 = vector.extract_strided_slice %456 {offsets = [0, 64], sizes = [2, 32], strides = [1, 1]} : vector<2x192xf32> to vector<2x32xf32>
    %479 = arith.mulf %466, %478 : vector<2x32xf32>
    %480 = arith.addf %477, %479 : vector<2x32xf32>
    %481 = math.tanh %480 : vector<2x32xf32>
    %cst_181 = arith.constant 1.000000e+00 : f32
    %482 = vector.broadcast %cst_181 : f32 to vector<2x32xf32>
    %483 = arith.subf %482, %476 : vector<2x32xf32>
    %484 = arith.mulf %483, %481 : vector<2x32xf32>
    %485 = vector.extract_strided_slice %449 {offsets = [0, 0], sizes = [2, 32], strides = [1, 1]} : vector<2x64xf32> to vector<2x32xf32>
    %486 = arith.mulf %476, %485 : vector<2x32xf32>
    %487 = arith.addf %484, %486 : vector<2x32xf32>
    %488 = vector.extract_strided_slice %453 {offsets = [0, 0], sizes = [2, 32], strides = [1, 1]} : vector<2x96xf32> to vector<2x32xf32>
    %489 = vector.extract_strided_slice %456 {offsets = [0, 96], sizes = [2, 32], strides = [1, 1]} : vector<2x192xf32> to vector<2x32xf32>
    %490 = arith.addf %488, %489 : vector<2x32xf32>
    %cst_182 = arith.constant 5.000000e-01 : f32
    %491 = vector.broadcast %cst_182 : f32 to vector<2x32xf32>
    %492 = arith.mulf %491, %490 : vector<2x32xf32>
    %493 = math.tanh %492 : vector<2x32xf32>
    %cst_183 = arith.constant 1.000000e+00 : f32
    %494 = vector.broadcast %cst_183 : f32 to vector<2x32xf32>
    %495 = arith.addf %493, %494 : vector<2x32xf32>
    %cst_184 = arith.constant 5.000000e-01 : f32
    %496 = vector.broadcast %cst_184 : f32 to vector<2x32xf32>
    %497 = arith.mulf %496, %495 : vector<2x32xf32>
    %498 = vector.extract_strided_slice %453 {offsets = [0, 32], sizes = [2, 32], strides = [1, 1]} : vector<2x96xf32> to vector<2x32xf32>
    %499 = vector.extract_strided_slice %456 {offsets = [0, 128], sizes = [2, 32], strides = [1, 1]} : vector<2x192xf32> to vector<2x32xf32>
    %500 = arith.addf %498, %499 : vector<2x32xf32>
    %cst_185 = arith.constant 5.000000e-01 : f32
    %501 = vector.broadcast %cst_185 : f32 to vector<2x32xf32>
    %502 = arith.mulf %501, %500 : vector<2x32xf32>
    %503 = math.tanh %502 : vector<2x32xf32>
    %cst_186 = arith.constant 1.000000e+00 : f32
    %504 = vector.broadcast %cst_186 : f32 to vector<2x32xf32>
    %505 = arith.addf %503, %504 : vector<2x32xf32>
    %cst_187 = arith.constant 5.000000e-01 : f32
    %506 = vector.broadcast %cst_187 : f32 to vector<2x32xf32>
    %507 = arith.mulf %506, %505 : vector<2x32xf32>
    %508 = vector.extract_strided_slice %453 {offsets = [0, 64], sizes = [2, 32], strides = [1, 1]} : vector<2x96xf32> to vector<2x32xf32>
    %509 = vector.extract_strided_slice %456 {offsets = [0, 160], sizes = [2, 32], strides = [1, 1]} : vector<2x192xf32> to vector<2x32xf32>
    %510 = arith.mulf %497, %509 : vector<2x32xf32>
    %511 = arith.addf %508, %510 : vector<2x32xf32>
    %512 = math.tanh %511 : vector<2x32xf32>
    %cst_188 = arith.constant 1.000000e+00 : f32
    %513 = vector.broadcast %cst_188 : f32 to vector<2x32xf32>
    %514 = arith.subf %513, %507 : vector<2x32xf32>
    %515 = arith.mulf %514, %512 : vector<2x32xf32>
    %516 = vector.extract_strided_slice %449 {offsets = [0, 32], sizes = [2, 32], strides = [1, 1]} : vector<2x64xf32> to vector<2x32xf32>
    %517 = arith.mulf %507, %516 : vector<2x32xf32>
    %518 = arith.addf %515, %517 : vector<2x32xf32>
    %519 = tpu.concatenate %487, %518 in 1 : vector<2x32xf32>, vector<2x32xf32> -> vector<2x64xf32>
    %c4 = arith.constant 4 : index
    %c0_189 = arith.constant 0 : index
    %520 = vector.load %arg22[%c4, %c0_189] : memref<16x32xf32, #tpu.memory_space<vmem>>, vector<2x32xf32>
    tpu.vector_store %arg22[%c4, %c0_189], %487 {strides = array<i32>} : memref<16x32xf32, #tpu.memory_space<vmem>>, vector<2x32xf32>,
    %c10 = arith.constant 10 : index
    %c0_190 = arith.constant 0 : index
    %521 = vector.load %arg23[%c10, %c0_190] : memref<16x32xf32, #tpu.memory_space<vmem>>, vector<2x32xf32>
    tpu.vector_store %arg23[%c10, %c0_190], %518 {strides = array<i32>} : memref<16x32xf32, #tpu.memory_space<vmem>>, vector<2x32xf32>,
    %522 = vector.extract_strided_slice %310 {offsets = [6, 0], sizes = [2, 96], strides = [1, 1]} : vector<16x192xf32> to vector<2x96xf32>
    %523 = vector.extract_strided_slice %310 {offsets = [8, 96], sizes = [2, 96], strides = [1, 1]} : vector<16x192xf32> to vector<2x96xf32>
    %cst_191 = arith.constant dense<0.000000e+00> : vector<2x192xf32>
    %524 = tpu.matmul %519, %306, %cst_191 {dimension_numbers = #tpu.dot_dimension_numbers<[1], [0], [0], [1], [0, 0, 1, 1], [], []>} : vector<2x64xf32>, vector<64x192xf32>, vector<2x192xf32> -> vector<2x192xf32>
    %525 = vector.broadcast %304 : vector<1x192xf32> to vector<2x192xf32>
    %526 = arith.addf %524, %525 : vector<2x192xf32>
    %527 = vector.extract_strided_slice %522 {offsets = [0, 0], sizes = [2, 32], strides = [1, 1]} : vector<2x96xf32> to vector<2x32xf32>
    %528 = vector.extract_strided_slice %526 {offsets = [0, 0], sizes = [2, 32], strides = [1, 1]} : vector<2x192xf32> to vector<2x32xf32>
    %529 = arith.addf %527, %528 : vector<2x32xf32>
    %cst_192 = arith.constant 5.000000e-01 : f32
    %530 = vector.broadcast %cst_192 : f32 to vector<2x32xf32>
    %531 = arith.mulf %530, %529 : vector<2x32xf32>
    %532 = math.tanh %531 : vector<2x32xf32>
    %cst_193 = arith.constant 1.000000e+00 : f32
    %533 = vector.broadcast %cst_193 : f32 to vector<2x32xf32>
    %534 = arith.addf %532, %533 : vector<2x32xf32>
    %cst_194 = arith.constant 5.000000e-01 : f32
    %535 = vector.broadcast %cst_194 : f32 to vector<2x32xf32>
    %536 = arith.mulf %535, %534 : vector<2x32xf32>
    %537 = vector.extract_strided_slice %522 {offsets = [0, 32], sizes = [2, 32], strides = [1, 1]} : vector<2x96xf32> to vector<2x32xf32>
    %538 = vector.extract_strided_slice %526 {offsets = [0, 32], sizes = [2, 32], strides = [1, 1]} : vector<2x192xf32> to vector<2x32xf32>
    %539 = arith.addf %537, %538 : vector<2x32xf32>
    %cst_195 = arith.constant 5.000000e-01 : f32
    %540 = vector.broadcast %cst_195 : f32 to vector<2x32xf32>
    %541 = arith.mulf %540, %539 : vector<2x32xf32>
    %542 = math.tanh %541 : vector<2x32xf32>
    %cst_196 = arith.constant 1.000000e+00 : f32
    %543 = vector.broadcast %cst_196 : f32 to vector<2x32xf32>
    %544 = arith.addf %542, %543 : vector<2x32xf32>
    %cst_197 = arith.constant 5.000000e-01 : f32
    %545 = vector.broadcast %cst_197 : f32 to vector<2x32xf32>
    %546 = arith.mulf %545, %544 : vector<2x32xf32>
    %547 = vector.extract_strided_slice %522 {offsets = [0, 64], sizes = [2, 32], strides = [1, 1]} : vector<2x96xf32> to vector<2x32xf32>
    %548 = vector.extract_strided_slice %526 {offsets = [0, 64], sizes = [2, 32], strides = [1, 1]} : vector<2x192xf32> to vector<2x32xf32>
    %549 = arith.mulf %536, %548 : vector<2x32xf32>
    %550 = arith.addf %547, %549 : vector<2x32xf32>
    %551 = math.tanh %550 : vector<2x32xf32>
    %cst_198 = arith.constant 1.000000e+00 : f32
    %552 = vector.broadcast %cst_198 : f32 to vector<2x32xf32>
    %553 = arith.subf %552, %546 : vector<2x32xf32>
    %554 = arith.mulf %553, %551 : vector<2x32xf32>
    %555 = vector.extract_strided_slice %519 {offsets = [0, 0], sizes = [2, 32], strides = [1, 1]} : vector<2x64xf32> to vector<2x32xf32>
    %556 = arith.mulf %546, %555 : vector<2x32xf32>
    %557 = arith.addf %554, %556 : vector<2x32xf32>
    %558 = vector.extract_strided_slice %523 {offsets = [0, 0], sizes = [2, 32], strides = [1, 1]} : vector<2x96xf32> to vector<2x32xf32>
    %559 = vector.extract_strided_slice %526 {offsets = [0, 96], sizes = [2, 32], strides = [1, 1]} : vector<2x192xf32> to vector<2x32xf32>
    %560 = arith.addf %558, %559 : vector<2x32xf32>
    %cst_199 = arith.constant 5.000000e-01 : f32
    %561 = vector.broadcast %cst_199 : f32 to vector<2x32xf32>
    %562 = arith.mulf %561, %560 : vector<2x32xf32>
    %563 = math.tanh %562 : vector<2x32xf32>
    %cst_200 = arith.constant 1.000000e+00 : f32
    %564 = vector.broadcast %cst_200 : f32 to vector<2x32xf32>
    %565 = arith.addf %563, %564 : vector<2x32xf32>
    %cst_201 = arith.constant 5.000000e-01 : f32
    %566 = vector.broadcast %cst_201 : f32 to vector<2x32xf32>
    %567 = arith.mulf %566, %565 : vector<2x32xf32>
    %568 = vector.extract_strided_slice %523 {offsets = [0, 32], sizes = [2, 32], strides = [1, 1]} : vector<2x96xf32> to vector<2x32xf32>
    %569 = vector.extract_strided_slice %526 {offsets = [0, 128], sizes = [2, 32], strides = [1, 1]} : vector<2x192xf32> to vector<2x32xf32>
    %570 = arith.addf %568, %569 : vector<2x32xf32>
    %cst_202 = arith.constant 5.000000e-01 : f32
    %571 = vector.broadcast %cst_202 : f32 to vector<2x32xf32>
    %572 = arith.mulf %571, %570 : vector<2x32xf32>
    %573 = math.tanh %572 : vector<2x32xf32>
    %cst_203 = arith.constant 1.000000e+00 : f32
    %574 = vector.broadcast %cst_203 : f32 to vector<2x32xf32>
    %575 = arith.addf %573, %574 : vector<2x32xf32>
    %cst_204 = arith.constant 5.000000e-01 : f32
    %576 = vector.broadcast %cst_204 : f32 to vector<2x32xf32>
    %577 = arith.mulf %576, %575 : vector<2x32xf32>
    %578 = vector.extract_strided_slice %523 {offsets = [0, 64], sizes = [2, 32], strides = [1, 1]} : vector<2x96xf32> to vector<2x32xf32>
    %579 = vector.extract_strided_slice %526 {offsets = [0, 160], sizes = [2, 32], strides = [1, 1]} : vector<2x192xf32> to vector<2x32xf32>
    %580 = arith.mulf %567, %579 : vector<2x32xf32>
    %581 = arith.addf %578, %580 : vector<2x32xf32>
    %582 = math.tanh %581 : vector<2x32xf32>
    %cst_205 = arith.constant 1.000000e+00 : f32
    %583 = vector.broadcast %cst_205 : f32 to vector<2x32xf32>
    %584 = arith.subf %583, %577 : vector<2x32xf32>
    %585 = arith.mulf %584, %582 : vector<2x32xf32>
    %586 = vector.extract_strided_slice %519 {offsets = [0, 32], sizes = [2, 32], strides = [1, 1]} : vector<2x64xf32> to vector<2x32xf32>
    %587 = arith.mulf %577, %586 : vector<2x32xf32>
    %588 = arith.addf %585, %587 : vector<2x32xf32>
    %589 = tpu.concatenate %557, %588 in 1 : vector<2x32xf32>, vector<2x32xf32> -> vector<2x64xf32>
    %c6 = arith.constant 6 : index
    %c0_206 = arith.constant 0 : index
    %590 = vector.load %arg22[%c6, %c0_206] : memref<16x32xf32, #tpu.memory_space<vmem>>, vector<2x32xf32>
    tpu.vector_store %arg22[%c6, %c0_206], %557 {strides = array<i32>} : memref<16x32xf32, #tpu.memory_space<vmem>>, vector<2x32xf32>,
    %c8 = arith.constant 8 : index
    %c0_207 = arith.constant 0 : index
    %591 = vector.load %arg23[%c8, %c0_207] : memref<16x32xf32, #tpu.memory_space<vmem>>, vector<2x32xf32>
    tpu.vector_store %arg23[%c8, %c0_207], %588 {strides = array<i32>} : memref<16x32xf32, #tpu.memory_space<vmem>>, vector<2x32xf32>,
    %592 = vector.extract_strided_slice %310 {offsets = [8, 0], sizes = [2, 96], strides = [1, 1]} : vector<16x192xf32> to vector<2x96xf32>
    %593 = vector.extract_strided_slice %310 {offsets = [6, 96], sizes = [2, 96], strides = [1, 1]} : vector<16x192xf32> to vector<2x96xf32>
    %cst_208 = arith.constant dense<0.000000e+00> : vector<2x192xf32>
    %594 = tpu.matmul %589, %306, %cst_208 {dimension_numbers = #tpu.dot_dimension_numbers<[1], [0], [0], [1], [0, 0, 1, 1], [], []>} : vector<2x64xf32>, vector<64x192xf32>, vector<2x192xf32> -> vector<2x192xf32>
    %595 = vector.broadcast %304 : vector<1x192xf32> to vector<2x192xf32>
    %596 = arith.addf %594, %595 : vector<2x192xf32>
    %597 = vector.extract_strided_slice %592 {offsets = [0, 0], sizes = [2, 32], strides = [1, 1]} : vector<2x96xf32> to vector<2x32xf32>
    %598 = vector.extract_strided_slice %596 {offsets = [0, 0], sizes = [2, 32], strides = [1, 1]} : vector<2x192xf32> to vector<2x32xf32>
    %599 = arith.addf %597, %598 : vector<2x32xf32>
    %cst_209 = arith.constant 5.000000e-01 : f32
    %600 = vector.broadcast %cst_209 : f32 to vector<2x32xf32>
    %601 = arith.mulf %600, %599 : vector<2x32xf32>
    %602 = math.tanh %601 : vector<2x32xf32>
    %cst_210 = arith.constant 1.000000e+00 : f32
    %603 = vector.broadcast %cst_210 : f32 to vector<2x32xf32>
    %604 = arith.addf %602, %603 : vector<2x32xf32>
    %cst_211 = arith.constant 5.000000e-01 : f32
    %605 = vector.broadcast %cst_211 : f32 to vector<2x32xf32>
    %606 = arith.mulf %605, %604 : vector<2x32xf32>
    %607 = vector.extract_strided_slice %592 {offsets = [0, 32], sizes = [2, 32], strides = [1, 1]} : vector<2x96xf32> to vector<2x32xf32>
    %608 = vector.extract_strided_slice %596 {offsets = [0, 32], sizes = [2, 32], strides = [1, 1]} : vector<2x192xf32> to vector<2x32xf32>
    %609 = arith.addf %607, %608 : vector<2x32xf32>
    %cst_212 = arith.constant 5.000000e-01 : f32
    %610 = vector.broadcast %cst_212 : f32 to vector<2x32xf32>
    %611 = arith.mulf %610, %609 : vector<2x32xf32>
    %612 = math.tanh %611 : vector<2x32xf32>
    %cst_213 = arith.constant 1.000000e+00 : f32
    %613 = vector.broadcast %cst_213 : f32 to vector<2x32xf32>
    %614 = arith.addf %612, %613 : vector<2x32xf32>
    %cst_214 = arith.constant 5.000000e-01 : f32
    %615 = vector.broadcast %cst_214 : f32 to vector<2x32xf32>
    %616 = arith.mulf %615, %614 : vector<2x32xf32>
    %617 = vector.extract_strided_slice %592 {offsets = [0, 64], sizes = [2, 32], strides = [1, 1]} : vector<2x96xf32> to vector<2x32xf32>
    %618 = vector.extract_strided_slice %596 {offsets = [0, 64], sizes = [2, 32], strides = [1, 1]} : vector<2x192xf32> to vector<2x32xf32>
    %619 = arith.mulf %606, %618 : vector<2x32xf32>
    %620 = arith.addf %617, %619 : vector<2x32xf32>
    %621 = math.tanh %620 : vector<2x32xf32>
    %cst_215 = arith.constant 1.000000e+00 : f32
    %622 = vector.broadcast %cst_215 : f32 to vector<2x32xf32>
    %623 = arith.subf %622, %616 : vector<2x32xf32>
    %624 = arith.mulf %623, %621 : vector<2x32xf32>
    %625 = vector.extract_strided_slice %589 {offsets = [0, 0], sizes = [2, 32], strides = [1, 1]} : vector<2x64xf32> to vector<2x32xf32>
    %626 = arith.mulf %616, %625 : vector<2x32xf32>
    %627 = arith.addf %624, %626 : vector<2x32xf32>
    %628 = vector.extract_strided_slice %593 {offsets = [0, 0], sizes = [2, 32], strides = [1, 1]} : vector<2x96xf32> to vector<2x32xf32>
    %629 = vector.extract_strided_slice %596 {offsets = [0, 96], sizes = [2, 32], strides = [1, 1]} : vector<2x192xf32> to vector<2x32xf32>
    %630 = arith.addf %628, %629 : vector<2x32xf32>
    %cst_216 = arith.constant 5.000000e-01 : f32
    %631 = vector.broadcast %cst_216 : f32 to vector<2x32xf32>
    %632 = arith.mulf %631, %630 : vector<2x32xf32>
    %633 = math.tanh %632 : vector<2x32xf32>
    %cst_217 = arith.constant 1.000000e+00 : f32
    %634 = vector.broadcast %cst_217 : f32 to vector<2x32xf32>
    %635 = arith.addf %633, %634 : vector<2x32xf32>
    %cst_218 = arith.constant 5.000000e-01 : f32
    %636 = vector.broadcast %cst_218 : f32 to vector<2x32xf32>
    %637 = arith.mulf %636, %635 : vector<2x32xf32>
    %638 = vector.extract_strided_slice %593 {offsets = [0, 32], sizes = [2, 32], strides = [1, 1]} : vector<2x96xf32> to vector<2x32xf32>
    %639 = vector.extract_strided_slice %596 {offsets = [0, 128], sizes = [2, 32], strides = [1, 1]} : vector<2x192xf32> to vector<2x32xf32>
    %640 = arith.addf %638, %639 : vector<2x32xf32>
    %cst_219 = arith.constant 5.000000e-01 : f32
    %641 = vector.broadcast %cst_219 : f32 to vector<2x32xf32>
    %642 = arith.mulf %641, %640 : vector<2x32xf32>
    %643 = math.tanh %642 : vector<2x32xf32>
    %cst_220 = arith.constant 1.000000e+00 : f32
    %644 = vector.broadcast %cst_220 : f32 to vector<2x32xf32>
    %645 = arith.addf %643, %644 : vector<2x32xf32>
    %cst_221 = arith.constant 5.000000e-01 : f32
    %646 = vector.broadcast %cst_221 : f32 to vector<2x32xf32>
    %647 = arith.mulf %646, %645 : vector<2x32xf32>
    %648 = vector.extract_strided_slice %593 {offsets = [0, 64], sizes = [2, 32], strides = [1, 1]} : vector<2x96xf32> to vector<2x32xf32>
    %649 = vector.extract_strided_slice %596 {offsets = [0, 160], sizes = [2, 32], strides = [1, 1]} : vector<2x192xf32> to vector<2x32xf32>
    %650 = arith.mulf %637, %649 : vector<2x32xf32>
    %651 = arith.addf %648, %650 : vector<2x32xf32>
    %652 = math.tanh %651 : vector<2x32xf32>
    %cst_222 = arith.constant 1.000000e+00 : f32
    %653 = vector.broadcast %cst_222 : f32 to vector<2x32xf32>
    %654 = arith.subf %653, %647 : vector<2x32xf32>
    %655 = arith.mulf %654, %652 : vector<2x32xf32>
    %656 = vector.extract_strided_slice %589 {offsets = [0, 32], sizes = [2, 32], strides = [1, 1]} : vector<2x64xf32> to vector<2x32xf32>
    %657 = arith.mulf %647, %656 : vector<2x32xf32>
    %658 = arith.addf %655, %657 : vector<2x32xf32>
    %659 = tpu.concatenate %627, %658 in 1 : vector<2x32xf32>, vector<2x32xf32> -> vector<2x64xf32>
    %c8_223 = arith.constant 8 : index
    %c0_224 = arith.constant 0 : index
    %660 = vector.load %arg22[%c8_223, %c0_224] : memref<16x32xf32, #tpu.memory_space<vmem>>, vector<2x32xf32>
    tpu.vector_store %arg22[%c8_223, %c0_224], %627 {strides = array<i32>} : memref<16x32xf32, #tpu.memory_space<vmem>>, vector<2x32xf32>,
    %c6_225 = arith.constant 6 : index
    %c0_226 = arith.constant 0 : index
    %661 = vector.load %arg23[%c6_225, %c0_226] : memref<16x32xf32, #tpu.memory_space<vmem>>, vector<2x32xf32>
    tpu.vector_store %arg23[%c6_225, %c0_226], %658 {strides = array<i32>} : memref<16x32xf32, #tpu.memory_space<vmem>>, vector<2x32xf32>,
    %662 = vector.extract_strided_slice %310 {offsets = [10, 0], sizes = [2, 96], strides = [1, 1]} : vector<16x192xf32> to vector<2x96xf32>
    %663 = vector.extract_strided_slice %310 {offsets = [4, 96], sizes = [2, 96], strides = [1, 1]} : vector<16x192xf32> to vector<2x96xf32>
    %cst_227 = arith.constant dense<0.000000e+00> : vector<2x192xf32>
    %664 = tpu.matmul %659, %306, %cst_227 {dimension_numbers = #tpu.dot_dimension_numbers<[1], [0], [0], [1], [0, 0, 1, 1], [], []>} : vector<2x64xf32>, vector<64x192xf32>, vector<2x192xf32> -> vector<2x192xf32>
    %665 = vector.broadcast %304 : vector<1x192xf32> to vector<2x192xf32>
    %666 = arith.addf %664, %665 : vector<2x192xf32>
    %667 = vector.extract_strided_slice %662 {offsets = [0, 0], sizes = [2, 32], strides = [1, 1]} : vector<2x96xf32> to vector<2x32xf32>
    %668 = vector.extract_strided_slice %666 {offsets = [0, 0], sizes = [2, 32], strides = [1, 1]} : vector<2x192xf32> to vector<2x32xf32>
    %669 = arith.addf %667, %668 : vector<2x32xf32>
    %cst_228 = arith.constant 5.000000e-01 : f32
    %670 = vector.broadcast %cst_228 : f32 to vector<2x32xf32>
    %671 = arith.mulf %670, %669 : vector<2x32xf32>
    %672 = math.tanh %671 : vector<2x32xf32>
    %cst_229 = arith.constant 1.000000e+00 : f32
    %673 = vector.broadcast %cst_229 : f32 to vector<2x32xf32>
    %674 = arith.addf %672, %673 : vector<2x32xf32>
    %cst_230 = arith.constant 5.000000e-01 : f32
    %675 = vector.broadcast %cst_230 : f32 to vector<2x32xf32>
    %676 = arith.mulf %675, %674 : vector<2x32xf32>
    %677 = vector.extract_strided_slice %662 {offsets = [0, 32], sizes = [2, 32], strides = [1, 1]} : vector<2x96xf32> to vector<2x32xf32>
    %678 = vector.extract_strided_slice %666 {offsets = [0, 32], sizes = [2, 32], strides = [1, 1]} : vector<2x192xf32> to vector<2x32xf32>
    %679 = arith.addf %677, %678 : vector<2x32xf32>
    %cst_231 = arith.constant 5.000000e-01 : f32
    %680 = vector.broadcast %cst_231 : f32 to vector<2x32xf32>
    %681 = arith.mulf %680, %679 : vector<2x32xf32>
    %682 = math.tanh %681 : vector<2x32xf32>
    %cst_232 = arith.constant 1.000000e+00 : f32
    %683 = vector.broadcast %cst_232 : f32 to vector<2x32xf32>
    %684 = arith.addf %682, %683 : vector<2x32xf32>
    %cst_233 = arith.constant 5.000000e-01 : f32
    %685 = vector.broadcast %cst_233 : f32 to vector<2x32xf32>
    %686 = arith.mulf %685, %684 : vector<2x32xf32>
    %687 = vector.extract_strided_slice %662 {offsets = [0, 64], sizes = [2, 32], strides = [1, 1]} : vector<2x96xf32> to vector<2x32xf32>
    %688 = vector.extract_strided_slice %666 {offsets = [0, 64], sizes = [2, 32], strides = [1, 1]} : vector<2x192xf32> to vector<2x32xf32>
    %689 = arith.mulf %676, %688 : vector<2x32xf32>
    %690 = arith.addf %687, %689 : vector<2x32xf32>
    %691 = math.tanh %690 : vector<2x32xf32>
    %cst_234 = arith.constant 1.000000e+00 : f32
    %692 = vector.broadcast %cst_234 : f32 to vector<2x32xf32>
    %693 = arith.subf %692, %686 : vector<2x32xf32>
    %694 = arith.mulf %693, %691 : vector<2x32xf32>
    %695 = vector.extract_strided_slice %659 {offsets = [0, 0], sizes = [2, 32], strides = [1, 1]} : vector<2x64xf32> to vector<2x32xf32>
    %696 = arith.mulf %686, %695 : vector<2x32xf32>
    %697 = arith.addf %694, %696 : vector<2x32xf32>
    %698 = vector.extract_strided_slice %663 {offsets = [0, 0], sizes = [2, 32], strides = [1, 1]} : vector<2x96xf32> to vector<2x32xf32>
    %699 = vector.extract_strided_slice %666 {offsets = [0, 96], sizes = [2, 32], strides = [1, 1]} : vector<2x192xf32> to vector<2x32xf32>
    %700 = arith.addf %698, %699 : vector<2x32xf32>
    %cst_235 = arith.constant 5.000000e-01 : f32
    %701 = vector.broadcast %cst_235 : f32 to vector<2x32xf32>
    %702 = arith.mulf %701, %700 : vector<2x32xf32>
    %703 = math.tanh %702 : vector<2x32xf32>
    %cst_236 = arith.constant 1.000000e+00 : f32
    %704 = vector.broadcast %cst_236 : f32 to vector<2x32xf32>
    %705 = arith.addf %703, %704 : vector<2x32xf32>
    %cst_237 = arith.constant 5.000000e-01 : f32
    %706 = vector.broadcast %cst_237 : f32 to vector<2x32xf32>
    %707 = arith.mulf %706, %705 : vector<2x32xf32>
    %708 = vector.extract_strided_slice %663 {offsets = [0, 32], sizes = [2, 32], strides = [1, 1]} : vector<2x96xf32> to vector<2x32xf32>
    %709 = vector.extract_strided_slice %666 {offsets = [0, 128], sizes = [2, 32], strides = [1, 1]} : vector<2x192xf32> to vector<2x32xf32>
    %710 = arith.addf %708, %709 : vector<2x32xf32>
    %cst_238 = arith.constant 5.000000e-01 : f32
    %711 = vector.broadcast %cst_238 : f32 to vector<2x32xf32>
    %712 = arith.mulf %711, %710 : vector<2x32xf32>
    %713 = math.tanh %712 : vector<2x32xf32>
    %cst_239 = arith.constant 1.000000e+00 : f32
    %714 = vector.broadcast %cst_239 : f32 to vector<2x32xf32>
    %715 = arith.addf %713, %714 : vector<2x32xf32>
    %cst_240 = arith.constant 5.000000e-01 : f32
    %716 = vector.broadcast %cst_240 : f32 to vector<2x32xf32>
    %717 = arith.mulf %716, %715 : vector<2x32xf32>
    %718 = vector.extract_strided_slice %663 {offsets = [0, 64], sizes = [2, 32], strides = [1, 1]} : vector<2x96xf32> to vector<2x32xf32>
    %719 = vector.extract_strided_slice %666 {offsets = [0, 160], sizes = [2, 32], strides = [1, 1]} : vector<2x192xf32> to vector<2x32xf32>
    %720 = arith.mulf %707, %719 : vector<2x32xf32>
    %721 = arith.addf %718, %720 : vector<2x32xf32>
    %722 = math.tanh %721 : vector<2x32xf32>
    %cst_241 = arith.constant 1.000000e+00 : f32
    %723 = vector.broadcast %cst_241 : f32 to vector<2x32xf32>
    %724 = arith.subf %723, %717 : vector<2x32xf32>
    %725 = arith.mulf %724, %722 : vector<2x32xf32>
    %726 = vector.extract_strided_slice %659 {offsets = [0, 32], sizes = [2, 32], strides = [1, 1]} : vector<2x64xf32> to vector<2x32xf32>
    %727 = arith.mulf %717, %726 : vector<2x32xf32>
    %728 = arith.addf %725, %727 : vector<2x32xf32>
    %729 = tpu.concatenate %697, %728 in 1 : vector<2x32xf32>, vector<2x32xf32> -> vector<2x64xf32>
    %c10_242 = arith.constant 10 : index
    %c0_243 = arith.constant 0 : index
    %730 = vector.load %arg22[%c10_242, %c0_243] : memref<16x32xf32, #tpu.memory_space<vmem>>, vector<2x32xf32>
    tpu.vector_store %arg22[%c10_242, %c0_243], %697 {strides = array<i32>} : memref<16x32xf32, #tpu.memory_space<vmem>>, vector<2x32xf32>,
    %c4_244 = arith.constant 4 : index
    %c0_245 = arith.constant 0 : index
    %731 = vector.load %arg23[%c4_244, %c0_245] : memref<16x32xf32, #tpu.memory_space<vmem>>, vector<2x32xf32>
    tpu.vector_store %arg23[%c4_244, %c0_245], %728 {strides = array<i32>} : memref<16x32xf32, #tpu.memory_space<vmem>>, vector<2x32xf32>,
    %732 = vector.extract_strided_slice %310 {offsets = [12, 0], sizes = [2, 96], strides = [1, 1]} : vector<16x192xf32> to vector<2x96xf32>
    %733 = vector.extract_strided_slice %310 {offsets = [2, 96], sizes = [2, 96], strides = [1, 1]} : vector<16x192xf32> to vector<2x96xf32>
    %cst_246 = arith.constant dense<0.000000e+00> : vector<2x192xf32>
    %734 = tpu.matmul %729, %306, %cst_246 {dimension_numbers = #tpu.dot_dimension_numbers<[1], [0], [0], [1], [0, 0, 1, 1], [], []>} : vector<2x64xf32>, vector<64x192xf32>, vector<2x192xf32> -> vector<2x192xf32>
    %735 = vector.broadcast %304 : vector<1x192xf32> to vector<2x192xf32>
    %736 = arith.addf %734, %735 : vector<2x192xf32>
    %737 = vector.extract_strided_slice %732 {offsets = [0, 0], sizes = [2, 32], strides = [1, 1]} : vector<2x96xf32> to vector<2x32xf32>
    %738 = vector.extract_strided_slice %736 {offsets = [0, 0], sizes = [2, 32], strides = [1, 1]} : vector<2x192xf32> to vector<2x32xf32>
    %739 = arith.addf %737, %738 : vector<2x32xf32>
    %cst_247 = arith.constant 5.000000e-01 : f32
    %740 = vector.broadcast %cst_247 : f32 to vector<2x32xf32>
    %741 = arith.mulf %740, %739 : vector<2x32xf32>
    %742 = math.tanh %741 : vector<2x32xf32>
    %cst_248 = arith.constant 1.000000e+00 : f32
    %743 = vector.broadcast %cst_248 : f32 to vector<2x32xf32>
    %744 = arith.addf %742, %743 : vector<2x32xf32>
    %cst_249 = arith.constant 5.000000e-01 : f32
    %745 = vector.broadcast %cst_249 : f32 to vector<2x32xf32>
    %746 = arith.mulf %745, %744 : vector<2x32xf32>
    %747 = vector.extract_strided_slice %732 {offsets = [0, 32], sizes = [2, 32], strides = [1, 1]} : vector<2x96xf32> to vector<2x32xf32>
    %748 = vector.extract_strided_slice %736 {offsets = [0, 32], sizes = [2, 32], strides = [1, 1]} : vector<2x192xf32> to vector<2x32xf32>
    %749 = arith.addf %747, %748 : vector<2x32xf32>
    %cst_250 = arith.constant 5.000000e-01 : f32
    %750 = vector.broadcast %cst_250 : f32 to vector<2x32xf32>
    %751 = arith.mulf %750, %749 : vector<2x32xf32>
    %752 = math.tanh %751 : vector<2x32xf32>
    %cst_251 = arith.constant 1.000000e+00 : f32
    %753 = vector.broadcast %cst_251 : f32 to vector<2x32xf32>
    %754 = arith.addf %752, %753 : vector<2x32xf32>
    %cst_252 = arith.constant 5.000000e-01 : f32
    %755 = vector.broadcast %cst_252 : f32 to vector<2x32xf32>
    %756 = arith.mulf %755, %754 : vector<2x32xf32>
    %757 = vector.extract_strided_slice %732 {offsets = [0, 64], sizes = [2, 32], strides = [1, 1]} : vector<2x96xf32> to vector<2x32xf32>
    %758 = vector.extract_strided_slice %736 {offsets = [0, 64], sizes = [2, 32], strides = [1, 1]} : vector<2x192xf32> to vector<2x32xf32>
    %759 = arith.mulf %746, %758 : vector<2x32xf32>
    %760 = arith.addf %757, %759 : vector<2x32xf32>
    %761 = math.tanh %760 : vector<2x32xf32>
    %cst_253 = arith.constant 1.000000e+00 : f32
    %762 = vector.broadcast %cst_253 : f32 to vector<2x32xf32>
    %763 = arith.subf %762, %756 : vector<2x32xf32>
    %764 = arith.mulf %763, %761 : vector<2x32xf32>
    %765 = vector.extract_strided_slice %729 {offsets = [0, 0], sizes = [2, 32], strides = [1, 1]} : vector<2x64xf32> to vector<2x32xf32>
    %766 = arith.mulf %756, %765 : vector<2x32xf32>
    %767 = arith.addf %764, %766 : vector<2x32xf32>
    %768 = vector.extract_strided_slice %733 {offsets = [0, 0], sizes = [2, 32], strides = [1, 1]} : vector<2x96xf32> to vector<2x32xf32>
    %769 = vector.extract_strided_slice %736 {offsets = [0, 96], sizes = [2, 32], strides = [1, 1]} : vector<2x192xf32> to vector<2x32xf32>
    %770 = arith.addf %768, %769 : vector<2x32xf32>
    %cst_254 = arith.constant 5.000000e-01 : f32
    %771 = vector.broadcast %cst_254 : f32 to vector<2x32xf32>
    %772 = arith.mulf %771, %770 : vector<2x32xf32>
    %773 = math.tanh %772 : vector<2x32xf32>
    %cst_255 = arith.constant 1.000000e+00 : f32
    %774 = vector.broadcast %cst_255 : f32 to vector<2x32xf32>
    %775 = arith.addf %773, %774 : vector<2x32xf32>
    %cst_256 = arith.constant 5.000000e-01 : f32
    %776 = vector.broadcast %cst_256 : f32 to vector<2x32xf32>
    %777 = arith.mulf %776, %775 : vector<2x32xf32>
    %778 = vector.extract_strided_slice %733 {offsets = [0, 32], sizes = [2, 32], strides = [1, 1]} : vector<2x96xf32> to vector<2x32xf32>
    %779 = vector.extract_strided_slice %736 {offsets = [0, 128], sizes = [2, 32], strides = [1, 1]} : vector<2x192xf32> to vector<2x32xf32>
    %780 = arith.addf %778, %779 : vector<2x32xf32>
    %cst_257 = arith.constant 5.000000e-01 : f32
    %781 = vector.broadcast %cst_257 : f32 to vector<2x32xf32>
    %782 = arith.mulf %781, %780 : vector<2x32xf32>
    %783 = math.tanh %782 : vector<2x32xf32>
    %cst_258 = arith.constant 1.000000e+00 : f32
    %784 = vector.broadcast %cst_258 : f32 to vector<2x32xf32>
    %785 = arith.addf %783, %784 : vector<2x32xf32>
    %cst_259 = arith.constant 5.000000e-01 : f32
    %786 = vector.broadcast %cst_259 : f32 to vector<2x32xf32>
    %787 = arith.mulf %786, %785 : vector<2x32xf32>
    %788 = vector.extract_strided_slice %733 {offsets = [0, 64], sizes = [2, 32], strides = [1, 1]} : vector<2x96xf32> to vector<2x32xf32>
    %789 = vector.extract_strided_slice %736 {offsets = [0, 160], sizes = [2, 32], strides = [1, 1]} : vector<2x192xf32> to vector<2x32xf32>
    %790 = arith.mulf %777, %789 : vector<2x32xf32>
    %791 = arith.addf %788, %790 : vector<2x32xf32>
    %792 = math.tanh %791 : vector<2x32xf32>
    %cst_260 = arith.constant 1.000000e+00 : f32
    %793 = vector.broadcast %cst_260 : f32 to vector<2x32xf32>
    %794 = arith.subf %793, %787 : vector<2x32xf32>
    %795 = arith.mulf %794, %792 : vector<2x32xf32>
    %796 = vector.extract_strided_slice %729 {offsets = [0, 32], sizes = [2, 32], strides = [1, 1]} : vector<2x64xf32> to vector<2x32xf32>
    %797 = arith.mulf %787, %796 : vector<2x32xf32>
    %798 = arith.addf %795, %797 : vector<2x32xf32>
    %799 = tpu.concatenate %767, %798 in 1 : vector<2x32xf32>, vector<2x32xf32> -> vector<2x64xf32>
    %c12_261 = arith.constant 12 : index
    %c0_262 = arith.constant 0 : index
    %800 = vector.load %arg22[%c12_261, %c0_262] : memref<16x32xf32, #tpu.memory_space<vmem>>, vector<2x32xf32>
    tpu.vector_store %arg22[%c12_261, %c0_262], %767 {strides = array<i32>} : memref<16x32xf32, #tpu.memory_space<vmem>>, vector<2x32xf32>,
    %c2_263 = arith.constant 2 : index
    %c0_264 = arith.constant 0 : index
    %801 = vector.load %arg23[%c2_263, %c0_264] : memref<16x32xf32, #tpu.memory_space<vmem>>, vector<2x32xf32>
    tpu.vector_store %arg23[%c2_263, %c0_264], %798 {strides = array<i32>} : memref<16x32xf32, #tpu.memory_space<vmem>>, vector<2x32xf32>,
    %802 = vector.extract_strided_slice %310 {offsets = [14, 0], sizes = [2, 96], strides = [1, 1]} : vector<16x192xf32> to vector<2x96xf32>
    %803 = vector.extract_strided_slice %310 {offsets = [0, 96], sizes = [2, 96], strides = [1, 1]} : vector<16x192xf32> to vector<2x96xf32>
    %cst_265 = arith.constant dense<0.000000e+00> : vector<2x192xf32>
    %804 = tpu.matmul %799, %306, %cst_265 {dimension_numbers = #tpu.dot_dimension_numbers<[1], [0], [0], [1], [0, 0, 1, 1], [], []>} : vector<2x64xf32>, vector<64x192xf32>, vector<2x192xf32> -> vector<2x192xf32>
    %805 = vector.broadcast %304 : vector<1x192xf32> to vector<2x192xf32>
    %806 = arith.addf %804, %805 : vector<2x192xf32>
    %807 = vector.extract_strided_slice %802 {offsets = [0, 0], sizes = [2, 32], strides = [1, 1]} : vector<2x96xf32> to vector<2x32xf32>
    %808 = vector.extract_strided_slice %806 {offsets = [0, 0], sizes = [2, 32], strides = [1, 1]} : vector<2x192xf32> to vector<2x32xf32>
    %809 = arith.addf %807, %808 : vector<2x32xf32>
    %cst_266 = arith.constant 5.000000e-01 : f32
    %810 = vector.broadcast %cst_266 : f32 to vector<2x32xf32>
    %811 = arith.mulf %810, %809 : vector<2x32xf32>
    %812 = math.tanh %811 : vector<2x32xf32>
    %cst_267 = arith.constant 1.000000e+00 : f32
    %813 = vector.broadcast %cst_267 : f32 to vector<2x32xf32>
    %814 = arith.addf %812, %813 : vector<2x32xf32>
    %cst_268 = arith.constant 5.000000e-01 : f32
    %815 = vector.broadcast %cst_268 : f32 to vector<2x32xf32>
    %816 = arith.mulf %815, %814 : vector<2x32xf32>
    %817 = vector.extract_strided_slice %802 {offsets = [0, 32], sizes = [2, 32], strides = [1, 1]} : vector<2x96xf32> to vector<2x32xf32>
    %818 = vector.extract_strided_slice %806 {offsets = [0, 32], sizes = [2, 32], strides = [1, 1]} : vector<2x192xf32> to vector<2x32xf32>
    %819 = arith.addf %817, %818 : vector<2x32xf32>
    %cst_269 = arith.constant 5.000000e-01 : f32
    %820 = vector.broadcast %cst_269 : f32 to vector<2x32xf32>
    %821 = arith.mulf %820, %819 : vector<2x32xf32>
    %822 = math.tanh %821 : vector<2x32xf32>
    %cst_270 = arith.constant 1.000000e+00 : f32
    %823 = vector.broadcast %cst_270 : f32 to vector<2x32xf32>
    %824 = arith.addf %822, %823 : vector<2x32xf32>
    %cst_271 = arith.constant 5.000000e-01 : f32
    %825 = vector.broadcast %cst_271 : f32 to vector<2x32xf32>
    %826 = arith.mulf %825, %824 : vector<2x32xf32>
    %827 = vector.extract_strided_slice %802 {offsets = [0, 64], sizes = [2, 32], strides = [1, 1]} : vector<2x96xf32> to vector<2x32xf32>
    %828 = vector.extract_strided_slice %806 {offsets = [0, 64], sizes = [2, 32], strides = [1, 1]} : vector<2x192xf32> to vector<2x32xf32>
    %829 = arith.mulf %816, %828 : vector<2x32xf32>
    %830 = arith.addf %827, %829 : vector<2x32xf32>
    %831 = math.tanh %830 : vector<2x32xf32>
    %cst_272 = arith.constant 1.000000e+00 : f32
    %832 = vector.broadcast %cst_272 : f32 to vector<2x32xf32>
    %833 = arith.subf %832, %826 : vector<2x32xf32>
    %834 = arith.mulf %833, %831 : vector<2x32xf32>
    %835 = vector.extract_strided_slice %799 {offsets = [0, 0], sizes = [2, 32], strides = [1, 1]} : vector<2x64xf32> to vector<2x32xf32>
    %836 = arith.mulf %826, %835 : vector<2x32xf32>
    %837 = arith.addf %834, %836 : vector<2x32xf32>
    %838 = vector.extract_strided_slice %803 {offsets = [0, 0], sizes = [2, 32], strides = [1, 1]} : vector<2x96xf32> to vector<2x32xf32>
    %839 = vector.extract_strided_slice %806 {offsets = [0, 96], sizes = [2, 32], strides = [1, 1]} : vector<2x192xf32> to vector<2x32xf32>
    %840 = arith.addf %838, %839 : vector<2x32xf32>
    %cst_273 = arith.constant 5.000000e-01 : f32
    %841 = vector.broadcast %cst_273 : f32 to vector<2x32xf32>
    %842 = arith.mulf %841, %840 : vector<2x32xf32>
    %843 = math.tanh %842 : vector<2x32xf32>
    %cst_274 = arith.constant 1.000000e+00 : f32
    %844 = vector.broadcast %cst_274 : f32 to vector<2x32xf32>
    %845 = arith.addf %843, %844 : vector<2x32xf32>
    %cst_275 = arith.constant 5.000000e-01 : f32
    %846 = vector.broadcast %cst_275 : f32 to vector<2x32xf32>
    %847 = arith.mulf %846, %845 : vector<2x32xf32>
    %848 = vector.extract_strided_slice %803 {offsets = [0, 32], sizes = [2, 32], strides = [1, 1]} : vector<2x96xf32> to vector<2x32xf32>
    %849 = vector.extract_strided_slice %806 {offsets = [0, 128], sizes = [2, 32], strides = [1, 1]} : vector<2x192xf32> to vector<2x32xf32>
    %850 = arith.addf %848, %849 : vector<2x32xf32>
    %cst_276 = arith.constant 5.000000e-01 : f32
    %851 = vector.broadcast %cst_276 : f32 to vector<2x32xf32>
    %852 = arith.mulf %851, %850 : vector<2x32xf32>
    %853 = math.tanh %852 : vector<2x32xf32>
    %cst_277 = arith.constant 1.000000e+00 : f32
    %854 = vector.broadcast %cst_277 : f32 to vector<2x32xf32>
    %855 = arith.addf %853, %854 : vector<2x32xf32>
    %cst_278 = arith.constant 5.000000e-01 : f32
    %856 = vector.broadcast %cst_278 : f32 to vector<2x32xf32>
    %857 = arith.mulf %856, %855 : vector<2x32xf32>
    %858 = vector.extract_strided_slice %803 {offsets = [0, 64], sizes = [2, 32], strides = [1, 1]} : vector<2x96xf32> to vector<2x32xf32>
    %859 = vector.extract_strided_slice %806 {offsets = [0, 160], sizes = [2, 32], strides = [1, 1]} : vector<2x192xf32> to vector<2x32xf32>
    %860 = arith.mulf %847, %859 : vector<2x32xf32>
    %861 = arith.addf %858, %860 : vector<2x32xf32>
    %862 = math.tanh %861 : vector<2x32xf32>
    %cst_279 = arith.constant 1.000000e+00 : f32
    %863 = vector.broadcast %cst_279 : f32 to vector<2x32xf32>
    %864 = arith.subf %863, %857 : vector<2x32xf32>
    %865 = arith.mulf %864, %862 : vector<2x32xf32>
    %866 = vector.extract_strided_slice %799 {offsets = [0, 32], sizes = [2, 32], strides = [1, 1]} : vector<2x64xf32> to vector<2x32xf32>
    %867 = arith.mulf %857, %866 : vector<2x32xf32>
    %868 = arith.addf %865, %867 : vector<2x32xf32>
    %c14_280 = arith.constant 14 : index
    %c0_281 = arith.constant 0 : index
    %869 = vector.load %arg22[%c14_280, %c0_281] : memref<16x32xf32, #tpu.memory_space<vmem>>, vector<2x32xf32>
    tpu.vector_store %arg22[%c14_280, %c0_281], %837 {strides = array<i32>} : memref<16x32xf32, #tpu.memory_space<vmem>>, vector<2x32xf32>,
    %c0_282 = arith.constant 0 : index
    %c0_283 = arith.constant 0 : index
    %870 = vector.load %arg23[%c0_282, %c0_283] : memref<16x32xf32, #tpu.memory_space<vmem>>, vector<2x32xf32>
    tpu.vector_store %arg23[%c0_282, %c0_283], %868 {strides = array<i32>} : memref<16x32xf32, #tpu.memory_space<vmem>>, vector<2x32xf32>,
    %c1_284 = arith.constant 1 : index
    %c0_285 = arith.constant 0 : index
    %c0_286 = arith.constant 0 : index
    %871 = vector.load %arg17[%c1_284, %c0_285, %c0_286] : memref<3x1x192xf32, #tpu.memory_space<vmem>>, vector<1x1x192xf32>
    %872 = vector.shape_cast %871 : vector<1x1x192xf32> to vector<1x192xf32>
    %c1_287 = arith.constant 1 : index
    %c0_288 = arith.constant 0 : index
    %c0_289 = arith.constant 0 : index
    %873 = vector.load %arg18[%c1_287, %c0_288, %c0_289] : memref<3x1x192xf32, #tpu.memory_space<vmem>>, vector<1x1x192xf32>
    %874 = vector.shape_cast %873 : vector<1x1x192xf32> to vector<1x192xf32>
    %c1_290 = arith.constant 1 : index
    %c0_291 = arith.constant 0 : index
    %c0_292 = arith.constant 0 : index
    %875 = vector.load %arg16[%c1_290, %c0_291, %c0_292] : memref<3x64x192xf32, #tpu.memory_space<vmem>>, vector<1x64x192xf32>
    %876 = vector.shape_cast %875 : vector<1x64x192xf32> to vector<64x192xf32>
    %c0_293 = arith.constant 0 : index
    %c0_294 = arith.constant 0 : index
    %c0_295 = arith.constant 0 : index
    %877 = vector.load %arg15[%c0_293, %c0_294, %c0_295] : memref<2x64x192xf32, #tpu.memory_space<vmem>>, vector<1x64x192xf32>
    %878 = vector.shape_cast %877 : vector<1x64x192xf32> to vector<64x192xf32>
    %c0_296 = arith.constant 0 : index
    %c0_297 = arith.constant 0 : index
    %879 = vector.load %arg22[%c0_296, %c0_297] : memref<16x32xf32, #tpu.memory_space<vmem>>, vector<16x32xf32>
    %880 = vector.extract_strided_slice %878 {offsets = [0, 0], sizes = [32, 192], strides = [1, 1]} : vector<64x192xf32> to vector<32x192xf32>
    %cst_298 = arith.constant dense<0.000000e+00> : vector<16x192xf32>
    %881 = tpu.matmul %879, %880, %cst_298 {dimension_numbers = #tpu.dot_dimension_numbers<[1], [0], [0], [1], [0, 0, 1, 1], [], []>} : vector<16x32xf32>, vector<32x192xf32>, vector<16x192xf32> -> vector<16x192xf32>
    %c0_299 = arith.constant 0 : index
    %c0_300 = arith.constant 0 : index
    %882 = vector.load %arg23[%c0_299, %c0_300] : memref<16x32xf32, #tpu.memory_space<vmem>>, vector<16x32xf32>
    %883 = vector.extract_strided_slice %878 {offsets = [32, 0], sizes = [32, 192], strides = [1, 1]} : vector<64x192xf32> to vector<32x192xf32>
    %cst_301 = arith.constant dense<0.000000e+00> : vector<16x192xf32>
    %884 = tpu.matmul %882, %883, %cst_301 {dimension_numbers = #tpu.dot_dimension_numbers<[1], [0], [0], [1], [0, 0, 1, 1], [], []>} : vector<16x32xf32>, vector<32x192xf32>, vector<16x192xf32> -> vector<16x192xf32>
    %885 = arith.addf %881, %884 : vector<16x192xf32>
    %886 = vector.broadcast %872 : vector<1x192xf32> to vector<16x192xf32>
    %887 = arith.addf %885, %886 : vector<16x192xf32>
    %cst_302 = arith.constant 0.000000e+00 : f32
    %888 = vector.broadcast %cst_302 : f32 to vector<2x64xf32>
    %889 = vector.extract_strided_slice %887 {offsets = [0, 0], sizes = [2, 96], strides = [1, 1]} : vector<16x192xf32> to vector<2x96xf32>
    %890 = vector.extract_strided_slice %887 {offsets = [14, 96], sizes = [2, 96], strides = [1, 1]} : vector<16x192xf32> to vector<2x96xf32>
    %cst_303 = arith.constant dense<0.000000e+00> : vector<2x192xf32>
    %891 = tpu.matmul %888, %876, %cst_303 {dimension_numbers = #tpu.dot_dimension_numbers<[1], [0], [0], [1], [0, 0, 1, 1], [], []>} : vector<2x64xf32>, vector<64x192xf32>, vector<2x192xf32> -> vector<2x192xf32>
    %892 = vector.broadcast %874 : vector<1x192xf32> to vector<2x192xf32>
    %893 = arith.addf %891, %892 : vector<2x192xf32>
    %894 = vector.extract_strided_slice %889 {offsets = [0, 0], sizes = [2, 32], strides = [1, 1]} : vector<2x96xf32> to vector<2x32xf32>
    %895 = vector.extract_strided_slice %893 {offsets = [0, 0], sizes = [2, 32], strides = [1, 1]} : vector<2x192xf32> to vector<2x32xf32>
    %896 = arith.addf %894, %895 : vector<2x32xf32>
    %cst_304 = arith.constant 5.000000e-01 : f32
    %897 = vector.broadcast %cst_304 : f32 to vector<2x32xf32>
    %898 = arith.mulf %897, %896 : vector<2x32xf32>
    %899 = math.tanh %898 : vector<2x32xf32>
    %cst_305 = arith.constant 1.000000e+00 : f32
    %900 = vector.broadcast %cst_305 : f32 to vector<2x32xf32>
    %901 = arith.addf %899, %900 : vector<2x32xf32>
    %cst_306 = arith.constant 5.000000e-01 : f32
    %902 = vector.broadcast %cst_306 : f32 to vector<2x32xf32>
    %903 = arith.mulf %902, %901 : vector<2x32xf32>
    %904 = vector.extract_strided_slice %889 {offsets = [0, 32], sizes = [2, 32], strides = [1, 1]} : vector<2x96xf32> to vector<2x32xf32>
    %905 = vector.extract_strided_slice %893 {offsets = [0, 32], sizes = [2, 32], strides = [1, 1]} : vector<2x192xf32> to vector<2x32xf32>
    %906 = arith.addf %904, %905 : vector<2x32xf32>
    %cst_307 = arith.constant 5.000000e-01 : f32
    %907 = vector.broadcast %cst_307 : f32 to vector<2x32xf32>
    %908 = arith.mulf %907, %906 : vector<2x32xf32>
    %909 = math.tanh %908 : vector<2x32xf32>
    %cst_308 = arith.constant 1.000000e+00 : f32
    %910 = vector.broadcast %cst_308 : f32 to vector<2x32xf32>
    %911 = arith.addf %909, %910 : vector<2x32xf32>
    %cst_309 = arith.constant 5.000000e-01 : f32
    %912 = vector.broadcast %cst_309 : f32 to vector<2x32xf32>
    %913 = arith.mulf %912, %911 : vector<2x32xf32>
    %914 = vector.extract_strided_slice %889 {offsets = [0, 64], sizes = [2, 32], strides = [1, 1]} : vector<2x96xf32> to vector<2x32xf32>
    %915 = vector.extract_strided_slice %893 {offsets = [0, 64], sizes = [2, 32], strides = [1, 1]} : vector<2x192xf32> to vector<2x32xf32>
    %916 = arith.mulf %903, %915 : vector<2x32xf32>
    %917 = arith.addf %914, %916 : vector<2x32xf32>
    %918 = math.tanh %917 : vector<2x32xf32>
    %cst_310 = arith.constant 1.000000e+00 : f32
    %919 = vector.broadcast %cst_310 : f32 to vector<2x32xf32>
    %920 = arith.subf %919, %913 : vector<2x32xf32>
    %921 = arith.mulf %920, %918 : vector<2x32xf32>
    %922 = vector.extract_strided_slice %888 {offsets = [0, 0], sizes = [2, 32], strides = [1, 1]} : vector<2x64xf32> to vector<2x32xf32>
    %923 = arith.mulf %913, %922 : vector<2x32xf32>
    %924 = arith.addf %921, %923 : vector<2x32xf32>
    %925 = vector.extract_strided_slice %890 {offsets = [0, 0], sizes = [2, 32], strides = [1, 1]} : vector<2x96xf32> to vector<2x32xf32>
    %926 = vector.extract_strided_slice %893 {offsets = [0, 96], sizes = [2, 32], strides = [1, 1]} : vector<2x192xf32> to vector<2x32xf32>
    %927 = arith.addf %925, %926 : vector<2x32xf32>
    %cst_311 = arith.constant 5.000000e-01 : f32
    %928 = vector.broadcast %cst_311 : f32 to vector<2x32xf32>
    %929 = arith.mulf %928, %927 : vector<2x32xf32>
    %930 = math.tanh %929 : vector<2x32xf32>
    %cst_312 = arith.constant 1.000000e+00 : f32
    %931 = vector.broadcast %cst_312 : f32 to vector<2x32xf32>
    %932 = arith.addf %930, %931 : vector<2x32xf32>
    %cst_313 = arith.constant 5.000000e-01 : f32
    %933 = vector.broadcast %cst_313 : f32 to vector<2x32xf32>
    %934 = arith.mulf %933, %932 : vector<2x32xf32>
    %935 = vector.extract_strided_slice %890 {offsets = [0, 32], sizes = [2, 32], strides = [1, 1]} : vector<2x96xf32> to vector<2x32xf32>
    %936 = vector.extract_strided_slice %893 {offsets = [0, 128], sizes = [2, 32], strides = [1, 1]} : vector<2x192xf32> to vector<2x32xf32>
    %937 = arith.addf %935, %936 : vector<2x32xf32>
    %cst_314 = arith.constant 5.000000e-01 : f32
    %938 = vector.broadcast %cst_314 : f32 to vector<2x32xf32>
    %939 = arith.mulf %938, %937 : vector<2x32xf32>
    %940 = math.tanh %939 : vector<2x32xf32>
    %cst_315 = arith.constant 1.000000e+00 : f32
    %941 = vector.broadcast %cst_315 : f32 to vector<2x32xf32>
    %942 = arith.addf %940, %941 : vector<2x32xf32>
    %cst_316 = arith.constant 5.000000e-01 : f32
    %943 = vector.broadcast %cst_316 : f32 to vector<2x32xf32>
    %944 = arith.mulf %943, %942 : vector<2x32xf32>
    %945 = vector.extract_strided_slice %890 {offsets = [0, 64], sizes = [2, 32], strides = [1, 1]} : vector<2x96xf32> to vector<2x32xf32>
    %946 = vector.extract_strided_slice %893 {offsets = [0, 160], sizes = [2, 32], strides = [1, 1]} : vector<2x192xf32> to vector<2x32xf32>
    %947 = arith.mulf %934, %946 : vector<2x32xf32>
    %948 = arith.addf %945, %947 : vector<2x32xf32>
    %949 = math.tanh %948 : vector<2x32xf32>
    %cst_317 = arith.constant 1.000000e+00 : f32
    %950 = vector.broadcast %cst_317 : f32 to vector<2x32xf32>
    %951 = arith.subf %950, %944 : vector<2x32xf32>
    %952 = arith.mulf %951, %949 : vector<2x32xf32>
    %953 = vector.extract_strided_slice %888 {offsets = [0, 32], sizes = [2, 32], strides = [1, 1]} : vector<2x64xf32> to vector<2x32xf32>
    %954 = arith.mulf %944, %953 : vector<2x32xf32>
    %955 = arith.addf %952, %954 : vector<2x32xf32>
    %956 = tpu.concatenate %924, %955 in 1 : vector<2x32xf32>, vector<2x32xf32> -> vector<2x64xf32>
    %c0_318 = arith.constant 0 : index
    %c0_319 = arith.constant 0 : index
    %957 = vector.load %arg22[%c0_318, %c0_319] : memref<16x32xf32, #tpu.memory_space<vmem>>, vector<2x32xf32>
    tpu.vector_store %arg22[%c0_318, %c0_319], %924 {strides = array<i32>} : memref<16x32xf32, #tpu.memory_space<vmem>>, vector<2x32xf32>,
    %c14_320 = arith.constant 14 : index
    %c0_321 = arith.constant 0 : index
    %958 = vector.load %arg23[%c14_320, %c0_321] : memref<16x32xf32, #tpu.memory_space<vmem>>, vector<2x32xf32>
    tpu.vector_store %arg23[%c14_320, %c0_321], %955 {strides = array<i32>} : memref<16x32xf32, #tpu.memory_space<vmem>>, vector<2x32xf32>,
    %959 = vector.extract_strided_slice %887 {offsets = [2, 0], sizes = [2, 96], strides = [1, 1]} : vector<16x192xf32> to vector<2x96xf32>
    %960 = vector.extract_strided_slice %887 {offsets = [12, 96], sizes = [2, 96], strides = [1, 1]} : vector<16x192xf32> to vector<2x96xf32>
    %cst_322 = arith.constant dense<0.000000e+00> : vector<2x192xf32>
    %961 = tpu.matmul %956, %876, %cst_322 {dimension_numbers = #tpu.dot_dimension_numbers<[1], [0], [0], [1], [0, 0, 1, 1], [], []>} : vector<2x64xf32>, vector<64x192xf32>, vector<2x192xf32> -> vector<2x192xf32>
    %962 = vector.broadcast %874 : vector<1x192xf32> to vector<2x192xf32>
    %963 = arith.addf %961, %962 : vector<2x192xf32>
    %964 = vector.extract_strided_slice %959 {offsets = [0, 0], sizes = [2, 32], strides = [1, 1]} : vector<2x96xf32> to vector<2x32xf32>
    %965 = vector.extract_strided_slice %963 {offsets = [0, 0], sizes = [2, 32], strides = [1, 1]} : vector<2x192xf32> to vector<2x32xf32>
    %966 = arith.addf %964, %965 : vector<2x32xf32>
    %cst_323 = arith.constant 5.000000e-01 : f32
    %967 = vector.broadcast %cst_323 : f32 to vector<2x32xf32>
    %968 = arith.mulf %967, %966 : vector<2x32xf32>
    %969 = math.tanh %968 : vector<2x32xf32>
    %cst_324 = arith.constant 1.000000e+00 : f32
    %970 = vector.broadcast %cst_324 : f32 to vector<2x32xf32>
    %971 = arith.addf %969, %970 : vector<2x32xf32>
    %cst_325 = arith.constant 5.000000e-01 : f32
    %972 = vector.broadcast %cst_325 : f32 to vector<2x32xf32>
    %973 = arith.mulf %972, %971 : vector<2x32xf32>
    %974 = vector.extract_strided_slice %959 {offsets = [0, 32], sizes = [2, 32], strides = [1, 1]} : vector<2x96xf32> to vector<2x32xf32>
    %975 = vector.extract_strided_slice %963 {offsets = [0, 32], sizes = [2, 32], strides = [1, 1]} : vector<2x192xf32> to vector<2x32xf32>
    %976 = arith.addf %974, %975 : vector<2x32xf32>
    %cst_326 = arith.constant 5.000000e-01 : f32
    %977 = vector.broadcast %cst_326 : f32 to vector<2x32xf32>
    %978 = arith.mulf %977, %976 : vector<2x32xf32>
    %979 = math.tanh %978 : vector<2x32xf32>
    %cst_327 = arith.constant 1.000000e+00 : f32
    %980 = vector.broadcast %cst_327 : f32 to vector<2x32xf32>
    %981 = arith.addf %979, %980 : vector<2x32xf32>
    %cst_328 = arith.constant 5.000000e-01 : f32
    %982 = vector.broadcast %cst_328 : f32 to vector<2x32xf32>
    %983 = arith.mulf %982, %981 : vector<2x32xf32>
    %984 = vector.extract_strided_slice %959 {offsets = [0, 64], sizes = [2, 32], strides = [1, 1]} : vector<2x96xf32> to vector<2x32xf32>
    %985 = vector.extract_strided_slice %963 {offsets = [0, 64], sizes = [2, 32], strides = [1, 1]} : vector<2x192xf32> to vector<2x32xf32>
    %986 = arith.mulf %973, %985 : vector<2x32xf32>
    %987 = arith.addf %984, %986 : vector<2x32xf32>
    %988 = math.tanh %987 : vector<2x32xf32>
    %cst_329 = arith.constant 1.000000e+00 : f32
    %989 = vector.broadcast %cst_329 : f32 to vector<2x32xf32>
    %990 = arith.subf %989, %983 : vector<2x32xf32>
    %991 = arith.mulf %990, %988 : vector<2x32xf32>
    %992 = vector.extract_strided_slice %956 {offsets = [0, 0], sizes = [2, 32], strides = [1, 1]} : vector<2x64xf32> to vector<2x32xf32>
    %993 = arith.mulf %983, %992 : vector<2x32xf32>
    %994 = arith.addf %991, %993 : vector<2x32xf32>
    %995 = vector.extract_strided_slice %960 {offsets = [0, 0], sizes = [2, 32], strides = [1, 1]} : vector<2x96xf32> to vector<2x32xf32>
    %996 = vector.extract_strided_slice %963 {offsets = [0, 96], sizes = [2, 32], strides = [1, 1]} : vector<2x192xf32> to vector<2x32xf32>
    %997 = arith.addf %995, %996 : vector<2x32xf32>
    %cst_330 = arith.constant 5.000000e-01 : f32
    %998 = vector.broadcast %cst_330 : f32 to vector<2x32xf32>
    %999 = arith.mulf %998, %997 : vector<2x32xf32>
    %1000 = math.tanh %999 : vector<2x32xf32>
    %cst_331 = arith.constant 1.000000e+00 : f32
    %1001 = vector.broadcast %cst_331 : f32 to vector<2x32xf32>
    %1002 = arith.addf %1000, %1001 : vector<2x32xf32>
    %cst_332 = arith.constant 5.000000e-01 : f32
    %1003 = vector.broadcast %cst_332 : f32 to vector<2x32xf32>
    %1004 = arith.mulf %1003, %1002 : vector<2x32xf32>
    %1005 = vector.extract_strided_slice %960 {offsets = [0, 32], sizes = [2, 32], strides = [1, 1]} : vector<2x96xf32> to vector<2x32xf32>
    %1006 = vector.extract_strided_slice %963 {offsets = [0, 128], sizes = [2, 32], strides = [1, 1]} : vector<2x192xf32> to vector<2x32xf32>
    %1007 = arith.addf %1005, %1006 : vector<2x32xf32>
    %cst_333 = arith.constant 5.000000e-01 : f32
    %1008 = vector.broadcast %cst_333 : f32 to vector<2x32xf32>
    %1009 = arith.mulf %1008, %1007 : vector<2x32xf32>
    %1010 = math.tanh %1009 : vector<2x32xf32>
    %cst_334 = arith.constant 1.000000e+00 : f32
    %1011 = vector.broadcast %cst_334 : f32 to vector<2x32xf32>
    %1012 = arith.addf %1010, %1011 : vector<2x32xf32>
    %cst_335 = arith.constant 5.000000e-01 : f32
    %1013 = vector.broadcast %cst_335 : f32 to vector<2x32xf32>
    %1014 = arith.mulf %1013, %1012 : vector<2x32xf32>
    %1015 = vector.extract_strided_slice %960 {offsets = [0, 64], sizes = [2, 32], strides = [1, 1]} : vector<2x96xf32> to vector<2x32xf32>
    %1016 = vector.extract_strided_slice %963 {offsets = [0, 160], sizes = [2, 32], strides = [1, 1]} : vector<2x192xf32> to vector<2x32xf32>
    %1017 = arith.mulf %1004, %1016 : vector<2x32xf32>
    %1018 = arith.addf %1015, %1017 : vector<2x32xf32>
    %1019 = math.tanh %1018 : vector<2x32xf32>
    %cst_336 = arith.constant 1.000000e+00 : f32
    %1020 = vector.broadcast %cst_336 : f32 to vector<2x32xf32>
    %1021 = arith.subf %1020, %1014 : vector<2x32xf32>
    %1022 = arith.mulf %1021, %1019 : vector<2x32xf32>
    %1023 = vector.extract_strided_slice %956 {offsets = [0, 32], sizes = [2, 32], strides = [1, 1]} : vector<2x64xf32> to vector<2x32xf32>
    %1024 = arith.mulf %1014, %1023 : vector<2x32xf32>
    %1025 = arith.addf %1022, %1024 : vector<2x32xf32>
    %1026 = tpu.concatenate %994, %1025 in 1 : vector<2x32xf32>, vector<2x32xf32> -> vector<2x64xf32>
    %c2_337 = arith.constant 2 : index
    %c0_338 = arith.constant 0 : index
    %1027 = vector.load %arg22[%c2_337, %c0_338] : memref<16x32xf32, #tpu.memory_space<vmem>>, vector<2x32xf32>
    tpu.vector_store %arg22[%c2_337, %c0_338], %994 {strides = array<i32>} : memref<16x32xf32, #tpu.memory_space<vmem>>, vector<2x32xf32>,
    %c12_339 = arith.constant 12 : index
    %c0_340 = arith.constant 0 : index
    %1028 = vector.load %arg23[%c12_339, %c0_340] : memref<16x32xf32, #tpu.memory_space<vmem>>, vector<2x32xf32>
    tpu.vector_store %arg23[%c12_339, %c0_340], %1025 {strides = array<i32>} : memref<16x32xf32, #tpu.memory_space<vmem>>, vector<2x32xf32>,
    %1029 = vector.extract_strided_slice %887 {offsets = [4, 0], sizes = [2, 96], strides = [1, 1]} : vector<16x192xf32> to vector<2x96xf32>
    %1030 = vector.extract_strided_slice %887 {offsets = [10, 96], sizes = [2, 96], strides = [1, 1]} : vector<16x192xf32> to vector<2x96xf32>
    %cst_341 = arith.constant dense<0.000000e+00> : vector<2x192xf32>
    %1031 = tpu.matmul %1026, %876, %cst_341 {dimension_numbers = #tpu.dot_dimension_numbers<[1], [0], [0], [1], [0, 0, 1, 1], [], []>} : vector<2x64xf32>, vector<64x192xf32>, vector<2x192xf32> -> vector<2x192xf32>
    %1032 = vector.broadcast %874 : vector<1x192xf32> to vector<2x192xf32>
    %1033 = arith.addf %1031, %1032 : vector<2x192xf32>
    %1034 = vector.extract_strided_slice %1029 {offsets = [0, 0], sizes = [2, 32], strides = [1, 1]} : vector<2x96xf32> to vector<2x32xf32>
    %1035 = vector.extract_strided_slice %1033 {offsets = [0, 0], sizes = [2, 32], strides = [1, 1]} : vector<2x192xf32> to vector<2x32xf32>
    %1036 = arith.addf %1034, %1035 : vector<2x32xf32>
    %cst_342 = arith.constant 5.000000e-01 : f32
    %1037 = vector.broadcast %cst_342 : f32 to vector<2x32xf32>
    %1038 = arith.mulf %1037, %1036 : vector<2x32xf32>
    %1039 = math.tanh %1038 : vector<2x32xf32>
    %cst_343 = arith.constant 1.000000e+00 : f32
    %1040 = vector.broadcast %cst_343 : f32 to vector<2x32xf32>
    %1041 = arith.addf %1039, %1040 : vector<2x32xf32>
    %cst_344 = arith.constant 5.000000e-01 : f32
    %1042 = vector.broadcast %cst_344 : f32 to vector<2x32xf32>
    %1043 = arith.mulf %1042, %1041 : vector<2x32xf32>
    %1044 = vector.extract_strided_slice %1029 {offsets = [0, 32], sizes = [2, 32], strides = [1, 1]} : vector<2x96xf32> to vector<2x32xf32>
    %1045 = vector.extract_strided_slice %1033 {offsets = [0, 32], sizes = [2, 32], strides = [1, 1]} : vector<2x192xf32> to vector<2x32xf32>
    %1046 = arith.addf %1044, %1045 : vector<2x32xf32>
    %cst_345 = arith.constant 5.000000e-01 : f32
    %1047 = vector.broadcast %cst_345 : f32 to vector<2x32xf32>
    %1048 = arith.mulf %1047, %1046 : vector<2x32xf32>
    %1049 = math.tanh %1048 : vector<2x32xf32>
    %cst_346 = arith.constant 1.000000e+00 : f32
    %1050 = vector.broadcast %cst_346 : f32 to vector<2x32xf32>
    %1051 = arith.addf %1049, %1050 : vector<2x32xf32>
    %cst_347 = arith.constant 5.000000e-01 : f32
    %1052 = vector.broadcast %cst_347 : f32 to vector<2x32xf32>
    %1053 = arith.mulf %1052, %1051 : vector<2x32xf32>
    %1054 = vector.extract_strided_slice %1029 {offsets = [0, 64], sizes = [2, 32], strides = [1, 1]} : vector<2x96xf32> to vector<2x32xf32>
    %1055 = vector.extract_strided_slice %1033 {offsets = [0, 64], sizes = [2, 32], strides = [1, 1]} : vector<2x192xf32> to vector<2x32xf32>
    %1056 = arith.mulf %1043, %1055 : vector<2x32xf32>
    %1057 = arith.addf %1054, %1056 : vector<2x32xf32>
    %1058 = math.tanh %1057 : vector<2x32xf32>
    %cst_348 = arith.constant 1.000000e+00 : f32
    %1059 = vector.broadcast %cst_348 : f32 to vector<2x32xf32>
    %1060 = arith.subf %1059, %1053 : vector<2x32xf32>
    %1061 = arith.mulf %1060, %1058 : vector<2x32xf32>
    %1062 = vector.extract_strided_slice %1026 {offsets = [0, 0], sizes = [2, 32], strides = [1, 1]} : vector<2x64xf32> to vector<2x32xf32>
    %1063 = arith.mulf %1053, %1062 : vector<2x32xf32>
    %1064 = arith.addf %1061, %1063 : vector<2x32xf32>
    %1065 = vector.extract_strided_slice %1030 {offsets = [0, 0], sizes = [2, 32], strides = [1, 1]} : vector<2x96xf32> to vector<2x32xf32>
    %1066 = vector.extract_strided_slice %1033 {offsets = [0, 96], sizes = [2, 32], strides = [1, 1]} : vector<2x192xf32> to vector<2x32xf32>
    %1067 = arith.addf %1065, %1066 : vector<2x32xf32>
    %cst_349 = arith.constant 5.000000e-01 : f32
    %1068 = vector.broadcast %cst_349 : f32 to vector<2x32xf32>
    %1069 = arith.mulf %1068, %1067 : vector<2x32xf32>
    %1070 = math.tanh %1069 : vector<2x32xf32>
    %cst_350 = arith.constant 1.000000e+00 : f32
    %1071 = vector.broadcast %cst_350 : f32 to vector<2x32xf32>
    %1072 = arith.addf %1070, %1071 : vector<2x32xf32>
    %cst_351 = arith.constant 5.000000e-01 : f32
    %1073 = vector.broadcast %cst_351 : f32 to vector<2x32xf32>
    %1074 = arith.mulf %1073, %1072 : vector<2x32xf32>
    %1075 = vector.extract_strided_slice %1030 {offsets = [0, 32], sizes = [2, 32], strides = [1, 1]} : vector<2x96xf32> to vector<2x32xf32>
    %1076 = vector.extract_strided_slice %1033 {offsets = [0, 128], sizes = [2, 32], strides = [1, 1]} : vector<2x192xf32> to vector<2x32xf32>
    %1077 = arith.addf %1075, %1076 : vector<2x32xf32>
    %cst_352 = arith.constant 5.000000e-01 : f32
    %1078 = vector.broadcast %cst_352 : f32 to vector<2x32xf32>
    %1079 = arith.mulf %1078, %1077 : vector<2x32xf32>
    %1080 = math.tanh %1079 : vector<2x32xf32>
    %cst_353 = arith.constant 1.000000e+00 : f32
    %1081 = vector.broadcast %cst_353 : f32 to vector<2x32xf32>
    %1082 = arith.addf %1080, %1081 : vector<2x32xf32>
    %cst_354 = arith.constant 5.000000e-01 : f32
    %1083 = vector.broadcast %cst_354 : f32 to vector<2x32xf32>
    %1084 = arith.mulf %1083, %1082 : vector<2x32xf32>
    %1085 = vector.extract_strided_slice %1030 {offsets = [0, 64], sizes = [2, 32], strides = [1, 1]} : vector<2x96xf32> to vector<2x32xf32>
    %1086 = vector.extract_strided_slice %1033 {offsets = [0, 160], sizes = [2, 32], strides = [1, 1]} : vector<2x192xf32> to vector<2x32xf32>
    %1087 = arith.mulf %1074, %1086 : vector<2x32xf32>
    %1088 = arith.addf %1085, %1087 : vector<2x32xf32>
    %1089 = math.tanh %1088 : vector<2x32xf32>
    %cst_355 = arith.constant 1.000000e+00 : f32
    %1090 = vector.broadcast %cst_355 : f32 to vector<2x32xf32>
    %1091 = arith.subf %1090, %1084 : vector<2x32xf32>
    %1092 = arith.mulf %1091, %1089 : vector<2x32xf32>
    %1093 = vector.extract_strided_slice %1026 {offsets = [0, 32], sizes = [2, 32], strides = [1, 1]} : vector<2x64xf32> to vector<2x32xf32>
    %1094 = arith.mulf %1084, %1093 : vector<2x32xf32>
    %1095 = arith.addf %1092, %1094 : vector<2x32xf32>
    %1096 = tpu.concatenate %1064, %1095 in 1 : vector<2x32xf32>, vector<2x32xf32> -> vector<2x64xf32>
    %c4_356 = arith.constant 4 : index
    %c0_357 = arith.constant 0 : index
    %1097 = vector.load %arg22[%c4_356, %c0_357] : memref<16x32xf32, #tpu.memory_space<vmem>>, vector<2x32xf32>
    tpu.vector_store %arg22[%c4_356, %c0_357], %1064 {strides = array<i32>} : memref<16x32xf32, #tpu.memory_space<vmem>>, vector<2x32xf32>,
    %c10_358 = arith.constant 10 : index
    %c0_359 = arith.constant 0 : index
    %1098 = vector.load %arg23[%c10_358, %c0_359] : memref<16x32xf32, #tpu.memory_space<vmem>>, vector<2x32xf32>
    tpu.vector_store %arg23[%c10_358, %c0_359], %1095 {strides = array<i32>} : memref<16x32xf32, #tpu.memory_space<vmem>>, vector<2x32xf32>,
    %1099 = vector.extract_strided_slice %887 {offsets = [6, 0], sizes = [2, 96], strides = [1, 1]} : vector<16x192xf32> to vector<2x96xf32>
    %1100 = vector.extract_strided_slice %887 {offsets = [8, 96], sizes = [2, 96], strides = [1, 1]} : vector<16x192xf32> to vector<2x96xf32>
    %cst_360 = arith.constant dense<0.000000e+00> : vector<2x192xf32>
    %1101 = tpu.matmul %1096, %876, %cst_360 {dimension_numbers = #tpu.dot_dimension_numbers<[1], [0], [0], [1], [0, 0, 1, 1], [], []>} : vector<2x64xf32>, vector<64x192xf32>, vector<2x192xf32> -> vector<2x192xf32>
    %1102 = vector.broadcast %874 : vector<1x192xf32> to vector<2x192xf32>
    %1103 = arith.addf %1101, %1102 : vector<2x192xf32>
    %1104 = vector.extract_strided_slice %1099 {offsets = [0, 0], sizes = [2, 32], strides = [1, 1]} : vector<2x96xf32> to vector<2x32xf32>
    %1105 = vector.extract_strided_slice %1103 {offsets = [0, 0], sizes = [2, 32], strides = [1, 1]} : vector<2x192xf32> to vector<2x32xf32>
    %1106 = arith.addf %1104, %1105 : vector<2x32xf32>
    %cst_361 = arith.constant 5.000000e-01 : f32
    %1107 = vector.broadcast %cst_361 : f32 to vector<2x32xf32>
    %1108 = arith.mulf %1107, %1106 : vector<2x32xf32>
    %1109 = math.tanh %1108 : vector<2x32xf32>
    %cst_362 = arith.constant 1.000000e+00 : f32
    %1110 = vector.broadcast %cst_362 : f32 to vector<2x32xf32>
    %1111 = arith.addf %1109, %1110 : vector<2x32xf32>
    %cst_363 = arith.constant 5.000000e-01 : f32
    %1112 = vector.broadcast %cst_363 : f32 to vector<2x32xf32>
    %1113 = arith.mulf %1112, %1111 : vector<2x32xf32>
    %1114 = vector.extract_strided_slice %1099 {offsets = [0, 32], sizes = [2, 32], strides = [1, 1]} : vector<2x96xf32> to vector<2x32xf32>
    %1115 = vector.extract_strided_slice %1103 {offsets = [0, 32], sizes = [2, 32], strides = [1, 1]} : vector<2x192xf32> to vector<2x32xf32>
    %1116 = arith.addf %1114, %1115 : vector<2x32xf32>
    %cst_364 = arith.constant 5.000000e-01 : f32
    %1117 = vector.broadcast %cst_364 : f32 to vector<2x32xf32>
    %1118 = arith.mulf %1117, %1116 : vector<2x32xf32>
    %1119 = math.tanh %1118 : vector<2x32xf32>
    %cst_365 = arith.constant 1.000000e+00 : f32
    %1120 = vector.broadcast %cst_365 : f32 to vector<2x32xf32>
    %1121 = arith.addf %1119, %1120 : vector<2x32xf32>
    %cst_366 = arith.constant 5.000000e-01 : f32
    %1122 = vector.broadcast %cst_366 : f32 to vector<2x32xf32>
    %1123 = arith.mulf %1122, %1121 : vector<2x32xf32>
    %1124 = vector.extract_strided_slice %1099 {offsets = [0, 64], sizes = [2, 32], strides = [1, 1]} : vector<2x96xf32> to vector<2x32xf32>
    %1125 = vector.extract_strided_slice %1103 {offsets = [0, 64], sizes = [2, 32], strides = [1, 1]} : vector<2x192xf32> to vector<2x32xf32>
    %1126 = arith.mulf %1113, %1125 : vector<2x32xf32>
    %1127 = arith.addf %1124, %1126 : vector<2x32xf32>
    %1128 = math.tanh %1127 : vector<2x32xf32>
    %cst_367 = arith.constant 1.000000e+00 : f32
    %1129 = vector.broadcast %cst_367 : f32 to vector<2x32xf32>
    %1130 = arith.subf %1129, %1123 : vector<2x32xf32>
    %1131 = arith.mulf %1130, %1128 : vector<2x32xf32>
    %1132 = vector.extract_strided_slice %1096 {offsets = [0, 0], sizes = [2, 32], strides = [1, 1]} : vector<2x64xf32> to vector<2x32xf32>
    %1133 = arith.mulf %1123, %1132 : vector<2x32xf32>
    %1134 = arith.addf %1131, %1133 : vector<2x32xf32>
    %1135 = vector.extract_strided_slice %1100 {offsets = [0, 0], sizes = [2, 32], strides = [1, 1]} : vector<2x96xf32> to vector<2x32xf32>
    %1136 = vector.extract_strided_slice %1103 {offsets = [0, 96], sizes = [2, 32], strides = [1, 1]} : vector<2x192xf32> to vector<2x32xf32>
    %1137 = arith.addf %1135, %1136 : vector<2x32xf32>
    %cst_368 = arith.constant 5.000000e-01 : f32
    %1138 = vector.broadcast %cst_368 : f32 to vector<2x32xf32>
    %1139 = arith.mulf %1138, %1137 : vector<2x32xf32>
    %1140 = math.tanh %1139 : vector<2x32xf32>
    %cst_369 = arith.constant 1.000000e+00 : f32
    %1141 = vector.broadcast %cst_369 : f32 to vector<2x32xf32>
    %1142 = arith.addf %1140, %1141 : vector<2x32xf32>
    %cst_370 = arith.constant 5.000000e-01 : f32
    %1143 = vector.broadcast %cst_370 : f32 to vector<2x32xf32>
    %1144 = arith.mulf %1143, %1142 : vector<2x32xf32>
    %1145 = vector.extract_strided_slice %1100 {offsets = [0, 32], sizes = [2, 32], strides = [1, 1]} : vector<2x96xf32> to vector<2x32xf32>
    %1146 = vector.extract_strided_slice %1103 {offsets = [0, 128], sizes = [2, 32], strides = [1, 1]} : vector<2x192xf32> to vector<2x32xf32>
    %1147 = arith.addf %1145, %1146 : vector<2x32xf32>
    %cst_371 = arith.constant 5.000000e-01 : f32
    %1148 = vector.broadcast %cst_371 : f32 to vector<2x32xf32>
    %1149 = arith.mulf %1148, %1147 : vector<2x32xf32>
    %1150 = math.tanh %1149 : vector<2x32xf32>
    %cst_372 = arith.constant 1.000000e+00 : f32
    %1151 = vector.broadcast %cst_372 : f32 to vector<2x32xf32>
    %1152 = arith.addf %1150, %1151 : vector<2x32xf32>
    %cst_373 = arith.constant 5.000000e-01 : f32
    %1153 = vector.broadcast %cst_373 : f32 to vector<2x32xf32>
    %1154 = arith.mulf %1153, %1152 : vector<2x32xf32>
    %1155 = vector.extract_strided_slice %1100 {offsets = [0, 64], sizes = [2, 32], strides = [1, 1]} : vector<2x96xf32> to vector<2x32xf32>
    %1156 = vector.extract_strided_slice %1103 {offsets = [0, 160], sizes = [2, 32], strides = [1, 1]} : vector<2x192xf32> to vector<2x32xf32>
    %1157 = arith.mulf %1144, %1156 : vector<2x32xf32>
    %1158 = arith.addf %1155, %1157 : vector<2x32xf32>
    %1159 = math.tanh %1158 : vector<2x32xf32>
    %cst_374 = arith.constant 1.000000e+00 : f32
    %1160 = vector.broadcast %cst_374 : f32 to vector<2x32xf32>
    %1161 = arith.subf %1160, %1154 : vector<2x32xf32>
    %1162 = arith.mulf %1161, %1159 : vector<2x32xf32>
    %1163 = vector.extract_strided_slice %1096 {offsets = [0, 32], sizes = [2, 32], strides = [1, 1]} : vector<2x64xf32> to vector<2x32xf32>
    %1164 = arith.mulf %1154, %1163 : vector<2x32xf32>
    %1165 = arith.addf %1162, %1164 : vector<2x32xf32>
    %1166 = tpu.concatenate %1134, %1165 in 1 : vector<2x32xf32>, vector<2x32xf32> -> vector<2x64xf32>
    %c6_375 = arith.constant 6 : index
    %c0_376 = arith.constant 0 : index
    %1167 = vector.load %arg22[%c6_375, %c0_376] : memref<16x32xf32, #tpu.memory_space<vmem>>, vector<2x32xf32>
    tpu.vector_store %arg22[%c6_375, %c0_376], %1134 {strides = array<i32>} : memref<16x32xf32, #tpu.memory_space<vmem>>, vector<2x32xf32>,
    %c8_377 = arith.constant 8 : index
    %c0_378 = arith.constant 0 : index
    %1168 = vector.load %arg23[%c8_377, %c0_378] : memref<16x32xf32, #tpu.memory_space<vmem>>, vector<2x32xf32>
    tpu.vector_store %arg23[%c8_377, %c0_378], %1165 {strides = array<i32>} : memref<16x32xf32, #tpu.memory_space<vmem>>, vector<2x32xf32>,
    %1169 = vector.extract_strided_slice %887 {offsets = [8, 0], sizes = [2, 96], strides = [1, 1]} : vector<16x192xf32> to vector<2x96xf32>
    %1170 = vector.extract_strided_slice %887 {offsets = [6, 96], sizes = [2, 96], strides = [1, 1]} : vector<16x192xf32> to vector<2x96xf32>
    %cst_379 = arith.constant dense<0.000000e+00> : vector<2x192xf32>
    %1171 = tpu.matmul %1166, %876, %cst_379 {dimension_numbers = #tpu.dot_dimension_numbers<[1], [0], [0], [1], [0, 0, 1, 1], [], []>} : vector<2x64xf32>, vector<64x192xf32>, vector<2x192xf32> -> vector<2x192xf32>
    %1172 = vector.broadcast %874 : vector<1x192xf32> to vector<2x192xf32>
    %1173 = arith.addf %1171, %1172 : vector<2x192xf32>
    %1174 = vector.extract_strided_slice %1169 {offsets = [0, 0], sizes = [2, 32], strides = [1, 1]} : vector<2x96xf32> to vector<2x32xf32>
    %1175 = vector.extract_strided_slice %1173 {offsets = [0, 0], sizes = [2, 32], strides = [1, 1]} : vector<2x192xf32> to vector<2x32xf32>
    %1176 = arith.addf %1174, %1175 : vector<2x32xf32>
    %cst_380 = arith.constant 5.000000e-01 : f32
    %1177 = vector.broadcast %cst_380 : f32 to vector<2x32xf32>
    %1178 = arith.mulf %1177, %1176 : vector<2x32xf32>
    %1179 = math.tanh %1178 : vector<2x32xf32>
    %cst_381 = arith.constant 1.000000e+00 : f32
    %1180 = vector.broadcast %cst_381 : f32 to vector<2x32xf32>
    %1181 = arith.addf %1179, %1180 : vector<2x32xf32>
    %cst_382 = arith.constant 5.000000e-01 : f32
    %1182 = vector.broadcast %cst_382 : f32 to vector<2x32xf32>
    %1183 = arith.mulf %1182, %1181 : vector<2x32xf32>
    %1184 = vector.extract_strided_slice %1169 {offsets = [0, 32], sizes = [2, 32], strides = [1, 1]} : vector<2x96xf32> to vector<2x32xf32>
    %1185 = vector.extract_strided_slice %1173 {offsets = [0, 32], sizes = [2, 32], strides = [1, 1]} : vector<2x192xf32> to vector<2x32xf32>
    %1186 = arith.addf %1184, %1185 : vector<2x32xf32>
    %cst_383 = arith.constant 5.000000e-01 : f32
    %1187 = vector.broadcast %cst_383 : f32 to vector<2x32xf32>
    %1188 = arith.mulf %1187, %1186 : vector<2x32xf32>
    %1189 = math.tanh %1188 : vector<2x32xf32>
    %cst_384 = arith.constant 1.000000e+00 : f32
    %1190 = vector.broadcast %cst_384 : f32 to vector<2x32xf32>
    %1191 = arith.addf %1189, %1190 : vector<2x32xf32>
    %cst_385 = arith.constant 5.000000e-01 : f32
    %1192 = vector.broadcast %cst_385 : f32 to vector<2x32xf32>
    %1193 = arith.mulf %1192, %1191 : vector<2x32xf32>
    %1194 = vector.extract_strided_slice %1169 {offsets = [0, 64], sizes = [2, 32], strides = [1, 1]} : vector<2x96xf32> to vector<2x32xf32>
    %1195 = vector.extract_strided_slice %1173 {offsets = [0, 64], sizes = [2, 32], strides = [1, 1]} : vector<2x192xf32> to vector<2x32xf32>
    %1196 = arith.mulf %1183, %1195 : vector<2x32xf32>
    %1197 = arith.addf %1194, %1196 : vector<2x32xf32>
    %1198 = math.tanh %1197 : vector<2x32xf32>
    %cst_386 = arith.constant 1.000000e+00 : f32
    %1199 = vector.broadcast %cst_386 : f32 to vector<2x32xf32>
    %1200 = arith.subf %1199, %1193 : vector<2x32xf32>
    %1201 = arith.mulf %1200, %1198 : vector<2x32xf32>
    %1202 = vector.extract_strided_slice %1166 {offsets = [0, 0], sizes = [2, 32], strides = [1, 1]} : vector<2x64xf32> to vector<2x32xf32>
    %1203 = arith.mulf %1193, %1202 : vector<2x32xf32>
    %1204 = arith.addf %1201, %1203 : vector<2x32xf32>
    %1205 = vector.extract_strided_slice %1170 {offsets = [0, 0], sizes = [2, 32], strides = [1, 1]} : vector<2x96xf32> to vector<2x32xf32>
    %1206 = vector.extract_strided_slice %1173 {offsets = [0, 96], sizes = [2, 32], strides = [1, 1]} : vector<2x192xf32> to vector<2x32xf32>
    %1207 = arith.addf %1205, %1206 : vector<2x32xf32>
    %cst_387 = arith.constant 5.000000e-01 : f32
    %1208 = vector.broadcast %cst_387 : f32 to vector<2x32xf32>
    %1209 = arith.mulf %1208, %1207 : vector<2x32xf32>
    %1210 = math.tanh %1209 : vector<2x32xf32>
    %cst_388 = arith.constant 1.000000e+00 : f32
    %1211 = vector.broadcast %cst_388 : f32 to vector<2x32xf32>
    %1212 = arith.addf %1210, %1211 : vector<2x32xf32>
    %cst_389 = arith.constant 5.000000e-01 : f32
    %1213 = vector.broadcast %cst_389 : f32 to vector<2x32xf32>
    %1214 = arith.mulf %1213, %1212 : vector<2x32xf32>
    %1215 = vector.extract_strided_slice %1170 {offsets = [0, 32], sizes = [2, 32], strides = [1, 1]} : vector<2x96xf32> to vector<2x32xf32>
    %1216 = vector.extract_strided_slice %1173 {offsets = [0, 128], sizes = [2, 32], strides = [1, 1]} : vector<2x192xf32> to vector<2x32xf32>
    %1217 = arith.addf %1215, %1216 : vector<2x32xf32>
    %cst_390 = arith.constant 5.000000e-01 : f32
    %1218 = vector.broadcast %cst_390 : f32 to vector<2x32xf32>
    %1219 = arith.mulf %1218, %1217 : vector<2x32xf32>
    %1220 = math.tanh %1219 : vector<2x32xf32>
    %cst_391 = arith.constant 1.000000e+00 : f32
    %1221 = vector.broadcast %cst_391 : f32 to vector<2x32xf32>
    %1222 = arith.addf %1220, %1221 : vector<2x32xf32>
    %cst_392 = arith.constant 5.000000e-01 : f32
    %1223 = vector.broadcast %cst_392 : f32 to vector<2x32xf32>
    %1224 = arith.mulf %1223, %1222 : vector<2x32xf32>
    %1225 = vector.extract_strided_slice %1170 {offsets = [0, 64], sizes = [2, 32], strides = [1, 1]} : vector<2x96xf32> to vector<2x32xf32>
    %1226 = vector.extract_strided_slice %1173 {offsets = [0, 160], sizes = [2, 32], strides = [1, 1]} : vector<2x192xf32> to vector<2x32xf32>
    %1227 = arith.mulf %1214, %1226 : vector<2x32xf32>
    %1228 = arith.addf %1225, %1227 : vector<2x32xf32>
    %1229 = math.tanh %1228 : vector<2x32xf32>
    %cst_393 = arith.constant 1.000000e+00 : f32
    %1230 = vector.broadcast %cst_393 : f32 to vector<2x32xf32>
    %1231 = arith.subf %1230, %1224 : vector<2x32xf32>
    %1232 = arith.mulf %1231, %1229 : vector<2x32xf32>
    %1233 = vector.extract_strided_slice %1166 {offsets = [0, 32], sizes = [2, 32], strides = [1, 1]} : vector<2x64xf32> to vector<2x32xf32>
    %1234 = arith.mulf %1224, %1233 : vector<2x32xf32>
    %1235 = arith.addf %1232, %1234 : vector<2x32xf32>
    %1236 = tpu.concatenate %1204, %1235 in 1 : vector<2x32xf32>, vector<2x32xf32> -> vector<2x64xf32>
    %c8_394 = arith.constant 8 : index
    %c0_395 = arith.constant 0 : index
    %1237 = vector.load %arg22[%c8_394, %c0_395] : memref<16x32xf32, #tpu.memory_space<vmem>>, vector<2x32xf32>
    tpu.vector_store %arg22[%c8_394, %c0_395], %1204 {strides = array<i32>} : memref<16x32xf32, #tpu.memory_space<vmem>>, vector<2x32xf32>,
    %c6_396 = arith.constant 6 : index
    %c0_397 = arith.constant 0 : index
    %1238 = vector.load %arg23[%c6_396, %c0_397] : memref<16x32xf32, #tpu.memory_space<vmem>>, vector<2x32xf32>
    tpu.vector_store %arg23[%c6_396, %c0_397], %1235 {strides = array<i32>} : memref<16x32xf32, #tpu.memory_space<vmem>>, vector<2x32xf32>,
    %1239 = vector.extract_strided_slice %887 {offsets = [10, 0], sizes = [2, 96], strides = [1, 1]} : vector<16x192xf32> to vector<2x96xf32>
    %1240 = vector.extract_strided_slice %887 {offsets = [4, 96], sizes = [2, 96], strides = [1, 1]} : vector<16x192xf32> to vector<2x96xf32>
    %cst_398 = arith.constant dense<0.000000e+00> : vector<2x192xf32>
    %1241 = tpu.matmul %1236, %876, %cst_398 {dimension_numbers = #tpu.dot_dimension_numbers<[1], [0], [0], [1], [0, 0, 1, 1], [], []>} : vector<2x64xf32>, vector<64x192xf32>, vector<2x192xf32> -> vector<2x192xf32>
    %1242 = vector.broadcast %874 : vector<1x192xf32> to vector<2x192xf32>
    %1243 = arith.addf %1241, %1242 : vector<2x192xf32>
    %1244 = vector.extract_strided_slice %1239 {offsets = [0, 0], sizes = [2, 32], strides = [1, 1]} : vector<2x96xf32> to vector<2x32xf32>
    %1245 = vector.extract_strided_slice %1243 {offsets = [0, 0], sizes = [2, 32], strides = [1, 1]} : vector<2x192xf32> to vector<2x32xf32>
    %1246 = arith.addf %1244, %1245 : vector<2x32xf32>
    %cst_399 = arith.constant 5.000000e-01 : f32
    %1247 = vector.broadcast %cst_399 : f32 to vector<2x32xf32>
    %1248 = arith.mulf %1247, %1246 : vector<2x32xf32>
    %1249 = math.tanh %1248 : vector<2x32xf32>
    %cst_400 = arith.constant 1.000000e+00 : f32
    %1250 = vector.broadcast %cst_400 : f32 to vector<2x32xf32>
    %1251 = arith.addf %1249, %1250 : vector<2x32xf32>
    %cst_401 = arith.constant 5.000000e-01 : f32
    %1252 = vector.broadcast %cst_401 : f32 to vector<2x32xf32>
    %1253 = arith.mulf %1252, %1251 : vector<2x32xf32>
    %1254 = vector.extract_strided_slice %1239 {offsets = [0, 32], sizes = [2, 32], strides = [1, 1]} : vector<2x96xf32> to vector<2x32xf32>
    %1255 = vector.extract_strided_slice %1243 {offsets = [0, 32], sizes = [2, 32], strides = [1, 1]} : vector<2x192xf32> to vector<2x32xf32>
    %1256 = arith.addf %1254, %1255 : vector<2x32xf32>
    %cst_402 = arith.constant 5.000000e-01 : f32
    %1257 = vector.broadcast %cst_402 : f32 to vector<2x32xf32>
    %1258 = arith.mulf %1257, %1256 : vector<2x32xf32>
    %1259 = math.tanh %1258 : vector<2x32xf32>
    %cst_403 = arith.constant 1.000000e+00 : f32
    %1260 = vector.broadcast %cst_403 : f32 to vector<2x32xf32>
    %1261 = arith.addf %1259, %1260 : vector<2x32xf32>
    %cst_404 = arith.constant 5.000000e-01 : f32
    %1262 = vector.broadcast %cst_404 : f32 to vector<2x32xf32>
    %1263 = arith.mulf %1262, %1261 : vector<2x32xf32>
    %1264 = vector.extract_strided_slice %1239 {offsets = [0, 64], sizes = [2, 32], strides = [1, 1]} : vector<2x96xf32> to vector<2x32xf32>
    %1265 = vector.extract_strided_slice %1243 {offsets = [0, 64], sizes = [2, 32], strides = [1, 1]} : vector<2x192xf32> to vector<2x32xf32>
    %1266 = arith.mulf %1253, %1265 : vector<2x32xf32>
    %1267 = arith.addf %1264, %1266 : vector<2x32xf32>
    %1268 = math.tanh %1267 : vector<2x32xf32>
    %cst_405 = arith.constant 1.000000e+00 : f32
    %1269 = vector.broadcast %cst_405 : f32 to vector<2x32xf32>
    %1270 = arith.subf %1269, %1263 : vector<2x32xf32>
    %1271 = arith.mulf %1270, %1268 : vector<2x32xf32>
    %1272 = vector.extract_strided_slice %1236 {offsets = [0, 0], sizes = [2, 32], strides = [1, 1]} : vector<2x64xf32> to vector<2x32xf32>
    %1273 = arith.mulf %1263, %1272 : vector<2x32xf32>
    %1274 = arith.addf %1271, %1273 : vector<2x32xf32>
    %1275 = vector.extract_strided_slice %1240 {offsets = [0, 0], sizes = [2, 32], strides = [1, 1]} : vector<2x96xf32> to vector<2x32xf32>
    %1276 = vector.extract_strided_slice %1243 {offsets = [0, 96], sizes = [2, 32], strides = [1, 1]} : vector<2x192xf32> to vector<2x32xf32>
    %1277 = arith.addf %1275, %1276 : vector<2x32xf32>
    %cst_406 = arith.constant 5.000000e-01 : f32
    %1278 = vector.broadcast %cst_406 : f32 to vector<2x32xf32>
    %1279 = arith.mulf %1278, %1277 : vector<2x32xf32>
    %1280 = math.tanh %1279 : vector<2x32xf32>
    %cst_407 = arith.constant 1.000000e+00 : f32
    %1281 = vector.broadcast %cst_407 : f32 to vector<2x32xf32>
    %1282 = arith.addf %1280, %1281 : vector<2x32xf32>
    %cst_408 = arith.constant 5.000000e-01 : f32
    %1283 = vector.broadcast %cst_408 : f32 to vector<2x32xf32>
    %1284 = arith.mulf %1283, %1282 : vector<2x32xf32>
    %1285 = vector.extract_strided_slice %1240 {offsets = [0, 32], sizes = [2, 32], strides = [1, 1]} : vector<2x96xf32> to vector<2x32xf32>
    %1286 = vector.extract_strided_slice %1243 {offsets = [0, 128], sizes = [2, 32], strides = [1, 1]} : vector<2x192xf32> to vector<2x32xf32>
    %1287 = arith.addf %1285, %1286 : vector<2x32xf32>
    %cst_409 = arith.constant 5.000000e-01 : f32
    %1288 = vector.broadcast %cst_409 : f32 to vector<2x32xf32>
    %1289 = arith.mulf %1288, %1287 : vector<2x32xf32>
    %1290 = math.tanh %1289 : vector<2x32xf32>
    %cst_410 = arith.constant 1.000000e+00 : f32
    %1291 = vector.broadcast %cst_410 : f32 to vector<2x32xf32>
    %1292 = arith.addf %1290, %1291 : vector<2x32xf32>
    %cst_411 = arith.constant 5.000000e-01 : f32
    %1293 = vector.broadcast %cst_411 : f32 to vector<2x32xf32>
    %1294 = arith.mulf %1293, %1292 : vector<2x32xf32>
    %1295 = vector.extract_strided_slice %1240 {offsets = [0, 64], sizes = [2, 32], strides = [1, 1]} : vector<2x96xf32> to vector<2x32xf32>
    %1296 = vector.extract_strided_slice %1243 {offsets = [0, 160], sizes = [2, 32], strides = [1, 1]} : vector<2x192xf32> to vector<2x32xf32>
    %1297 = arith.mulf %1284, %1296 : vector<2x32xf32>
    %1298 = arith.addf %1295, %1297 : vector<2x32xf32>
    %1299 = math.tanh %1298 : vector<2x32xf32>
    %cst_412 = arith.constant 1.000000e+00 : f32
    %1300 = vector.broadcast %cst_412 : f32 to vector<2x32xf32>
    %1301 = arith.subf %1300, %1294 : vector<2x32xf32>
    %1302 = arith.mulf %1301, %1299 : vector<2x32xf32>
    %1303 = vector.extract_strided_slice %1236 {offsets = [0, 32], sizes = [2, 32], strides = [1, 1]} : vector<2x64xf32> to vector<2x32xf32>
    %1304 = arith.mulf %1294, %1303 : vector<2x32xf32>
    %1305 = arith.addf %1302, %1304 : vector<2x32xf32>
    %1306 = tpu.concatenate %1274, %1305 in 1 : vector<2x32xf32>, vector<2x32xf32> -> vector<2x64xf32>
    %c10_413 = arith.constant 10 : index
    %c0_414 = arith.constant 0 : index
    %1307 = vector.load %arg22[%c10_413, %c0_414] : memref<16x32xf32, #tpu.memory_space<vmem>>, vector<2x32xf32>
    tpu.vector_store %arg22[%c10_413, %c0_414], %1274 {strides = array<i32>} : memref<16x32xf32, #tpu.memory_space<vmem>>, vector<2x32xf32>,
    %c4_415 = arith.constant 4 : index
    %c0_416 = arith.constant 0 : index
    %1308 = vector.load %arg23[%c4_415, %c0_416] : memref<16x32xf32, #tpu.memory_space<vmem>>, vector<2x32xf32>
    tpu.vector_store %arg23[%c4_415, %c0_416], %1305 {strides = array<i32>} : memref<16x32xf32, #tpu.memory_space<vmem>>, vector<2x32xf32>,
    %1309 = vector.extract_strided_slice %887 {offsets = [12, 0], sizes = [2, 96], strides = [1, 1]} : vector<16x192xf32> to vector<2x96xf32>
    %1310 = vector.extract_strided_slice %887 {offsets = [2, 96], sizes = [2, 96], strides = [1, 1]} : vector<16x192xf32> to vector<2x96xf32>
    %cst_417 = arith.constant dense<0.000000e+00> : vector<2x192xf32>
    %1311 = tpu.matmul %1306, %876, %cst_417 {dimension_numbers = #tpu.dot_dimension_numbers<[1], [0], [0], [1], [0, 0, 1, 1], [], []>} : vector<2x64xf32>, vector<64x192xf32>, vector<2x192xf32> -> vector<2x192xf32>
    %1312 = vector.broadcast %874 : vector<1x192xf32> to vector<2x192xf32>
    %1313 = arith.addf %1311, %1312 : vector<2x192xf32>
    %1314 = vector.extract_strided_slice %1309 {offsets = [0, 0], sizes = [2, 32], strides = [1, 1]} : vector<2x96xf32> to vector<2x32xf32>
    %1315 = vector.extract_strided_slice %1313 {offsets = [0, 0], sizes = [2, 32], strides = [1, 1]} : vector<2x192xf32> to vector<2x32xf32>
    %1316 = arith.addf %1314, %1315 : vector<2x32xf32>
    %cst_418 = arith.constant 5.000000e-01 : f32
    %1317 = vector.broadcast %cst_418 : f32 to vector<2x32xf32>
    %1318 = arith.mulf %1317, %1316 : vector<2x32xf32>
    %1319 = math.tanh %1318 : vector<2x32xf32>
    %cst_419 = arith.constant 1.000000e+00 : f32
    %1320 = vector.broadcast %cst_419 : f32 to vector<2x32xf32>
    %1321 = arith.addf %1319, %1320 : vector<2x32xf32>
    %cst_420 = arith.constant 5.000000e-01 : f32
    %1322 = vector.broadcast %cst_420 : f32 to vector<2x32xf32>
    %1323 = arith.mulf %1322, %1321 : vector<2x32xf32>
    %1324 = vector.extract_strided_slice %1309 {offsets = [0, 32], sizes = [2, 32], strides = [1, 1]} : vector<2x96xf32> to vector<2x32xf32>
    %1325 = vector.extract_strided_slice %1313 {offsets = [0, 32], sizes = [2, 32], strides = [1, 1]} : vector<2x192xf32> to vector<2x32xf32>
    %1326 = arith.addf %1324, %1325 : vector<2x32xf32>
    %cst_421 = arith.constant 5.000000e-01 : f32
    %1327 = vector.broadcast %cst_421 : f32 to vector<2x32xf32>
    %1328 = arith.mulf %1327, %1326 : vector<2x32xf32>
    %1329 = math.tanh %1328 : vector<2x32xf32>
    %cst_422 = arith.constant 1.000000e+00 : f32
    %1330 = vector.broadcast %cst_422 : f32 to vector<2x32xf32>
    %1331 = arith.addf %1329, %1330 : vector<2x32xf32>
    %cst_423 = arith.constant 5.000000e-01 : f32
    %1332 = vector.broadcast %cst_423 : f32 to vector<2x32xf32>
    %1333 = arith.mulf %1332, %1331 : vector<2x32xf32>
    %1334 = vector.extract_strided_slice %1309 {offsets = [0, 64], sizes = [2, 32], strides = [1, 1]} : vector<2x96xf32> to vector<2x32xf32>
    %1335 = vector.extract_strided_slice %1313 {offsets = [0, 64], sizes = [2, 32], strides = [1, 1]} : vector<2x192xf32> to vector<2x32xf32>
    %1336 = arith.mulf %1323, %1335 : vector<2x32xf32>
    %1337 = arith.addf %1334, %1336 : vector<2x32xf32>
    %1338 = math.tanh %1337 : vector<2x32xf32>
    %cst_424 = arith.constant 1.000000e+00 : f32
    %1339 = vector.broadcast %cst_424 : f32 to vector<2x32xf32>
    %1340 = arith.subf %1339, %1333 : vector<2x32xf32>
    %1341 = arith.mulf %1340, %1338 : vector<2x32xf32>
    %1342 = vector.extract_strided_slice %1306 {offsets = [0, 0], sizes = [2, 32], strides = [1, 1]} : vector<2x64xf32> to vector<2x32xf32>
    %1343 = arith.mulf %1333, %1342 : vector<2x32xf32>
    %1344 = arith.addf %1341, %1343 : vector<2x32xf32>
    %1345 = vector.extract_strided_slice %1310 {offsets = [0, 0], sizes = [2, 32], strides = [1, 1]} : vector<2x96xf32> to vector<2x32xf32>
    %1346 = vector.extract_strided_slice %1313 {offsets = [0, 96], sizes = [2, 32], strides = [1, 1]} : vector<2x192xf32> to vector<2x32xf32>
    %1347 = arith.addf %1345, %1346 : vector<2x32xf32>
    %cst_425 = arith.constant 5.000000e-01 : f32
    %1348 = vector.broadcast %cst_425 : f32 to vector<2x32xf32>
    %1349 = arith.mulf %1348, %1347 : vector<2x32xf32>
    %1350 = math.tanh %1349 : vector<2x32xf32>
    %cst_426 = arith.constant 1.000000e+00 : f32
    %1351 = vector.broadcast %cst_426 : f32 to vector<2x32xf32>
    %1352 = arith.addf %1350, %1351 : vector<2x32xf32>
    %cst_427 = arith.constant 5.000000e-01 : f32
    %1353 = vector.broadcast %cst_427 : f32 to vector<2x32xf32>
    %1354 = arith.mulf %1353, %1352 : vector<2x32xf32>
    %1355 = vector.extract_strided_slice %1310 {offsets = [0, 32], sizes = [2, 32], strides = [1, 1]} : vector<2x96xf32> to vector<2x32xf32>
    %1356 = vector.extract_strided_slice %1313 {offsets = [0, 128], sizes = [2, 32], strides = [1, 1]} : vector<2x192xf32> to vector<2x32xf32>
    %1357 = arith.addf %1355, %1356 : vector<2x32xf32>
    %cst_428 = arith.constant 5.000000e-01 : f32
    %1358 = vector.broadcast %cst_428 : f32 to vector<2x32xf32>
    %1359 = arith.mulf %1358, %1357 : vector<2x32xf32>
    %1360 = math.tanh %1359 : vector<2x32xf32>
    %cst_429 = arith.constant 1.000000e+00 : f32
    %1361 = vector.broadcast %cst_429 : f32 to vector<2x32xf32>
    %1362 = arith.addf %1360, %1361 : vector<2x32xf32>
    %cst_430 = arith.constant 5.000000e-01 : f32
    %1363 = vector.broadcast %cst_430 : f32 to vector<2x32xf32>
    %1364 = arith.mulf %1363, %1362 : vector<2x32xf32>
    %1365 = vector.extract_strided_slice %1310 {offsets = [0, 64], sizes = [2, 32], strides = [1, 1]} : vector<2x96xf32> to vector<2x32xf32>
    %1366 = vector.extract_strided_slice %1313 {offsets = [0, 160], sizes = [2, 32], strides = [1, 1]} : vector<2x192xf32> to vector<2x32xf32>
    %1367 = arith.mulf %1354, %1366 : vector<2x32xf32>
    %1368 = arith.addf %1365, %1367 : vector<2x32xf32>
    %1369 = math.tanh %1368 : vector<2x32xf32>
    %cst_431 = arith.constant 1.000000e+00 : f32
    %1370 = vector.broadcast %cst_431 : f32 to vector<2x32xf32>
    %1371 = arith.subf %1370, %1364 : vector<2x32xf32>
    %1372 = arith.mulf %1371, %1369 : vector<2x32xf32>
    %1373 = vector.extract_strided_slice %1306 {offsets = [0, 32], sizes = [2, 32], strides = [1, 1]} : vector<2x64xf32> to vector<2x32xf32>
    %1374 = arith.mulf %1364, %1373 : vector<2x32xf32>
    %1375 = arith.addf %1372, %1374 : vector<2x32xf32>
    %1376 = tpu.concatenate %1344, %1375 in 1 : vector<2x32xf32>, vector<2x32xf32> -> vector<2x64xf32>
    %c12_432 = arith.constant 12 : index
    %c0_433 = arith.constant 0 : index
    %1377 = vector.load %arg22[%c12_432, %c0_433] : memref<16x32xf32, #tpu.memory_space<vmem>>, vector<2x32xf32>
    tpu.vector_store %arg22[%c12_432, %c0_433], %1344 {strides = array<i32>} : memref<16x32xf32, #tpu.memory_space<vmem>>, vector<2x32xf32>,
    %c2_434 = arith.constant 2 : index
    %c0_435 = arith.constant 0 : index
    %1378 = vector.load %arg23[%c2_434, %c0_435] : memref<16x32xf32, #tpu.memory_space<vmem>>, vector<2x32xf32>
    tpu.vector_store %arg23[%c2_434, %c0_435], %1375 {strides = array<i32>} : memref<16x32xf32, #tpu.memory_space<vmem>>, vector<2x32xf32>,
    %1379 = vector.extract_strided_slice %887 {offsets = [14, 0], sizes = [2, 96], strides = [1, 1]} : vector<16x192xf32> to vector<2x96xf32>
    %1380 = vector.extract_strided_slice %887 {offsets = [0, 96], sizes = [2, 96], strides = [1, 1]} : vector<16x192xf32> to vector<2x96xf32>
    %cst_436 = arith.constant dense<0.000000e+00> : vector<2x192xf32>
    %1381 = tpu.matmul %1376, %876, %cst_436 {dimension_numbers = #tpu.dot_dimension_numbers<[1], [0], [0], [1], [0, 0, 1, 1], [], []>} : vector<2x64xf32>, vector<64x192xf32>, vector<2x192xf32> -> vector<2x192xf32>
    %1382 = vector.broadcast %874 : vector<1x192xf32> to vector<2x192xf32>
    %1383 = arith.addf %1381, %1382 : vector<2x192xf32>
    %1384 = vector.extract_strided_slice %1379 {offsets = [0, 0], sizes = [2, 32], strides = [1, 1]} : vector<2x96xf32> to vector<2x32xf32>
    %1385 = vector.extract_strided_slice %1383 {offsets = [0, 0], sizes = [2, 32], strides = [1, 1]} : vector<2x192xf32> to vector<2x32xf32>
    %1386 = arith.addf %1384, %1385 : vector<2x32xf32>
    %cst_437 = arith.constant 5.000000e-01 : f32
    %1387 = vector.broadcast %cst_437 : f32 to vector<2x32xf32>
    %1388 = arith.mulf %1387, %1386 : vector<2x32xf32>
    %1389 = math.tanh %1388 : vector<2x32xf32>
    %cst_438 = arith.constant 1.000000e+00 : f32
    %1390 = vector.broadcast %cst_438 : f32 to vector<2x32xf32>
    %1391 = arith.addf %1389, %1390 : vector<2x32xf32>
    %cst_439 = arith.constant 5.000000e-01 : f32
    %1392 = vector.broadcast %cst_439 : f32 to vector<2x32xf32>
    %1393 = arith.mulf %1392, %1391 : vector<2x32xf32>
    %1394 = vector.extract_strided_slice %1379 {offsets = [0, 32], sizes = [2, 32], strides = [1, 1]} : vector<2x96xf32> to vector<2x32xf32>
    %1395 = vector.extract_strided_slice %1383 {offsets = [0, 32], sizes = [2, 32], strides = [1, 1]} : vector<2x192xf32> to vector<2x32xf32>
    %1396 = arith.addf %1394, %1395 : vector<2x32xf32>
    %cst_440 = arith.constant 5.000000e-01 : f32
    %1397 = vector.broadcast %cst_440 : f32 to vector<2x32xf32>
    %1398 = arith.mulf %1397, %1396 : vector<2x32xf32>
    %1399 = math.tanh %1398 : vector<2x32xf32>
    %cst_441 = arith.constant 1.000000e+00 : f32
    %1400 = vector.broadcast %cst_441 : f32 to vector<2x32xf32>
    %1401 = arith.addf %1399, %1400 : vector<2x32xf32>
    %cst_442 = arith.constant 5.000000e-01 : f32
    %1402 = vector.broadcast %cst_442 : f32 to vector<2x32xf32>
    %1403 = arith.mulf %1402, %1401 : vector<2x32xf32>
    %1404 = vector.extract_strided_slice %1379 {offsets = [0, 64], sizes = [2, 32], strides = [1, 1]} : vector<2x96xf32> to vector<2x32xf32>
    %1405 = vector.extract_strided_slice %1383 {offsets = [0, 64], sizes = [2, 32], strides = [1, 1]} : vector<2x192xf32> to vector<2x32xf32>
    %1406 = arith.mulf %1393, %1405 : vector<2x32xf32>
    %1407 = arith.addf %1404, %1406 : vector<2x32xf32>
    %1408 = math.tanh %1407 : vector<2x32xf32>
    %cst_443 = arith.constant 1.000000e+00 : f32
    %1409 = vector.broadcast %cst_443 : f32 to vector<2x32xf32>
    %1410 = arith.subf %1409, %1403 : vector<2x32xf32>
    %1411 = arith.mulf %1410, %1408 : vector<2x32xf32>
    %1412 = vector.extract_strided_slice %1376 {offsets = [0, 0], sizes = [2, 32], strides = [1, 1]} : vector<2x64xf32> to vector<2x32xf32>
    %1413 = arith.mulf %1403, %1412 : vector<2x32xf32>
    %1414 = arith.addf %1411, %1413 : vector<2x32xf32>
    %1415 = vector.extract_strided_slice %1380 {offsets = [0, 0], sizes = [2, 32], strides = [1, 1]} : vector<2x96xf32> to vector<2x32xf32>
    %1416 = vector.extract_strided_slice %1383 {offsets = [0, 96], sizes = [2, 32], strides = [1, 1]} : vector<2x192xf32> to vector<2x32xf32>
    %1417 = arith.addf %1415, %1416 : vector<2x32xf32>
    %cst_444 = arith.constant 5.000000e-01 : f32
    %1418 = vector.broadcast %cst_444 : f32 to vector<2x32xf32>
    %1419 = arith.mulf %1418, %1417 : vector<2x32xf32>
    %1420 = math.tanh %1419 : vector<2x32xf32>
    %cst_445 = arith.constant 1.000000e+00 : f32
    %1421 = vector.broadcast %cst_445 : f32 to vector<2x32xf32>
    %1422 = arith.addf %1420, %1421 : vector<2x32xf32>
    %cst_446 = arith.constant 5.000000e-01 : f32
    %1423 = vector.broadcast %cst_446 : f32 to vector<2x32xf32>
    %1424 = arith.mulf %1423, %1422 : vector<2x32xf32>
    %1425 = vector.extract_strided_slice %1380 {offsets = [0, 32], sizes = [2, 32], strides = [1, 1]} : vector<2x96xf32> to vector<2x32xf32>
    %1426 = vector.extract_strided_slice %1383 {offsets = [0, 128], sizes = [2, 32], strides = [1, 1]} : vector<2x192xf32> to vector<2x32xf32>
    %1427 = arith.addf %1425, %1426 : vector<2x32xf32>
    %cst_447 = arith.constant 5.000000e-01 : f32
    %1428 = vector.broadcast %cst_447 : f32 to vector<2x32xf32>
    %1429 = arith.mulf %1428, %1427 : vector<2x32xf32>
    %1430 = math.tanh %1429 : vector<2x32xf32>
    %cst_448 = arith.constant 1.000000e+00 : f32
    %1431 = vector.broadcast %cst_448 : f32 to vector<2x32xf32>
    %1432 = arith.addf %1430, %1431 : vector<2x32xf32>
    %cst_449 = arith.constant 5.000000e-01 : f32
    %1433 = vector.broadcast %cst_449 : f32 to vector<2x32xf32>
    %1434 = arith.mulf %1433, %1432 : vector<2x32xf32>
    %1435 = vector.extract_strided_slice %1380 {offsets = [0, 64], sizes = [2, 32], strides = [1, 1]} : vector<2x96xf32> to vector<2x32xf32>
    %1436 = vector.extract_strided_slice %1383 {offsets = [0, 160], sizes = [2, 32], strides = [1, 1]} : vector<2x192xf32> to vector<2x32xf32>
    %1437 = arith.mulf %1424, %1436 : vector<2x32xf32>
    %1438 = arith.addf %1435, %1437 : vector<2x32xf32>
    %1439 = math.tanh %1438 : vector<2x32xf32>
    %cst_450 = arith.constant 1.000000e+00 : f32
    %1440 = vector.broadcast %cst_450 : f32 to vector<2x32xf32>
    %1441 = arith.subf %1440, %1434 : vector<2x32xf32>
    %1442 = arith.mulf %1441, %1439 : vector<2x32xf32>
    %1443 = vector.extract_strided_slice %1376 {offsets = [0, 32], sizes = [2, 32], strides = [1, 1]} : vector<2x64xf32> to vector<2x32xf32>
    %1444 = arith.mulf %1434, %1443 : vector<2x32xf32>
    %1445 = arith.addf %1442, %1444 : vector<2x32xf32>
    %c14_451 = arith.constant 14 : index
    %c0_452 = arith.constant 0 : index
    %1446 = vector.load %arg22[%c14_451, %c0_452] : memref<16x32xf32, #tpu.memory_space<vmem>>, vector<2x32xf32>
    tpu.vector_store %arg22[%c14_451, %c0_452], %1414 {strides = array<i32>} : memref<16x32xf32, #tpu.memory_space<vmem>>, vector<2x32xf32>,
    %c0_453 = arith.constant 0 : index
    %c0_454 = arith.constant 0 : index
    %1447 = vector.load %arg23[%c0_453, %c0_454] : memref<16x32xf32, #tpu.memory_space<vmem>>, vector<2x32xf32>
    tpu.vector_store %arg23[%c0_453, %c0_454], %1445 {strides = array<i32>} : memref<16x32xf32, #tpu.memory_space<vmem>>, vector<2x32xf32>,
    %c2_455 = arith.constant 2 : index
    %c0_456 = arith.constant 0 : index
    %c0_457 = arith.constant 0 : index
    %1448 = vector.load %arg17[%c2_455, %c0_456, %c0_457] : memref<3x1x192xf32, #tpu.memory_space<vmem>>, vector<1x1x192xf32>
    %1449 = vector.shape_cast %1448 : vector<1x1x192xf32> to vector<1x192xf32>
    %c2_458 = arith.constant 2 : index
    %c0_459 = arith.constant 0 : index
    %c0_460 = arith.constant 0 : index
    %1450 = vector.load %arg18[%c2_458, %c0_459, %c0_460] : memref<3x1x192xf32, #tpu.memory_space<vmem>>, vector<1x1x192xf32>
    %1451 = vector.shape_cast %1450 : vector<1x1x192xf32> to vector<1x192xf32>
    %c2_461 = arith.constant 2 : index
    %c0_462 = arith.constant 0 : index
    %c0_463 = arith.constant 0 : index
    %1452 = vector.load %arg16[%c2_461, %c0_462, %c0_463] : memref<3x64x192xf32, #tpu.memory_space<vmem>>, vector<1x64x192xf32>
    %1453 = vector.shape_cast %1452 : vector<1x64x192xf32> to vector<64x192xf32>
    %c1_464 = arith.constant 1 : index
    %c0_465 = arith.constant 0 : index
    %c0_466 = arith.constant 0 : index
    %1454 = vector.load %arg15[%c1_464, %c0_465, %c0_466] : memref<2x64x192xf32, #tpu.memory_space<vmem>>, vector<1x64x192xf32>
    %1455 = vector.shape_cast %1454 : vector<1x64x192xf32> to vector<64x192xf32>
    %c0_467 = arith.constant 0 : index
    %c0_468 = arith.constant 0 : index
    %1456 = vector.load %arg22[%c0_467, %c0_468] : memref<16x32xf32, #tpu.memory_space<vmem>>, vector<16x32xf32>
    %1457 = vector.extract_strided_slice %1455 {offsets = [0, 0], sizes = [32, 192], strides = [1, 1]} : vector<64x192xf32> to vector<32x192xf32>
    %cst_469 = arith.constant dense<0.000000e+00> : vector<16x192xf32>
    %1458 = tpu.matmul %1456, %1457, %cst_469 {dimension_numbers = #tpu.dot_dimension_numbers<[1], [0], [0], [1], [0, 0, 1, 1], [], []>} : vector<16x32xf32>, vector<32x192xf32>, vector<16x192xf32> -> vector<16x192xf32>
    %c0_470 = arith.constant 0 : index
    %c0_471 = arith.constant 0 : index
    %1459 = vector.load %arg23[%c0_470, %c0_471] : memref<16x32xf32, #tpu.memory_space<vmem>>, vector<16x32xf32>
    %1460 = vector.extract_strided_slice %1455 {offsets = [32, 0], sizes = [32, 192], strides = [1, 1]} : vector<64x192xf32> to vector<32x192xf32>
    %cst_472 = arith.constant dense<0.000000e+00> : vector<16x192xf32>
    %1461 = tpu.matmul %1459, %1460, %cst_472 {dimension_numbers = #tpu.dot_dimension_numbers<[1], [0], [0], [1], [0, 0, 1, 1], [], []>} : vector<16x32xf32>, vector<32x192xf32>, vector<16x192xf32> -> vector<16x192xf32>
    %1462 = arith.addf %1458, %1461 : vector<16x192xf32>
    %1463 = vector.broadcast %1449 : vector<1x192xf32> to vector<16x192xf32>
    %1464 = arith.addf %1462, %1463 : vector<16x192xf32>
    %cst_473 = arith.constant 0.000000e+00 : f32
    %1465 = vector.broadcast %cst_473 : f32 to vector<2x64xf32>
    %1466 = vector.extract_strided_slice %1464 {offsets = [0, 0], sizes = [2, 96], strides = [1, 1]} : vector<16x192xf32> to vector<2x96xf32>
    %1467 = vector.extract_strided_slice %1464 {offsets = [14, 96], sizes = [2, 96], strides = [1, 1]} : vector<16x192xf32> to vector<2x96xf32>
    %cst_474 = arith.constant dense<0.000000e+00> : vector<2x192xf32>
    %1468 = tpu.matmul %1465, %1453, %cst_474 {dimension_numbers = #tpu.dot_dimension_numbers<[1], [0], [0], [1], [0, 0, 1, 1], [], []>} : vector<2x64xf32>, vector<64x192xf32>, vector<2x192xf32> -> vector<2x192xf32>
    %1469 = vector.broadcast %1451 : vector<1x192xf32> to vector<2x192xf32>
    %1470 = arith.addf %1468, %1469 : vector<2x192xf32>
    %1471 = vector.extract_strided_slice %1466 {offsets = [0, 0], sizes = [2, 32], strides = [1, 1]} : vector<2x96xf32> to vector<2x32xf32>
    %1472 = vector.extract_strided_slice %1470 {offsets = [0, 0], sizes = [2, 32], strides = [1, 1]} : vector<2x192xf32> to vector<2x32xf32>
    %1473 = arith.addf %1471, %1472 : vector<2x32xf32>
    %cst_475 = arith.constant 5.000000e-01 : f32
    %1474 = vector.broadcast %cst_475 : f32 to vector<2x32xf32>
    %1475 = arith.mulf %1474, %1473 : vector<2x32xf32>
    %1476 = math.tanh %1475 : vector<2x32xf32>
    %cst_476 = arith.constant 1.000000e+00 : f32
    %1477 = vector.broadcast %cst_476 : f32 to vector<2x32xf32>
    %1478 = arith.addf %1476, %1477 : vector<2x32xf32>
    %cst_477 = arith.constant 5.000000e-01 : f32
    %1479 = vector.broadcast %cst_477 : f32 to vector<2x32xf32>
    %1480 = arith.mulf %1479, %1478 : vector<2x32xf32>
    %1481 = vector.extract_strided_slice %1466 {offsets = [0, 32], sizes = [2, 32], strides = [1, 1]} : vector<2x96xf32> to vector<2x32xf32>
    %1482 = vector.extract_strided_slice %1470 {offsets = [0, 32], sizes = [2, 32], strides = [1, 1]} : vector<2x192xf32> to vector<2x32xf32>
    %1483 = arith.addf %1481, %1482 : vector<2x32xf32>
    %cst_478 = arith.constant 5.000000e-01 : f32
    %1484 = vector.broadcast %cst_478 : f32 to vector<2x32xf32>
    %1485 = arith.mulf %1484, %1483 : vector<2x32xf32>
    %1486 = math.tanh %1485 : vector<2x32xf32>
    %cst_479 = arith.constant 1.000000e+00 : f32
    %1487 = vector.broadcast %cst_479 : f32 to vector<2x32xf32>
    %1488 = arith.addf %1486, %1487 : vector<2x32xf32>
    %cst_480 = arith.constant 5.000000e-01 : f32
    %1489 = vector.broadcast %cst_480 : f32 to vector<2x32xf32>
    %1490 = arith.mulf %1489, %1488 : vector<2x32xf32>
    %1491 = vector.extract_strided_slice %1466 {offsets = [0, 64], sizes = [2, 32], strides = [1, 1]} : vector<2x96xf32> to vector<2x32xf32>
    %1492 = vector.extract_strided_slice %1470 {offsets = [0, 64], sizes = [2, 32], strides = [1, 1]} : vector<2x192xf32> to vector<2x32xf32>
    %1493 = arith.mulf %1480, %1492 : vector<2x32xf32>
    %1494 = arith.addf %1491, %1493 : vector<2x32xf32>
    %1495 = math.tanh %1494 : vector<2x32xf32>
    %cst_481 = arith.constant 1.000000e+00 : f32
    %1496 = vector.broadcast %cst_481 : f32 to vector<2x32xf32>
    %1497 = arith.subf %1496, %1490 : vector<2x32xf32>
    %1498 = arith.mulf %1497, %1495 : vector<2x32xf32>
    %1499 = vector.extract_strided_slice %1465 {offsets = [0, 0], sizes = [2, 32], strides = [1, 1]} : vector<2x64xf32> to vector<2x32xf32>
    %1500 = arith.mulf %1490, %1499 : vector<2x32xf32>
    %1501 = arith.addf %1498, %1500 : vector<2x32xf32>
    %1502 = vector.extract_strided_slice %1467 {offsets = [0, 0], sizes = [2, 32], strides = [1, 1]} : vector<2x96xf32> to vector<2x32xf32>
    %1503 = vector.extract_strided_slice %1470 {offsets = [0, 96], sizes = [2, 32], strides = [1, 1]} : vector<2x192xf32> to vector<2x32xf32>
    %1504 = arith.addf %1502, %1503 : vector<2x32xf32>
    %cst_482 = arith.constant 5.000000e-01 : f32
    %1505 = vector.broadcast %cst_482 : f32 to vector<2x32xf32>
    %1506 = arith.mulf %1505, %1504 : vector<2x32xf32>
    %1507 = math.tanh %1506 : vector<2x32xf32>
    %cst_483 = arith.constant 1.000000e+00 : f32
    %1508 = vector.broadcast %cst_483 : f32 to vector<2x32xf32>
    %1509 = arith.addf %1507, %1508 : vector<2x32xf32>
    %cst_484 = arith.constant 5.000000e-01 : f32
    %1510 = vector.broadcast %cst_484 : f32 to vector<2x32xf32>
    %1511 = arith.mulf %1510, %1509 : vector<2x32xf32>
    %1512 = vector.extract_strided_slice %1467 {offsets = [0, 32], sizes = [2, 32], strides = [1, 1]} : vector<2x96xf32> to vector<2x32xf32>
    %1513 = vector.extract_strided_slice %1470 {offsets = [0, 128], sizes = [2, 32], strides = [1, 1]} : vector<2x192xf32> to vector<2x32xf32>
    %1514 = arith.addf %1512, %1513 : vector<2x32xf32>
    %cst_485 = arith.constant 5.000000e-01 : f32
    %1515 = vector.broadcast %cst_485 : f32 to vector<2x32xf32>
    %1516 = arith.mulf %1515, %1514 : vector<2x32xf32>
    %1517 = math.tanh %1516 : vector<2x32xf32>
    %cst_486 = arith.constant 1.000000e+00 : f32
    %1518 = vector.broadcast %cst_486 : f32 to vector<2x32xf32>
    %1519 = arith.addf %1517, %1518 : vector<2x32xf32>
    %cst_487 = arith.constant 5.000000e-01 : f32
    %1520 = vector.broadcast %cst_487 : f32 to vector<2x32xf32>
    %1521 = arith.mulf %1520, %1519 : vector<2x32xf32>
    %1522 = vector.extract_strided_slice %1467 {offsets = [0, 64], sizes = [2, 32], strides = [1, 1]} : vector<2x96xf32> to vector<2x32xf32>
    %1523 = vector.extract_strided_slice %1470 {offsets = [0, 160], sizes = [2, 32], strides = [1, 1]} : vector<2x192xf32> to vector<2x32xf32>
    %1524 = arith.mulf %1511, %1523 : vector<2x32xf32>
    %1525 = arith.addf %1522, %1524 : vector<2x32xf32>
    %1526 = math.tanh %1525 : vector<2x32xf32>
    %cst_488 = arith.constant 1.000000e+00 : f32
    %1527 = vector.broadcast %cst_488 : f32 to vector<2x32xf32>
    %1528 = arith.subf %1527, %1521 : vector<2x32xf32>
    %1529 = arith.mulf %1528, %1526 : vector<2x32xf32>
    %1530 = vector.extract_strided_slice %1465 {offsets = [0, 32], sizes = [2, 32], strides = [1, 1]} : vector<2x64xf32> to vector<2x32xf32>
    %1531 = arith.mulf %1521, %1530 : vector<2x32xf32>
    %1532 = arith.addf %1529, %1531 : vector<2x32xf32>
    %1533 = tpu.concatenate %1501, %1532 in 1 : vector<2x32xf32>, vector<2x32xf32> -> vector<2x64xf32>
    %1534 = vector.extract_strided_slice %1464 {offsets = [2, 0], sizes = [2, 96], strides = [1, 1]} : vector<16x192xf32> to vector<2x96xf32>
    %1535 = vector.extract_strided_slice %1464 {offsets = [12, 96], sizes = [2, 96], strides = [1, 1]} : vector<16x192xf32> to vector<2x96xf32>
    %cst_489 = arith.constant dense<0.000000e+00> : vector<2x192xf32>
    %1536 = tpu.matmul %1533, %1453, %cst_489 {dimension_numbers = #tpu.dot_dimension_numbers<[1], [0], [0], [1], [0, 0, 1, 1], [], []>} : vector<2x64xf32>, vector<64x192xf32>, vector<2x192xf32> -> vector<2x192xf32>
    %1537 = vector.broadcast %1451 : vector<1x192xf32> to vector<2x192xf32>
    %1538 = arith.addf %1536, %1537 : vector<2x192xf32>
    %1539 = vector.extract_strided_slice %1534 {offsets = [0, 0], sizes = [2, 32], strides = [1, 1]} : vector<2x96xf32> to vector<2x32xf32>
    %1540 = vector.extract_strided_slice %1538 {offsets = [0, 0], sizes = [2, 32], strides = [1, 1]} : vector<2x192xf32> to vector<2x32xf32>
    %1541 = arith.addf %1539, %1540 : vector<2x32xf32>
    %cst_490 = arith.constant 5.000000e-01 : f32
    %1542 = vector.broadcast %cst_490 : f32 to vector<2x32xf32>
    %1543 = arith.mulf %1542, %1541 : vector<2x32xf32>
    %1544 = math.tanh %1543 : vector<2x32xf32>
    %cst_491 = arith.constant 1.000000e+00 : f32
    %1545 = vector.broadcast %cst_491 : f32 to vector<2x32xf32>
    %1546 = arith.addf %1544, %1545 : vector<2x32xf32>
    %cst_492 = arith.constant 5.000000e-01 : f32
    %1547 = vector.broadcast %cst_492 : f32 to vector<2x32xf32>
    %1548 = arith.mulf %1547, %1546 : vector<2x32xf32>
    %1549 = vector.extract_strided_slice %1534 {offsets = [0, 32], sizes = [2, 32], strides = [1, 1]} : vector<2x96xf32> to vector<2x32xf32>
    %1550 = vector.extract_strided_slice %1538 {offsets = [0, 32], sizes = [2, 32], strides = [1, 1]} : vector<2x192xf32> to vector<2x32xf32>
    %1551 = arith.addf %1549, %1550 : vector<2x32xf32>
    %cst_493 = arith.constant 5.000000e-01 : f32
    %1552 = vector.broadcast %cst_493 : f32 to vector<2x32xf32>
    %1553 = arith.mulf %1552, %1551 : vector<2x32xf32>
    %1554 = math.tanh %1553 : vector<2x32xf32>
    %cst_494 = arith.constant 1.000000e+00 : f32
    %1555 = vector.broadcast %cst_494 : f32 to vector<2x32xf32>
    %1556 = arith.addf %1554, %1555 : vector<2x32xf32>
    %cst_495 = arith.constant 5.000000e-01 : f32
    %1557 = vector.broadcast %cst_495 : f32 to vector<2x32xf32>
    %1558 = arith.mulf %1557, %1556 : vector<2x32xf32>
    %1559 = vector.extract_strided_slice %1534 {offsets = [0, 64], sizes = [2, 32], strides = [1, 1]} : vector<2x96xf32> to vector<2x32xf32>
    %1560 = vector.extract_strided_slice %1538 {offsets = [0, 64], sizes = [2, 32], strides = [1, 1]} : vector<2x192xf32> to vector<2x32xf32>
    %1561 = arith.mulf %1548, %1560 : vector<2x32xf32>
    %1562 = arith.addf %1559, %1561 : vector<2x32xf32>
    %1563 = math.tanh %1562 : vector<2x32xf32>
    %cst_496 = arith.constant 1.000000e+00 : f32
    %1564 = vector.broadcast %cst_496 : f32 to vector<2x32xf32>
    %1565 = arith.subf %1564, %1558 : vector<2x32xf32>
    %1566 = arith.mulf %1565, %1563 : vector<2x32xf32>
    %1567 = vector.extract_strided_slice %1533 {offsets = [0, 0], sizes = [2, 32], strides = [1, 1]} : vector<2x64xf32> to vector<2x32xf32>
    %1568 = arith.mulf %1558, %1567 : vector<2x32xf32>
    %1569 = arith.addf %1566, %1568 : vector<2x32xf32>
    %1570 = vector.extract_strided_slice %1535 {offsets = [0, 0], sizes = [2, 32], strides = [1, 1]} : vector<2x96xf32> to vector<2x32xf32>
    %1571 = vector.extract_strided_slice %1538 {offsets = [0, 96], sizes = [2, 32], strides = [1, 1]} : vector<2x192xf32> to vector<2x32xf32>
    %1572 = arith.addf %1570, %1571 : vector<2x32xf32>
    %cst_497 = arith.constant 5.000000e-01 : f32
    %1573 = vector.broadcast %cst_497 : f32 to vector<2x32xf32>
    %1574 = arith.mulf %1573, %1572 : vector<2x32xf32>
    %1575 = math.tanh %1574 : vector<2x32xf32>
    %cst_498 = arith.constant 1.000000e+00 : f32
    %1576 = vector.broadcast %cst_498 : f32 to vector<2x32xf32>
    %1577 = arith.addf %1575, %1576 : vector<2x32xf32>
    %cst_499 = arith.constant 5.000000e-01 : f32
    %1578 = vector.broadcast %cst_499 : f32 to vector<2x32xf32>
    %1579 = arith.mulf %1578, %1577 : vector<2x32xf32>
    %1580 = vector.extract_strided_slice %1535 {offsets = [0, 32], sizes = [2, 32], strides = [1, 1]} : vector<2x96xf32> to vector<2x32xf32>
    %1581 = vector.extract_strided_slice %1538 {offsets = [0, 128], sizes = [2, 32], strides = [1, 1]} : vector<2x192xf32> to vector<2x32xf32>
    %1582 = arith.addf %1580, %1581 : vector<2x32xf32>
    %cst_500 = arith.constant 5.000000e-01 : f32
    %1583 = vector.broadcast %cst_500 : f32 to vector<2x32xf32>
    %1584 = arith.mulf %1583, %1582 : vector<2x32xf32>
    %1585 = math.tanh %1584 : vector<2x32xf32>
    %cst_501 = arith.constant 1.000000e+00 : f32
    %1586 = vector.broadcast %cst_501 : f32 to vector<2x32xf32>
    %1587 = arith.addf %1585, %1586 : vector<2x32xf32>
    %cst_502 = arith.constant 5.000000e-01 : f32
    %1588 = vector.broadcast %cst_502 : f32 to vector<2x32xf32>
    %1589 = arith.mulf %1588, %1587 : vector<2x32xf32>
    %1590 = vector.extract_strided_slice %1535 {offsets = [0, 64], sizes = [2, 32], strides = [1, 1]} : vector<2x96xf32> to vector<2x32xf32>
    %1591 = vector.extract_strided_slice %1538 {offsets = [0, 160], sizes = [2, 32], strides = [1, 1]} : vector<2x192xf32> to vector<2x32xf32>
    %1592 = arith.mulf %1579, %1591 : vector<2x32xf32>
    %1593 = arith.addf %1590, %1592 : vector<2x32xf32>
    %1594 = math.tanh %1593 : vector<2x32xf32>
    %cst_503 = arith.constant 1.000000e+00 : f32
    %1595 = vector.broadcast %cst_503 : f32 to vector<2x32xf32>
    %1596 = arith.subf %1595, %1589 : vector<2x32xf32>
    %1597 = arith.mulf %1596, %1594 : vector<2x32xf32>
    %1598 = vector.extract_strided_slice %1533 {offsets = [0, 32], sizes = [2, 32], strides = [1, 1]} : vector<2x64xf32> to vector<2x32xf32>
    %1599 = arith.mulf %1589, %1598 : vector<2x32xf32>
    %1600 = arith.addf %1597, %1599 : vector<2x32xf32>
    %1601 = tpu.concatenate %1569, %1600 in 1 : vector<2x32xf32>, vector<2x32xf32> -> vector<2x64xf32>
    %1602 = vector.extract_strided_slice %1464 {offsets = [4, 0], sizes = [2, 96], strides = [1, 1]} : vector<16x192xf32> to vector<2x96xf32>
    %1603 = vector.extract_strided_slice %1464 {offsets = [10, 96], sizes = [2, 96], strides = [1, 1]} : vector<16x192xf32> to vector<2x96xf32>
    %cst_504 = arith.constant dense<0.000000e+00> : vector<2x192xf32>
    %1604 = tpu.matmul %1601, %1453, %cst_504 {dimension_numbers = #tpu.dot_dimension_numbers<[1], [0], [0], [1], [0, 0, 1, 1], [], []>} : vector<2x64xf32>, vector<64x192xf32>, vector<2x192xf32> -> vector<2x192xf32>
    %1605 = vector.broadcast %1451 : vector<1x192xf32> to vector<2x192xf32>
    %1606 = arith.addf %1604, %1605 : vector<2x192xf32>
    %1607 = vector.extract_strided_slice %1602 {offsets = [0, 0], sizes = [2, 32], strides = [1, 1]} : vector<2x96xf32> to vector<2x32xf32>
    %1608 = vector.extract_strided_slice %1606 {offsets = [0, 0], sizes = [2, 32], strides = [1, 1]} : vector<2x192xf32> to vector<2x32xf32>
    %1609 = arith.addf %1607, %1608 : vector<2x32xf32>
    %cst_505 = arith.constant 5.000000e-01 : f32
    %1610 = vector.broadcast %cst_505 : f32 to vector<2x32xf32>
    %1611 = arith.mulf %1610, %1609 : vector<2x32xf32>
    %1612 = math.tanh %1611 : vector<2x32xf32>
    %cst_506 = arith.constant 1.000000e+00 : f32
    %1613 = vector.broadcast %cst_506 : f32 to vector<2x32xf32>
    %1614 = arith.addf %1612, %1613 : vector<2x32xf32>
    %cst_507 = arith.constant 5.000000e-01 : f32
    %1615 = vector.broadcast %cst_507 : f32 to vector<2x32xf32>
    %1616 = arith.mulf %1615, %1614 : vector<2x32xf32>
    %1617 = vector.extract_strided_slice %1602 {offsets = [0, 32], sizes = [2, 32], strides = [1, 1]} : vector<2x96xf32> to vector<2x32xf32>
    %1618 = vector.extract_strided_slice %1606 {offsets = [0, 32], sizes = [2, 32], strides = [1, 1]} : vector<2x192xf32> to vector<2x32xf32>
    %1619 = arith.addf %1617, %1618 : vector<2x32xf32>
    %cst_508 = arith.constant 5.000000e-01 : f32
    %1620 = vector.broadcast %cst_508 : f32 to vector<2x32xf32>
    %1621 = arith.mulf %1620, %1619 : vector<2x32xf32>
    %1622 = math.tanh %1621 : vector<2x32xf32>
    %cst_509 = arith.constant 1.000000e+00 : f32
    %1623 = vector.broadcast %cst_509 : f32 to vector<2x32xf32>
    %1624 = arith.addf %1622, %1623 : vector<2x32xf32>
    %cst_510 = arith.constant 5.000000e-01 : f32
    %1625 = vector.broadcast %cst_510 : f32 to vector<2x32xf32>
    %1626 = arith.mulf %1625, %1624 : vector<2x32xf32>
    %1627 = vector.extract_strided_slice %1602 {offsets = [0, 64], sizes = [2, 32], strides = [1, 1]} : vector<2x96xf32> to vector<2x32xf32>
    %1628 = vector.extract_strided_slice %1606 {offsets = [0, 64], sizes = [2, 32], strides = [1, 1]} : vector<2x192xf32> to vector<2x32xf32>
    %1629 = arith.mulf %1616, %1628 : vector<2x32xf32>
    %1630 = arith.addf %1627, %1629 : vector<2x32xf32>
    %1631 = math.tanh %1630 : vector<2x32xf32>
    %cst_511 = arith.constant 1.000000e+00 : f32
    %1632 = vector.broadcast %cst_511 : f32 to vector<2x32xf32>
    %1633 = arith.subf %1632, %1626 : vector<2x32xf32>
    %1634 = arith.mulf %1633, %1631 : vector<2x32xf32>
    %1635 = vector.extract_strided_slice %1601 {offsets = [0, 0], sizes = [2, 32], strides = [1, 1]} : vector<2x64xf32> to vector<2x32xf32>
    %1636 = arith.mulf %1626, %1635 : vector<2x32xf32>
    %1637 = arith.addf %1634, %1636 : vector<2x32xf32>
    %1638 = vector.extract_strided_slice %1603 {offsets = [0, 0], sizes = [2, 32], strides = [1, 1]} : vector<2x96xf32> to vector<2x32xf32>
    %1639 = vector.extract_strided_slice %1606 {offsets = [0, 96], sizes = [2, 32], strides = [1, 1]} : vector<2x192xf32> to vector<2x32xf32>
    %1640 = arith.addf %1638, %1639 : vector<2x32xf32>
    %cst_512 = arith.constant 5.000000e-01 : f32
    %1641 = vector.broadcast %cst_512 : f32 to vector<2x32xf32>
    %1642 = arith.mulf %1641, %1640 : vector<2x32xf32>
    %1643 = math.tanh %1642 : vector<2x32xf32>
    %cst_513 = arith.constant 1.000000e+00 : f32
    %1644 = vector.broadcast %cst_513 : f32 to vector<2x32xf32>
    %1645 = arith.addf %1643, %1644 : vector<2x32xf32>
    %cst_514 = arith.constant 5.000000e-01 : f32
    %1646 = vector.broadcast %cst_514 : f32 to vector<2x32xf32>
    %1647 = arith.mulf %1646, %1645 : vector<2x32xf32>
    %1648 = vector.extract_strided_slice %1603 {offsets = [0, 32], sizes = [2, 32], strides = [1, 1]} : vector<2x96xf32> to vector<2x32xf32>
    %1649 = vector.extract_strided_slice %1606 {offsets = [0, 128], sizes = [2, 32], strides = [1, 1]} : vector<2x192xf32> to vector<2x32xf32>
    %1650 = arith.addf %1648, %1649 : vector<2x32xf32>
    %cst_515 = arith.constant 5.000000e-01 : f32
    %1651 = vector.broadcast %cst_515 : f32 to vector<2x32xf32>
    %1652 = arith.mulf %1651, %1650 : vector<2x32xf32>
    %1653 = math.tanh %1652 : vector<2x32xf32>
    %cst_516 = arith.constant 1.000000e+00 : f32
    %1654 = vector.broadcast %cst_516 : f32 to vector<2x32xf32>
    %1655 = arith.addf %1653, %1654 : vector<2x32xf32>
    %cst_517 = arith.constant 5.000000e-01 : f32
    %1656 = vector.broadcast %cst_517 : f32 to vector<2x32xf32>
    %1657 = arith.mulf %1656, %1655 : vector<2x32xf32>
    %1658 = vector.extract_strided_slice %1603 {offsets = [0, 64], sizes = [2, 32], strides = [1, 1]} : vector<2x96xf32> to vector<2x32xf32>
    %1659 = vector.extract_strided_slice %1606 {offsets = [0, 160], sizes = [2, 32], strides = [1, 1]} : vector<2x192xf32> to vector<2x32xf32>
    %1660 = arith.mulf %1647, %1659 : vector<2x32xf32>
    %1661 = arith.addf %1658, %1660 : vector<2x32xf32>
    %1662 = math.tanh %1661 : vector<2x32xf32>
    %cst_518 = arith.constant 1.000000e+00 : f32
    %1663 = vector.broadcast %cst_518 : f32 to vector<2x32xf32>
    %1664 = arith.subf %1663, %1657 : vector<2x32xf32>
    %1665 = arith.mulf %1664, %1662 : vector<2x32xf32>
    %1666 = vector.extract_strided_slice %1601 {offsets = [0, 32], sizes = [2, 32], strides = [1, 1]} : vector<2x64xf32> to vector<2x32xf32>
    %1667 = arith.mulf %1657, %1666 : vector<2x32xf32>
    %1668 = arith.addf %1665, %1667 : vector<2x32xf32>
    %1669 = tpu.concatenate %1637, %1668 in 1 : vector<2x32xf32>, vector<2x32xf32> -> vector<2x64xf32>
    %1670 = vector.extract_strided_slice %1464 {offsets = [6, 0], sizes = [2, 96], strides = [1, 1]} : vector<16x192xf32> to vector<2x96xf32>
    %1671 = vector.extract_strided_slice %1464 {offsets = [8, 96], sizes = [2, 96], strides = [1, 1]} : vector<16x192xf32> to vector<2x96xf32>
    %cst_519 = arith.constant dense<0.000000e+00> : vector<2x192xf32>
    %1672 = tpu.matmul %1669, %1453, %cst_519 {dimension_numbers = #tpu.dot_dimension_numbers<[1], [0], [0], [1], [0, 0, 1, 1], [], []>} : vector<2x64xf32>, vector<64x192xf32>, vector<2x192xf32> -> vector<2x192xf32>
    %1673 = vector.broadcast %1451 : vector<1x192xf32> to vector<2x192xf32>
    %1674 = arith.addf %1672, %1673 : vector<2x192xf32>
    %1675 = vector.extract_strided_slice %1670 {offsets = [0, 0], sizes = [2, 32], strides = [1, 1]} : vector<2x96xf32> to vector<2x32xf32>
    %1676 = vector.extract_strided_slice %1674 {offsets = [0, 0], sizes = [2, 32], strides = [1, 1]} : vector<2x192xf32> to vector<2x32xf32>
    %1677 = arith.addf %1675, %1676 : vector<2x32xf32>
    %cst_520 = arith.constant 5.000000e-01 : f32
    %1678 = vector.broadcast %cst_520 : f32 to vector<2x32xf32>
    %1679 = arith.mulf %1678, %1677 : vector<2x32xf32>
    %1680 = math.tanh %1679 : vector<2x32xf32>
    %cst_521 = arith.constant 1.000000e+00 : f32
    %1681 = vector.broadcast %cst_521 : f32 to vector<2x32xf32>
    %1682 = arith.addf %1680, %1681 : vector<2x32xf32>
    %cst_522 = arith.constant 5.000000e-01 : f32
    %1683 = vector.broadcast %cst_522 : f32 to vector<2x32xf32>
    %1684 = arith.mulf %1683, %1682 : vector<2x32xf32>
    %1685 = vector.extract_strided_slice %1670 {offsets = [0, 32], sizes = [2, 32], strides = [1, 1]} : vector<2x96xf32> to vector<2x32xf32>
    %1686 = vector.extract_strided_slice %1674 {offsets = [0, 32], sizes = [2, 32], strides = [1, 1]} : vector<2x192xf32> to vector<2x32xf32>
    %1687 = arith.addf %1685, %1686 : vector<2x32xf32>
    %cst_523 = arith.constant 5.000000e-01 : f32
    %1688 = vector.broadcast %cst_523 : f32 to vector<2x32xf32>
    %1689 = arith.mulf %1688, %1687 : vector<2x32xf32>
    %1690 = math.tanh %1689 : vector<2x32xf32>
    %cst_524 = arith.constant 1.000000e+00 : f32
    %1691 = vector.broadcast %cst_524 : f32 to vector<2x32xf32>
    %1692 = arith.addf %1690, %1691 : vector<2x32xf32>
    %cst_525 = arith.constant 5.000000e-01 : f32
    %1693 = vector.broadcast %cst_525 : f32 to vector<2x32xf32>
    %1694 = arith.mulf %1693, %1692 : vector<2x32xf32>
    %1695 = vector.extract_strided_slice %1670 {offsets = [0, 64], sizes = [2, 32], strides = [1, 1]} : vector<2x96xf32> to vector<2x32xf32>
    %1696 = vector.extract_strided_slice %1674 {offsets = [0, 64], sizes = [2, 32], strides = [1, 1]} : vector<2x192xf32> to vector<2x32xf32>
    %1697 = arith.mulf %1684, %1696 : vector<2x32xf32>
    %1698 = arith.addf %1695, %1697 : vector<2x32xf32>
    %1699 = math.tanh %1698 : vector<2x32xf32>
    %cst_526 = arith.constant 1.000000e+00 : f32
    %1700 = vector.broadcast %cst_526 : f32 to vector<2x32xf32>
    %1701 = arith.subf %1700, %1694 : vector<2x32xf32>
    %1702 = arith.mulf %1701, %1699 : vector<2x32xf32>
    %1703 = vector.extract_strided_slice %1669 {offsets = [0, 0], sizes = [2, 32], strides = [1, 1]} : vector<2x64xf32> to vector<2x32xf32>
    %1704 = arith.mulf %1694, %1703 : vector<2x32xf32>
    %1705 = arith.addf %1702, %1704 : vector<2x32xf32>
    %1706 = vector.extract_strided_slice %1671 {offsets = [0, 0], sizes = [2, 32], strides = [1, 1]} : vector<2x96xf32> to vector<2x32xf32>
    %1707 = vector.extract_strided_slice %1674 {offsets = [0, 96], sizes = [2, 32], strides = [1, 1]} : vector<2x192xf32> to vector<2x32xf32>
    %1708 = arith.addf %1706, %1707 : vector<2x32xf32>
    %cst_527 = arith.constant 5.000000e-01 : f32
    %1709 = vector.broadcast %cst_527 : f32 to vector<2x32xf32>
    %1710 = arith.mulf %1709, %1708 : vector<2x32xf32>
    %1711 = math.tanh %1710 : vector<2x32xf32>
    %cst_528 = arith.constant 1.000000e+00 : f32
    %1712 = vector.broadcast %cst_528 : f32 to vector<2x32xf32>
    %1713 = arith.addf %1711, %1712 : vector<2x32xf32>
    %cst_529 = arith.constant 5.000000e-01 : f32
    %1714 = vector.broadcast %cst_529 : f32 to vector<2x32xf32>
    %1715 = arith.mulf %1714, %1713 : vector<2x32xf32>
    %1716 = vector.extract_strided_slice %1671 {offsets = [0, 32], sizes = [2, 32], strides = [1, 1]} : vector<2x96xf32> to vector<2x32xf32>
    %1717 = vector.extract_strided_slice %1674 {offsets = [0, 128], sizes = [2, 32], strides = [1, 1]} : vector<2x192xf32> to vector<2x32xf32>
    %1718 = arith.addf %1716, %1717 : vector<2x32xf32>
    %cst_530 = arith.constant 5.000000e-01 : f32
    %1719 = vector.broadcast %cst_530 : f32 to vector<2x32xf32>
    %1720 = arith.mulf %1719, %1718 : vector<2x32xf32>
    %1721 = math.tanh %1720 : vector<2x32xf32>
    %cst_531 = arith.constant 1.000000e+00 : f32
    %1722 = vector.broadcast %cst_531 : f32 to vector<2x32xf32>
    %1723 = arith.addf %1721, %1722 : vector<2x32xf32>
    %cst_532 = arith.constant 5.000000e-01 : f32
    %1724 = vector.broadcast %cst_532 : f32 to vector<2x32xf32>
    %1725 = arith.mulf %1724, %1723 : vector<2x32xf32>
    %1726 = vector.extract_strided_slice %1671 {offsets = [0, 64], sizes = [2, 32], strides = [1, 1]} : vector<2x96xf32> to vector<2x32xf32>
    %1727 = vector.extract_strided_slice %1674 {offsets = [0, 160], sizes = [2, 32], strides = [1, 1]} : vector<2x192xf32> to vector<2x32xf32>
    %1728 = arith.mulf %1715, %1727 : vector<2x32xf32>
    %1729 = arith.addf %1726, %1728 : vector<2x32xf32>
    %1730 = math.tanh %1729 : vector<2x32xf32>
    %cst_533 = arith.constant 1.000000e+00 : f32
    %1731 = vector.broadcast %cst_533 : f32 to vector<2x32xf32>
    %1732 = arith.subf %1731, %1725 : vector<2x32xf32>
    %1733 = arith.mulf %1732, %1730 : vector<2x32xf32>
    %1734 = vector.extract_strided_slice %1669 {offsets = [0, 32], sizes = [2, 32], strides = [1, 1]} : vector<2x64xf32> to vector<2x32xf32>
    %1735 = arith.mulf %1725, %1734 : vector<2x32xf32>
    %1736 = arith.addf %1733, %1735 : vector<2x32xf32>
    %1737 = tpu.concatenate %1705, %1736 in 1 : vector<2x32xf32>, vector<2x32xf32> -> vector<2x64xf32>
    %1738 = vector.extract_strided_slice %1464 {offsets = [8, 0], sizes = [2, 96], strides = [1, 1]} : vector<16x192xf32> to vector<2x96xf32>
    %1739 = vector.extract_strided_slice %1464 {offsets = [6, 96], sizes = [2, 96], strides = [1, 1]} : vector<16x192xf32> to vector<2x96xf32>
    %cst_534 = arith.constant dense<0.000000e+00> : vector<2x192xf32>
    %1740 = tpu.matmul %1737, %1453, %cst_534 {dimension_numbers = #tpu.dot_dimension_numbers<[1], [0], [0], [1], [0, 0, 1, 1], [], []>} : vector<2x64xf32>, vector<64x192xf32>, vector<2x192xf32> -> vector<2x192xf32>
    %1741 = vector.broadcast %1451 : vector<1x192xf32> to vector<2x192xf32>
    %1742 = arith.addf %1740, %1741 : vector<2x192xf32>
    %1743 = vector.extract_strided_slice %1738 {offsets = [0, 0], sizes = [2, 32], strides = [1, 1]} : vector<2x96xf32> to vector<2x32xf32>
    %1744 = vector.extract_strided_slice %1742 {offsets = [0, 0], sizes = [2, 32], strides = [1, 1]} : vector<2x192xf32> to vector<2x32xf32>
    %1745 = arith.addf %1743, %1744 : vector<2x32xf32>
    %cst_535 = arith.constant 5.000000e-01 : f32
    %1746 = vector.broadcast %cst_535 : f32 to vector<2x32xf32>
    %1747 = arith.mulf %1746, %1745 : vector<2x32xf32>
    %1748 = math.tanh %1747 : vector<2x32xf32>
    %cst_536 = arith.constant 1.000000e+00 : f32
    %1749 = vector.broadcast %cst_536 : f32 to vector<2x32xf32>
    %1750 = arith.addf %1748, %1749 : vector<2x32xf32>
    %cst_537 = arith.constant 5.000000e-01 : f32
    %1751 = vector.broadcast %cst_537 : f32 to vector<2x32xf32>
    %1752 = arith.mulf %1751, %1750 : vector<2x32xf32>
    %1753 = vector.extract_strided_slice %1738 {offsets = [0, 32], sizes = [2, 32], strides = [1, 1]} : vector<2x96xf32> to vector<2x32xf32>
    %1754 = vector.extract_strided_slice %1742 {offsets = [0, 32], sizes = [2, 32], strides = [1, 1]} : vector<2x192xf32> to vector<2x32xf32>
    %1755 = arith.addf %1753, %1754 : vector<2x32xf32>
    %cst_538 = arith.constant 5.000000e-01 : f32
    %1756 = vector.broadcast %cst_538 : f32 to vector<2x32xf32>
    %1757 = arith.mulf %1756, %1755 : vector<2x32xf32>
    %1758 = math.tanh %1757 : vector<2x32xf32>
    %cst_539 = arith.constant 1.000000e+00 : f32
    %1759 = vector.broadcast %cst_539 : f32 to vector<2x32xf32>
    %1760 = arith.addf %1758, %1759 : vector<2x32xf32>
    %cst_540 = arith.constant 5.000000e-01 : f32
    %1761 = vector.broadcast %cst_540 : f32 to vector<2x32xf32>
    %1762 = arith.mulf %1761, %1760 : vector<2x32xf32>
    %1763 = vector.extract_strided_slice %1738 {offsets = [0, 64], sizes = [2, 32], strides = [1, 1]} : vector<2x96xf32> to vector<2x32xf32>
    %1764 = vector.extract_strided_slice %1742 {offsets = [0, 64], sizes = [2, 32], strides = [1, 1]} : vector<2x192xf32> to vector<2x32xf32>
    %1765 = arith.mulf %1752, %1764 : vector<2x32xf32>
    %1766 = arith.addf %1763, %1765 : vector<2x32xf32>
    %1767 = math.tanh %1766 : vector<2x32xf32>
    %cst_541 = arith.constant 1.000000e+00 : f32
    %1768 = vector.broadcast %cst_541 : f32 to vector<2x32xf32>
    %1769 = arith.subf %1768, %1762 : vector<2x32xf32>
    %1770 = arith.mulf %1769, %1767 : vector<2x32xf32>
    %1771 = vector.extract_strided_slice %1737 {offsets = [0, 0], sizes = [2, 32], strides = [1, 1]} : vector<2x64xf32> to vector<2x32xf32>
    %1772 = arith.mulf %1762, %1771 : vector<2x32xf32>
    %1773 = arith.addf %1770, %1772 : vector<2x32xf32>
    %1774 = vector.extract_strided_slice %1739 {offsets = [0, 0], sizes = [2, 32], strides = [1, 1]} : vector<2x96xf32> to vector<2x32xf32>
    %1775 = vector.extract_strided_slice %1742 {offsets = [0, 96], sizes = [2, 32], strides = [1, 1]} : vector<2x192xf32> to vector<2x32xf32>
    %1776 = arith.addf %1774, %1775 : vector<2x32xf32>
    %cst_542 = arith.constant 5.000000e-01 : f32
    %1777 = vector.broadcast %cst_542 : f32 to vector<2x32xf32>
    %1778 = arith.mulf %1777, %1776 : vector<2x32xf32>
    %1779 = math.tanh %1778 : vector<2x32xf32>
    %cst_543 = arith.constant 1.000000e+00 : f32
    %1780 = vector.broadcast %cst_543 : f32 to vector<2x32xf32>
    %1781 = arith.addf %1779, %1780 : vector<2x32xf32>
    %cst_544 = arith.constant 5.000000e-01 : f32
    %1782 = vector.broadcast %cst_544 : f32 to vector<2x32xf32>
    %1783 = arith.mulf %1782, %1781 : vector<2x32xf32>
    %1784 = vector.extract_strided_slice %1739 {offsets = [0, 32], sizes = [2, 32], strides = [1, 1]} : vector<2x96xf32> to vector<2x32xf32>
    %1785 = vector.extract_strided_slice %1742 {offsets = [0, 128], sizes = [2, 32], strides = [1, 1]} : vector<2x192xf32> to vector<2x32xf32>
    %1786 = arith.addf %1784, %1785 : vector<2x32xf32>
    %cst_545 = arith.constant 5.000000e-01 : f32
    %1787 = vector.broadcast %cst_545 : f32 to vector<2x32xf32>
    %1788 = arith.mulf %1787, %1786 : vector<2x32xf32>
    %1789 = math.tanh %1788 : vector<2x32xf32>
    %cst_546 = arith.constant 1.000000e+00 : f32
    %1790 = vector.broadcast %cst_546 : f32 to vector<2x32xf32>
    %1791 = arith.addf %1789, %1790 : vector<2x32xf32>
    %cst_547 = arith.constant 5.000000e-01 : f32
    %1792 = vector.broadcast %cst_547 : f32 to vector<2x32xf32>
    %1793 = arith.mulf %1792, %1791 : vector<2x32xf32>
    %1794 = vector.extract_strided_slice %1739 {offsets = [0, 64], sizes = [2, 32], strides = [1, 1]} : vector<2x96xf32> to vector<2x32xf32>
    %1795 = vector.extract_strided_slice %1742 {offsets = [0, 160], sizes = [2, 32], strides = [1, 1]} : vector<2x192xf32> to vector<2x32xf32>
    %1796 = arith.mulf %1783, %1795 : vector<2x32xf32>
    %1797 = arith.addf %1794, %1796 : vector<2x32xf32>
    %1798 = math.tanh %1797 : vector<2x32xf32>
    %cst_548 = arith.constant 1.000000e+00 : f32
    %1799 = vector.broadcast %cst_548 : f32 to vector<2x32xf32>
    %1800 = arith.subf %1799, %1793 : vector<2x32xf32>
    %1801 = arith.mulf %1800, %1798 : vector<2x32xf32>
    %1802 = vector.extract_strided_slice %1737 {offsets = [0, 32], sizes = [2, 32], strides = [1, 1]} : vector<2x64xf32> to vector<2x32xf32>
    %1803 = arith.mulf %1793, %1802 : vector<2x32xf32>
    %1804 = arith.addf %1801, %1803 : vector<2x32xf32>
    %1805 = tpu.concatenate %1773, %1804 in 1 : vector<2x32xf32>, vector<2x32xf32> -> vector<2x64xf32>
    %1806 = vector.extract_strided_slice %1464 {offsets = [10, 0], sizes = [2, 96], strides = [1, 1]} : vector<16x192xf32> to vector<2x96xf32>
    %1807 = vector.extract_strided_slice %1464 {offsets = [4, 96], sizes = [2, 96], strides = [1, 1]} : vector<16x192xf32> to vector<2x96xf32>
    %cst_549 = arith.constant dense<0.000000e+00> : vector<2x192xf32>
    %1808 = tpu.matmul %1805, %1453, %cst_549 {dimension_numbers = #tpu.dot_dimension_numbers<[1], [0], [0], [1], [0, 0, 1, 1], [], []>} : vector<2x64xf32>, vector<64x192xf32>, vector<2x192xf32> -> vector<2x192xf32>
    %1809 = vector.broadcast %1451 : vector<1x192xf32> to vector<2x192xf32>
    %1810 = arith.addf %1808, %1809 : vector<2x192xf32>
    %1811 = vector.extract_strided_slice %1806 {offsets = [0, 0], sizes = [2, 32], strides = [1, 1]} : vector<2x96xf32> to vector<2x32xf32>
    %1812 = vector.extract_strided_slice %1810 {offsets = [0, 0], sizes = [2, 32], strides = [1, 1]} : vector<2x192xf32> to vector<2x32xf32>
    %1813 = arith.addf %1811, %1812 : vector<2x32xf32>
    %cst_550 = arith.constant 5.000000e-01 : f32
    %1814 = vector.broadcast %cst_550 : f32 to vector<2x32xf32>
    %1815 = arith.mulf %1814, %1813 : vector<2x32xf32>
    %1816 = math.tanh %1815 : vector<2x32xf32>
    %cst_551 = arith.constant 1.000000e+00 : f32
    %1817 = vector.broadcast %cst_551 : f32 to vector<2x32xf32>
    %1818 = arith.addf %1816, %1817 : vector<2x32xf32>
    %cst_552 = arith.constant 5.000000e-01 : f32
    %1819 = vector.broadcast %cst_552 : f32 to vector<2x32xf32>
    %1820 = arith.mulf %1819, %1818 : vector<2x32xf32>
    %1821 = vector.extract_strided_slice %1806 {offsets = [0, 32], sizes = [2, 32], strides = [1, 1]} : vector<2x96xf32> to vector<2x32xf32>
    %1822 = vector.extract_strided_slice %1810 {offsets = [0, 32], sizes = [2, 32], strides = [1, 1]} : vector<2x192xf32> to vector<2x32xf32>
    %1823 = arith.addf %1821, %1822 : vector<2x32xf32>
    %cst_553 = arith.constant 5.000000e-01 : f32
    %1824 = vector.broadcast %cst_553 : f32 to vector<2x32xf32>
    %1825 = arith.mulf %1824, %1823 : vector<2x32xf32>
    %1826 = math.tanh %1825 : vector<2x32xf32>
    %cst_554 = arith.constant 1.000000e+00 : f32
    %1827 = vector.broadcast %cst_554 : f32 to vector<2x32xf32>
    %1828 = arith.addf %1826, %1827 : vector<2x32xf32>
    %cst_555 = arith.constant 5.000000e-01 : f32
    %1829 = vector.broadcast %cst_555 : f32 to vector<2x32xf32>
    %1830 = arith.mulf %1829, %1828 : vector<2x32xf32>
    %1831 = vector.extract_strided_slice %1806 {offsets = [0, 64], sizes = [2, 32], strides = [1, 1]} : vector<2x96xf32> to vector<2x32xf32>
    %1832 = vector.extract_strided_slice %1810 {offsets = [0, 64], sizes = [2, 32], strides = [1, 1]} : vector<2x192xf32> to vector<2x32xf32>
    %1833 = arith.mulf %1820, %1832 : vector<2x32xf32>
    %1834 = arith.addf %1831, %1833 : vector<2x32xf32>
    %1835 = math.tanh %1834 : vector<2x32xf32>
    %cst_556 = arith.constant 1.000000e+00 : f32
    %1836 = vector.broadcast %cst_556 : f32 to vector<2x32xf32>
    %1837 = arith.subf %1836, %1830 : vector<2x32xf32>
    %1838 = arith.mulf %1837, %1835 : vector<2x32xf32>
    %1839 = vector.extract_strided_slice %1805 {offsets = [0, 0], sizes = [2, 32], strides = [1, 1]} : vector<2x64xf32> to vector<2x32xf32>
    %1840 = arith.mulf %1830, %1839 : vector<2x32xf32>
    %1841 = arith.addf %1838, %1840 : vector<2x32xf32>
    %1842 = vector.extract_strided_slice %1807 {offsets = [0, 0], sizes = [2, 32], strides = [1, 1]} : vector<2x96xf32> to vector<2x32xf32>
    %1843 = vector.extract_strided_slice %1810 {offsets = [0, 96], sizes = [2, 32], strides = [1, 1]} : vector<2x192xf32> to vector<2x32xf32>
    %1844 = arith.addf %1842, %1843 : vector<2x32xf32>
    %cst_557 = arith.constant 5.000000e-01 : f32
    %1845 = vector.broadcast %cst_557 : f32 to vector<2x32xf32>
    %1846 = arith.mulf %1845, %1844 : vector<2x32xf32>
    %1847 = math.tanh %1846 : vector<2x32xf32>
    %cst_558 = arith.constant 1.000000e+00 : f32
    %1848 = vector.broadcast %cst_558 : f32 to vector<2x32xf32>
    %1849 = arith.addf %1847, %1848 : vector<2x32xf32>
    %cst_559 = arith.constant 5.000000e-01 : f32
    %1850 = vector.broadcast %cst_559 : f32 to vector<2x32xf32>
    %1851 = arith.mulf %1850, %1849 : vector<2x32xf32>
    %1852 = vector.extract_strided_slice %1807 {offsets = [0, 32], sizes = [2, 32], strides = [1, 1]} : vector<2x96xf32> to vector<2x32xf32>
    %1853 = vector.extract_strided_slice %1810 {offsets = [0, 128], sizes = [2, 32], strides = [1, 1]} : vector<2x192xf32> to vector<2x32xf32>
    %1854 = arith.addf %1852, %1853 : vector<2x32xf32>
    %cst_560 = arith.constant 5.000000e-01 : f32
    %1855 = vector.broadcast %cst_560 : f32 to vector<2x32xf32>
    %1856 = arith.mulf %1855, %1854 : vector<2x32xf32>
    %1857 = math.tanh %1856 : vector<2x32xf32>
    %cst_561 = arith.constant 1.000000e+00 : f32
    %1858 = vector.broadcast %cst_561 : f32 to vector<2x32xf32>
    %1859 = arith.addf %1857, %1858 : vector<2x32xf32>
    %cst_562 = arith.constant 5.000000e-01 : f32
    %1860 = vector.broadcast %cst_562 : f32 to vector<2x32xf32>
    %1861 = arith.mulf %1860, %1859 : vector<2x32xf32>
    %1862 = vector.extract_strided_slice %1807 {offsets = [0, 64], sizes = [2, 32], strides = [1, 1]} : vector<2x96xf32> to vector<2x32xf32>
    %1863 = vector.extract_strided_slice %1810 {offsets = [0, 160], sizes = [2, 32], strides = [1, 1]} : vector<2x192xf32> to vector<2x32xf32>
    %1864 = arith.mulf %1851, %1863 : vector<2x32xf32>
    %1865 = arith.addf %1862, %1864 : vector<2x32xf32>
    %1866 = math.tanh %1865 : vector<2x32xf32>
    %cst_563 = arith.constant 1.000000e+00 : f32
    %1867 = vector.broadcast %cst_563 : f32 to vector<2x32xf32>
    %1868 = arith.subf %1867, %1861 : vector<2x32xf32>
    %1869 = arith.mulf %1868, %1866 : vector<2x32xf32>
    %1870 = vector.extract_strided_slice %1805 {offsets = [0, 32], sizes = [2, 32], strides = [1, 1]} : vector<2x64xf32> to vector<2x32xf32>
    %1871 = arith.mulf %1861, %1870 : vector<2x32xf32>
    %1872 = arith.addf %1869, %1871 : vector<2x32xf32>
    %1873 = tpu.concatenate %1841, %1872 in 1 : vector<2x32xf32>, vector<2x32xf32> -> vector<2x64xf32>
    %1874 = vector.extract_strided_slice %1464 {offsets = [12, 0], sizes = [2, 96], strides = [1, 1]} : vector<16x192xf32> to vector<2x96xf32>
    %1875 = vector.extract_strided_slice %1464 {offsets = [2, 96], sizes = [2, 96], strides = [1, 1]} : vector<16x192xf32> to vector<2x96xf32>
    %cst_564 = arith.constant dense<0.000000e+00> : vector<2x192xf32>
    %1876 = tpu.matmul %1873, %1453, %cst_564 {dimension_numbers = #tpu.dot_dimension_numbers<[1], [0], [0], [1], [0, 0, 1, 1], [], []>} : vector<2x64xf32>, vector<64x192xf32>, vector<2x192xf32> -> vector<2x192xf32>
    %1877 = vector.broadcast %1451 : vector<1x192xf32> to vector<2x192xf32>
    %1878 = arith.addf %1876, %1877 : vector<2x192xf32>
    %1879 = vector.extract_strided_slice %1874 {offsets = [0, 0], sizes = [2, 32], strides = [1, 1]} : vector<2x96xf32> to vector<2x32xf32>
    %1880 = vector.extract_strided_slice %1878 {offsets = [0, 0], sizes = [2, 32], strides = [1, 1]} : vector<2x192xf32> to vector<2x32xf32>
    %1881 = arith.addf %1879, %1880 : vector<2x32xf32>
    %cst_565 = arith.constant 5.000000e-01 : f32
    %1882 = vector.broadcast %cst_565 : f32 to vector<2x32xf32>
    %1883 = arith.mulf %1882, %1881 : vector<2x32xf32>
    %1884 = math.tanh %1883 : vector<2x32xf32>
    %cst_566 = arith.constant 1.000000e+00 : f32
    %1885 = vector.broadcast %cst_566 : f32 to vector<2x32xf32>
    %1886 = arith.addf %1884, %1885 : vector<2x32xf32>
    %cst_567 = arith.constant 5.000000e-01 : f32
    %1887 = vector.broadcast %cst_567 : f32 to vector<2x32xf32>
    %1888 = arith.mulf %1887, %1886 : vector<2x32xf32>
    %1889 = vector.extract_strided_slice %1874 {offsets = [0, 32], sizes = [2, 32], strides = [1, 1]} : vector<2x96xf32> to vector<2x32xf32>
    %1890 = vector.extract_strided_slice %1878 {offsets = [0, 32], sizes = [2, 32], strides = [1, 1]} : vector<2x192xf32> to vector<2x32xf32>
    %1891 = arith.addf %1889, %1890 : vector<2x32xf32>
    %cst_568 = arith.constant 5.000000e-01 : f32
    %1892 = vector.broadcast %cst_568 : f32 to vector<2x32xf32>
    %1893 = arith.mulf %1892, %1891 : vector<2x32xf32>
    %1894 = math.tanh %1893 : vector<2x32xf32>
    %cst_569 = arith.constant 1.000000e+00 : f32
    %1895 = vector.broadcast %cst_569 : f32 to vector<2x32xf32>
    %1896 = arith.addf %1894, %1895 : vector<2x32xf32>
    %cst_570 = arith.constant 5.000000e-01 : f32
    %1897 = vector.broadcast %cst_570 : f32 to vector<2x32xf32>
    %1898 = arith.mulf %1897, %1896 : vector<2x32xf32>
    %1899 = vector.extract_strided_slice %1874 {offsets = [0, 64], sizes = [2, 32], strides = [1, 1]} : vector<2x96xf32> to vector<2x32xf32>
    %1900 = vector.extract_strided_slice %1878 {offsets = [0, 64], sizes = [2, 32], strides = [1, 1]} : vector<2x192xf32> to vector<2x32xf32>
    %1901 = arith.mulf %1888, %1900 : vector<2x32xf32>
    %1902 = arith.addf %1899, %1901 : vector<2x32xf32>
    %1903 = math.tanh %1902 : vector<2x32xf32>
    %cst_571 = arith.constant 1.000000e+00 : f32
    %1904 = vector.broadcast %cst_571 : f32 to vector<2x32xf32>
    %1905 = arith.subf %1904, %1898 : vector<2x32xf32>
    %1906 = arith.mulf %1905, %1903 : vector<2x32xf32>
    %1907 = vector.extract_strided_slice %1873 {offsets = [0, 0], sizes = [2, 32], strides = [1, 1]} : vector<2x64xf32> to vector<2x32xf32>
    %1908 = arith.mulf %1898, %1907 : vector<2x32xf32>
    %1909 = arith.addf %1906, %1908 : vector<2x32xf32>
    %1910 = vector.extract_strided_slice %1875 {offsets = [0, 0], sizes = [2, 32], strides = [1, 1]} : vector<2x96xf32> to vector<2x32xf32>
    %1911 = vector.extract_strided_slice %1878 {offsets = [0, 96], sizes = [2, 32], strides = [1, 1]} : vector<2x192xf32> to vector<2x32xf32>
    %1912 = arith.addf %1910, %1911 : vector<2x32xf32>
    %cst_572 = arith.constant 5.000000e-01 : f32
    %1913 = vector.broadcast %cst_572 : f32 to vector<2x32xf32>
    %1914 = arith.mulf %1913, %1912 : vector<2x32xf32>
    %1915 = math.tanh %1914 : vector<2x32xf32>
    %cst_573 = arith.constant 1.000000e+00 : f32
    %1916 = vector.broadcast %cst_573 : f32 to vector<2x32xf32>
    %1917 = arith.addf %1915, %1916 : vector<2x32xf32>
    %cst_574 = arith.constant 5.000000e-01 : f32
    %1918 = vector.broadcast %cst_574 : f32 to vector<2x32xf32>
    %1919 = arith.mulf %1918, %1917 : vector<2x32xf32>
    %1920 = vector.extract_strided_slice %1875 {offsets = [0, 32], sizes = [2, 32], strides = [1, 1]} : vector<2x96xf32> to vector<2x32xf32>
    %1921 = vector.extract_strided_slice %1878 {offsets = [0, 128], sizes = [2, 32], strides = [1, 1]} : vector<2x192xf32> to vector<2x32xf32>
    %1922 = arith.addf %1920, %1921 : vector<2x32xf32>
    %cst_575 = arith.constant 5.000000e-01 : f32
    %1923 = vector.broadcast %cst_575 : f32 to vector<2x32xf32>
    %1924 = arith.mulf %1923, %1922 : vector<2x32xf32>
    %1925 = math.tanh %1924 : vector<2x32xf32>
    %cst_576 = arith.constant 1.000000e+00 : f32
    %1926 = vector.broadcast %cst_576 : f32 to vector<2x32xf32>
    %1927 = arith.addf %1925, %1926 : vector<2x32xf32>
    %cst_577 = arith.constant 5.000000e-01 : f32
    %1928 = vector.broadcast %cst_577 : f32 to vector<2x32xf32>
    %1929 = arith.mulf %1928, %1927 : vector<2x32xf32>
    %1930 = vector.extract_strided_slice %1875 {offsets = [0, 64], sizes = [2, 32], strides = [1, 1]} : vector<2x96xf32> to vector<2x32xf32>
    %1931 = vector.extract_strided_slice %1878 {offsets = [0, 160], sizes = [2, 32], strides = [1, 1]} : vector<2x192xf32> to vector<2x32xf32>
    %1932 = arith.mulf %1919, %1931 : vector<2x32xf32>
    %1933 = arith.addf %1930, %1932 : vector<2x32xf32>
    %1934 = math.tanh %1933 : vector<2x32xf32>
    %cst_578 = arith.constant 1.000000e+00 : f32
    %1935 = vector.broadcast %cst_578 : f32 to vector<2x32xf32>
    %1936 = arith.subf %1935, %1929 : vector<2x32xf32>
    %1937 = arith.mulf %1936, %1934 : vector<2x32xf32>
    %1938 = vector.extract_strided_slice %1873 {offsets = [0, 32], sizes = [2, 32], strides = [1, 1]} : vector<2x64xf32> to vector<2x32xf32>
    %1939 = arith.mulf %1929, %1938 : vector<2x32xf32>
    %1940 = arith.addf %1937, %1939 : vector<2x32xf32>
    %1941 = tpu.concatenate %1909, %1940 in 1 : vector<2x32xf32>, vector<2x32xf32> -> vector<2x64xf32>
    %1942 = vector.extract_strided_slice %1464 {offsets = [14, 0], sizes = [2, 96], strides = [1, 1]} : vector<16x192xf32> to vector<2x96xf32>
    %1943 = vector.extract_strided_slice %1464 {offsets = [0, 96], sizes = [2, 96], strides = [1, 1]} : vector<16x192xf32> to vector<2x96xf32>
    %cst_579 = arith.constant dense<0.000000e+00> : vector<2x192xf32>
    %1944 = tpu.matmul %1941, %1453, %cst_579 {dimension_numbers = #tpu.dot_dimension_numbers<[1], [0], [0], [1], [0, 0, 1, 1], [], []>} : vector<2x64xf32>, vector<64x192xf32>, vector<2x192xf32> -> vector<2x192xf32>
    %1945 = vector.broadcast %1451 : vector<1x192xf32> to vector<2x192xf32>
    %1946 = arith.addf %1944, %1945 : vector<2x192xf32>
    %1947 = vector.extract_strided_slice %1942 {offsets = [0, 0], sizes = [2, 32], strides = [1, 1]} : vector<2x96xf32> to vector<2x32xf32>
    %1948 = vector.extract_strided_slice %1946 {offsets = [0, 0], sizes = [2, 32], strides = [1, 1]} : vector<2x192xf32> to vector<2x32xf32>
    %1949 = arith.addf %1947, %1948 : vector<2x32xf32>
    %cst_580 = arith.constant 5.000000e-01 : f32
    %1950 = vector.broadcast %cst_580 : f32 to vector<2x32xf32>
    %1951 = arith.mulf %1950, %1949 : vector<2x32xf32>
    %1952 = math.tanh %1951 : vector<2x32xf32>
    %cst_581 = arith.constant 1.000000e+00 : f32
    %1953 = vector.broadcast %cst_581 : f32 to vector<2x32xf32>
    %1954 = arith.addf %1952, %1953 : vector<2x32xf32>
    %cst_582 = arith.constant 5.000000e-01 : f32
    %1955 = vector.broadcast %cst_582 : f32 to vector<2x32xf32>
    %1956 = arith.mulf %1955, %1954 : vector<2x32xf32>
    %1957 = vector.extract_strided_slice %1942 {offsets = [0, 32], sizes = [2, 32], strides = [1, 1]} : vector<2x96xf32> to vector<2x32xf32>
    %1958 = vector.extract_strided_slice %1946 {offsets = [0, 32], sizes = [2, 32], strides = [1, 1]} : vector<2x192xf32> to vector<2x32xf32>
    %1959 = arith.addf %1957, %1958 : vector<2x32xf32>
    %cst_583 = arith.constant 5.000000e-01 : f32
    %1960 = vector.broadcast %cst_583 : f32 to vector<2x32xf32>
    %1961 = arith.mulf %1960, %1959 : vector<2x32xf32>
    %1962 = math.tanh %1961 : vector<2x32xf32>
    %cst_584 = arith.constant 1.000000e+00 : f32
    %1963 = vector.broadcast %cst_584 : f32 to vector<2x32xf32>
    %1964 = arith.addf %1962, %1963 : vector<2x32xf32>
    %cst_585 = arith.constant 5.000000e-01 : f32
    %1965 = vector.broadcast %cst_585 : f32 to vector<2x32xf32>
    %1966 = arith.mulf %1965, %1964 : vector<2x32xf32>
    %1967 = vector.extract_strided_slice %1942 {offsets = [0, 64], sizes = [2, 32], strides = [1, 1]} : vector<2x96xf32> to vector<2x32xf32>
    %1968 = vector.extract_strided_slice %1946 {offsets = [0, 64], sizes = [2, 32], strides = [1, 1]} : vector<2x192xf32> to vector<2x32xf32>
    %1969 = arith.mulf %1956, %1968 : vector<2x32xf32>
    %1970 = arith.addf %1967, %1969 : vector<2x32xf32>
    %1971 = math.tanh %1970 : vector<2x32xf32>
    %cst_586 = arith.constant 1.000000e+00 : f32
    %1972 = vector.broadcast %cst_586 : f32 to vector<2x32xf32>
    %1973 = arith.subf %1972, %1966 : vector<2x32xf32>
    %1974 = arith.mulf %1973, %1971 : vector<2x32xf32>
    %1975 = vector.extract_strided_slice %1941 {offsets = [0, 0], sizes = [2, 32], strides = [1, 1]} : vector<2x64xf32> to vector<2x32xf32>
    %1976 = arith.mulf %1966, %1975 : vector<2x32xf32>
    %1977 = arith.addf %1974, %1976 : vector<2x32xf32>
    %1978 = vector.extract_strided_slice %1943 {offsets = [0, 0], sizes = [2, 32], strides = [1, 1]} : vector<2x96xf32> to vector<2x32xf32>
    %1979 = vector.extract_strided_slice %1946 {offsets = [0, 96], sizes = [2, 32], strides = [1, 1]} : vector<2x192xf32> to vector<2x32xf32>
    %1980 = arith.addf %1978, %1979 : vector<2x32xf32>
    %cst_587 = arith.constant 5.000000e-01 : f32
    %1981 = vector.broadcast %cst_587 : f32 to vector<2x32xf32>
    %1982 = arith.mulf %1981, %1980 : vector<2x32xf32>
    %1983 = math.tanh %1982 : vector<2x32xf32>
    %cst_588 = arith.constant 1.000000e+00 : f32
    %1984 = vector.broadcast %cst_588 : f32 to vector<2x32xf32>
    %1985 = arith.addf %1983, %1984 : vector<2x32xf32>
    %cst_589 = arith.constant 5.000000e-01 : f32
    %1986 = vector.broadcast %cst_589 : f32 to vector<2x32xf32>
    %1987 = arith.mulf %1986, %1985 : vector<2x32xf32>
    %1988 = vector.extract_strided_slice %1943 {offsets = [0, 32], sizes = [2, 32], strides = [1, 1]} : vector<2x96xf32> to vector<2x32xf32>
    %1989 = vector.extract_strided_slice %1946 {offsets = [0, 128], sizes = [2, 32], strides = [1, 1]} : vector<2x192xf32> to vector<2x32xf32>
    %1990 = arith.addf %1988, %1989 : vector<2x32xf32>
    %cst_590 = arith.constant 5.000000e-01 : f32
    %1991 = vector.broadcast %cst_590 : f32 to vector<2x32xf32>
    %1992 = arith.mulf %1991, %1990 : vector<2x32xf32>
    %1993 = math.tanh %1992 : vector<2x32xf32>
    %cst_591 = arith.constant 1.000000e+00 : f32
    %1994 = vector.broadcast %cst_591 : f32 to vector<2x32xf32>
    %1995 = arith.addf %1993, %1994 : vector<2x32xf32>
    %cst_592 = arith.constant 5.000000e-01 : f32
    %1996 = vector.broadcast %cst_592 : f32 to vector<2x32xf32>
    %1997 = arith.mulf %1996, %1995 : vector<2x32xf32>
    %1998 = vector.extract_strided_slice %1943 {offsets = [0, 64], sizes = [2, 32], strides = [1, 1]} : vector<2x96xf32> to vector<2x32xf32>
    %1999 = vector.extract_strided_slice %1946 {offsets = [0, 160], sizes = [2, 32], strides = [1, 1]} : vector<2x192xf32> to vector<2x32xf32>
    %2000 = arith.mulf %1987, %1999 : vector<2x32xf32>
    %2001 = arith.addf %1998, %2000 : vector<2x32xf32>
    %2002 = math.tanh %2001 : vector<2x32xf32>
    %cst_593 = arith.constant 1.000000e+00 : f32
    %2003 = vector.broadcast %cst_593 : f32 to vector<2x32xf32>
    %2004 = arith.subf %2003, %1997 : vector<2x32xf32>
    %2005 = arith.mulf %2004, %2002 : vector<2x32xf32>
    %2006 = vector.extract_strided_slice %1941 {offsets = [0, 32], sizes = [2, 32], strides = [1, 1]} : vector<2x64xf32> to vector<2x32xf32>
    %2007 = arith.mulf %1997, %2006 : vector<2x32xf32>
    %2008 = arith.addf %2005, %2007 : vector<2x32xf32>
    %2009 = tpu.concatenate %1977, %2008 in 1 : vector<2x32xf32>, vector<2x32xf32> -> vector<2x64xf32>
    %2010 = vector.extract_strided_slice %2009 {offsets = [0, 0], sizes = [2, 32], strides = [1, 1]} : vector<2x64xf32> to vector<2x32xf32>
    %2011 = math.tanh %2010 : vector<2x32xf32>
    %2012 = vector.extract_strided_slice %2009 {offsets = [0, 32], sizes = [2, 32], strides = [1, 1]} : vector<2x64xf32> to vector<2x32xf32>
    %2013 = math.tanh %2012 : vector<2x32xf32>
    %c0_594 = arith.constant 0 : index
    %c0_595 = arith.constant 0 : index
    %2014 = vector.load %arg19[%c0_594, %c0_595] : memref<64x128xf32, #tpu.memory_space<vmem>>, vector<64x128xf32>
    %2015 = vector.extract_strided_slice %2014 {offsets = [0, 0], sizes = [32, 128], strides = [1, 1]} : vector<64x128xf32> to vector<32x128xf32>
    %cst_596 = arith.constant dense<0.000000e+00> : vector<2x128xf32>
    %2016 = tpu.matmul %2013, %2015, %cst_596 {dimension_numbers = #tpu.dot_dimension_numbers<[1], [0], [0], [1], [0, 0, 1, 1], [], []>} : vector<2x32xf32>, vector<32x128xf32>, vector<2x128xf32> -> vector<2x128xf32>
    %2017 = vector.extract_strided_slice %2014 {offsets = [32, 0], sizes = [32, 128], strides = [1, 1]} : vector<64x128xf32> to vector<32x128xf32>
    %cst_597 = arith.constant dense<0.000000e+00> : vector<2x128xf32>
    %2018 = tpu.matmul %2011, %2017, %cst_597 {dimension_numbers = #tpu.dot_dimension_numbers<[1], [0], [0], [1], [0, 0, 1, 1], [], []>} : vector<2x32xf32>, vector<32x128xf32>, vector<2x128xf32> -> vector<2x128xf32>
    %2019 = arith.addf %2016, %2018 : vector<2x128xf32>
    %c0_598 = arith.constant 0 : index
    %c0_599 = arith.constant 0 : index
    %2020 = vector.load %arg20[%c0_598, %c0_599] : memref<1x128xf32, #tpu.memory_space<vmem>>, vector<1x128xf32>
    %2021 = vector.broadcast %2020 : vector<1x128xf32> to vector<2x128xf32>
    %2022 = arith.addf %2019, %2021 : vector<2x128xf32>
    %c0_600 = arith.constant 0 : index
    %c0_601 = arith.constant 0 : index
    %2023 = vector.load %arg21[%c0_600, %c0_601] : memref<2x128xf32, #tpu.memory_space<vmem>>, vector<2x128xf32>
    tpu.vector_store %arg21[%c0_600, %c0_601], %2022 {strides = array<i32>} : memref<2x128xf32, #tpu.memory_space<vmem>>, vector<2x128xf32>,
    return
  }
  func.func @transform_0(%arg0: i32) -> (i32, i32) {
    %c0_i32 = arith.constant 0 : i32
    %c0_i32_0 = arith.constant 0 : i32
    %c0_i32_1 = arith.constant 0 : i32
    return %c0_i32, %c0_i32_0 : i32, i32
  }
  func.func @transform_1(%arg0: i32) -> (i32, i32) {
    %c0_i32 = arith.constant 0 : i32
    %c0_i32_0 = arith.constant 0 : i32
    %c0_i32_1 = arith.constant 0 : i32
    return %c0_i32, %c0_i32_0 : i32, i32
  }
  func.func @transform_2(%arg0: i32) -> (i32, i32) {
    %c0_i32 = arith.constant 0 : i32
    %c0_i32_0 = arith.constant 0 : i32
    %c0_i32_1 = arith.constant 0 : i32
    return %c0_i32, %c0_i32_0 : i32, i32
  }
  func.func @transform_3(%arg0: i32) -> (i32, i32, i32) {
    %c0_i32 = arith.constant 0 : i32
    %c0_i32_0 = arith.constant 0 : i32
    %c0_i32_1 = arith.constant 0 : i32
    %c0_i32_2 = arith.constant 0 : i32
    return %c0_i32, %c0_i32_0, %c0_i32_1 : i32, i32, i32
  }
  func.func @transform_4(%arg0: i32) -> (i32, i32, i32) {
    %c0_i32 = arith.constant 0 : i32
    %c0_i32_0 = arith.constant 0 : i32
    %c0_i32_1 = arith.constant 0 : i32
    %c0_i32_2 = arith.constant 0 : i32
    return %c0_i32, %c0_i32_0, %c0_i32_1 : i32, i32, i32
  }
  func.func @transform_5(%arg0: i32) -> (i32, i32, i32) {
    %c0_i32 = arith.constant 0 : i32
    %c0_i32_0 = arith.constant 0 : i32
    %c0_i32_1 = arith.constant 0 : i32
    %c0_i32_2 = arith.constant 0 : i32
    return %c0_i32, %c0_i32_0, %c0_i32_1 : i32, i32, i32
  }
  func.func @transform_6(%arg0: i32) -> (i32, i32, i32) {
    %c0_i32 = arith.constant 0 : i32
    %c0_i32_0 = arith.constant 0 : i32
    %c0_i32_1 = arith.constant 0 : i32
    %c0_i32_2 = arith.constant 0 : i32
    return %c0_i32, %c0_i32_0, %c0_i32_1 : i32, i32, i32
  }
  func.func @transform_7(%arg0: i32) -> (i32, i32, i32) {
    %c0_i32 = arith.constant 0 : i32
    %c0_i32_0 = arith.constant 0 : i32
    %c0_i32_1 = arith.constant 0 : i32
    %c0_i32_2 = arith.constant 0 : i32
    return %c0_i32, %c0_i32_0, %c0_i32_1 : i32, i32, i32
  }
  func.func @transform_8(%arg0: i32) -> (i32, i32, i32) {
    %c0_i32 = arith.constant 0 : i32
    %c0_i32_0 = arith.constant 0 : i32
    %c0_i32_1 = arith.constant 0 : i32
    %c0_i32_2 = arith.constant 0 : i32
    return %c0_i32, %c0_i32_0, %c0_i32_1 : i32, i32, i32
  }
  func.func @transform_9(%arg0: i32) -> (i32, i32, i32) {
    %c0_i32 = arith.constant 0 : i32
    %c0_i32_0 = arith.constant 0 : i32
    %c0_i32_1 = arith.constant 0 : i32
    %c0_i32_2 = arith.constant 0 : i32
    return %c0_i32, %c0_i32_0, %c0_i32_1 : i32, i32, i32
  }
  func.func @transform_10(%arg0: i32) -> (i32, i32, i32) {
    %c0_i32 = arith.constant 0 : i32
    %c0_i32_0 = arith.constant 0 : i32
    %c0_i32_1 = arith.constant 0 : i32
    %c0_i32_2 = arith.constant 0 : i32
    return %c0_i32, %c0_i32_0, %c0_i32_1 : i32, i32, i32
  }
  func.func @transform_11(%arg0: i32) -> (i32, i32, i32) {
    %c0_i32 = arith.constant 0 : i32
    %c0_i32_0 = arith.constant 0 : i32
    %c0_i32_1 = arith.constant 0 : i32
    %c0_i32_2 = arith.constant 0 : i32
    return %c0_i32, %c0_i32_0, %c0_i32_1 : i32, i32, i32
  }
  func.func @transform_12(%arg0: i32) -> (i32, i32, i32) {
    %c0_i32 = arith.constant 0 : i32
    %c0_i32_0 = arith.constant 0 : i32
    %c0_i32_1 = arith.constant 0 : i32
    %c0_i32_2 = arith.constant 0 : i32
    return %c0_i32, %c0_i32_0, %c0_i32_1 : i32, i32, i32
  }
  func.func @transform_13(%arg0: i32) -> (i32, i32) {
    %c0_i32 = arith.constant 0 : i32
    %c0_i32_0 = arith.constant 0 : i32
    %c0_i32_1 = arith.constant 0 : i32
    return %c0_i32, %c0_i32_0 : i32, i32
  }
  func.func @transform_14(%arg0: i32) -> (i32, i32, i32) {
    %c0_i32 = arith.constant 0 : i32
    %c0_i32_0 = arith.constant 0 : i32
    %c0_i32_1 = arith.constant 0 : i32
    %c0_i32_2 = arith.constant 0 : i32
    return %c0_i32, %c0_i32_0, %c0_i32_1 : i32, i32, i32
  }
  func.func @transform_15(%arg0: i32) -> (i32, i32, i32) {
    %c0_i32 = arith.constant 0 : i32
    %c0_i32_0 = arith.constant 0 : i32
    %c0_i32_1 = arith.constant 0 : i32
    %c0_i32_2 = arith.constant 0 : i32
    return %c0_i32, %c0_i32_0, %c0_i32_1 : i32, i32, i32
  }
  func.func @transform_16(%arg0: i32) -> (i32, i32, i32) {
    %c0_i32 = arith.constant 0 : i32
    %c0_i32_0 = arith.constant 0 : i32
    %c0_i32_1 = arith.constant 0 : i32
    %c0_i32_2 = arith.constant 0 : i32
    return %c0_i32, %c0_i32_0, %c0_i32_1 : i32, i32, i32
  }
  func.func @transform_17(%arg0: i32) -> (i32, i32, i32) {
    %c0_i32 = arith.constant 0 : i32
    %c0_i32_0 = arith.constant 0 : i32
    %c0_i32_1 = arith.constant 0 : i32
    %c0_i32_2 = arith.constant 0 : i32
    return %c0_i32, %c0_i32_0, %c0_i32_1 : i32, i32, i32
  }
  func.func @transform_18(%arg0: i32) -> (i32, i32) {
    %c0_i32 = arith.constant 0 : i32
    %c0_i32_0 = arith.constant 0 : i32
    %c0_i32_1 = arith.constant 0 : i32
    return %c0_i32, %c0_i32_0 : i32, i32
  }
  func.func @transform_19(%arg0: i32) -> (i32, i32) {
    %c0_i32 = arith.constant 0 : i32
    %c0_i32_0 = arith.constant 0 : i32
    %c0_i32_1 = arith.constant 0 : i32
    return %c0_i32, %c0_i32_0 : i32, i32
  }
  func.func @transform_20(%arg0: i32) -> (i32, i32) {
    %c0_i32 = arith.constant 0 : i32
    %c0_i32_0 = arith.constant 0 : i32
    %c0_i32_1 = arith.constant 0 : i32
    return %c0_i32, %c0_i32_0 : i32, i32
  }
}

</mosaic_0001>

<llo_original>
// kernel: tpu_custom_call.1
$region0: #{tpu_custom_call.1}
  #allocation0 [shape = 'u32[]', space=smem, size = 0x4, offset = 0x4, fixed_abs, tag = 'smem constant byte address 0x4 - core index']
  #allocation1 [shape = 'u32[144,128]{1,0:T(1,128)}', space=vmem, size = 0x12000, scoped, tag = 'internal scratch']
  #allocation2 [shape = 'f32[16,32]{1,0:T(8,128)}', space=vmem, size = 0x2000, scoped, tag = 'scratch operand']
  #allocation3 [shape = 'f32[16,32]{1,0:T(8,128)}', space=vmem, size = 0x2000, scoped, tag = 'scratch operand']
  %s0 = inlined_call_operand.hbm [shape: f32[16,32], index: 0, kind: input, shape index: {}]
  %s1 = inlined_call_operand.hbm [shape: f32[16,16], index: 1, kind: input, shape index: {}]
  %s2 = inlined_call_operand.hbm [shape: f32[2,32], index: 2, kind: input, shape index: {}]
  %s3 = inlined_call_operand.vmem [shape: f32[2,32,96], index: 3, kind: input, shape index: {}]
  %s4 = inlined_call_operand.hbm [shape: f32[2,1,96], index: 4, kind: input, shape index: {}]
  %s5 = inlined_call_operand.vmem [shape: f32[2,32,32], index: 5, kind: input, shape index: {}]
  %s6 = inlined_call_operand.vmem [shape: f32[2,1,32], index: 6, kind: input, shape index: {}]
  %s7 = inlined_call_operand.hbm [shape: f32[2,2,32], index: 7, kind: input, shape index: {}]
  %s8 = inlined_call_operand.vmem [shape: f32[2,32,64], index: 8, kind: input, shape index: {}]
  %s9 = inlined_call_operand.hbm [shape: f32[2,1,64], index: 9, kind: input, shape index: {}]
  %s10 = inlined_call_operand.vmem [shape: f32[2,64,32], index: 10, kind: input, shape index: {}]
  %s11 = inlined_call_operand.hbm [shape: f32[2,1,32], index: 11, kind: input, shape index: {}]
  %s12 = inlined_call_operand.vmem [shape: f32[2,2,32], index: 12, kind: input, shape index: {}]
  %s13 = inlined_call_operand.hbm [shape: f32[32,192], index: 13, kind: input, shape index: {}]
  %s14 = inlined_call_operand.hbm [shape: f32[2,64,192], index: 14, kind: input, shape index: {}]
  %s15 = inlined_call_operand.hbm [shape: f32[3,64,192], index: 15, kind: input, shape index: {}]
  %s16 = inlined_call_operand.vmem [shape: f32[3,1,192], index: 16, kind: input, shape index: {}]
  %s17 = inlined_call_operand.vmem [shape: f32[3,1,192], index: 17, kind: input, shape index: {}]
  %s18 = inlined_call_operand.hbm [shape: f32[64,128], index: 18, kind: input, shape index: {}]
  %s19 = inlined_call_operand.vmem [shape: f32[1,128], index: 19, kind: input, shape index: {}]
  %s20 = inlined_call_operand.hbm [shape: f32[2,128], index: 20, kind: output, shape index: {}]
  %s21 = sld [smem:[#allocation0]]
  $region134: #{tpu_custom_call.1} parent=0
    _
  %s23 = ssub.s32 1, %s21
  %s24 = scalar_select 0, %s23, %s21
  $region1: #{tpu_custom_call.1} parent=0
    #allocation4 [shape = 'u8[8192]{0}', space=vmem, size = 0x2000, scoped, tag = 'input window, operand 0, single buffered']
    #allocation5 [shape = 's32[1]{0}', space=sflag, size = 0x4, scoped, tag = 'scoped memory for tpu_custom_call.1']
    #allocation6 [shape = 's32[1]{0}', space=sflag, size = 0x4, scoped, tag = 'scoped memory for tpu_custom_call.1']
    #allocation7 [shape = 'u8[8192]{0}', space=vmem, size = 0x2000, scoped, tag = 'input window, operand 1, single buffered']
    #allocation8 [shape = 's32[1]{0}', space=sflag, size = 0x4, scoped, tag = 'scoped memory for tpu_custom_call.1']
    #allocation9 [shape = 'u8[1024]{0}', space=vmem, size = 0x400, scoped, tag = 'input window, operand 2, single buffered']
    #allocation10 [shape = 'u8[1024]{0}', space=vmem, size = 0x400, scoped, tag = 'input window, operand 4, single buffered']
    #allocation11 [shape = 's32[1]{0}', space=sflag, size = 0x4, scoped, tag = 'scoped memory for tpu_custom_call.1']
    #allocation12 [shape = 'u8[2048]{0}', space=vmem, size = 0x800, scoped, tag = 'input window, operand 7, single buffered']
    #allocation13 [shape = 'u8[1024]{0}', space=vmem, size = 0x400, scoped, tag = 'input window, operand 9, single buffered']
    #allocation14 [shape = 's32[1]{0}', space=sflag, size = 0x4, scoped, tag = 'scoped memory for tpu_custom_call.1']
    #allocation15 [shape = 'u8[1024]{0}', space=vmem, size = 0x400, scoped, tag = 'input window, operand 11, single buffered']
    #allocation16 [shape = 'u8[32768]{0}', space=vmem, size = 0x8000, scoped, tag = 'input window, operand 13, single buffered']
    #allocation17 [shape = 's32[1]{0}', space=sflag, size = 0x4, scoped, tag = 'scoped memory for tpu_custom_call.1']
    #allocation18 [shape = 'u8[131072]{0}', space=vmem, size = 0x20000, scoped, tag = 'input window, operand 14, single buffered']
    #allocation19 [shape = 'u8[196608]{0}', space=vmem, size = 0x30000, scoped, tag = 'input window, operand 15, single buffered']
    #allocation20 [shape = 's32[1]{0}', space=sflag, size = 0x4, scoped, tag = 'scoped memory for tpu_custom_call.1']
    #allocation21 [shape = 'u8[32768]{0}', space=vmem, size = 0x8000, scoped, tag = 'input window, operand 18, single buffered']
    #allocation22 [shape = 'u8[1024]{0}', space=vmem, size = 0x400, scoped, tag = 'output window, operand 0, single buffered']
    %25 = vsyncpa [#allocation5], 0
    %26 = vsyncpa [#allocation8], 0
    %27 = vsyncpa [#allocation11], 0
    %28 = vsyncpa [#allocation14], 0
    %29 = vsyncpa [#allocation17], 0
    %30 = vsyncpa [#allocation20], 0
    %31 = vsyncpa [#allocation6], 0
    // Predicated region
    $region2: #{tpu_custom_call.1} parent=1 // pred_check
      _
    $region3: #{tpu_custom_call.1} parent=1 // pred_check_branch
      %33 = sbr.rel (0) target = $region5
    $region4: #{tpu_custom_call.1} parent=1 // pred_region
      %s35 = ssub.s32 256, 256
      %36 = vsyncadd [#allocation5], %s35
      %s37 = sshll.u32 [#allocation4], 4
      %s38 = int_to_ptr.vmem [resolvable:$true] %s37
      %43 = dma.hbm_to_vmem [thread:$0]  %s0, 256, %s38, [#allocation5], 128, 128, 8
    $region5: #{tpu_custom_call.1} parent=1 // pred_fallthru
      _
    // Predicated region
    $region6: #{tpu_custom_call.1} parent=1 // pred_check
      _
    $region7: #{tpu_custom_call.1} parent=1 // pred_check_branch
      %45 = sbr.rel (0) target = $region9
    $region8: #{tpu_custom_call.1} parent=1 // pred_region
      %s47 = ssub.s32 256, 256
      %48 = vsyncadd [#allocation8], %s47
      %s49 = sshll.u32 [#allocation7], 4
      %s50 = int_to_ptr.vmem [resolvable:$true] %s49
      %55 = dma.hbm_to_vmem [thread:$0]  %s1, 256, %s50, [#allocation8], 128, 128, 8
    $region9: #{tpu_custom_call.1} parent=1 // pred_fallthru
      _
    // Predicated region
    $region10: #{tpu_custom_call.1} parent=1 // pred_check
      _
    $region11: #{tpu_custom_call.1} parent=1 // pred_check_branch
      %57 = sbr.rel (0) target = $region13
    $region12: #{tpu_custom_call.1} parent=1 // pred_region
      %s59 = ssub.s32 32, 32
      %60 = vsyncadd [#allocation8], %s59
      %s62 = sshll.u32 [#allocation9], 4
      %s63 = int_to_ptr.vmem [resolvable:$true] %s62
      %65 = dma.hbm_to_vmem [thread:$0]  %s2, 32, %s63, [#allocation8]
    $region13: #{tpu_custom_call.1} parent=1 // pred_fallthru
      _
    // Predicated region
    $region14: #{tpu_custom_call.1} parent=1 // pred_check
      _
    $region15: #{tpu_custom_call.1} parent=1 // pred_check_branch
      %67 = sbr.rel (0) target = $region17
    $region16: #{tpu_custom_call.1} parent=1 // pred_region
      _
    $region17: #{tpu_custom_call.1} parent=1 // pred_fallthru
      _
    // Predicated region
    $region18: #{tpu_custom_call.1} parent=1 // pred_check
      _
    $region19: #{tpu_custom_call.1} parent=1 // pred_check_branch
      %69 = sbr.rel (0) target = $region21
    $region20: #{tpu_custom_call.1} parent=1 // pred_region
      %s71 = ssub.s32 32, 32
      %72 = vsyncadd [#allocation11], %s71
      %s73 = sshll.u32 [#allocation10], 4
      %s74 = int_to_ptr.vmem [resolvable:$true] %s73
      %79 = dma.hbm_to_vmem [thread:$0]  %s4, 32, %s74, [#allocation11], 16, 16, 1
    $region21: #{tpu_custom_call.1} parent=1 // pred_fallthru
      _
    // Predicated region
    $region22: #{tpu_custom_call.1} parent=1 // pred_check
      _
    $region23: #{tpu_custom_call.1} parent=1 // pred_check_branch
      %81 = sbr.rel (0) target = $region25
    $region24: #{tpu_custom_call.1} parent=1 // pred_region
      _
    $region25: #{tpu_custom_call.1} parent=1 // pred_fallthru
      _
    // Predicated region
    $region26: #{tpu_custom_call.1} parent=1 // pred_check
      _
    $region27: #{tpu_custom_call.1} parent=1 // pred_check_branch
      %83 = sbr.rel (0) target = $region29
    $region28: #{tpu_custom_call.1} parent=1 // pred_region
      _
    $region29: #{tpu_custom_call.1} parent=1 // pred_fallthru
      _
    // Predicated region
    $region30: #{tpu_custom_call.1} parent=1 // pred_check
      _
    $region31: #{tpu_custom_call.1} parent=1 // pred_check_branch
      %85 = sbr.rel (0) target = $region33
    $region32: #{tpu_custom_call.1} parent=1 // pred_region
      %s87 = ssub.s32 64, 64
      %88 = vsyncadd [#allocation11], %s87
      %s89 = sshll.u32 [#allocation12], 4
      %s90 = int_to_ptr.vmem [resolvable:$true] %s89
      %95 = dma.hbm_to_vmem [thread:$0]  %s7, 64, %s90, [#allocation11], 32, 32, 2
    $region33: #{tpu_custom_call.1} parent=1 // pred_fallthru
      _
    // Predicated region
    $region34: #{tpu_custom_call.1} parent=1 // pred_check
      _
    $region35: #{tpu_custom_call.1} parent=1 // pred_check_branch
      %97 = sbr.rel (0) target = $region37
    $region36: #{tpu_custom_call.1} parent=1 // pred_region
      _
    $region37: #{tpu_custom_call.1} parent=1 // pred_fallthru
      _
    // Predicated region
    $region38: #{tpu_custom_call.1} parent=1 // pred_check
      _
    $region39: #{tpu_custom_call.1} parent=1 // pred_check_branch
      %99 = sbr.rel (0) target = $region41
    $region40: #{tpu_custom_call.1} parent=1 // pred_region
      %s101 = ssub.s32 32, 32
      %102 = vsyncadd [#allocation14], %s101
      %s103 = sshll.u32 [#allocation13], 4
      %s104 = int_to_ptr.vmem [resolvable:$true] %s103
      %109 = dma.hbm_to_vmem [thread:$0]  %s9, 32, %s104, [#allocation14], 16, 16, 1
    $region41: #{tpu_custom_call.1} parent=1 // pred_fallthru
      _
    // Predicated region
    $region42: #{tpu_custom_call.1} parent=1 // pred_check
      _
    $region43: #{tpu_custom_call.1} parent=1 // pred_check_branch
      %111 = sbr.rel (0) target = $region45
    $region44: #{tpu_custom_call.1} parent=1 // pred_region
      _
    $region45: #{tpu_custom_call.1} parent=1 // pred_fallthru
      _
    // Predicated region
    $region46: #{tpu_custom_call.1} parent=1 // pred_check
      _
    $region47: #{tpu_custom_call.1} parent=1 // pred_check_branch
      %113 = sbr.rel (0) target = $region49
    $region48: #{tpu_custom_call.1} parent=1 // pred_region
      %s115 = ssub.s32 32, 32
      %116 = vsyncadd [#allocation14], %s115
      %s117 = sshll.u32 [#allocation15], 4
      %s118 = int_to_ptr.vmem [resolvable:$true] %s117
      %123 = dma.hbm_to_vmem [thread:$0]  %s11, 32, %s118, [#allocation14], 16, 16, 1
    $region49: #{tpu_custom_call.1} parent=1 // pred_fallthru
      _
    // Predicated region
    $region50: #{tpu_custom_call.1} parent=1 // pred_check
      _
    $region51: #{tpu_custom_call.1} parent=1 // pred_check_branch
      %125 = sbr.rel (0) target = $region53
    $region52: #{tpu_custom_call.1} parent=1 // pred_region
      _
    $region53: #{tpu_custom_call.1} parent=1 // pred_fallthru
      _
    // Predicated region
    $region54: #{tpu_custom_call.1} parent=1 // pred_check
      _
    $region55: #{tpu_custom_call.1} parent=1 // pred_check_branch
      %127 = sbr.rel (0) target = $region57
    $region56: #{tpu_custom_call.1} parent=1 // pred_region
      %s129 = ssub.s32 1024, 1024
      %130 = vsyncadd [#allocation17], %s129
      %s131 = sshll.u32 [#allocation16], 4
      %s132 = int_to_ptr.vmem [resolvable:$true] %s131
      %137 = dma.hbm_to_vmem [thread:$0]  %s13, 1024, %s132, [#allocation17], 256, 256, 16
    $region57: #{tpu_custom_call.1} parent=1 // pred_fallthru
      _
    // Predicated region
    $region58: #{tpu_custom_call.1} parent=1 // pred_check
      _
    $region59: #{tpu_custom_call.1} parent=1 // pred_check_branch
      %139 = sbr.rel (0) target = $region61
    $region60: #{tpu_custom_call.1} parent=1 // pred_region
      %s141 = ssub.s32 4096, 4096
      %142 = vsyncadd [#allocation17], %s141
      %s143 = sshll.u32 [#allocation18], 4
      %s144 = int_to_ptr.vmem [resolvable:$true] %s143
      %149 = dma.hbm_to_vmem [thread:$0]  %s14, 4096, %s144, [#allocation17], 256, 256, 16
    $region61: #{tpu_custom_call.1} parent=1 // pred_fallthru
      _
    // Predicated region
    $region62: #{tpu_custom_call.1} parent=1 // pred_check
      _
    $region63: #{tpu_custom_call.1} parent=1 // pred_check_branch
      %151 = sbr.rel (0) target = $region65
    $region64: #{tpu_custom_call.1} parent=1 // pred_region
      %s153 = ssub.s32 6144, 6144
      %154 = vsyncadd [#allocation20], %s153
      %s155 = sshll.u32 [#allocation19], 4
      %s156 = int_to_ptr.vmem [resolvable:$true] %s155
      %161 = dma.hbm_to_vmem [thread:$0]  %s15, 6144, %s156, [#allocation20], 256, 256, 16
    $region65: #{tpu_custom_call.1} parent=1 // pred_fallthru
      _
    // Predicated region
    $region66: #{tpu_custom_call.1} parent=1 // pred_check
      _
    $region67: #{tpu_custom_call.1} parent=1 // pred_check_branch
      %163 = sbr.rel (0) target = $region69
    $region68: #{tpu_custom_call.1} parent=1 // pred_region
      _
    $region69: #{tpu_custom_call.1} parent=1 // pred_fallthru
      _
    // Predicated region
    $region70: #{tpu_custom_call.1} parent=1 // pred_check
      _
    $region71: #{tpu_custom_call.1} parent=1 // pred_check_branch
      %165 = sbr.rel (0) target = $region73
    $region72: #{tpu_custom_call.1} parent=1 // pred_region
      _
    $region73: #{tpu_custom_call.1} parent=1 // pred_fallthru
      _
    // Predicated region
    $region74: #{tpu_custom_call.1} parent=1 // pred_check
      _
    $region75: #{tpu_custom_call.1} parent=1 // pred_check_branch
      %167 = sbr.rel (0) target = $region77
    $region76: #{tpu_custom_call.1} parent=1 // pred_region
      %s169 = ssub.s32 1024, 1024
      %170 = vsyncadd [#allocation20], %s169
      %s171 = sshll.u32 [#allocation21], 4
      %s172 = int_to_ptr.vmem [resolvable:$true] %s171
      %177 = dma.hbm_to_vmem [thread:$0]  %s18, 1024, %s172, [#allocation20], 128, 128, 8
    $region77: #{tpu_custom_call.1} parent=1 // pred_fallthru
      _
    // Predicated region
    $region78: #{tpu_custom_call.1} parent=1 // pred_check
      _
    $region79: #{tpu_custom_call.1} parent=1 // pred_check_branch
      %179 = sbr.rel (0) target = $region81
    $region80: #{tpu_custom_call.1} parent=1 // pred_region
      _
    $region81: #{tpu_custom_call.1} parent=1 // pred_fallthru
      _
    // Predicated region
    $region82: #{tpu_custom_call.1} parent=1 // pred_check
      _
    $region83: #{tpu_custom_call.1} parent=1 // pred_check_branch
      %181 = sbr.rel (0) target = $region85
    $region84: #{tpu_custom_call.1} parent=1 // pred_region
      %182 = dma.done [#allocation5], 256
    $region85: #{tpu_custom_call.1} parent=1 // pred_fallthru
      _
    // Predicated region
    $region86: #{tpu_custom_call.1} parent=1 // pred_check
      _
    $region87: #{tpu_custom_call.1} parent=1 // pred_check_branch
      %184 = sbr.rel (0) target = $region89
    $region88: #{tpu_custom_call.1} parent=1 // pred_region
      %185 = dma.done [#allocation8], 256
    $region89: #{tpu_custom_call.1} parent=1 // pred_fallthru
      _
    // Predicated region
    $region90: #{tpu_custom_call.1} parent=1 // pred_check
      _
    $region91: #{tpu_custom_call.1} parent=1 // pred_check_branch
      %187 = sbr.rel (0) target = $region93
    $region92: #{tpu_custom_call.1} parent=1 // pred_region
      %188 = dma.done [#allocation8], 32
    $region93: #{tpu_custom_call.1} parent=1 // pred_fallthru
      _
    // Predicated region
    $region94: #{tpu_custom_call.1} parent=1 // pred_check
      _
    $region95: #{tpu_custom_call.1} parent=1 // pred_check_branch
      %190 = sbr.rel (0) target = $region97
    $region96: #{tpu_custom_call.1} parent=1 // pred_region
      %191 = dma.done [#allocation11], 32
    $region97: #{tpu_custom_call.1} parent=1 // pred_fallthru
      _
    // Predicated region
    $region98: #{tpu_custom_call.1} parent=1 // pred_check
      _
    $region99: #{tpu_custom_call.1} parent=1 // pred_check_branch
      %193 = sbr.rel (0) target = $region101
    $region100: #{tpu_custom_call.1} parent=1 // pred_region
      %194 = dma.done [#allocation11], 64
    $region101: #{tpu_custom_call.1} parent=1 // pred_fallthru
      _
    // Predicated region
    $region102: #{tpu_custom_call.1} parent=1 // pred_check
      _
    $region103: #{tpu_custom_call.1} parent=1 // pred_check_branch
      %196 = sbr.rel (0) target = $region105
    $region104: #{tpu_custom_call.1} parent=1 // pred_region
      %197 = dma.done [#allocation14], 32
    $region105: #{tpu_custom_call.1} parent=1 // pred_fallthru
      _
    // Predicated region
    $region106: #{tpu_custom_call.1} parent=1 // pred_check
      _
    $region107: #{tpu_custom_call.1} parent=1 // pred_check_branch
      %199 = sbr.rel (0) target = $region109
    $region108: #{tpu_custom_call.1} parent=1 // pred_region
      %200 = dma.done [#allocation14], 32
    $region109: #{tpu_custom_call.1} parent=1 // pred_fallthru
      _
    // Predicated region
    $region110: #{tpu_custom_call.1} parent=1 // pred_check
      _
    $region111: #{tpu_custom_call.1} parent=1 // pred_check_branch
      %202 = sbr.rel (0) target = $region113
    $region112: #{tpu_custom_call.1} parent=1 // pred_region
      %203 = dma.done [#allocation17], 1024
    $region113: #{tpu_custom_call.1} parent=1 // pred_fallthru
      _
    // Predicated region
    $region114: #{tpu_custom_call.1} parent=1 // pred_check
      _
    $region115: #{tpu_custom_call.1} parent=1 // pred_check_branch
      %205 = sbr.rel (0) target = $region117
    $region116: #{tpu_custom_call.1} parent=1 // pred_region
      %206 = dma.done [#allocation17], 4096
    $region117: #{tpu_custom_call.1} parent=1 // pred_fallthru
      _
    // Predicated region
    $region118: #{tpu_custom_call.1} parent=1 // pred_check
      _
    $region119: #{tpu_custom_call.1} parent=1 // pred_check_branch
      %208 = sbr.rel (0) target = $region121
    $region120: #{tpu_custom_call.1} parent=1 // pred_region
      %209 = dma.done [#allocation20], 6144
    $region121: #{tpu_custom_call.1} parent=1 // pred_fallthru
      _
    // Predicated region
    $region122: #{tpu_custom_call.1} parent=1 // pred_check
      _
    $region123: #{tpu_custom_call.1} parent=1 // pred_check_branch
      %211 = sbr.rel (0) target = $region125
    $region124: #{tpu_custom_call.1} parent=1 // pred_region
      %212 = dma.done [#allocation20], 1024
    $region125: #{tpu_custom_call.1} parent=1 // pred_fallthru
      _
    %v213 = vld [vmem:[#allocation4] sm:$0xff]
    %v214 = vld [vmem:[#allocation4 + $0x8] sm:$0xff]
    %v215 = vld [vmem:[#allocation7] sm:$0xff]
    %v216 = vld [vmem:[#allocation7 + $0x8] sm:$0xff]
    %v217 = vld [vmem:[#allocation9] sm:$0x3]
    %vm218 = vcmask 261120
    %v219 = vsel %vm218, %v213, 0.0
    %220 = vadd.xlane.f32.xlu0 %v219
    %v221 = vpop.xlane.xlu0 %220
    %v222 = vsel %vm218, %v214, 0.0
    %223 = vadd.xlane.f32.xlu0 %v222
    %v224 = vpop.xlane.xlu0 %223
    %v225 = vrcp.pop 32.0
    %v226 = vmul.f32 %v221, %v225
    %v227 = vmul.f32 %v224, %v225
    %v228 = vsub.f32 %v213, %v226
    %v229 = vsub.f32 %v214, %v227
    %v230 = vmul.f32 %v228, %v228
    %v231 = vmul.f32 %v229, %v229
    %v232 = vsel %vm218, %v230, 0.0
    %233 = vadd.xlane.f32.xlu0 %v232
    %v234 = vpop.xlane.xlu0 %233
    %v235 = vsel %vm218, %v231, 0.0
    %236 = vadd.xlane.f32.xlu0 %v235
    %v237 = vpop.xlane.xlu0 %236
    %v238 = vmul.f32 %v234, %v225
    %v239 = vmul.f32 %v237, %v225
    %v240 = vadd.f32 %v238, 1e-12
    %v241 = vadd.f32 %v239, 1e-12
    %v242 = vrsqrt.pop %v240
    %v243 = vrsqrt.pop %v241
    %v244 = vmul.f32 %v228, %v242
    %v245 = vmul.f32 %v229, %v243
    %v246 = vlaneseq
    %v247 = vshrl.u32 %v246, 7
    %v248 = vsub.s32 0, %v247
    %v249 = vrot.slane %v217, %v248
    %v250 = vmul.f32 %v244, %v249
    %v251 = vmul.f32 %v245, %v249
    %v252 = vlaneseq
    %v253 = vshrl.u32 %v252, 7
    %v254 = vsub.s32 1, %v253
    %v255 = vrot.slane %v217, %v254
    %v256 = vadd.f32 %v250, %v255
    %v257 = vadd.f32 %v251, %v255
    %v258 = vld [vmem:[%s3] sm:$0xff]
    %v259 = vld [vmem:[%s3 + $0x8] sm:$0xff]
    %v260 = vld [vmem:[%s3 + $0x10] sm:$0xff]
    %v261 = vld [vmem:[%s3 + $0x18] sm:$0xff]
    %v262 = vld [vmem:[#allocation10] sm:$0x1]
    %v264 = vlaneseq
    %v265 = vshrl.u32 %v264, 7
    %v266 = vsub.s32 0, %v265
    %v267 = vrot.slane %v262, %v266
    %v270 = vsel %vm218, %v256, 0
    %v273 = vsel %vm218, %v257, 0
    %275 = vmatprep.subr.mxu0 0.0
    %276 = vmatpush1.msra.mxu0 0.0
    %277 = vmatprep.subr.mxu0 0.0
    %278 = vmatpush1.msra.mxu0 0.0
    %279 = vmatprep.subr.mxu0 0.0
    %280 = vmatpush1.msra.mxu0 0.0
    %281 = vmatprep.subr.mxu0 0.0
    %282 = vmatpush1.msra.mxu0 0.0
    %283 = vmatprep.subr.mxu0 0.0
    %284 = vmatpush1.msra.mxu0 0.0
    %285 = vmatprep.subr.mxu0 0.0
    %286 = vmatpush1.msra.mxu0 0.0
    %287 = vmatprep.subr.mxu0 0.0
    %288 = vmatpush1.msra.mxu0 0.0
    %289 = vmatprep.subr.mxu0 0.0
    %290 = vmatpush1.msra.mxu0 0.0
    %291 = vmatprep.subr.mxu0 0.0
    %292 = vmatpush1.msra.mxu0 0.0
    %293 = vmatprep.subr.mxu0 0.0
    %294 = vmatpush1.msra.mxu0 0.0
    %295 = vmatprep.subr.mxu0 0.0
    %296 = vmatpush1.msra.mxu0 0.0
    %297 = vmatprep.subr.mxu0 0.0
    %298 = vmatpush1.msra.mxu0 0.0
    %299 = vmatprep.subr.mxu0 0.0
    %300 = vmatpush1.msra.mxu0 %v261
    %301 = vmatprep.subr.mxu0 0.0
    %302 = vmatpush1.msra.mxu0 %v260
    %303 = vmatprep.subr.mxu0 0.0
    %304 = vmatpush1.msra.mxu0 %v259
    %305 = vmatprep.subr.mxu0 0.0
    %306 = vmatpush1.msra.mxu0 %v258
    %307 = vmatprep.subr.mxu0 0.0
    %308 = vmatpush2.msra.mxu0 0.0
    %309 = vmatprep.subr.mxu0 0.0
    %310 = vmatpush2.msra.mxu0 0.0
    %311 = vmatprep.subr.mxu0 0.0
    %312 = vmatpush2.msra.mxu0 0.0
    %313 = vmatprep.subr.mxu0 0.0
    %314 = vmatpush2.msra.mxu0 0.0
    %315 = vmatprep.subr.mxu0 0.0
    %316 = vmatpush2.msra.mxu0 0.0
    %317 = vmatprep.subr.mxu0 0.0
    %318 = vmatpush2.msra.mxu0 0.0
    %319 = vmatprep.subr.mxu0 0.0
    %320 = vmatpush2.msra.mxu0 0.0
    %321 = vmatprep.subr.mxu0 0.0
    %322 = vmatpush2.msra.mxu0 0.0
    %323 = vmatprep.subr.mxu0 0.0
    %324 = vmatpush2.msra.mxu0 0.0
    %325 = vmatprep.subr.mxu0 0.0
    %326 = vmatpush2.msra.mxu0 0.0
    %327 = vmatprep.subr.mxu0 0.0
    %328 = vmatpush2.msra.mxu0 0.0
    %329 = vmatprep.subr.mxu0 0.0
    %330 = vmatpush2.msra.mxu0 0.0
    %331 = vmatprep.subr.mxu0 0.0
    %332 = vmatpush2.msra.mxu0 0.0
    %333 = vmatprep.subr.mxu0 0.0
    %334 = vmatpush2.msra.mxu0 0.0
    %335 = vmatprep.subr.mxu0 0.0
    %336 = vmatpush2.msra.mxu0 0.0
    %337 = vmatprep.subr.mxu0 0.0
    %338 = vmatpush2.msra.mxu0 0.0
    %339 = vmatprep.mubr.f32.mxu0 0.0
    %340 = vmatmul.mubr.f32.gmra.mxu0 %v270
    %v341 = vpop.f32.mrf.mxu0
    %v342 = vadd.f32 %v267, %v341
    %v343 = vpop.f32.mrf.mxu0
    %344 = vmatprep.mubr.f32.mxu0 0.0
    %345 = vmatmul.mubr.f32.gmra.mxu0 %v273
    %v346 = vpop.f32.mrf.mxu0
    %v347 = vadd.f32 %v267, %v346
    %v348 = vpop.f32.mrf.mxu0
    %349 = vdwg.mxu0
    %v350 = vld [vmem:[%s5] sm:$0xff]
    %v351 = vld [vmem:[%s5 + $0x8] sm:$0xff]
    %v352 = vld [vmem:[%s5 + $0x10] sm:$0xff]
    %v353 = vld [vmem:[%s5 + $0x18] sm:$0xff]
    %356 = vrot.lane.b32.xlu0 %v342, 96
    %v357 = vpop.permute.xlu0 %356
    %358 = vrot.lane.b32.xlu0 %v347, 96
    %v359 = vpop.permute.xlu0 %358
    %vm360 = vcmask 130048
    %v361 = vsel %vm360, %v342, 0
    %v363 = vsel %vm360, %v347, 0
    %v365 = vsel %vm360, %v357, 0
    %v367 = vsel %vm360, %v359, 0
    %369 = vmatprep.subr.mxu0 0.0
    %370 = vmatpush1.xpose.msra.mxu0 0.0
    %371 = vmatprep.subr.mxu0 0.0
    %372 = vmatpush1.xpose.msra.mxu0 0.0
    %373 = vmatprep.subr.mxu0 0.0
    %374 = vmatpush1.xpose.msra.mxu0 0.0
    %375 = vmatprep.subr.mxu0 0.0
    %376 = vmatpush1.xpose.msra.mxu0 0.0
    %377 = vmatprep.subr.mxu0 0.0
    %378 = vmatpush1.xpose.msra.mxu0 0.0
    %379 = vmatprep.subr.mxu0 0.0
    %380 = vmatpush1.xpose.msra.mxu0 0.0
    %381 = vmatprep.subr.mxu0 0.0
    %382 = vmatpush1.xpose.msra.mxu0 0.0
    %383 = vmatprep.subr.mxu0 0.0
    %384 = vmatpush1.xpose.msra.mxu0 0.0
    %385 = vmatprep.subr.mxu0 0.0
    %386 = vmatpush1.xpose.msra.mxu0 0.0
    %387 = vmatprep.subr.mxu0 0.0
    %388 = vmatpush1.xpose.msra.mxu0 0.0
    %389 = vmatprep.subr.mxu0 0.0
    %390 = vmatpush1.xpose.msra.mxu0 0.0
    %391 = vmatprep.subr.mxu0 0.0
    %392 = vmatpush1.xpose.msra.mxu0 0.0
    %393 = vmatprep.subr.mxu0 0.0
    %394 = vmatpush1.xpose.msra.mxu0 0.0
    %395 = vmatprep.subr.mxu0 0.0
    %396 = vmatpush1.xpose.msra.mxu0 0.0
    %397 = vmatprep.subr.mxu0 0.0
    %398 = vmatpush1.xpose.msra.mxu0 %v367
    %399 = vmatprep.subr.mxu0 0.0
    %400 = vmatpush1.xpose.msra.mxu0 %v365
    %401 = vmatprep.subr.mxu0 0.0
    %402 = vmatpush2.xpose.msra.mxu0 0.0
    %403 = vmatprep.subr.mxu0 0.0
    %404 = vmatpush2.xpose.msra.mxu0 0.0
    %405 = vmatprep.subr.mxu0 0.0
    %406 = vmatpush2.xpose.msra.mxu0 0.0
    %407 = vmatprep.subr.mxu0 0.0
    %408 = vmatpush2.xpose.msra.mxu0 0.0
    %409 = vmatprep.subr.mxu0 0.0
    %410 = vmatpush2.xpose.msra.mxu0 0.0
    %411 = vmatprep.subr.mxu0 0.0
    %412 = vmatpush2.xpose.msra.mxu0 0.0
    %413 = vmatprep.subr.mxu0 0.0
    %414 = vmatpush2.xpose.msra.mxu0 0.0
    %415 = vmatprep.subr.mxu0 0.0
    %416 = vmatpush2.xpose.msra.mxu0 0.0
    %417 = vmatprep.subr.mxu0 0.0
    %418 = vmatpush2.xpose.msra.mxu0 0.0
    %419 = vmatprep.subr.mxu0 0.0
    %420 = vmatpush2.xpose.msra.mxu0 0.0
    %421 = vmatprep.subr.mxu0 0.0
    %422 = vmatpush2.xpose.msra.mxu0 0.0
    %423 = vmatprep.subr.mxu0 0.0
    %424 = vmatpush2.xpose.msra.mxu0 0.0
    %425 = vmatprep.subr.mxu0 0.0
    %426 = vmatpush2.xpose.msra.mxu0 0.0
    %427 = vmatprep.subr.mxu0 0.0
    %428 = vmatpush2.xpose.msra.mxu0 0.0
    %429 = vmatprep.subr.mxu0 0.0
    %430 = vmatpush2.xpose.msra.mxu0 0.0
    %431 = vmatprep.subr.mxu0 0.0
    %432 = vmatpush2.xpose.msra.mxu0 0.0
    %433 = vmatprep.mubr.f32.mxu0 0.0
    %434 = vmatmul.mubr.f32.gmra.mxu0 %v361
    %v435 = vpop.f32.mrf.mxu0
    %v436 = vadd.f32 0.0, %v435
    %v437 = vpop.f32.mrf.mxu0
    %438 = vmatprep.mubr.f32.mxu0 0.0
    %439 = vmatmul.mubr.f32.gmra.mxu0 %v363
    %v440 = vpop.f32.mrf.mxu0
    %v441 = vadd.f32 0.0, %v440
    %v442 = vpop.f32.mrf.mxu0
    %443 = vdwg.mxu0
    %v444 = vmul.f32 %v436, 0.25
    %v445 = vmul.f32 %v441, 0.25
    %v446 = vadd.f32 %v444, %v215
    %v447 = vadd.f32 %v445, %v216
    %v448 = vsel %vm360, %v446, -inf
    %449 = vmax.xlane.f32.xlu0 %v448
    %v450 = vpop.xlane.xlu0 %449
    %v451 = vsel %vm360, %v447, -inf
    %452 = vmax.xlane.f32.xlu0 %v451
    %v453 = vpop.xlane.xlu0 %452
    %v454 = vsub.f32 %v446, %v450
    %v455 = vsub.f32 %v447, %v453
    %v456 = vmul.f32 %v454, 1.442695
    %v457 = vpow.pop %v456
    %v458 = vmul.f32 %v455, 1.442695
    %v459 = vpow.pop %v458
    %v460 = vsel %vm360, %v457, 0.0
    %461 = vadd.xlane.f32.xlu0 %v460
    %v462 = vpop.xlane.xlu0 %461
    %v463 = vsel %vm360, %v459, 0.0
    %464 = vadd.xlane.f32.xlu0 %v463
    %v465 = vpop.xlane.xlu0 %464
    %v466 = vrcp.pop %v462
    %v467 = vrcp.pop %v465
    %v468 = vmul.f32 %v457, %v466
    %v469 = vmul.f32 %v459, %v467
    %470 = vrot.lane.b32.xlu0 %v342, 64
    %v471 = vpop.permute.xlu0 %470
    %472 = vrot.lane.b32.xlu0 %v347, 64
    %v473 = vpop.permute.xlu0 %472
    %v477 = vsel %vm360, %v468, 0
    %v480 = vsel %vm360, %v469, 0
    %482 = vmatprep.subr.mxu0 0.0
    %483 = vmatpush1.msra.mxu0 0.0
    %484 = vmatprep.subr.mxu0 0.0
    %485 = vmatpush1.msra.mxu0 0.0
    %486 = vmatprep.subr.mxu0 0.0
    %487 = vmatpush1.msra.mxu0 0.0
    %488 = vmatprep.subr.mxu0 0.0
    %489 = vmatpush1.msra.mxu0 0.0
    %490 = vmatprep.subr.mxu0 0.0
    %491 = vmatpush1.msra.mxu0 0.0
    %492 = vmatprep.subr.mxu0 0.0
    %493 = vmatpush1.msra.mxu0 0.0
    %494 = vmatprep.subr.mxu0 0.0
    %495 = vmatpush1.msra.mxu0 0.0
    %496 = vmatprep.subr.mxu0 0.0
    %497 = vmatpush1.msra.mxu0 0.0
    %498 = vmatprep.subr.mxu0 0.0
    %499 = vmatpush1.msra.mxu0 0.0
    %500 = vmatprep.subr.mxu0 0.0
    %501 = vmatpush1.msra.mxu0 0.0
    %502 = vmatprep.subr.mxu0 0.0
    %503 = vmatpush1.msra.mxu0 0.0
    %504 = vmatprep.subr.mxu0 0.0
    %505 = vmatpush1.msra.mxu0 0.0
    %506 = vmatprep.subr.mxu0 0.0
    %507 = vmatpush1.msra.mxu0 0.0
    %508 = vmatprep.subr.mxu0 0.0
    %509 = vmatpush1.msra.mxu0 0.0
    %510 = vmatprep.subr.mxu0 0.0
    %511 = vmatpush1.msra.mxu0 %v473
    %512 = vmatprep.subr.mxu0 0.0
    %513 = vmatpush1.msra.mxu0 %v471
    %514 = vmatprep.subr.mxu0 0.0
    %515 = vmatpush2.msra.mxu0 0.0
    %516 = vmatprep.subr.mxu0 0.0
    %517 = vmatpush2.msra.mxu0 0.0
    %518 = vmatprep.subr.mxu0 0.0
    %519 = vmatpush2.msra.mxu0 0.0
    %520 = vmatprep.subr.mxu0 0.0
    %521 = vmatpush2.msra.mxu0 0.0
    %522 = vmatprep.subr.mxu0 0.0
    %523 = vmatpush2.msra.mxu0 0.0
    %524 = vmatprep.subr.mxu0 0.0
    %525 = vmatpush2.msra.mxu0 0.0
    %526 = vmatprep.subr.mxu0 0.0
    %527 = vmatpush2.msra.mxu0 0.0
    %528 = vmatprep.subr.mxu0 0.0
    %529 = vmatpush2.msra.mxu0 0.0
    %530 = vmatprep.subr.mxu0 0.0
    %531 = vmatpush2.msra.mxu0 0.0
    %532 = vmatprep.subr.mxu0 0.0
    %533 = vmatpush2.msra.mxu0 0.0
    %534 = vmatprep.subr.mxu0 0.0
    %535 = vmatpush2.msra.mxu0 0.0
    %536 = vmatprep.subr.mxu0 0.0
    %537 = vmatpush2.msra.mxu0 0.0
    %538 = vmatprep.subr.mxu0 0.0
    %539 = vmatpush2.msra.mxu0 0.0
    %540 = vmatprep.subr.mxu0 0.0
    %541 = vmatpush2.msra.mxu0 0.0
    %542 = vmatprep.subr.mxu0 0.0
    %543 = vmatpush2.msra.mxu0 0.0
    %544 = vmatprep.subr.mxu0 0.0
    %545 = vmatpush2.msra.mxu0 0.0
    %546 = vmatprep.mubr.f32.mxu0 0.0
    %547 = vmatmul.mubr.f32.gmra.mxu0 %v477
    %v548 = vpop.f32.mrf.mxu0
    %v549 = vadd.f32 0.0, %v548
    %v550 = vpop.f32.mrf.mxu0
    %551 = vmatprep.mubr.f32.mxu0 0.0
    %552 = vmatmul.mubr.f32.gmra.mxu0 %v480
    %v553 = vpop.f32.mrf.mxu0
    %v554 = vadd.f32 0.0, %v553
    %v555 = vpop.f32.mrf.mxu0
    %556 = vdwg.mxu0
    %557 = vrot.lane.b32.xlu0 %v342, 112
    %v558 = vpop.permute.xlu0 %557
    %559 = vrot.lane.b32.xlu0 %v347, 112
    %v560 = vpop.permute.xlu0 %559
    %561 = vrot.lane.b32.xlu0 %v342, 80
    %v562 = vpop.permute.xlu0 %561
    %563 = vrot.lane.b32.xlu0 %v347, 80
    %v564 = vpop.permute.xlu0 %563
    %v565 = vsel %vm360, %v558, 0
    %v567 = vsel %vm360, %v560, 0
    %v569 = vsel %vm360, %v562, 0
    %v571 = vsel %vm360, %v564, 0
    %573 = vmatprep.subr.mxu0 0.0
    %574 = vmatpush1.xpose.msra.mxu0 0.0
    %575 = vmatprep.subr.mxu0 0.0
    %576 = vmatpush1.xpose.msra.mxu0 0.0
    %577 = vmatprep.subr.mxu0 0.0
    %578 = vmatpush1.xpose.msra.mxu0 0.0
    %579 = vmatprep.subr.mxu0 0.0
    %580 = vmatpush1.xpose.msra.mxu0 0.0
    %581 = vmatprep.subr.mxu0 0.0
    %582 = vmatpush1.xpose.msra.mxu0 0.0
    %583 = vmatprep.subr.mxu0 0.0
    %584 = vmatpush1.xpose.msra.mxu0 0.0
    %585 = vmatprep.subr.mxu0 0.0
    %586 = vmatpush1.xpose.msra.mxu0 0.0
    %587 = vmatprep.subr.mxu0 0.0
    %588 = vmatpush1.xpose.msra.mxu0 0.0
    %589 = vmatprep.subr.mxu0 0.0
    %590 = vmatpush1.xpose.msra.mxu0 0.0
    %591 = vmatprep.subr.mxu0 0.0
    %592 = vmatpush1.xpose.msra.mxu0 0.0
    %593 = vmatprep.subr.mxu0 0.0
    %594 = vmatpush1.xpose.msra.mxu0 0.0
    %595 = vmatprep.subr.mxu0 0.0
    %596 = vmatpush1.xpose.msra.mxu0 0.0
    %597 = vmatprep.subr.mxu0 0.0
    %598 = vmatpush1.xpose.msra.mxu0 0.0
    %599 = vmatprep.subr.mxu0 0.0
    %600 = vmatpush1.xpose.msra.mxu0 0.0
    %601 = vmatprep.subr.mxu0 0.0
    %602 = vmatpush1.xpose.msra.mxu0 %v571
    %603 = vmatprep.subr.mxu0 0.0
    %604 = vmatpush1.xpose.msra.mxu0 %v569
    %605 = vmatprep.subr.mxu0 0.0
    %606 = vmatpush2.xpose.msra.mxu0 0.0
    %607 = vmatprep.subr.mxu0 0.0
    %608 = vmatpush2.xpose.msra.mxu0 0.0
    %609 = vmatprep.subr.mxu0 0.0
    %610 = vmatpush2.xpose.msra.mxu0 0.0
    %611 = vmatprep.subr.mxu0 0.0
    %612 = vmatpush2.xpose.msra.mxu0 0.0
    %613 = vmatprep.subr.mxu0 0.0
    %614 = vmatpush2.xpose.msra.mxu0 0.0
    %615 = vmatprep.subr.mxu0 0.0
    %616 = vmatpush2.xpose.msra.mxu0 0.0
    %617 = vmatprep.subr.mxu0 0.0
    %618 = vmatpush2.xpose.msra.mxu0 0.0
    %619 = vmatprep.subr.mxu0 0.0
    %620 = vmatpush2.xpose.msra.mxu0 0.0
    %621 = vmatprep.subr.mxu0 0.0
    %622 = vmatpush2.xpose.msra.mxu0 0.0
    %623 = vmatprep.subr.mxu0 0.0
    %624 = vmatpush2.xpose.msra.mxu0 0.0
    %625 = vmatprep.subr.mxu0 0.0
    %626 = vmatpush2.xpose.msra.mxu0 0.0
    %627 = vmatprep.subr.mxu0 0.0
    %628 = vmatpush2.xpose.msra.mxu0 0.0
    %629 = vmatprep.subr.mxu0 0.0
    %630 = vmatpush2.xpose.msra.mxu0 0.0
    %631 = vmatprep.subr.mxu0 0.0
    %632 = vmatpush2.xpose.msra.mxu0 0.0
    %633 = vmatprep.subr.mxu0 0.0
    %634 = vmatpush2.xpose.msra.mxu0 0.0
    %635 = vmatprep.subr.mxu0 0.0
    %636 = vmatpush2.xpose.msra.mxu0 0.0
    %637 = vmatprep.mubr.f32.mxu0 0.0
    %638 = vmatmul.mubr.f32.gmra.mxu0 %v565
    %v639 = vpop.f32.mrf.mxu0
    %v640 = vadd.f32 0.0, %v639
    %v641 = vpop.f32.mrf.mxu0
    %642 = vmatprep.mubr.f32.mxu0 0.0
    %643 = vmatmul.mubr.f32.gmra.mxu0 %v567
    %v644 = vpop.f32.mrf.mxu0
    %v645 = vadd.f32 0.0, %v644
    %v646 = vpop.f32.mrf.mxu0
    %647 = vdwg.mxu0
    %v648 = vmul.f32 %v640, 0.25
    %v649 = vmul.f32 %v645, 0.25
    %v650 = vadd.f32 %v648, %v215
    %v651 = vadd.f32 %v649, %v216
    %v652 = vsel %vm360, %v650, -inf
    %653 = vmax.xlane.f32.xlu0 %v652
    %v654 = vpop.xlane.xlu0 %653
    %v655 = vsel %vm360, %v651, -inf
    %656 = vmax.xlane.f32.xlu0 %v655
    %v657 = vpop.xlane.xlu0 %656
    %v658 = vsub.f32 %v650, %v654
    %v659 = vsub.f32 %v651, %v657
    %v660 = vmul.f32 %v658, 1.442695
    %v661 = vpow.pop %v660
    %v662 = vmul.f32 %v659, 1.442695
    %v663 = vpow.pop %v662
    %v664 = vsel %vm360, %v661, 0.0
    %665 = vadd.xlane.f32.xlu0 %v664
    %v666 = vpop.xlane.xlu0 %665
    %v667 = vsel %vm360, %v663, 0.0
    %668 = vadd.xlane.f32.xlu0 %v667
    %v669 = vpop.xlane.xlu0 %668
    %v670 = vrcp.pop %v666
    %v671 = vrcp.pop %v669
    %v672 = vmul.f32 %v661, %v670
    %v673 = vmul.f32 %v663, %v671
    %674 = vrot.lane.b32.xlu0 %v342, 48
    %v675 = vpop.permute.xlu0 %674
    %676 = vrot.lane.b32.xlu0 %v347, 48
    %v677 = vpop.permute.xlu0 %676
    %v681 = vsel %vm360, %v672, 0
    %v684 = vsel %vm360, %v673, 0
    %686 = vmatprep.subr.mxu0 0.0
    %687 = vmatpush1.msra.mxu0 0.0
    %688 = vmatprep.subr.mxu0 0.0
    %689 = vmatpush1.msra.mxu0 0.0
    %690 = vmatprep.subr.mxu0 0.0
    %691 = vmatpush1.msra.mxu0 0.0
    %692 = vmatprep.subr.mxu0 0.0
    %693 = vmatpush1.msra.mxu0 0.0
    %694 = vmatprep.subr.mxu0 0.0
    %695 = vmatpush1.msra.mxu0 0.0
    %696 = vmatprep.subr.mxu0 0.0
    %697 = vmatpush1.msra.mxu0 0.0
    %698 = vmatprep.subr.mxu0 0.0
    %699 = vmatpush1.msra.mxu0 0.0
    %700 = vmatprep.subr.mxu0 0.0
    %701 = vmatpush1.msra.mxu0 0.0
    %702 = vmatprep.subr.mxu0 0.0
    %703 = vmatpush1.msra.mxu0 0.0
    %704 = vmatprep.subr.mxu0 0.0
    %705 = vmatpush1.msra.mxu0 0.0
    %706 = vmatprep.subr.mxu0 0.0
    %707 = vmatpush1.msra.mxu0 0.0
    %708 = vmatprep.subr.mxu0 0.0
    %709 = vmatpush1.msra.mxu0 0.0
    %710 = vmatprep.subr.mxu0 0.0
    %711 = vmatpush1.msra.mxu0 0.0
    %712 = vmatprep.subr.mxu0 0.0
    %713 = vmatpush1.msra.mxu0 0.0
    %714 = vmatprep.subr.mxu0 0.0
    %715 = vmatpush1.msra.mxu0 %v677
    %716 = vmatprep.subr.mxu0 0.0
    %717 = vmatpush1.msra.mxu0 %v675
    %718 = vmatprep.subr.mxu0 0.0
    %719 = vmatpush2.msra.mxu0 0.0
    %720 = vmatprep.subr.mxu0 0.0
    %721 = vmatpush2.msra.mxu0 0.0
    %722 = vmatprep.subr.mxu0 0.0
    %723 = vmatpush2.msra.mxu0 0.0
    %724 = vmatprep.subr.mxu0 0.0
    %725 = vmatpush2.msra.mxu0 0.0
    %726 = vmatprep.subr.mxu0 0.0
    %727 = vmatpush2.msra.mxu0 0.0
    %728 = vmatprep.subr.mxu0 0.0
    %729 = vmatpush2.msra.mxu0 0.0
    %730 = vmatprep.subr.mxu0 0.0
    %731 = vmatpush2.msra.mxu0 0.0
    %732 = vmatprep.subr.mxu0 0.0
    %733 = vmatpush2.msra.mxu0 0.0
    %734 = vmatprep.subr.mxu0 0.0
    %735 = vmatpush2.msra.mxu0 0.0
    %736 = vmatprep.subr.mxu0 0.0
    %737 = vmatpush2.msra.mxu0 0.0
    %738 = vmatprep.subr.mxu0 0.0
    %739 = vmatpush2.msra.mxu0 0.0
    %740 = vmatprep.subr.mxu0 0.0
    %741 = vmatpush2.msra.mxu0 0.0
    %742 = vmatprep.subr.mxu0 0.0
    %743 = vmatpush2.msra.mxu0 0.0
    %744 = vmatprep.subr.mxu0 0.0
    %745 = vmatpush2.msra.mxu0 0.0
    %746 = vmatprep.subr.mxu0 0.0
    %747 = vmatpush2.msra.mxu0 0.0
    %748 = vmatprep.subr.mxu0 0.0
    %749 = vmatpush2.msra.mxu0 0.0
    %750 = vmatprep.mubr.f32.mxu0 0.0
    %751 = vmatmul.mubr.f32.gmra.mxu0 %v681
    %v752 = vpop.f32.mrf.mxu0
    %v753 = vadd.f32 0.0, %v752
    %v754 = vpop.f32.mrf.mxu0
    %755 = vmatprep.mubr.f32.mxu0 0.0
    %756 = vmatmul.mubr.f32.gmra.mxu0 %v684
    %v757 = vpop.f32.mrf.mxu0
    %v758 = vadd.f32 0.0, %v757
    %v759 = vpop.f32.mrf.mxu0
    %760 = vdwg.mxu0
    %v762 = vsel %vm360, %v753, 0
    %v765 = vsel %vm360, %v758, 0
    %767 = vmatprep.subr.mxu0 0.0
    %768 = vmatpush1.msra.mxu0 0.0
    %769 = vmatprep.subr.mxu0 0.0
    %770 = vmatpush1.msra.mxu0 0.0
    %771 = vmatprep.subr.mxu0 0.0
    %772 = vmatpush1.msra.mxu0 0.0
    %773 = vmatprep.subr.mxu0 0.0
    %774 = vmatpush1.msra.mxu0 0.0
    %775 = vmatprep.subr.mxu0 0.0
    %776 = vmatpush1.msra.mxu0 0.0
    %777 = vmatprep.subr.mxu0 0.0
    %778 = vmatpush1.msra.mxu0 0.0
    %779 = vmatprep.subr.mxu0 0.0
    %780 = vmatpush1.msra.mxu0 0.0
    %781 = vmatprep.subr.mxu0 0.0
    %782 = vmatpush1.msra.mxu0 0.0
    %783 = vmatprep.subr.mxu0 0.0
    %784 = vmatpush1.msra.mxu0 0.0
    %785 = vmatprep.subr.mxu0 0.0
    %786 = vmatpush1.msra.mxu0 0.0
    %787 = vmatprep.subr.mxu0 0.0
    %788 = vmatpush1.msra.mxu0 0.0
    %789 = vmatprep.subr.mxu0 0.0
    %790 = vmatpush1.msra.mxu0 0.0
    %791 = vmatprep.subr.mxu0 0.0
    %792 = vmatpush1.msra.mxu0 0.0
    %793 = vmatprep.subr.mxu0 0.0
    %794 = vmatpush1.msra.mxu0 0.0
    %795 = vmatprep.subr.mxu0 0.0
    %796 = vmatpush1.msra.mxu0 %v353
    %797 = vmatprep.subr.mxu0 0.0
    %798 = vmatpush1.msra.mxu0 %v352
    %799 = vmatprep.subr.mxu0 0.0
    %800 = vmatpush2.msra.mxu0 0.0
    %801 = vmatprep.subr.mxu0 0.0
    %802 = vmatpush2.msra.mxu0 0.0
    %803 = vmatprep.subr.mxu0 0.0
    %804 = vmatpush2.msra.mxu0 0.0
    %805 = vmatprep.subr.mxu0 0.0
    %806 = vmatpush2.msra.mxu0 0.0
    %807 = vmatprep.subr.mxu0 0.0
    %808 = vmatpush2.msra.mxu0 0.0
    %809 = vmatprep.subr.mxu0 0.0
    %810 = vmatpush2.msra.mxu0 0.0
    %811 = vmatprep.subr.mxu0 0.0
    %812 = vmatpush2.msra.mxu0 0.0
    %813 = vmatprep.subr.mxu0 0.0
    %814 = vmatpush2.msra.mxu0 0.0
    %815 = vmatprep.subr.mxu0 0.0
    %816 = vmatpush2.msra.mxu0 0.0
    %817 = vmatprep.subr.mxu0 0.0
    %818 = vmatpush2.msra.mxu0 0.0
    %819 = vmatprep.subr.mxu0 0.0
    %820 = vmatpush2.msra.mxu0 0.0
    %821 = vmatprep.subr.mxu0 0.0
    %822 = vmatpush2.msra.mxu0 0.0
    %823 = vmatprep.subr.mxu0 0.0
    %824 = vmatpush2.msra.mxu0 0.0
    %825 = vmatprep.subr.mxu0 0.0
    %826 = vmatpush2.msra.mxu0 0.0
    %827 = vmatprep.subr.mxu0 0.0
    %828 = vmatpush2.msra.mxu0 0.0
    %829 = vmatprep.subr.mxu0 0.0
    %830 = vmatpush2.msra.mxu0 0.0
    %831 = vmatprep.mubr.f32.mxu0 0.0
    %832 = vmatmul.mubr.f32.gmra.mxu0 %v762
    %v833 = vpop.f32.mrf.mxu0
    %v834 = vadd.f32 0.0, %v833
    %v835 = vpop.f32.mrf.mxu0
    %836 = vmatprep.mubr.f32.mxu0 0.0
    %837 = vmatmul.mubr.f32.gmra.mxu0 %v765
    %v838 = vpop.f32.mrf.mxu0
    %v839 = vadd.f32 0.0, %v838
    %v840 = vpop.f32.mrf.mxu0
    %841 = vdwg.mxu0
    %v843 = vsel %vm360, %v549, 0
    %v846 = vsel %vm360, %v554, 0
    %848 = vmatprep.subr.mxu0 0.0
    %849 = vmatpush1.msra.mxu0 0.0
    %850 = vmatprep.subr.mxu0 0.0
    %851 = vmatpush1.msra.mxu0 0.0
    %852 = vmatprep.subr.mxu0 0.0
    %853 = vmatpush1.msra.mxu0 0.0
    %854 = vmatprep.subr.mxu0 0.0
    %855 = vmatpush1.msra.mxu0 0.0
    %856 = vmatprep.subr.mxu0 0.0
    %857 = vmatpush1.msra.mxu0 0.0
    %858 = vmatprep.subr.mxu0 0.0
    %859 = vmatpush1.msra.mxu0 0.0
    %860 = vmatprep.subr.mxu0 0.0
    %861 = vmatpush1.msra.mxu0 0.0
    %862 = vmatprep.subr.mxu0 0.0
    %863 = vmatpush1.msra.mxu0 0.0
    %864 = vmatprep.subr.mxu0 0.0
    %865 = vmatpush1.msra.mxu0 0.0
    %866 = vmatprep.subr.mxu0 0.0
    %867 = vmatpush1.msra.mxu0 0.0
    %868 = vmatprep.subr.mxu0 0.0
    %869 = vmatpush1.msra.mxu0 0.0
    %870 = vmatprep.subr.mxu0 0.0
    %871 = vmatpush1.msra.mxu0 0.0
    %872 = vmatprep.subr.mxu0 0.0
    %873 = vmatpush1.msra.mxu0 0.0
    %874 = vmatprep.subr.mxu0 0.0
    %875 = vmatpush1.msra.mxu0 0.0
    %876 = vmatprep.subr.mxu0 0.0
    %877 = vmatpush1.msra.mxu0 %v351
    %878 = vmatprep.subr.mxu0 0.0
    %879 = vmatpush1.msra.mxu0 %v350
    %880 = vmatprep.subr.mxu0 0.0
    %881 = vmatpush2.msra.mxu0 0.0
    %882 = vmatprep.subr.mxu0 0.0
    %883 = vmatpush2.msra.mxu0 0.0
    %884 = vmatprep.subr.mxu0 0.0
    %885 = vmatpush2.msra.mxu0 0.0
    %886 = vmatprep.subr.mxu0 0.0
    %887 = vmatpush2.msra.mxu0 0.0
    %888 = vmatprep.subr.mxu0 0.0
    %889 = vmatpush2.msra.mxu0 0.0
    %890 = vmatprep.subr.mxu0 0.0
    %891 = vmatpush2.msra.mxu0 0.0
    %892 = vmatprep.subr.mxu0 0.0
    %893 = vmatpush2.msra.mxu0 0.0
    %894 = vmatprep.subr.mxu0 0.0
    %895 = vmatpush2.msra.mxu0 0.0
    %896 = vmatprep.subr.mxu0 0.0
    %897 = vmatpush2.msra.mxu0 0.0
    %898 = vmatprep.subr.mxu0 0.0
    %899 = vmatpush2.msra.mxu0 0.0
    %900 = vmatprep.subr.mxu0 0.0
    %901 = vmatpush2.msra.mxu0 0.0
    %902 = vmatprep.subr.mxu0 0.0
    %903 = vmatpush2.msra.mxu0 0.0
    %904 = vmatprep.subr.mxu0 0.0
    %905 = vmatpush2.msra.mxu0 0.0
    %906 = vmatprep.subr.mxu0 0.0
    %907 = vmatpush2.msra.mxu0 0.0
    %908 = vmatprep.subr.mxu0 0.0
    %909 = vmatpush2.msra.mxu0 0.0
    %910 = vmatprep.subr.mxu0 0.0
    %911 = vmatpush2.msra.mxu0 0.0
    %912 = vmatprep.mubr.f32.mxu0 0.0
    %913 = vmatmul.mubr.f32.gmra.mxu0 %v843
    %v914 = vpop.f32.mrf.mxu0
    %v915 = vadd.f32 %v834, %v914
    %v916 = vpop.f32.mrf.mxu0
    %917 = vmatprep.mubr.f32.mxu0 0.0
    %918 = vmatmul.mubr.f32.gmra.mxu0 %v846
    %v919 = vpop.f32.mrf.mxu0
    %v920 = vadd.f32 %v839, %v919
    %v921 = vpop.f32.mrf.mxu0
    %922 = vdwg.mxu0
    %v923 = vld [vmem:[%s6] sm:$0x1]
    %v925 = vlaneseq
    %v926 = vshrl.u32 %v925, 7
    %v927 = vsub.s32 0, %v926
    %v928 = vrot.slane %v923, %v927
    %v930 = vadd.f32 %v915, %v928
    %v931 = vadd.f32 %v920, %v928
    %v932 = vld [vmem:[#allocation12] sm:$0x3]
    %v933 = vadd.f32 %v256, %v930
    %v934 = vadd.f32 %v257, %v931
    %v935 = vsel %vm218, %v933, 0.0
    %936 = vadd.xlane.f32.xlu0 %v935
    %v937 = vpop.xlane.xlu0 %936
    %v938 = vsel %vm218, %v934, 0.0
    %939 = vadd.xlane.f32.xlu0 %v938
    %v940 = vpop.xlane.xlu0 %939
    %v941 = vmul.f32 %v937, %v225
    %v942 = vmul.f32 %v940, %v225
    %v943 = vsub.f32 %v933, %v941
    %v944 = vsub.f32 %v934, %v942
    %v945 = vmul.f32 %v943, %v943
    %v946 = vmul.f32 %v944, %v944
    %v947 = vsel %vm218, %v945, 0.0
    %948 = vadd.xlane.f32.xlu0 %v947
    %v949 = vpop.xlane.xlu0 %948
    %v950 = vsel %vm218, %v946, 0.0
    %951 = vadd.xlane.f32.xlu0 %v950
    %v952 = vpop.xlane.xlu0 %951
    %v953 = vmul.f32 %v949, %v225
    %v954 = vmul.f32 %v952, %v225
    %v955 = vadd.f32 %v953, 1e-12
    %v956 = vadd.f32 %v954, 1e-12
    %v957 = vrsqrt.pop %v955
    %v958 = vrsqrt.pop %v956
    %v959 = vmul.f32 %v943, %v957
    %v960 = vmul.f32 %v944, %v958
    %v961 = vlaneseq
    %v962 = vshrl.u32 %v961, 7
    %v963 = vsub.s32 0, %v962
    %v964 = vrot.slane %v932, %v963
    %v965 = vmul.f32 %v959, %v964
    %v966 = vmul.f32 %v960, %v964
    %v967 = vlaneseq
    %v968 = vshrl.u32 %v967, 7
    %v969 = vsub.s32 1, %v968
    %v970 = vrot.slane %v932, %v969
    %v971 = vadd.f32 %v965, %v970
    %v972 = vadd.f32 %v966, %v970
    %v973 = vld [vmem:[%s8] sm:$0xff]
    %v974 = vld [vmem:[%s8 + $0x8] sm:$0xff]
    %v975 = vld [vmem:[%s8 + $0x10] sm:$0xff]
    %v976 = vld [vmem:[%s8 + $0x18] sm:$0xff]
    %v977 = vld [vmem:[#allocation13] sm:$0x1]
    %v979 = vlaneseq
    %v980 = vshrl.u32 %v979, 7
    %v981 = vsub.s32 0, %v980
    %v982 = vrot.slane %v977, %v981
    %v985 = vsel %vm218, %v971, 0
    %v988 = vsel %vm218, %v972, 0
    %990 = vmatprep.subr.mxu0 0.0
    %991 = vmatpush1.msra.mxu0 0.0
    %992 = vmatprep.subr.mxu0 0.0
    %993 = vmatpush1.msra.mxu0 0.0
    %994 = vmatprep.subr.mxu0 0.0
    %995 = vmatpush1.msra.mxu0 0.0
    %996 = vmatprep.subr.mxu0 0.0
    %997 = vmatpush1.msra.mxu0 0.0
    %998 = vmatprep.subr.mxu0 0.0
    %999 = vmatpush1.msra.mxu0 0.0
    %1000 = vmatprep.subr.mxu0 0.0
    %1001 = vmatpush1.msra.mxu0 0.0
    %1002 = vmatprep.subr.mxu0 0.0
    %1003 = vmatpush1.msra.mxu0 0.0
    %1004 = vmatprep.subr.mxu0 0.0
    %1005 = vmatpush1.msra.mxu0 0.0
    %1006 = vmatprep.subr.mxu0 0.0
    %1007 = vmatpush1.msra.mxu0 0.0
    %1008 = vmatprep.subr.mxu0 0.0
    %1009 = vmatpush1.msra.mxu0 0.0
    %1010 = vmatprep.subr.mxu0 0.0
    %1011 = vmatpush1.msra.mxu0 0.0
    %1012 = vmatprep.subr.mxu0 0.0
    %1013 = vmatpush1.msra.mxu0 0.0
    %1014 = vmatprep.subr.mxu0 0.0
    %1015 = vmatpush1.msra.mxu0 %v976
    %1016 = vmatprep.subr.mxu0 0.0
    %1017 = vmatpush1.msra.mxu0 %v975
    %1018 = vmatprep.subr.mxu0 0.0
    %1019 = vmatpush1.msra.mxu0 %v974
    %1020 = vmatprep.subr.mxu0 0.0
    %1021 = vmatpush1.msra.mxu0 %v973
    %1022 = vmatprep.subr.mxu0 0.0
    %1023 = vmatpush2.msra.mxu0 0.0
    %1024 = vmatprep.subr.mxu0 0.0
    %1025 = vmatpush2.msra.mxu0 0.0
    %1026 = vmatprep.subr.mxu0 0.0
    %1027 = vmatpush2.msra.mxu0 0.0
    %1028 = vmatprep.subr.mxu0 0.0
    %1029 = vmatpush2.msra.mxu0 0.0
    %1030 = vmatprep.subr.mxu0 0.0
    %1031 = vmatpush2.msra.mxu0 0.0
    %1032 = vmatprep.subr.mxu0 0.0
    %1033 = vmatpush2.msra.mxu0 0.0
    %1034 = vmatprep.subr.mxu0 0.0
    %1035 = vmatpush2.msra.mxu0 0.0
    %1036 = vmatprep.subr.mxu0 0.0
    %1037 = vmatpush2.msra.mxu0 0.0
    %1038 = vmatprep.subr.mxu0 0.0
    %1039 = vmatpush2.msra.mxu0 0.0
    %1040 = vmatprep.subr.mxu0 0.0
    %1041 = vmatpush2.msra.mxu0 0.0
    %1042 = vmatprep.subr.mxu0 0.0
    %1043 = vmatpush2.msra.mxu0 0.0
    %1044 = vmatprep.subr.mxu0 0.0
    %1045 = vmatpush2.msra.mxu0 0.0
    %1046 = vmatprep.subr.mxu0 0.0
    %1047 = vmatpush2.msra.mxu0 0.0
    %1048 = vmatprep.subr.mxu0 0.0
    %1049 = vmatpush2.msra.mxu0 0.0
    %1050 = vmatprep.subr.mxu0 0.0
    %1051 = vmatpush2.msra.mxu0 0.0
    %1052 = vmatprep.subr.mxu0 0.0
    %1053 = vmatpush2.msra.mxu0 0.0
    %1054 = vmatprep.mubr.f32.mxu0 0.0
    %1055 = vmatmul.mubr.f32.gmra.mxu0 %v985
    %v1056 = vpop.f32.mrf.mxu0
    %v1057 = vadd.f32 %v982, %v1056
    %v1058 = vpop.f32.mrf.mxu0
    %1059 = vmatprep.mubr.f32.mxu0 0.0
    %1060 = vmatmul.mubr.f32.gmra.mxu0 %v988
    %v1061 = vpop.f32.mrf.mxu0
    %v1062 = vadd.f32 %v982, %v1061
    %v1063 = vpop.f32.mrf.mxu0
    %1064 = vdwg.mxu0
    %v1065 = vmul.f32 %v1057, %v1057
    %v1066 = vmul.f32 %v1062, %v1062
    %v1067 = vmul.f32 %v1057, %v1065
    %v1068 = vmul.f32 %v1062, %v1066
    %v1069 = vmul.f32 %v1067, 0.044715
    %v1070 = vmul.f32 %v1068, 0.044715
    %v1071 = vadd.f32 %v1057, %v1069
    %v1072 = vadd.f32 %v1062, %v1070
    %v1073 = vmul.f32 %v1071, 0.7978846
    %v1074 = vmul.f32 %v1072, 0.7978846
    %v1075 = vtanh.pop %v1073
    %v1076 = vtanh.pop %v1074
    %v1077 = vadd.f32 %v1075, 1.0
    %v1078 = vadd.f32 %v1076, 1.0
    %v1079 = vmul.f32 %v1077, 0.5
    %v1080 = vmul.f32 %v1078, 0.5
    %v1081 = vmul.f32 %v1057, %v1079
    %v1082 = vmul.f32 %v1062, %v1080
    %v1083 = vld [vmem:[%s10] sm:$0xff]
    %v1084 = vld [vmem:[%s10 + $0x8] sm:$0xff]
    %v1085 = vld [vmem:[%s10 + $0x10] sm:$0xff]
    %v1086 = vld [vmem:[%s10 + $0x18] sm:$0xff]
    %v1087 = vld [vmem:[%s10 + $0x20] sm:$0xff]
    %v1088 = vld [vmem:[%s10 + $0x28] sm:$0xff]
    %v1089 = vld [vmem:[%s10 + $0x30] sm:$0xff]
    %v1090 = vld [vmem:[%s10 + $0x38] sm:$0xff]
    %v1091 = vld [vmem:[#allocation15] sm:$0x1]
    %v1093 = vlaneseq
    %v1094 = vshrl.u32 %v1093, 7
    %v1095 = vsub.s32 0, %v1094
    %v1096 = vrot.slane %v1091, %v1095
    %vm1098 = vcmask 523264
    %v1100 = vsel %vm1098, %v1081, 0
    %v1103 = vsel %vm1098, %v1082, 0
    %1105 = vmatprep.subr.mxu0 0.0
    %1106 = vmatpush1.msra.mxu0 0.0
    %1107 = vmatprep.subr.mxu0 0.0
    %1108 = vmatpush1.msra.mxu0 0.0
    %1109 = vmatprep.subr.mxu0 0.0
    %1110 = vmatpush1.msra.mxu0 0.0
    %1111 = vmatprep.subr.mxu0 0.0
    %1112 = vmatpush1.msra.mxu0 0.0
    %1113 = vmatprep.subr.mxu0 0.0
    %1114 = vmatpush1.msra.mxu0 0.0
    %1115 = vmatprep.subr.mxu0 0.0
    %1116 = vmatpush1.msra.mxu0 0.0
    %1117 = vmatprep.subr.mxu0 0.0
    %1118 = vmatpush1.msra.mxu0 0.0
    %1119 = vmatprep.subr.mxu0 0.0
    %1120 = vmatpush1.msra.mxu0 0.0
    %1121 = vmatprep.subr.mxu0 0.0
    %1122 = vmatpush1.msra.mxu0 %v1090
    %1123 = vmatprep.subr.mxu0 0.0
    %1124 = vmatpush1.msra.mxu0 %v1089
    %1125 = vmatprep.subr.mxu0 0.0
    %1126 = vmatpush1.msra.mxu0 %v1088
    %1127 = vmatprep.subr.mxu0 0.0
    %1128 = vmatpush1.msra.mxu0 %v1087
    %1129 = vmatprep.subr.mxu0 0.0
    %1130 = vmatpush1.msra.mxu0 %v1086
    %1131 = vmatprep.subr.mxu0 0.0
    %1132 = vmatpush1.msra.mxu0 %v1085
    %1133 = vmatprep.subr.mxu0 0.0
    %1134 = vmatpush1.msra.mxu0 %v1084
    %1135 = vmatprep.subr.mxu0 0.0
    %1136 = vmatpush1.msra.mxu0 %v1083
    %1137 = vmatprep.subr.mxu0 0.0
    %1138 = vmatpush2.msra.mxu0 0.0
    %1139 = vmatprep.subr.mxu0 0.0
    %1140 = vmatpush2.msra.mxu0 0.0
    %1141 = vmatprep.subr.mxu0 0.0
    %1142 = vmatpush2.msra.mxu0 0.0
    %1143 = vmatprep.subr.mxu0 0.0
    %1144 = vmatpush2.msra.mxu0 0.0
    %1145 = vmatprep.subr.mxu0 0.0
    %1146 = vmatpush2.msra.mxu0 0.0
    %1147 = vmatprep.subr.mxu0 0.0
    %1148 = vmatpush2.msra.mxu0 0.0
    %1149 = vmatprep.subr.mxu0 0.0
    %1150 = vmatpush2.msra.mxu0 0.0
    %1151 = vmatprep.subr.mxu0 0.0
    %1152 = vmatpush2.msra.mxu0 0.0
    %1153 = vmatprep.subr.mxu0 0.0
    %1154 = vmatpush2.msra.mxu0 0.0
    %1155 = vmatprep.subr.mxu0 0.0
    %1156 = vmatpush2.msra.mxu0 0.0
    %1157 = vmatprep.subr.mxu0 0.0
    %1158 = vmatpush2.msra.mxu0 0.0
    %1159 = vmatprep.subr.mxu0 0.0
    %1160 = vmatpush2.msra.mxu0 0.0
    %1161 = vmatprep.subr.mxu0 0.0
    %1162 = vmatpush2.msra.mxu0 0.0
    %1163 = vmatprep.subr.mxu0 0.0
    %1164 = vmatpush2.msra.mxu0 0.0
    %1165 = vmatprep.subr.mxu0 0.0
    %1166 = vmatpush2.msra.mxu0 0.0
    %1167 = vmatprep.subr.mxu0 0.0
    %1168 = vmatpush2.msra.mxu0 0.0
    %1169 = vmatprep.mubr.f32.mxu0 0.0
    %1170 = vmatmul.mubr.f32.gmra.mxu0 %v1100
    %v1171 = vpop.f32.mrf.mxu0
    %v1172 = vadd.f32 %v1096, %v1171
    %v1173 = vpop.f32.mrf.mxu0
    %1174 = vmatprep.mubr.f32.mxu0 0.0
    %1175 = vmatmul.mubr.f32.gmra.mxu0 %v1103
    %v1176 = vpop.f32.mrf.mxu0
    %v1177 = vadd.f32 %v1096, %v1176
    %v1178 = vpop.f32.mrf.mxu0
    %1179 = vdwg.mxu0
    %v1180 = vld [vmem:[%s12] sm:$0x3]
    %v1181 = vadd.f32 %v971, %v1172
    %v1182 = vadd.f32 %v972, %v1177
    %v1183 = vsel %vm218, %v1181, 0.0
    %1184 = vadd.xlane.f32.xlu0 %v1183
    %v1185 = vpop.xlane.xlu0 %1184
    %v1186 = vsel %vm218, %v1182, 0.0
    %1187 = vadd.xlane.f32.xlu0 %v1186
    %v1188 = vpop.xlane.xlu0 %1187
    %v1189 = vmul.f32 %v1185, %v225
    %v1190 = vmul.f32 %v1188, %v225
    %v1191 = vsub.f32 %v1181, %v1189
    %v1192 = vsub.f32 %v1182, %v1190
    %v1193 = vmul.f32 %v1191, %v1191
    %v1194 = vmul.f32 %v1192, %v1192
    %v1195 = vsel %vm218, %v1193, 0.0
    %1196 = vadd.xlane.f32.xlu0 %v1195
    %v1197 = vpop.xlane.xlu0 %1196
    %v1198 = vsel %vm218, %v1194, 0.0
    %1199 = vadd.xlane.f32.xlu0 %v1198
    %v1200 = vpop.xlane.xlu0 %1199
    %v1201 = vmul.f32 %v1197, %v225
    %v1202 = vmul.f32 %v1200, %v225
    %v1203 = vadd.f32 %v1201, 1e-12
    %v1204 = vadd.f32 %v1202, 1e-12
    %v1205 = vrsqrt.pop %v1203
    %v1206 = vrsqrt.pop %v1204
    %v1207 = vmul.f32 %v1191, %v1205
    %v1208 = vmul.f32 %v1192, %v1206
    %v1209 = vlaneseq
    %v1210 = vshrl.u32 %v1209, 7
    %v1211 = vsub.s32 0, %v1210
    %v1212 = vrot.slane %v1180, %v1211
    %v1213 = vmul.f32 %v1207, %v1212
    %v1214 = vmul.f32 %v1208, %v1212
    %v1215 = vlaneseq
    %v1216 = vshrl.u32 %v1215, 7
    %v1217 = vsub.s32 1, %v1216
    %v1218 = vrot.slane %v1180, %v1217
    %v1219 = vadd.f32 %v1213, %v1218
    %v1220 = vadd.f32 %v1214, %v1218
    %s1221 = scalar_lea.vmem %s3, 32
    %v1222 = vld [vmem:[%s1221] sm:$0xff]
    %v1223 = vld [vmem:[%s1221 + $0x8] sm:$0xff]
    %v1224 = vld [vmem:[%s1221 + $0x10] sm:$0xff]
    %v1225 = vld [vmem:[%s1221 + $0x18] sm:$0xff]
    %s1226 = scalar_lea.vmem [#allocation10], 1
    %v1227 = vld [vmem:[%s1226] sm:$0x1]
    %v1229 = vlaneseq
    %v1230 = vshrl.u32 %v1229, 7
    %v1231 = vsub.s32 0, %v1230
    %v1232 = vrot.slane %v1227, %v1231
    %v1235 = vsel %vm218, %v1219, 0
    %v1238 = vsel %vm218, %v1220, 0
    %1240 = vmatprep.subr.mxu0 0.0
    %1241 = vmatpush1.msra.mxu0 0.0
    %1242 = vmatprep.subr.mxu0 0.0
    %1243 = vmatpush1.msra.mxu0 0.0
    %1244 = vmatprep.subr.mxu0 0.0
    %1245 = vmatpush1.msra.mxu0 0.0
    %1246 = vmatprep.subr.mxu0 0.0
    %1247 = vmatpush1.msra.mxu0 0.0
    %1248 = vmatprep.subr.mxu0 0.0
    %1249 = vmatpush1.msra.mxu0 0.0
    %1250 = vmatprep.subr.mxu0 0.0
    %1251 = vmatpush1.msra.mxu0 0.0
    %1252 = vmatprep.subr.mxu0 0.0
    %1253 = vmatpush1.msra.mxu0 0.0
    %1254 = vmatprep.subr.mxu0 0.0
    %1255 = vmatpush1.msra.mxu0 0.0
    %1256 = vmatprep.subr.mxu0 0.0
    %1257 = vmatpush1.msra.mxu0 0.0
    %1258 = vmatprep.subr.mxu0 0.0
    %1259 = vmatpush1.msra.mxu0 0.0
    %1260 = vmatprep.subr.mxu0 0.0
    %1261 = vmatpush1.msra.mxu0 0.0
    %1262 = vmatprep.subr.mxu0 0.0
    %1263 = vmatpush1.msra.mxu0 0.0
    %1264 = vmatprep.subr.mxu0 0.0
    %1265 = vmatpush1.msra.mxu0 %v1225
    %1266 = vmatprep.subr.mxu0 0.0
    %1267 = vmatpush1.msra.mxu0 %v1224
    %1268 = vmatprep.subr.mxu0 0.0
    %1269 = vmatpush1.msra.mxu0 %v1223
    %1270 = vmatprep.subr.mxu0 0.0
    %1271 = vmatpush1.msra.mxu0 %v1222
    %1272 = vmatprep.subr.mxu0 0.0
    %1273 = vmatpush2.msra.mxu0 0.0
    %1274 = vmatprep.subr.mxu0 0.0
    %1275 = vmatpush2.msra.mxu0 0.0
    %1276 = vmatprep.subr.mxu0 0.0
    %1277 = vmatpush2.msra.mxu0 0.0
    %1278 = vmatprep.subr.mxu0 0.0
    %1279 = vmatpush2.msra.mxu0 0.0
    %1280 = vmatprep.subr.mxu0 0.0
    %1281 = vmatpush2.msra.mxu0 0.0
    %1282 = vmatprep.subr.mxu0 0.0
    %1283 = vmatpush2.msra.mxu0 0.0
    %1284 = vmatprep.subr.mxu0 0.0
    %1285 = vmatpush2.msra.mxu0 0.0
    %1286 = vmatprep.subr.mxu0 0.0
    %1287 = vmatpush2.msra.mxu0 0.0
    %1288 = vmatprep.subr.mxu0 0.0
    %1289 = vmatpush2.msra.mxu0 0.0
    %1290 = vmatprep.subr.mxu0 0.0
    %1291 = vmatpush2.msra.mxu0 0.0
    %1292 = vmatprep.subr.mxu0 0.0
    %1293 = vmatpush2.msra.mxu0 0.0
    %1294 = vmatprep.subr.mxu0 0.0
    %1295 = vmatpush2.msra.mxu0 0.0
    %1296 = vmatprep.subr.mxu0 0.0
    %1297 = vmatpush2.msra.mxu0 0.0
    %1298 = vmatprep.subr.mxu0 0.0
    %1299 = vmatpush2.msra.mxu0 0.0
    %1300 = vmatprep.subr.mxu0 0.0
    %1301 = vmatpush2.msra.mxu0 0.0
    %1302 = vmatprep.subr.mxu0 0.0
    %1303 = vmatpush2.msra.mxu0 0.0
    %1304 = vmatprep.mubr.f32.mxu0 0.0
    %1305 = vmatmul.mubr.f32.gmra.mxu0 %v1235
    %v1306 = vpop.f32.mrf.mxu0
    %v1307 = vadd.f32 %v1232, %v1306
    %v1308 = vpop.f32.mrf.mxu0
    %1309 = vmatprep.mubr.f32.mxu0 0.0
    %1310 = vmatmul.mubr.f32.gmra.mxu0 %v1238
    %v1311 = vpop.f32.mrf.mxu0
    %v1312 = vadd.f32 %v1232, %v1311
    %v1313 = vpop.f32.mrf.mxu0
    %1314 = vdwg.mxu0
    %s1315 = scalar_lea.vmem %s5, 32
    %v1316 = vld [vmem:[%s1315] sm:$0xff]
    %v1317 = vld [vmem:[%s1315 + $0x8] sm:$0xff]
    %v1318 = vld [vmem:[%s1315 + $0x10] sm:$0xff]
    %v1319 = vld [vmem:[%s1315 + $0x18] sm:$0xff]
    %1322 = vrot.lane.b32.xlu0 %v1307, 96
    %v1323 = vpop.permute.xlu0 %1322
    %1324 = vrot.lane.b32.xlu0 %v1312, 96
    %v1325 = vpop.permute.xlu0 %1324
    %v1326 = vsel %vm360, %v1307, 0
    %v1328 = vsel %vm360, %v1312, 0
    %v1330 = vsel %vm360, %v1323, 0
    %v1332 = vsel %vm360, %v1325, 0
    %1334 = vmatprep.subr.mxu0 0.0
    %1335 = vmatpush1.xpose.msra.mxu0 0.0
    %1336 = vmatprep.subr.mxu0 0.0
    %1337 = vmatpush1.xpose.msra.mxu0 0.0
    %1338 = vmatprep.subr.mxu0 0.0
    %1339 = vmatpush1.xpose.msra.mxu0 0.0
    %1340 = vmatprep.subr.mxu0 0.0
    %1341 = vmatpush1.xpose.msra.mxu0 0.0
    %1342 = vmatprep.subr.mxu0 0.0
    %1343 = vmatpush1.xpose.msra.mxu0 0.0
    %1344 = vmatprep.subr.mxu0 0.0
    %1345 = vmatpush1.xpose.msra.mxu0 0.0
    %1346 = vmatprep.subr.mxu0 0.0
    %1347 = vmatpush1.xpose.msra.mxu0 0.0
    %1348 = vmatprep.subr.mxu0 0.0
    %1349 = vmatpush1.xpose.msra.mxu0 0.0
    %1350 = vmatprep.subr.mxu0 0.0
    %1351 = vmatpush1.xpose.msra.mxu0 0.0
    %1352 = vmatprep.subr.mxu0 0.0
    %1353 = vmatpush1.xpose.msra.mxu0 0.0
    %1354 = vmatprep.subr.mxu0 0.0
    %1355 = vmatpush1.xpose.msra.mxu0 0.0
    %1356 = vmatprep.subr.mxu0 0.0
    %1357 = vmatpush1.xpose.msra.mxu0 0.0
    %1358 = vmatprep.subr.mxu0 0.0
    %1359 = vmatpush1.xpose.msra.mxu0 0.0
    %1360 = vmatprep.subr.mxu0 0.0
    %1361 = vmatpush1.xpose.msra.mxu0 0.0
    %1362 = vmatprep.subr.mxu0 0.0
    %1363 = vmatpush1.xpose.msra.mxu0 %v1332
    %1364 = vmatprep.subr.mxu0 0.0
    %1365 = vmatpush1.xpose.msra.mxu0 %v1330
    %1366 = vmatprep.subr.mxu0 0.0
    %1367 = vmatpush2.xpose.msra.mxu0 0.0
    %1368 = vmatprep.subr.mxu0 0.0
    %1369 = vmatpush2.xpose.msra.mxu0 0.0
    %1370 = vmatprep.subr.mxu0 0.0
    %1371 = vmatpush2.xpose.msra.mxu0 0.0
    %1372 = vmatprep.subr.mxu0 0.0
    %1373 = vmatpush2.xpose.msra.mxu0 0.0
    %1374 = vmatprep.subr.mxu0 0.0
    %1375 = vmatpush2.xpose.msra.mxu0 0.0
    %1376 = vmatprep.subr.mxu0 0.0
    %1377 = vmatpush2.xpose.msra.mxu0 0.0
    %1378 = vmatprep.subr.mxu0 0.0
    %1379 = vmatpush2.xpose.msra.mxu0 0.0
    %1380 = vmatprep.subr.mxu0 0.0
    %1381 = vmatpush2.xpose.msra.mxu0 0.0
    %1382 = vmatprep.subr.mxu0 0.0
    %1383 = vmatpush2.xpose.msra.mxu0 0.0
    %1384 = vmatprep.subr.mxu0 0.0
    %1385 = vmatpush2.xpose.msra.mxu0 0.0
    %1386 = vmatprep.subr.mxu0 0.0
    %1387 = vmatpush2.xpose.msra.mxu0 0.0
    %1388 = vmatprep.subr.mxu0 0.0
    %1389 = vmatpush2.xpose.msra.mxu0 0.0
    %1390 = vmatprep.subr.mxu0 0.0
    %1391 = vmatpush2.xpose.msra.mxu0 0.0
    %1392 = vmatprep.subr.mxu0 0.0
    %1393 = vmatpush2.xpose.msra.mxu0 0.0
    %1394 = vmatprep.subr.mxu0 0.0
    %1395 = vmatpush2.xpose.msra.mxu0 0.0
    %1396 = vmatprep.subr.mxu0 0.0
    %1397 = vmatpush2.xpose.msra.mxu0 0.0
    %1398 = vmatprep.mubr.f32.mxu0 0.0
    %1399 = vmatmul.mubr.f32.gmra.mxu0 %v1326
    %v1400 = vpop.f32.mrf.mxu0
    %v1401 = vadd.f32 0.0, %v1400
    %v1402 = vpop.f32.mrf.mxu0
    %1403 = vmatprep.mubr.f32.mxu0 0.0
    %1404 = vmatmul.mubr.f32.gmra.mxu0 %v1328
    %v1405 = vpop.f32.mrf.mxu0
    %v1406 = vadd.f32 0.0, %v1405
    %v1407 = vpop.f32.mrf.mxu0
    %1408 = vdwg.mxu0
    %v1409 = vmul.f32 %v1401, 0.25
    %v1410 = vmul.f32 %v1406, 0.25
    %v1411 = vadd.f32 %v1409, %v215
    %v1412 = vadd.f32 %v1410, %v216
    %v1413 = vsel %vm360, %v1411, -inf
    %1414 = vmax.xlane.f32.xlu0 %v1413
    %v1415 = vpop.xlane.xlu0 %1414
    %v1416 = vsel %vm360, %v1412, -inf
    %1417 = vmax.xlane.f32.xlu0 %v1416
    %v1418 = vpop.xlane.xlu0 %1417
    %v1419 = vsub.f32 %v1411, %v1415
    %v1420 = vsub.f32 %v1412, %v1418
    %v1421 = vmul.f32 %v1419, 1.442695
    %v1422 = vpow.pop %v1421
    %v1423 = vmul.f32 %v1420, 1.442695
    %v1424 = vpow.pop %v1423
    %v1425 = vsel %vm360, %v1422, 0.0
    %1426 = vadd.xlane.f32.xlu0 %v1425
    %v1427 = vpop.xlane.xlu0 %1426
    %v1428 = vsel %vm360, %v1424, 0.0
    %1429 = vadd.xlane.f32.xlu0 %v1428
    %v1430 = vpop.xlane.xlu0 %1429
    %v1431 = vrcp.pop %v1427
    %v1432 = vrcp.pop %v1430
    %v1433 = vmul.f32 %v1422, %v1431
    %v1434 = vmul.f32 %v1424, %v1432
    %1435 = vrot.lane.b32.xlu0 %v1307, 64
    %v1436 = vpop.permute.xlu0 %1435
    %1437 = vrot.lane.b32.xlu0 %v1312, 64
    %v1438 = vpop.permute.xlu0 %1437
    %v1442 = vsel %vm360, %v1433, 0
    %v1445 = vsel %vm360, %v1434, 0
    %1447 = vmatprep.subr.mxu0 0.0
    %1448 = vmatpush1.msra.mxu0 0.0
    %1449 = vmatprep.subr.mxu0 0.0
    %1450 = vmatpush1.msra.mxu0 0.0
    %1451 = vmatprep.subr.mxu0 0.0
    %1452 = vmatpush1.msra.mxu0 0.0
    %1453 = vmatprep.subr.mxu0 0.0
    %1454 = vmatpush1.msra.mxu0 0.0
    %1455 = vmatprep.subr.mxu0 0.0
    %1456 = vmatpush1.msra.mxu0 0.0
    %1457 = vmatprep.subr.mxu0 0.0
    %1458 = vmatpush1.msra.mxu0 0.0
    %1459 = vmatprep.subr.mxu0 0.0
    %1460 = vmatpush1.msra.mxu0 0.0
    %1461 = vmatprep.subr.mxu0 0.0
    %1462 = vmatpush1.msra.mxu0 0.0
    %1463 = vmatprep.subr.mxu0 0.0
    %1464 = vmatpush1.msra.mxu0 0.0
    %1465 = vmatprep.subr.mxu0 0.0
    %1466 = vmatpush1.msra.mxu0 0.0
    %1467 = vmatprep.subr.mxu0 0.0
    %1468 = vmatpush1.msra.mxu0 0.0
    %1469 = vmatprep.subr.mxu0 0.0
    %1470 = vmatpush1.msra.mxu0 0.0
    %1471 = vmatprep.subr.mxu0 0.0
    %1472 = vmatpush1.msra.mxu0 0.0
    %1473 = vmatprep.subr.mxu0 0.0
    %1474 = vmatpush1.msra.mxu0 0.0
    %1475 = vmatprep.subr.mxu0 0.0
    %1476 = vmatpush1.msra.mxu0 %v1438
    %1477 = vmatprep.subr.mxu0 0.0
    %1478 = vmatpush1.msra.mxu0 %v1436
    %1479 = vmatprep.subr.mxu0 0.0
    %1480 = vmatpush2.msra.mxu0 0.0
    %1481 = vmatprep.subr.mxu0 0.0
    %1482 = vmatpush2.msra.mxu0 0.0
    %1483 = vmatprep.subr.mxu0 0.0
    %1484 = vmatpush2.msra.mxu0 0.0
    %1485 = vmatprep.subr.mxu0 0.0
    %1486 = vmatpush2.msra.mxu0 0.0
    %1487 = vmatprep.subr.mxu0 0.0
    %1488 = vmatpush2.msra.mxu0 0.0
    %1489 = vmatprep.subr.mxu0 0.0
    %1490 = vmatpush2.msra.mxu0 0.0
    %1491 = vmatprep.subr.mxu0 0.0
    %1492 = vmatpush2.msra.mxu0 0.0
    %1493 = vmatprep.subr.mxu0 0.0
    %1494 = vmatpush2.msra.mxu0 0.0
    %1495 = vmatprep.subr.mxu0 0.0
    %1496 = vmatpush2.msra.mxu0 0.0
    %1497 = vmatprep.subr.mxu0 0.0
    %1498 = vmatpush2.msra.mxu0 0.0
    %1499 = vmatprep.subr.mxu0 0.0
    %1500 = vmatpush2.msra.mxu0 0.0
    %1501 = vmatprep.subr.mxu0 0.0
    %1502 = vmatpush2.msra.mxu0 0.0
    %1503 = vmatprep.subr.mxu0 0.0
    %1504 = vmatpush2.msra.mxu0 0.0
    %1505 = vmatprep.subr.mxu0 0.0
    %1506 = vmatpush2.msra.mxu0 0.0
    %1507 = vmatprep.subr.mxu0 0.0
    %1508 = vmatpush2.msra.mxu0 0.0
    %1509 = vmatprep.subr.mxu0 0.0
    %1510 = vmatpush2.msra.mxu0 0.0
    %1511 = vmatprep.mubr.f32.mxu0 0.0
    %1512 = vmatmul.mubr.f32.gmra.mxu0 %v1442
    %v1513 = vpop.f32.mrf.mxu0
    %v1514 = vadd.f32 0.0, %v1513
    %v1515 = vpop.f32.mrf.mxu0
    %1516 = vmatprep.mubr.f32.mxu0 0.0
    %1517 = vmatmul.mubr.f32.gmra.mxu0 %v1445
    %v1518 = vpop.f32.mrf.mxu0
    %v1519 = vadd.f32 0.0, %v1518
    %v1520 = vpop.f32.mrf.mxu0
    %1521 = vdwg.mxu0
    %1522 = vrot.lane.b32.xlu0 %v1307, 112
    %v1523 = vpop.permute.xlu0 %1522
    %1524 = vrot.lane.b32.xlu0 %v1312, 112
    %v1525 = vpop.permute.xlu0 %1524
    %1526 = vrot.lane.b32.xlu0 %v1307, 80
    %v1527 = vpop.permute.xlu0 %1526
    %1528 = vrot.lane.b32.xlu0 %v1312, 80
    %v1529 = vpop.permute.xlu0 %1528
    %v1530 = vsel %vm360, %v1523, 0
    %v1532 = vsel %vm360, %v1525, 0
    %v1534 = vsel %vm360, %v1527, 0
    %v1536 = vsel %vm360, %v1529, 0
    %1538 = vmatprep.subr.mxu0 0.0
    %1539 = vmatpush1.xpose.msra.mxu0 0.0
    %1540 = vmatprep.subr.mxu0 0.0
    %1541 = vmatpush1.xpose.msra.mxu0 0.0
    %1542 = vmatprep.subr.mxu0 0.0
    %1543 = vmatpush1.xpose.msra.mxu0 0.0
    %1544 = vmatprep.subr.mxu0 0.0
    %1545 = vmatpush1.xpose.msra.mxu0 0.0
    %1546 = vmatprep.subr.mxu0 0.0
    %1547 = vmatpush1.xpose.msra.mxu0 0.0
    %1548 = vmatprep.subr.mxu0 0.0
    %1549 = vmatpush1.xpose.msra.mxu0 0.0
    %1550 = vmatprep.subr.mxu0 0.0
    %1551 = vmatpush1.xpose.msra.mxu0 0.0
    %1552 = vmatprep.subr.mxu0 0.0
    %1553 = vmatpush1.xpose.msra.mxu0 0.0
    %1554 = vmatprep.subr.mxu0 0.0
    %1555 = vmatpush1.xpose.msra.mxu0 0.0
    %1556 = vmatprep.subr.mxu0 0.0
    %1557 = vmatpush1.xpose.msra.mxu0 0.0
    %1558 = vmatprep.subr.mxu0 0.0
    %1559 = vmatpush1.xpose.msra.mxu0 0.0
    %1560 = vmatprep.subr.mxu0 0.0
    %1561 = vmatpush1.xpose.msra.mxu0 0.0
    %1562 = vmatprep.subr.mxu0 0.0
    %1563 = vmatpush1.xpose.msra.mxu0 0.0
    %1564 = vmatprep.subr.mxu0 0.0
    %1565 = vmatpush1.xpose.msra.mxu0 0.0
    %1566 = vmatprep.subr.mxu0 0.0
    %1567 = vmatpush1.xpose.msra.mxu0 %v1536
    %1568 = vmatprep.subr.mxu0 0.0
    %1569 = vmatpush1.xpose.msra.mxu0 %v1534
    %1570 = vmatprep.subr.mxu0 0.0
    %1571 = vmatpush2.xpose.msra.mxu0 0.0
    %1572 = vmatprep.subr.mxu0 0.0
    %1573 = vmatpush2.xpose.msra.mxu0 0.0
    %1574 = vmatprep.subr.mxu0 0.0
    %1575 = vmatpush2.xpose.msra.mxu0 0.0
    %1576 = vmatprep.subr.mxu0 0.0
    %1577 = vmatpush2.xpose.msra.mxu0 0.0
    %1578 = vmatprep.subr.mxu0 0.0
    %1579 = vmatpush2.xpose.msra.mxu0 0.0
    %1580 = vmatprep.subr.mxu0 0.0
    %1581 = vmatpush2.xpose.msra.mxu0 0.0
    %1582 = vmatprep.subr.mxu0 0.0
    %1583 = vmatpush2.xpose.msra.mxu0 0.0
    %1584 = vmatprep.subr.mxu0 0.0
    %1585 = vmatpush2.xpose.msra.mxu0 0.0
    %1586 = vmatprep.subr.mxu0 0.0
    %1587 = vmatpush2.xpose.msra.mxu0 0.0
    %1588 = vmatprep.subr.mxu0 0.0
    %1589 = vmatpush2.xpose.msra.mxu0 0.0
    %1590 = vmatprep.subr.mxu0 0.0
    %1591 = vmatpush2.xpose.msra.mxu0 0.0
    %1592 = vmatprep.subr.mxu0 0.0
    %1593 = vmatpush2.xpose.msra.mxu0 0.0
    %1594 = vmatprep.subr.mxu0 0.0
    %1595 = vmatpush2.xpose.msra.mxu0 0.0
    %1596 = vmatprep.subr.mxu0 0.0
    %1597 = vmatpush2.xpose.msra.mxu0 0.0
    %1598 = vmatprep.subr.mxu0 0.0
    %1599 = vmatpush2.xpose.msra.mxu0 0.0
    %1600 = vmatprep.subr.mxu0 0.0
    %1601 = vmatpush2.xpose.msra.mxu0 0.0
    %1602 = vmatprep.mubr.f32.mxu0 0.0
    %1603 = vmatmul.mubr.f32.gmra.mxu0 %v1530
    %v1604 = vpop.f32.mrf.mxu0
    %v1605 = vadd.f32 0.0, %v1604
    %v1606 = vpop.f32.mrf.mxu0
    %1607 = vmatprep.mubr.f32.mxu0 0.0
    %1608 = vmatmul.mubr.f32.gmra.mxu0 %v1532
    %v1609 = vpop.f32.mrf.mxu0
    %v1610 = vadd.f32 0.0, %v1609
    %v1611 = vpop.f32.mrf.mxu0
    %1612 = vdwg.mxu0
    %v1613 = vmul.f32 %v1605, 0.25
    %v1614 = vmul.f32 %v1610, 0.25
    %v1615 = vadd.f32 %v1613, %v215
    %v1616 = vadd.f32 %v1614, %v216
    %v1617 = vsel %vm360, %v1615, -inf
    %1618 = vmax.xlane.f32.xlu0 %v1617
    %v1619 = vpop.xlane.xlu0 %1618
    %v1620 = vsel %vm360, %v1616, -inf
    %1621 = vmax.xlane.f32.xlu0 %v1620
    %v1622 = vpop.xlane.xlu0 %1621
    %v1623 = vsub.f32 %v1615, %v1619
    %v1624 = vsub.f32 %v1616, %v1622
    %v1625 = vmul.f32 %v1623, 1.442695
    %v1626 = vpow.pop %v1625
    %v1627 = vmul.f32 %v1624, 1.442695
    %v1628 = vpow.pop %v1627
    %v1629 = vsel %vm360, %v1626, 0.0
    %1630 = vadd.xlane.f32.xlu0 %v1629
    %v1631 = vpop.xlane.xlu0 %1630
    %v1632 = vsel %vm360, %v1628, 0.0
    %1633 = vadd.xlane.f32.xlu0 %v1632
    %v1634 = vpop.xlane.xlu0 %1633
    %v1635 = vrcp.pop %v1631
    %v1636 = vrcp.pop %v1634
    %v1637 = vmul.f32 %v1626, %v1635
    %v1638 = vmul.f32 %v1628, %v1636
    %1639 = vrot.lane.b32.xlu0 %v1307, 48
    %v1640 = vpop.permute.xlu0 %1639
    %1641 = vrot.lane.b32.xlu0 %v1312, 48
    %v1642 = vpop.permute.xlu0 %1641
    %v1646 = vsel %vm360, %v1637, 0
    %v1649 = vsel %vm360, %v1638, 0
    %1651 = vmatprep.subr.mxu0 0.0
    %1652 = vmatpush1.msra.mxu0 0.0
    %1653 = vmatprep.subr.mxu0 0.0
    %1654 = vmatpush1.msra.mxu0 0.0
    %1655 = vmatprep.subr.mxu0 0.0
    %1656 = vmatpush1.msra.mxu0 0.0
    %1657 = vmatprep.subr.mxu0 0.0
    %1658 = vmatpush1.msra.mxu0 0.0
    %1659 = vmatprep.subr.mxu0 0.0
    %1660 = vmatpush1.msra.mxu0 0.0
    %1661 = vmatprep.subr.mxu0 0.0
    %1662 = vmatpush1.msra.mxu0 0.0
    %1663 = vmatprep.subr.mxu0 0.0
    %1664 = vmatpush1.msra.mxu0 0.0
    %1665 = vmatprep.subr.mxu0 0.0
    %1666 = vmatpush1.msra.mxu0 0.0
    %1667 = vmatprep.subr.mxu0 0.0
    %1668 = vmatpush1.msra.mxu0 0.0
    %1669 = vmatprep.subr.mxu0 0.0
    %1670 = vmatpush1.msra.mxu0 0.0
    %1671 = vmatprep.subr.mxu0 0.0
    %1672 = vmatpush1.msra.mxu0 0.0
    %1673 = vmatprep.subr.mxu0 0.0
    %1674 = vmatpush1.msra.mxu0 0.0
    %1675 = vmatprep.subr.mxu0 0.0
    %1676 = vmatpush1.msra.mxu0 0.0
    %1677 = vmatprep.subr.mxu0 0.0
    %1678 = vmatpush1.msra.mxu0 0.0
    %1679 = vmatprep.subr.mxu0 0.0
    %1680 = vmatpush1.msra.mxu0 %v1642
    %1681 = vmatprep.subr.mxu0 0.0
    %1682 = vmatpush1.msra.mxu0 %v1640
    %1683 = vmatprep.subr.mxu0 0.0
    %1684 = vmatpush2.msra.mxu0 0.0
    %1685 = vmatprep.subr.mxu0 0.0
    %1686 = vmatpush2.msra.mxu0 0.0
    %1687 = vmatprep.subr.mxu0 0.0
    %1688 = vmatpush2.msra.mxu0 0.0
    %1689 = vmatprep.subr.mxu0 0.0
    %1690 = vmatpush2.msra.mxu0 0.0
    %1691 = vmatprep.subr.mxu0 0.0
    %1692 = vmatpush2.msra.mxu0 0.0
    %1693 = vmatprep.subr.mxu0 0.0
    %1694 = vmatpush2.msra.mxu0 0.0
    %1695 = vmatprep.subr.mxu0 0.0
    %1696 = vmatpush2.msra.mxu0 0.0
    %1697 = vmatprep.subr.mxu0 0.0
    %1698 = vmatpush2.msra.mxu0 0.0
    %1699 = vmatprep.subr.mxu0 0.0
    %1700 = vmatpush2.msra.mxu0 0.0
    %1701 = vmatprep.subr.mxu0 0.0
    %1702 = vmatpush2.msra.mxu0 0.0
    %1703 = vmatprep.subr.mxu0 0.0
    %1704 = vmatpush2.msra.mxu0 0.0
    %1705 = vmatprep.subr.mxu0 0.0
    %1706 = vmatpush2.msra.mxu0 0.0
    %1707 = vmatprep.subr.mxu0 0.0
    %1708 = vmatpush2.msra.mxu0 0.0
    %1709 = vmatprep.subr.mxu0 0.0
    %1710 = vmatpush2.msra.mxu0 0.0
    %1711 = vmatprep.subr.mxu0 0.0
    %1712 = vmatpush2.msra.mxu0 0.0
    %1713 = vmatprep.subr.mxu0 0.0
    %1714 = vmatpush2.msra.mxu0 0.0
    %1715 = vmatprep.mubr.f32.mxu0 0.0
    %1716 = vmatmul.mubr.f32.gmra.mxu0 %v1646
    %v1717 = vpop.f32.mrf.mxu0
    %v1718 = vadd.f32 0.0, %v1717
    %v1719 = vpop.f32.mrf.mxu0
    %1720 = vmatprep.mubr.f32.mxu0 0.0
    %1721 = vmatmul.mubr.f32.gmra.mxu0 %v1649
    %v1722 = vpop.f32.mrf.mxu0
    %v1723 = vadd.f32 0.0, %v1722
    %v1724 = vpop.f32.mrf.mxu0
    %1725 = vdwg.mxu0
    %v1727 = vsel %vm360, %v1718, 0
    %v1730 = vsel %vm360, %v1723, 0
    %1732 = vmatprep.subr.mxu0 0.0
    %1733 = vmatpush1.msra.mxu0 0.0
    %1734 = vmatprep.subr.mxu0 0.0
    %1735 = vmatpush1.msra.mxu0 0.0
    %1736 = vmatprep.subr.mxu0 0.0
    %1737 = vmatpush1.msra.mxu0 0.0
    %1738 = vmatprep.subr.mxu0 0.0
    %1739 = vmatpush1.msra.mxu0 0.0
    %1740 = vmatprep.subr.mxu0 0.0
    %1741 = vmatpush1.msra.mxu0 0.0
    %1742 = vmatprep.subr.mxu0 0.0
    %1743 = vmatpush1.msra.mxu0 0.0
    %1744 = vmatprep.subr.mxu0 0.0
    %1745 = vmatpush1.msra.mxu0 0.0
    %1746 = vmatprep.subr.mxu0 0.0
    %1747 = vmatpush1.msra.mxu0 0.0
    %1748 = vmatprep.subr.mxu0 0.0
    %1749 = vmatpush1.msra.mxu0 0.0
    %1750 = vmatprep.subr.mxu0 0.0
    %1751 = vmatpush1.msra.mxu0 0.0
    %1752 = vmatprep.subr.mxu0 0.0
    %1753 = vmatpush1.msra.mxu0 0.0
    %1754 = vmatprep.subr.mxu0 0.0
    %1755 = vmatpush1.msra.mxu0 0.0
    %1756 = vmatprep.subr.mxu0 0.0
    %1757 = vmatpush1.msra.mxu0 0.0
    %1758 = vmatprep.subr.mxu0 0.0
    %1759 = vmatpush1.msra.mxu0 0.0
    %1760 = vmatprep.subr.mxu0 0.0
    %1761 = vmatpush1.msra.mxu0 %v1319
    %1762 = vmatprep.subr.mxu0 0.0
    %1763 = vmatpush1.msra.mxu0 %v1318
    %1764 = vmatprep.subr.mxu0 0.0
    %1765 = vmatpush2.msra.mxu0 0.0
    %1766 = vmatprep.subr.mxu0 0.0
    %1767 = vmatpush2.msra.mxu0 0.0
    %1768 = vmatprep.subr.mxu0 0.0
    %1769 = vmatpush2.msra.mxu0 0.0
    %1770 = vmatprep.subr.mxu0 0.0
    %1771 = vmatpush2.msra.mxu0 0.0
    %1772 = vmatprep.subr.mxu0 0.0
    %1773 = vmatpush2.msra.mxu0 0.0
    %1774 = vmatprep.subr.mxu0 0.0
    %1775 = vmatpush2.msra.mxu0 0.0
    %1776 = vmatprep.subr.mxu0 0.0
    %1777 = vmatpush2.msra.mxu0 0.0
    %1778 = vmatprep.subr.mxu0 0.0
    %1779 = vmatpush2.msra.mxu0 0.0
    %1780 = vmatprep.subr.mxu0 0.0
    %1781 = vmatpush2.msra.mxu0 0.0
    %1782 = vmatprep.subr.mxu0 0.0
    %1783 = vmatpush2.msra.mxu0 0.0
    %1784 = vmatprep.subr.mxu0 0.0
    %1785 = vmatpush2.msra.mxu0 0.0
    %1786 = vmatprep.subr.mxu0 0.0
    %1787 = vmatpush2.msra.mxu0 0.0
    %1788 = vmatprep.subr.mxu0 0.0
    %1789 = vmatpush2.msra.mxu0 0.0
    %1790 = vmatprep.subr.mxu0 0.0
    %1791 = vmatpush2.msra.mxu0 0.0
    %1792 = vmatprep.subr.mxu0 0.0
    %1793 = vmatpush2.msra.mxu0 0.0
    %1794 = vmatprep.subr.mxu0 0.0
    %1795 = vmatpush2.msra.mxu0 0.0
    %1796 = vmatprep.mubr.f32.mxu0 0.0
    %1797 = vmatmul.mubr.f32.gmra.mxu0 %v1727
    %v1798 = vpop.f32.mrf.mxu0
    %v1799 = vadd.f32 0.0, %v1798
    %v1800 = vpop.f32.mrf.mxu0
    %1801 = vmatprep.mubr.f32.mxu0 0.0
    %1802 = vmatmul.mubr.f32.gmra.mxu0 %v1730
    %v1803 = vpop.f32.mrf.mxu0
    %v1804 = vadd.f32 0.0, %v1803
    %v1805 = vpop.f32.mrf.mxu0
    %1806 = vdwg.mxu0
    %v1808 = vsel %vm360, %v1514, 0
    %v1811 = vsel %vm360, %v1519, 0
    %1813 = vmatprep.subr.mxu0 0.0
    %1814 = vmatpush1.msra.mxu0 0.0
    %1815 = vmatprep.subr.mxu0 0.0
    %1816 = vmatpush1.msra.mxu0 0.0
    %1817 = vmatprep.subr.mxu0 0.0
    %1818 = vmatpush1.msra.mxu0 0.0
    %1819 = vmatprep.subr.mxu0 0.0
    %1820 = vmatpush1.msra.mxu0 0.0
    %1821 = vmatprep.subr.mxu0 0.0
    %1822 = vmatpush1.msra.mxu0 0.0
    %1823 = vmatprep.subr.mxu0 0.0
    %1824 = vmatpush1.msra.mxu0 0.0
    %1825 = vmatprep.subr.mxu0 0.0
    %1826 = vmatpush1.msra.mxu0 0.0
    %1827 = vmatprep.subr.mxu0 0.0
    %1828 = vmatpush1.msra.mxu0 0.0
    %1829 = vmatprep.subr.mxu0 0.0
    %1830 = vmatpush1.msra.mxu0 0.0
    %1831 = vmatprep.subr.mxu0 0.0
    %1832 = vmatpush1.msra.mxu0 0.0
    %1833 = vmatprep.subr.mxu0 0.0
    %1834 = vmatpush1.msra.mxu0 0.0
    %1835 = vmatprep.subr.mxu0 0.0
    %1836 = vmatpush1.msra.mxu0 0.0
    %1837 = vmatprep.subr.mxu0 0.0
    %1838 = vmatpush1.msra.mxu0 0.0
    %1839 = vmatprep.subr.mxu0 0.0
    %1840 = vmatpush1.msra.mxu0 0.0
    %1841 = vmatprep.subr.mxu0 0.0
    %1842 = vmatpush1.msra.mxu0 %v1317
    %1843 = vmatprep.subr.mxu0 0.0
    %1844 = vmatpush1.msra.mxu0 %v1316
    %1845 = vmatprep.subr.mxu0 0.0
    %1846 = vmatpush2.msra.mxu0 0.0
    %1847 = vmatprep.subr.mxu0 0.0
    %1848 = vmatpush2.msra.mxu0 0.0
    %1849 = vmatprep.subr.mxu0 0.0
    %1850 = vmatpush2.msra.mxu0 0.0
    %1851 = vmatprep.subr.mxu0 0.0
    %1852 = vmatpush2.msra.mxu0 0.0
    %1853 = vmatprep.subr.mxu0 0.0
    %1854 = vmatpush2.msra.mxu0 0.0
    %1855 = vmatprep.subr.mxu0 0.0
    %1856 = vmatpush2.msra.mxu0 0.0
    %1857 = vmatprep.subr.mxu0 0.0
    %1858 = vmatpush2.msra.mxu0 0.0
    %1859 = vmatprep.subr.mxu0 0.0
    %1860 = vmatpush2.msra.mxu0 0.0
    %1861 = vmatprep.subr.mxu0 0.0
    %1862 = vmatpush2.msra.mxu0 0.0
    %1863 = vmatprep.subr.mxu0 0.0
    %1864 = vmatpush2.msra.mxu0 0.0
    %1865 = vmatprep.subr.mxu0 0.0
    %1866 = vmatpush2.msra.mxu0 0.0
    %1867 = vmatprep.subr.mxu0 0.0
    %1868 = vmatpush2.msra.mxu0 0.0
    %1869 = vmatprep.subr.mxu0 0.0
    %1870 = vmatpush2.msra.mxu0 0.0
    %1871 = vmatprep.subr.mxu0 0.0
    %1872 = vmatpush2.msra.mxu0 0.0
    %1873 = vmatprep.subr.mxu0 0.0
    %1874 = vmatpush2.msra.mxu0 0.0
    %1875 = vmatprep.subr.mxu0 0.0
    %1876 = vmatpush2.msra.mxu0 0.0
    %1877 = vmatprep.mubr.f32.mxu0 0.0
    %1878 = vmatmul.mubr.f32.gmra.mxu0 %v1808
    %v1879 = vpop.f32.mrf.mxu0
    %v1880 = vadd.f32 %v1799, %v1879
    %v1881 = vpop.f32.mrf.mxu0
    %1882 = vmatprep.mubr.f32.mxu0 0.0
    %1883 = vmatmul.mubr.f32.gmra.mxu0 %v1811
    %v1884 = vpop.f32.mrf.mxu0
    %v1885 = vadd.f32 %v1804, %v1884
    %v1886 = vpop.f32.mrf.mxu0
    %1887 = vdwg.mxu0
    %s1888 = scalar_lea.vmem %s6, 1
    %v1889 = vld [vmem:[%s1888] sm:$0x1]
    %v1891 = vlaneseq
    %v1892 = vshrl.u32 %v1891, 7
    %v1893 = vsub.s32 0, %v1892
    %v1894 = vrot.slane %v1889, %v1893
    %v1896 = vadd.f32 %v1880, %v1894
    %v1897 = vadd.f32 %v1885, %v1894
    %s1898 = scalar_lea.vmem [#allocation12], 2
    %v1899 = vld [vmem:[%s1898] sm:$0x3]
    %v1900 = vadd.f32 %v1219, %v1896
    %v1901 = vadd.f32 %v1220, %v1897
    %v1902 = vsel %vm218, %v1900, 0.0
    %1903 = vadd.xlane.f32.xlu0 %v1902
    %v1904 = vpop.xlane.xlu0 %1903
    %v1905 = vsel %vm218, %v1901, 0.0
    %1906 = vadd.xlane.f32.xlu0 %v1905
    %v1907 = vpop.xlane.xlu0 %1906
    %v1908 = vmul.f32 %v1904, %v225
    %v1909 = vmul.f32 %v1907, %v225
    %v1910 = vsub.f32 %v1900, %v1908
    %v1911 = vsub.f32 %v1901, %v1909
    %v1912 = vmul.f32 %v1910, %v1910
    %v1913 = vmul.f32 %v1911, %v1911
    %v1914 = vsel %vm218, %v1912, 0.0
    %1915 = vadd.xlane.f32.xlu0 %v1914
    %v1916 = vpop.xlane.xlu0 %1915
    %v1917 = vsel %vm218, %v1913, 0.0
    %1918 = vadd.xlane.f32.xlu0 %v1917
    %v1919 = vpop.xlane.xlu0 %1918
    %v1920 = vmul.f32 %v1916, %v225
    %v1921 = vmul.f32 %v1919, %v225
    %v1922 = vadd.f32 %v1920, 1e-12
    %v1923 = vadd.f32 %v1921, 1e-12
    %v1924 = vrsqrt.pop %v1922
    %v1925 = vrsqrt.pop %v1923
    %v1926 = vmul.f32 %v1910, %v1924
    %v1927 = vmul.f32 %v1911, %v1925
    %v1928 = vlaneseq
    %v1929 = vshrl.u32 %v1928, 7
    %v1930 = vsub.s32 0, %v1929
    %v1931 = vrot.slane %v1899, %v1930
    %v1932 = vmul.f32 %v1926, %v1931
    %v1933 = vmul.f32 %v1927, %v1931
    %v1934 = vlaneseq
    %v1935 = vshrl.u32 %v1934, 7
    %v1936 = vsub.s32 1, %v1935
    %v1937 = vrot.slane %v1899, %v1936
    %v1938 = vadd.f32 %v1932, %v1937
    %v1939 = vadd.f32 %v1933, %v1937
    %s1940 = scalar_lea.vmem %s8, 32
    %v1941 = vld [vmem:[%s1940] sm:$0xff]
    %v1942 = vld [vmem:[%s1940 + $0x8] sm:$0xff]
    %v1943 = vld [vmem:[%s1940 + $0x10] sm:$0xff]
    %v1944 = vld [vmem:[%s1940 + $0x18] sm:$0xff]
    %s1945 = scalar_lea.vmem [#allocation13], 1
    %v1946 = vld [vmem:[%s1945] sm:$0x1]
    %v1948 = vlaneseq
    %v1949 = vshrl.u32 %v1948, 7
    %v1950 = vsub.s32 0, %v1949
    %v1951 = vrot.slane %v1946, %v1950
    %v1954 = vsel %vm218, %v1938, 0
    %v1957 = vsel %vm218, %v1939, 0
    %1959 = vmatprep.subr.mxu0 0.0
    %1960 = vmatpush1.msra.mxu0 0.0
    %1961 = vmatprep.subr.mxu0 0.0
    %1962 = vmatpush1.msra.mxu0 0.0
    %1963 = vmatprep.subr.mxu0 0.0
    %1964 = vmatpush1.msra.mxu0 0.0
    %1965 = vmatprep.subr.mxu0 0.0
    %1966 = vmatpush1.msra.mxu0 0.0
    %1967 = vmatprep.subr.mxu0 0.0
    %1968 = vmatpush1.msra.mxu0 0.0
    %1969 = vmatprep.subr.mxu0 0.0
    %1970 = vmatpush1.msra.mxu0 0.0
    %1971 = vmatprep.subr.mxu0 0.0
    %1972 = vmatpush1.msra.mxu0 0.0
    %1973 = vmatprep.subr.mxu0 0.0
    %1974 = vmatpush1.msra.mxu0 0.0
    %1975 = vmatprep.subr.mxu0 0.0
    %1976 = vmatpush1.msra.mxu0 0.0
    %1977 = vmatprep.subr.mxu0 0.0
    %1978 = vmatpush1.msra.mxu0 0.0
    %1979 = vmatprep.subr.mxu0 0.0
    %1980 = vmatpush1.msra.mxu0 0.0
    %1981 = vmatprep.subr.mxu0 0.0
    %1982 = vmatpush1.msra.mxu0 0.0
    %1983 = vmatprep.subr.mxu0 0.0
    %1984 = vmatpush1.msra.mxu0 %v1944
    %1985 = vmatprep.subr.mxu0 0.0
    %1986 = vmatpush1.msra.mxu0 %v1943
    %1987 = vmatprep.subr.mxu0 0.0
    %1988 = vmatpush1.msra.mxu0 %v1942
    %1989 = vmatprep.subr.mxu0 0.0
    %1990 = vmatpush1.msra.mxu0 %v1941
    %1991 = vmatprep.subr.mxu0 0.0
    %1992 = vmatpush2.msra.mxu0 0.0
    %1993 = vmatprep.subr.mxu0 0.0
    %1994 = vmatpush2.msra.mxu0 0.0
    %1995 = vmatprep.subr.mxu0 0.0
    %1996 = vmatpush2.msra.mxu0 0.0
    %1997 = vmatprep.subr.mxu0 0.0
    %1998 = vmatpush2.msra.mxu0 0.0
    %1999 = vmatprep.subr.mxu0 0.0
    %2000 = vmatpush2.msra.mxu0 0.0
    %2001 = vmatprep.subr.mxu0 0.0
    %2002 = vmatpush2.msra.mxu0 0.0
    %2003 = vmatprep.subr.mxu0 0.0
    %2004 = vmatpush2.msra.mxu0 0.0
    %2005 = vmatprep.subr.mxu0 0.0
    %2006 = vmatpush2.msra.mxu0 0.0
    %2007 = vmatprep.subr.mxu0 0.0
    %2008 = vmatpush2.msra.mxu0 0.0
    %2009 = vmatprep.subr.mxu0 0.0
    %2010 = vmatpush2.msra.mxu0 0.0
    %2011 = vmatprep.subr.mxu0 0.0
    %2012 = vmatpush2.msra.mxu0 0.0
    %2013 = vmatprep.subr.mxu0 0.0
    %2014 = vmatpush2.msra.mxu0 0.0
    %2015 = vmatprep.subr.mxu0 0.0
    %2016 = vmatpush2.msra.mxu0 0.0
    %2017 = vmatprep.subr.mxu0 0.0
    %2018 = vmatpush2.msra.mxu0 0.0
    %2019 = vmatprep.subr.mxu0 0.0
    %2020 = vmatpush2.msra.mxu0 0.0
    %2021 = vmatprep.subr.mxu0 0.0
    %2022 = vmatpush2.msra.mxu0 0.0
    %2023 = vmatprep.mubr.f32.mxu0 0.0
    %2024 = vmatmul.mubr.f32.gmra.mxu0 %v1954
    %v2025 = vpop.f32.mrf.mxu0
    %v2026 = vadd.f32 %v1951, %v2025
    %v2027 = vpop.f32.mrf.mxu0
    %2028 = vmatprep.mubr.f32.mxu0 0.0
    %2029 = vmatmul.mubr.f32.gmra.mxu0 %v1957
    %v2030 = vpop.f32.mrf.mxu0
    %v2031 = vadd.f32 %v1951, %v2030
    %v2032 = vpop.f32.mrf.mxu0
    %2033 = vdwg.mxu0
    %v2034 = vmul.f32 %v2026, %v2026
    %v2035 = vmul.f32 %v2031, %v2031
    %v2036 = vmul.f32 %v2026, %v2034
    %v2037 = vmul.f32 %v2031, %v2035
    %v2038 = vmul.f32 %v2036, 0.044715
    %v2039 = vmul.f32 %v2037, 0.044715
    %v2040 = vadd.f32 %v2026, %v2038
    %v2041 = vadd.f32 %v2031, %v2039
    %v2042 = vmul.f32 %v2040, 0.7978846
    %v2043 = vmul.f32 %v2041, 0.7978846
    %v2044 = vtanh.pop %v2042
    %v2045 = vtanh.pop %v2043
    %v2046 = vadd.f32 %v2044, 1.0
    %v2047 = vadd.f32 %v2045, 1.0
    %v2048 = vmul.f32 %v2046, 0.5
    %v2049 = vmul.f32 %v2047, 0.5
    %v2050 = vmul.f32 %v2026, %v2048
    %v2051 = vmul.f32 %v2031, %v2049
    %s2052 = scalar_lea.vmem %s10, 64
    %v2053 = vld [vmem:[%s2052] sm:$0xff]
    %v2054 = vld [vmem:[%s2052 + $0x8] sm:$0xff]
    %v2055 = vld [vmem:[%s2052 + $0x10] sm:$0xff]
    %v2056 = vld [vmem:[%s2052 + $0x18] sm:$0xff]
    %v2057 = vld [vmem:[%s2052 + $0x20] sm:$0xff]
    %v2058 = vld [vmem:[%s2052 + $0x28] sm:$0xff]
    %v2059 = vld [vmem:[%s2052 + $0x30] sm:$0xff]
    %v2060 = vld [vmem:[%s2052 + $0x38] sm:$0xff]
    %s2061 = scalar_lea.vmem [#allocation15], 1
    %v2062 = vld [vmem:[%s2061] sm:$0x1]
    %v2064 = vlaneseq
    %v2065 = vshrl.u32 %v2064, 7
    %v2066 = vsub.s32 0, %v2065
    %v2067 = vrot.slane %v2062, %v2066
    %v2070 = vsel %vm1098, %v2050, 0
    %v2073 = vsel %vm1098, %v2051, 0
    %2075 = vmatprep.subr.mxu0 0.0
    %2076 = vmatpush1.msra.mxu0 0.0
    %2077 = vmatprep.subr.mxu0 0.0
    %2078 = vmatpush1.msra.mxu0 0.0
    %2079 = vmatprep.subr.mxu0 0.0
    %2080 = vmatpush1.msra.mxu0 0.0
    %2081 = vmatprep.subr.mxu0 0.0
    %2082 = vmatpush1.msra.mxu0 0.0
    %2083 = vmatprep.subr.mxu0 0.0
    %2084 = vmatpush1.msra.mxu0 0.0
    %2085 = vmatprep.subr.mxu0 0.0
    %2086 = vmatpush1.msra.mxu0 0.0
    %2087 = vmatprep.subr.mxu0 0.0
    %2088 = vmatpush1.msra.mxu0 0.0
    %2089 = vmatprep.subr.mxu0 0.0
    %2090 = vmatpush1.msra.mxu0 0.0
    %2091 = vmatprep.subr.mxu0 0.0
    %2092 = vmatpush1.msra.mxu0 %v2060
    %2093 = vmatprep.subr.mxu0 0.0
    %2094 = vmatpush1.msra.mxu0 %v2059
    %2095 = vmatprep.subr.mxu0 0.0
    %2096 = vmatpush1.msra.mxu0 %v2058
    %2097 = vmatprep.subr.mxu0 0.0
    %2098 = vmatpush1.msra.mxu0 %v2057
    %2099 = vmatprep.subr.mxu0 0.0
    %2100 = vmatpush1.msra.mxu0 %v2056
    %2101 = vmatprep.subr.mxu0 0.0
    %2102 = vmatpush1.msra.mxu0 %v2055
    %2103 = vmatprep.subr.mxu0 0.0
    %2104 = vmatpush1.msra.mxu0 %v2054
    %2105 = vmatprep.subr.mxu0 0.0
    %2106 = vmatpush1.msra.mxu0 %v2053
    %2107 = vmatprep.subr.mxu0 0.0
    %2108 = vmatpush2.msra.mxu0 0.0
    %2109 = vmatprep.subr.mxu0 0.0
    %2110 = vmatpush2.msra.mxu0 0.0
    %2111 = vmatprep.subr.mxu0 0.0
    %2112 = vmatpush2.msra.mxu0 0.0
    %2113 = vmatprep.subr.mxu0 0.0
    %2114 = vmatpush2.msra.mxu0 0.0
    %2115 = vmatprep.subr.mxu0 0.0
    %2116 = vmatpush2.msra.mxu0 0.0
    %2117 = vmatprep.subr.mxu0 0.0
    %2118 = vmatpush2.msra.mxu0 0.0
    %2119 = vmatprep.subr.mxu0 0.0
    %2120 = vmatpush2.msra.mxu0 0.0
    %2121 = vmatprep.subr.mxu0 0.0
    %2122 = vmatpush2.msra.mxu0 0.0
    %2123 = vmatprep.subr.mxu0 0.0
    %2124 = vmatpush2.msra.mxu0 0.0
    %2125 = vmatprep.subr.mxu0 0.0
    %2126 = vmatpush2.msra.mxu0 0.0
    %2127 = vmatprep.subr.mxu0 0.0
    %2128 = vmatpush2.msra.mxu0 0.0
    %2129 = vmatprep.subr.mxu0 0.0
    %2130 = vmatpush2.msra.mxu0 0.0
    %2131 = vmatprep.subr.mxu0 0.0
    %2132 = vmatpush2.msra.mxu0 0.0
    %2133 = vmatprep.subr.mxu0 0.0
    %2134 = vmatpush2.msra.mxu0 0.0
    %2135 = vmatprep.subr.mxu0 0.0
    %2136 = vmatpush2.msra.mxu0 0.0
    %2137 = vmatprep.subr.mxu0 0.0
    %2138 = vmatpush2.msra.mxu0 0.0
    %2139 = vmatprep.mubr.f32.mxu0 0.0
    %2140 = vmatmul.mubr.f32.gmra.mxu0 %v2070
    %v2141 = vpop.f32.mrf.mxu0
    %v2142 = vadd.f32 %v2067, %v2141
    %v2143 = vpop.f32.mrf.mxu0
    %2144 = vmatprep.mubr.f32.mxu0 0.0
    %2145 = vmatmul.mubr.f32.gmra.mxu0 %v2073
    %v2146 = vpop.f32.mrf.mxu0
    %v2147 = vadd.f32 %v2067, %v2146
    %v2148 = vpop.f32.mrf.mxu0
    %2149 = vdwg.mxu0
    %s2150 = scalar_lea.vmem %s12, 2
    %v2151 = vld [vmem:[%s2150] sm:$0x3]
    %v2152 = vadd.f32 %v1938, %v2142
    %v2153 = vadd.f32 %v1939, %v2147
    %v2154 = vsel %vm218, %v2152, 0.0
    %2155 = vadd.xlane.f32.xlu0 %v2154
    %v2156 = vpop.xlane.xlu0 %2155
    %v2157 = vsel %vm218, %v2153, 0.0
    %2158 = vadd.xlane.f32.xlu0 %v2157
    %v2159 = vpop.xlane.xlu0 %2158
    %v2160 = vmul.f32 %v2156, %v225
    %v2161 = vmul.f32 %v2159, %v225
    %v2162 = vsub.f32 %v2152, %v2160
    %v2163 = vsub.f32 %v2153, %v2161
    %v2164 = vmul.f32 %v2162, %v2162
    %v2165 = vmul.f32 %v2163, %v2163
    %v2166 = vsel %vm218, %v2164, 0.0
    %2167 = vadd.xlane.f32.xlu0 %v2166
    %v2168 = vpop.xlane.xlu0 %2167
    %v2169 = vsel %vm218, %v2165, 0.0
    %2170 = vadd.xlane.f32.xlu0 %v2169
    %v2171 = vpop.xlane.xlu0 %2170
    %v2172 = vmul.f32 %v2168, %v225
    %v2173 = vmul.f32 %v2171, %v225
    %v2174 = vadd.f32 %v2172, 1e-12
    %v2175 = vadd.f32 %v2173, 1e-12
    %v2176 = vrsqrt.pop %v2174
    %v2177 = vrsqrt.pop %v2175
    %v2178 = vmul.f32 %v2162, %v2176
    %v2179 = vmul.f32 %v2163, %v2177
    %v2180 = vlaneseq
    %v2181 = vshrl.u32 %v2180, 7
    %v2182 = vsub.s32 0, %v2181
    %v2183 = vrot.slane %v2151, %v2182
    %v2184 = vmul.f32 %v2178, %v2183
    %v2185 = vmul.f32 %v2179, %v2183
    %v2186 = vlaneseq
    %v2187 = vshrl.u32 %v2186, 7
    %v2188 = vsub.s32 1, %v2187
    %v2189 = vrot.slane %v2151, %v2188
    %v2190 = vadd.f32 %v2184, %v2189
    %v2191 = vadd.f32 %v2185, %v2189
    %v2192 = vld [vmem:[%s16] sm:$0x3]
    %v2193 = vld [vmem:[%s17] sm:$0x3]
    %v2194 = vld [vmem:[#allocation19] sm:$0xff]
    %v2195 = vld [vmem:[#allocation19 + $0x8] sm:$0xff]
    %v2196 = vld [vmem:[#allocation19 + $0x10] sm:$0xff]
    %v2197 = vld [vmem:[#allocation19 + $0x18] sm:$0xff]
    %v2198 = vld [vmem:[#allocation19 + $0x20] sm:$0xff]
    %v2199 = vld [vmem:[#allocation19 + $0x28] sm:$0xff]
    %v2200 = vld [vmem:[#allocation19 + $0x30] sm:$0xff]
    %v2201 = vld [vmem:[#allocation19 + $0x38] sm:$0xff]
    %v2202 = vld [vmem:[#allocation19 + $0x40] sm:$0xff]
    %v2203 = vld [vmem:[#allocation19 + $0x48] sm:$0xff]
    %v2204 = vld [vmem:[#allocation19 + $0x50] sm:$0xff]
    %v2205 = vld [vmem:[#allocation19 + $0x58] sm:$0xff]
    %v2206 = vld [vmem:[#allocation19 + $0x60] sm:$0xff]
    %v2207 = vld [vmem:[#allocation19 + $0x68] sm:$0xff]
    %v2208 = vld [vmem:[#allocation19 + $0x70] sm:$0xff]
    %v2209 = vld [vmem:[#allocation19 + $0x78] sm:$0xff]
    %v2210 = vld [vmem:[#allocation16] sm:$0xff]
    %v2211 = vld [vmem:[#allocation16 + $0x8] sm:$0xff]
    %v2212 = vld [vmem:[#allocation16 + $0x10] sm:$0xff]
    %v2213 = vld [vmem:[#allocation16 + $0x18] sm:$0xff]
    %v2214 = vld [vmem:[#allocation16 + $0x20] sm:$0xff]
    %v2215 = vld [vmem:[#allocation16 + $0x28] sm:$0xff]
    %v2216 = vld [vmem:[#allocation16 + $0x30] sm:$0xff]
    %v2217 = vld [vmem:[#allocation16 + $0x38] sm:$0xff]
    %v2219 = vlaneseq
    %v2220 = vshrl.u32 %v2219, 7
    %v2221 = vsub.s32 0, %v2220
    %v2222 = vrot.slane %v2192, %v2221
    %v2223 = vlaneseq
    %v2224 = vshrl.u32 %v2223, 7
    %v2225 = vsub.s32 1, %v2224
    %v2226 = vrot.slane %v2192, %v2225
    %v2230 = vsel %vm218, %v2190, 0
    %v2233 = vsel %vm218, %v2191, 0
    %2235 = vmatprep.subr.mxu0 0.0
    %2236 = vmatpush1.msra.mxu0 0.0
    %2237 = vmatprep.subr.mxu0 0.0
    %2238 = vmatpush1.msra.mxu0 0.0
    %2239 = vmatprep.subr.mxu0 0.0
    %2240 = vmatpush1.msra.mxu0 0.0
    %2241 = vmatprep.subr.mxu0 0.0
    %2242 = vmatpush1.msra.mxu0 0.0
    %2243 = vmatprep.subr.mxu0 0.0
    %2244 = vmatpush1.msra.mxu0 0.0
    %2245 = vmatprep.subr.mxu0 0.0
    %2246 = vmatpush1.msra.mxu0 0.0
    %2247 = vmatprep.subr.mxu0 0.0
    %2248 = vmatpush1.msra.mxu0 0.0
    %2249 = vmatprep.subr.mxu0 0.0
    %2250 = vmatpush1.msra.mxu0 0.0
    %2251 = vmatprep.subr.mxu0 0.0
    %2252 = vmatpush1.msra.mxu0 0.0
    %2253 = vmatprep.subr.mxu0 0.0
    %2254 = vmatpush1.msra.mxu0 0.0
    %2255 = vmatprep.subr.mxu0 0.0
    %2256 = vmatpush1.msra.mxu0 0.0
    %2257 = vmatprep.subr.mxu0 0.0
    %2258 = vmatpush1.msra.mxu0 0.0
    %2259 = vmatprep.subr.mxu0 %v2217
    %2260 = vmatpush1.msra.mxu0 %v2216
    %2261 = vmatprep.subr.mxu0 %v2215
    %2262 = vmatpush1.msra.mxu0 %v2214
    %2263 = vmatprep.subr.mxu0 %v2213
    %2264 = vmatpush1.msra.mxu0 %v2212
    %2265 = vmatprep.subr.mxu0 %v2211
    %2266 = vmatpush1.msra.mxu0 %v2210
    %2267 = vmatprep.subr.mxu0 0.0
    %2268 = vmatpush2.msra.mxu0 0.0
    %2269 = vmatprep.subr.mxu0 0.0
    %2270 = vmatpush2.msra.mxu0 0.0
    %2271 = vmatprep.subr.mxu0 0.0
    %2272 = vmatpush2.msra.mxu0 0.0
    %2273 = vmatprep.subr.mxu0 0.0
    %2274 = vmatpush2.msra.mxu0 0.0
    %2275 = vmatprep.subr.mxu0 0.0
    %2276 = vmatpush2.msra.mxu0 0.0
    %2277 = vmatprep.subr.mxu0 0.0
    %2278 = vmatpush2.msra.mxu0 0.0
    %2279 = vmatprep.subr.mxu0 0.0
    %2280 = vmatpush2.msra.mxu0 0.0
    %2281 = vmatprep.subr.mxu0 0.0
    %2282 = vmatpush2.msra.mxu0 0.0
    %2283 = vmatprep.subr.mxu0 0.0
    %2284 = vmatpush2.msra.mxu0 0.0
    %2285 = vmatprep.subr.mxu0 0.0
    %2286 = vmatpush2.msra.mxu0 0.0
    %2287 = vmatprep.subr.mxu0 0.0
    %2288 = vmatpush2.msra.mxu0 0.0
    %2289 = vmatprep.subr.mxu0 0.0
    %2290 = vmatpush2.msra.mxu0 0.0
    %2291 = vmatprep.subr.mxu0 0.0
    %2292 = vmatpush2.msra.mxu0 0.0
    %2293 = vmatprep.subr.mxu0 0.0
    %2294 = vmatpush2.msra.mxu0 0.0
    %2295 = vmatprep.subr.mxu0 0.0
    %2296 = vmatpush2.msra.mxu0 0.0
    %2297 = vmatprep.subr.mxu0 0.0
    %2298 = vmatpush2.msra.mxu0 0.0
    %2299 = vmatprep.mubr.f32.mxu0 0.0
    %2300 = vmatmul.mubr.f32.gmra.mxu0 %v2230
    %v2301 = vpop.f32.mrf.mxu0
    %v2302 = vadd.f32 %v2222, %v2301
    %v2303 = vpop.f32.mrf.mxu0
    %v2304 = vadd.f32 %v2226, %v2303
    %2305 = vmatprep.mubr.f32.mxu0 0.0
    %2306 = vmatmul.mubr.f32.gmra.mxu0 %v2233
    %v2307 = vpop.f32.mrf.mxu0
    %v2308 = vadd.f32 %v2222, %v2307
    %v2309 = vpop.f32.mrf.mxu0
    %v2310 = vadd.f32 %v2226, %v2309
    %2311 = vdwg.mxu0
    %v2313 = vlaneseq
    %v2314 = vshrl.u32 %v2313, 7
    %v2315 = vsub.s32 0, %v2314
    %v2316 = vrot.slane %v2193, %v2315
    %v2317 = vlaneseq
    %v2318 = vshrl.u32 %v2317, 7
    %v2319 = vsub.s32 1, %v2318
    %v2320 = vrot.slane %v2193, %v2319
    %v2324 = vsel %vm1098, 0.0, 0
    %2326 = vmatprep.subr.mxu0 0.0
    %2327 = vmatpush1.msra.mxu0 0.0
    %2328 = vmatprep.subr.mxu0 0.0
    %2329 = vmatpush1.msra.mxu0 0.0
    %2330 = vmatprep.subr.mxu0 0.0
    %2331 = vmatpush1.msra.mxu0 0.0
    %2332 = vmatprep.subr.mxu0 0.0
    %2333 = vmatpush1.msra.mxu0 0.0
    %2334 = vmatprep.subr.mxu0 0.0
    %2335 = vmatpush1.msra.mxu0 0.0
    %2336 = vmatprep.subr.mxu0 0.0
    %2337 = vmatpush1.msra.mxu0 0.0
    %2338 = vmatprep.subr.mxu0 0.0
    %2339 = vmatpush1.msra.mxu0 0.0
    %2340 = vmatprep.subr.mxu0 0.0
    %2341 = vmatpush1.msra.mxu0 0.0
    %2342 = vmatprep.subr.mxu0 %v2209
    %2343 = vmatpush1.msra.mxu0 %v2208
    %2344 = vmatprep.subr.mxu0 %v2207
    %2345 = vmatpush1.msra.mxu0 %v2206
    %2346 = vmatprep.subr.mxu0 %v2205
    %2347 = vmatpush1.msra.mxu0 %v2204
    %2348 = vmatprep.subr.mxu0 %v2203
    %2349 = vmatpush1.msra.mxu0 %v2202
    %2350 = vmatprep.subr.mxu0 %v2201
    %2351 = vmatpush1.msra.mxu0 %v2200
    %2352 = vmatprep.subr.mxu0 %v2199
    %2353 = vmatpush1.msra.mxu0 %v2198
    %2354 = vmatprep.subr.mxu0 %v2197
    %2355 = vmatpush1.msra.mxu0 %v2196
    %2356 = vmatprep.subr.mxu0 %v2195
    %2357 = vmatpush1.msra.mxu0 %v2194
    %2358 = vmatprep.subr.mxu0 0.0
    %2359 = vmatpush2.msra.mxu0 0.0
    %2360 = vmatprep.subr.mxu0 0.0
    %2361 = vmatpush2.msra.mxu0 0.0
    %2362 = vmatprep.subr.mxu0 0.0
    %2363 = vmatpush2.msra.mxu0 0.0
    %2364 = vmatprep.subr.mxu0 0.0
    %2365 = vmatpush2.msra.mxu0 0.0
    %2366 = vmatprep.subr.mxu0 0.0
    %2367 = vmatpush2.msra.mxu0 0.0
    %2368 = vmatprep.subr.mxu0 0.0
    %2369 = vmatpush2.msra.mxu0 0.0
    %2370 = vmatprep.subr.mxu0 0.0
    %2371 = vmatpush2.msra.mxu0 0.0
    %2372 = vmatprep.subr.mxu0 0.0
    %2373 = vmatpush2.msra.mxu0 0.0
    %2374 = vmatprep.subr.mxu0 0.0
    %2375 = vmatpush2.msra.mxu0 0.0
    %2376 = vmatprep.subr.mxu0 0.0
    %2377 = vmatpush2.msra.mxu0 0.0
    %2378 = vmatprep.subr.mxu0 0.0
    %2379 = vmatpush2.msra.mxu0 0.0
    %2380 = vmatprep.subr.mxu0 0.0
    %2381 = vmatpush2.msra.mxu0 0.0
    %2382 = vmatprep.subr.mxu0 0.0
    %2383 = vmatpush2.msra.mxu0 0.0
    %2384 = vmatprep.subr.mxu0 0.0
    %2385 = vmatpush2.msra.mxu0 0.0
    %2386 = vmatprep.subr.mxu0 0.0
    %2387 = vmatpush2.msra.mxu0 0.0
    %2388 = vmatprep.subr.mxu0 0.0
    %2389 = vmatpush2.msra.mxu0 0.0
    %2390 = vmatprep.mubr.f32.mxu0 0.0
    %2391 = vmatmul.mubr.f32.gmra.mxu0 %v2324
    %v2392 = vpop.f32.mrf.mxu0
    %v2393 = vadd.f32 %v2316, %v2392
    %v2394 = vpop.f32.mrf.mxu0
    %v2395 = vadd.f32 %v2320, %v2394
    %2396 = vdwg.mxu0
    %v2397 = vadd.f32 %v2302, %v2393
    %v2398 = vmul.f32 %v2397, 0.5
    %v2399 = vtanh.pop %v2398
    %v2400 = vadd.f32 %v2399, 1.0
    %v2401 = vmul.f32 %v2400, 0.5
    %2403 = vrot.lane.b32.xlu0 %v2393, 64
    %v2404 = vpop.permute.xlu0 %2403
    %v2406 = vmul.f32 %v2401, %v2404
    %2408 = vrot.lane.b32.xlu0 %v2406, 64
    %v2409 = vpop.permute.xlu0 %2408
    %v2411 = vadd.f32 %v2302, %v2409
    %v2412 = vtanh.pop %v2411
    %v2413 = vsub.f32 1.0, %v2401
    %2415 = vrot.lane.b32.xlu0 %v2412, 96
    %v2416 = vpop.permute.xlu0 %2415
    %v2418 = vmul.f32 %v2413, %v2416
    %v2419 = vmul.f32 %v2401, 0.0
    %v2420 = vadd.f32 %v2418, %v2419
    %v2421 = vrot.slane %v2393, 2
    %v2423 = vadd.f32 %v2308, %v2421
    %v2424 = vmul.f32 %v2423, 0.5
    %v2425 = vtanh.pop %v2424
    %v2426 = vadd.f32 %v2425, 1.0
    %v2427 = vmul.f32 %v2426, 0.5
    %v2429 = vrot.slane %v2395, 2
    %v2431 = vadd.f32 %v2310, %v2429
    %v2432 = vmul.f32 %v2431, 0.5
    %v2433 = vtanh.pop %v2432
    %v2434 = vadd.f32 %v2433, 1.0
    %v2435 = vmul.f32 %v2434, 0.5
    %2436 = vrot.lane.b32.xlu0 %v2429, 64
    %v2437 = vpop.permute.xlu0 %2436
    %v2439 = vmul.f32 %v2427, %v2437
    %2441 = vrot.lane.b32.xlu0 %v2439, 64
    %v2442 = vpop.permute.xlu0 %2441
    %v2444 = vadd.f32 %v2310, %v2442
    %v2445 = vtanh.pop %v2444
    %v2446 = vsub.f32 1.0, %v2435
    %2448 = vrot.lane.b32.xlu0 %v2445, 96
    %v2449 = vpop.permute.xlu0 %2448
    %v2451 = vmul.f32 %v2446, %v2449
    %v2452 = vmul.f32 %v2435, 0.0
    %v2453 = vadd.f32 %v2451, %v2452
    %2455 = vrot.lane.b32.xlu0 %v2420, 96
    %v2456 = vpop.permute.xlu0 %2455
    %v2459 = vrot.slane %v2453, 6
    %2460 = vrot.lane.b32.xlu0 %v2459, 32
    %v2461 = vpop.permute.xlu0 %2460
    %v2463 = vsel %vm218, %v2456, %v2461
    %vm2464 = vcmask 254976
    %2465 = vst.msk [vmem:[#allocation2] sm:$0x3] %vm2464, %v2456
    %vm2466 = vcmask 261126
    %2467 = vst.msk [vmem:[#allocation3 + $0x8] sm:$0xc0] %vm2466, %v2453
    %v2469 = vsel %vm1098, %v2463, 0
    %2471 = vmatprep.subr.mxu0 0.0
    %2472 = vmatpush1.msra.mxu0 0.0
    %2473 = vmatprep.subr.mxu0 0.0
    %2474 = vmatpush1.msra.mxu0 0.0
    %2475 = vmatprep.subr.mxu0 0.0
    %2476 = vmatpush1.msra.mxu0 0.0
    %2477 = vmatprep.subr.mxu0 0.0
    %2478 = vmatpush1.msra.mxu0 0.0
    %2479 = vmatprep.subr.mxu0 0.0
    %2480 = vmatpush1.msra.mxu0 0.0
    %2481 = vmatprep.subr.mxu0 0.0
    %2482 = vmatpush1.msra.mxu0 0.0
    %2483 = vmatprep.subr.mxu0 0.0
    %2484 = vmatpush1.msra.mxu0 0.0
    %2485 = vmatprep.subr.mxu0 0.0
    %2486 = vmatpush1.msra.mxu0 0.0
    %2487 = vmatprep.subr.mxu0 %v2209
    %2488 = vmatpush1.msra.mxu0 %v2208
    %2489 = vmatprep.subr.mxu0 %v2207
    %2490 = vmatpush1.msra.mxu0 %v2206
    %2491 = vmatprep.subr.mxu0 %v2205
    %2492 = vmatpush1.msra.mxu0 %v2204
    %2493 = vmatprep.subr.mxu0 %v2203
    %2494 = vmatpush1.msra.mxu0 %v2202
    %2495 = vmatprep.subr.mxu0 %v2201
    %2496 = vmatpush1.msra.mxu0 %v2200
    %2497 = vmatprep.subr.mxu0 %v2199
    %2498 = vmatpush1.msra.mxu0 %v2198
    %2499 = vmatprep.subr.mxu0 %v2197
    %2500 = vmatpush1.msra.mxu0 %v2196
    %2501 = vmatprep.subr.mxu0 %v2195
    %2502 = vmatpush1.msra.mxu0 %v2194
    %2503 = vmatprep.subr.mxu0 0.0
    %2504 = vmatpush2.msra.mxu0 0.0
    %2505 = vmatprep.subr.mxu0 0.0
    %2506 = vmatpush2.msra.mxu0 0.0
    %2507 = vmatprep.subr.mxu0 0.0
    %2508 = vmatpush2.msra.mxu0 0.0
    %2509 = vmatprep.subr.mxu0 0.0
    %2510 = vmatpush2.msra.mxu0 0.0
    %2511 = vmatprep.subr.mxu0 0.0
    %2512 = vmatpush2.msra.mxu0 0.0
    %2513 = vmatprep.subr.mxu0 0.0
    %2514 = vmatpush2.msra.mxu0 0.0
    %2515 = vmatprep.subr.mxu0 0.0
    %2516 = vmatpush2.msra.mxu0 0.0
    %2517 = vmatprep.subr.mxu0 0.0
    %2518 = vmatpush2.msra.mxu0 0.0
    %2519 = vmatprep.subr.mxu0 0.0
    %2520 = vmatpush2.msra.mxu0 0.0
    %2521 = vmatprep.subr.mxu0 0.0
    %2522 = vmatpush2.msra.mxu0 0.0
    %2523 = vmatprep.subr.mxu0 0.0
    %2524 = vmatpush2.msra.mxu0 0.0
    %2525 = vmatprep.subr.mxu0 0.0
    %2526 = vmatpush2.msra.mxu0 0.0
    %2527 = vmatprep.subr.mxu0 0.0
    %2528 = vmatpush2.msra.mxu0 0.0
    %2529 = vmatprep.subr.mxu0 0.0
    %2530 = vmatpush2.msra.mxu0 0.0
    %2531 = vmatprep.subr.mxu0 0.0
    %2532 = vmatpush2.msra.mxu0 0.0
    %2533 = vmatprep.subr.mxu0 0.0
    %2534 = vmatpush2.msra.mxu0 0.0
    %2535 = vmatprep.mubr.f32.mxu0 0.0
    %2536 = vmatmul.mubr.f32.gmra.mxu0 %v2469
    %v2537 = vpop.f32.mrf.mxu0
    %v2538 = vadd.f32 %v2316, %v2537
    %v2539 = vpop.f32.mrf.mxu0
    %v2540 = vadd.f32 %v2320, %v2539
    %2541 = vdwg.mxu0
    %v2543 = vrot.slane %v2538, 6
    %v2545 = vadd.f32 %v2302, %v2543
    %v2546 = vmul.f32 %v2545, 0.5
    %v2547 = vtanh.pop %v2546
    %v2548 = vadd.f32 %v2547, 1.0
    %v2549 = vmul.f32 %v2548, 0.5
    %2550 = vrot.lane.b32.xlu0 %v2543, 64
    %v2551 = vpop.permute.xlu0 %2550
    %v2553 = vmul.f32 %v2549, %v2551
    %2555 = vrot.lane.b32.xlu0 %v2553, 64
    %v2556 = vpop.permute.xlu0 %2555
    %v2558 = vadd.f32 %v2302, %v2556
    %v2559 = vtanh.pop %v2558
    %v2560 = vsub.f32 1.0, %v2549
    %2562 = vrot.lane.b32.xlu0 %v2559, 96
    %v2563 = vpop.permute.xlu0 %2562
    %v2565 = vmul.f32 %v2560, %v2563
    %v2566 = vrot.slane %v2463, 6
    %2567 = vrot.lane.b32.xlu0 %v2566, 32
    %v2568 = vpop.permute.xlu0 %2567
    %v2570 = vmul.f32 %v2549, %v2568
    %v2571 = vadd.f32 %v2565, %v2570
    %v2572 = vrot.slane %v2538, 4
    %v2574 = vadd.f32 %v2308, %v2572
    %v2575 = vmul.f32 %v2574, 0.5
    %v2576 = vtanh.pop %v2575
    %v2577 = vadd.f32 %v2576, 1.0
    %v2578 = vmul.f32 %v2577, 0.5
    %v2580 = vrot.slane %v2540, 4
    %v2582 = vadd.f32 %v2310, %v2580
    %v2583 = vmul.f32 %v2582, 0.5
    %v2584 = vtanh.pop %v2583
    %v2585 = vadd.f32 %v2584, 1.0
    %v2586 = vmul.f32 %v2585, 0.5
    %2587 = vrot.lane.b32.xlu0 %v2580, 64
    %v2588 = vpop.permute.xlu0 %2587
    %v2590 = vmul.f32 %v2578, %v2588
    %2592 = vrot.lane.b32.xlu0 %v2590, 64
    %v2593 = vpop.permute.xlu0 %2592
    %v2595 = vadd.f32 %v2310, %v2593
    %v2596 = vtanh.pop %v2595
    %v2597 = vsub.f32 1.0, %v2586
    %2599 = vrot.lane.b32.xlu0 %v2596, 96
    %v2600 = vpop.permute.xlu0 %2599
    %v2602 = vmul.f32 %v2597, %v2600
    %v2603 = vrot.slane %v2463, 4
    %2604 = vrot.lane.b32.xlu0 %v2603, 96
    %v2605 = vpop.permute.xlu0 %2604
    %v2607 = vmul.f32 %v2586, %v2605
    %v2608 = vadd.f32 %v2602, %v2607
    %2610 = vrot.lane.b32.xlu0 %v2571, 96
    %v2611 = vpop.permute.xlu0 %2610
    %v2614 = vrot.slane %v2608, 2
    %2615 = vrot.lane.b32.xlu0 %v2614, 32
    %v2616 = vpop.permute.xlu0 %2615
    %v2618 = vsel %vm218, %v2611, %v2616
    %vm2619 = vcmask 257026
    %2620 = vst.msk [vmem:[#allocation2] sm:$0xc] %vm2619, %v2611
    %vm2621 = vcmask 259076
    %2622 = vst.msk [vmem:[#allocation3 + $0x8] sm:$0x30] %vm2621, %v2608
    %v2624 = vrot.slane %v2618, 2
    %v2625 = vsel %vm1098, %v2624, 0
    %2627 = vmatprep.subr.mxu0 0.0
    %2628 = vmatpush1.msra.mxu0 0.0
    %2629 = vmatprep.subr.mxu0 0.0
    %2630 = vmatpush1.msra.mxu0 0.0
    %2631 = vmatprep.subr.mxu0 0.0
    %2632 = vmatpush1.msra.mxu0 0.0
    %2633 = vmatprep.subr.mxu0 0.0
    %2634 = vmatpush1.msra.mxu0 0.0
    %2635 = vmatprep.subr.mxu0 0.0
    %2636 = vmatpush1.msra.mxu0 0.0
    %2637 = vmatprep.subr.mxu0 0.0
    %2638 = vmatpush1.msra.mxu0 0.0
    %2639 = vmatprep.subr.mxu0 0.0
    %2640 = vmatpush1.msra.mxu0 0.0
    %2641 = vmatprep.subr.mxu0 0.0
    %2642 = vmatpush1.msra.mxu0 0.0
    %2643 = vmatprep.subr.mxu0 %v2209
    %2644 = vmatpush1.msra.mxu0 %v2208
    %2645 = vmatprep.subr.mxu0 %v2207
    %2646 = vmatpush1.msra.mxu0 %v2206
    %2647 = vmatprep.subr.mxu0 %v2205
    %2648 = vmatpush1.msra.mxu0 %v2204
    %2649 = vmatprep.subr.mxu0 %v2203
    %2650 = vmatpush1.msra.mxu0 %v2202
    %2651 = vmatprep.subr.mxu0 %v2201
    %2652 = vmatpush1.msra.mxu0 %v2200
    %2653 = vmatprep.subr.mxu0 %v2199
    %2654 = vmatpush1.msra.mxu0 %v2198
    %2655 = vmatprep.subr.mxu0 %v2197
    %2656 = vmatpush1.msra.mxu0 %v2196
    %2657 = vmatprep.subr.mxu0 %v2195
    %2658 = vmatpush1.msra.mxu0 %v2194
    %2659 = vmatprep.subr.mxu0 0.0
    %2660 = vmatpush2.msra.mxu0 0.0
    %2661 = vmatprep.subr.mxu0 0.0
    %2662 = vmatpush2.msra.mxu0 0.0
    %2663 = vmatprep.subr.mxu0 0.0
    %2664 = vmatpush2.msra.mxu0 0.0
    %2665 = vmatprep.subr.mxu0 0.0
    %2666 = vmatpush2.msra.mxu0 0.0
    %2667 = vmatprep.subr.mxu0 0.0
    %2668 = vmatpush2.msra.mxu0 0.0
    %2669 = vmatprep.subr.mxu0 0.0
    %2670 = vmatpush2.msra.mxu0 0.0
    %2671 = vmatprep.subr.mxu0 0.0
    %2672 = vmatpush2.msra.mxu0 0.0
    %2673 = vmatprep.subr.mxu0 0.0
    %2674 = vmatpush2.msra.mxu0 0.0
    %2675 = vmatprep.subr.mxu0 0.0
    %2676 = vmatpush2.msra.mxu0 0.0
    %2677 = vmatprep.subr.mxu0 0.0
    %2678 = vmatpush2.msra.mxu0 0.0
    %2679 = vmatprep.subr.mxu0 0.0
    %2680 = vmatpush2.msra.mxu0 0.0
    %2681 = vmatprep.subr.mxu0 0.0
    %2682 = vmatpush2.msra.mxu0 0.0
    %2683 = vmatprep.subr.mxu0 0.0
    %2684 = vmatpush2.msra.mxu0 0.0
    %2685 = vmatprep.subr.mxu0 0.0
    %2686 = vmatpush2.msra.mxu0 0.0
    %2687 = vmatprep.subr.mxu0 0.0
    %2688 = vmatpush2.msra.mxu0 0.0
    %2689 = vmatprep.subr.mxu0 0.0
    %2690 = vmatpush2.msra.mxu0 0.0
    %2691 = vmatprep.mubr.f32.mxu0 0.0
    %2692 = vmatmul.mubr.f32.gmra.mxu0 %v2625
    %v2693 = vpop.f32.mrf.mxu0
    %v2694 = vadd.f32 %v2316, %v2693
    %v2695 = vpop.f32.mrf.mxu0
    %v2696 = vadd.f32 %v2320, %v2695
    %2697 = vdwg.mxu0
    %v2699 = vrot.slane %v2694, 4
    %v2701 = vadd.f32 %v2302, %v2699
    %v2702 = vmul.f32 %v2701, 0.5
    %v2703 = vtanh.pop %v2702
    %v2704 = vadd.f32 %v2703, 1.0
    %v2705 = vmul.f32 %v2704, 0.5
    %2706 = vrot.lane.b32.xlu0 %v2699, 64
    %v2707 = vpop.permute.xlu0 %2706
    %v2709 = vmul.f32 %v2705, %v2707
    %2711 = vrot.lane.b32.xlu0 %v2709, 64
    %v2712 = vpop.permute.xlu0 %2711
    %v2714 = vadd.f32 %v2302, %v2712
    %v2715 = vtanh.pop %v2714
    %v2716 = vsub.f32 1.0, %v2705
    %2718 = vrot.lane.b32.xlu0 %v2715, 96
    %v2719 = vpop.permute.xlu0 %2718
    %v2721 = vmul.f32 %v2716, %v2719
    %v2722 = vrot.slane %v2618, 6
    %2723 = vrot.lane.b32.xlu0 %v2722, 32
    %v2724 = vpop.permute.xlu0 %2723
    %v2726 = vmul.f32 %v2705, %v2724
    %v2727 = vadd.f32 %v2721, %v2726
    %v2728 = vrot.slane %v2694, 6
    %v2730 = vadd.f32 %v2308, %v2728
    %v2731 = vmul.f32 %v2730, 0.5
    %v2732 = vtanh.pop %v2731
    %v2733 = vadd.f32 %v2732, 1.0
    %v2734 = vmul.f32 %v2733, 0.5
    %v2736 = vrot.slane %v2696, 6
    %v2738 = vadd.f32 %v2310, %v2736
    %v2739 = vmul.f32 %v2738, 0.5
    %v2740 = vtanh.pop %v2739
    %v2741 = vadd.f32 %v2740, 1.0
    %v2742 = vmul.f32 %v2741, 0.5
    %2743 = vrot.lane.b32.xlu0 %v2736, 64
    %v2744 = vpop.permute.xlu0 %2743
    %v2746 = vmul.f32 %v2734, %v2744
    %2748 = vrot.lane.b32.xlu0 %v2746, 64
    %v2749 = vpop.permute.xlu0 %2748
    %v2751 = vadd.f32 %v2310, %v2749
    %v2752 = vtanh.pop %v2751
    %v2753 = vsub.f32 1.0, %v2742
    %2755 = vrot.lane.b32.xlu0 %v2752, 96
    %v2756 = vpop.permute.xlu0 %2755
    %v2758 = vmul.f32 %v2753, %v2756
    %2759 = vrot.lane.b32.xlu0 %v2618, 96
    %v2760 = vpop.permute.xlu0 %2759
    %v2762 = vmul.f32 %v2742, %v2760
    %v2763 = vadd.f32 %v2758, %v2762
    %2765 = vrot.lane.b32.xlu0 %v2727, 96
    %v2766 = vpop.permute.xlu0 %2765
    %v2769 = vrot.slane %v2763, 6
    %2770 = vrot.lane.b32.xlu0 %v2769, 32
    %v2771 = vpop.permute.xlu0 %2770
    %v2773 = vsel %vm218, %v2766, %v2771
    %2774 = vst.msk [vmem:[#allocation2] sm:$0x30] %vm2621, %v2766
    %2775 = vst.msk [vmem:[#allocation3 + $0x8] sm:$0xc] %vm2619, %v2763
    %v2777 = vrot.slane %v2773, 4
    %v2778 = vsel %vm1098, %v2777, 0
    %2780 = vmatprep.subr.mxu0 0.0
    %2781 = vmatpush1.msra.mxu0 0.0
    %2782 = vmatprep.subr.mxu0 0.0
    %2783 = vmatpush1.msra.mxu0 0.0
    %2784 = vmatprep.subr.mxu0 0.0
    %2785 = vmatpush1.msra.mxu0 0.0
    %2786 = vmatprep.subr.mxu0 0.0
    %2787 = vmatpush1.msra.mxu0 0.0
    %2788 = vmatprep.subr.mxu0 0.0
    %2789 = vmatpush1.msra.mxu0 0.0
    %2790 = vmatprep.subr.mxu0 0.0
    %2791 = vmatpush1.msra.mxu0 0.0
    %2792 = vmatprep.subr.mxu0 0.0
    %2793 = vmatpush1.msra.mxu0 0.0
    %2794 = vmatprep.subr.mxu0 0.0
    %2795 = vmatpush1.msra.mxu0 0.0
    %2796 = vmatprep.subr.mxu0 %v2209
    %2797 = vmatpush1.msra.mxu0 %v2208
    %2798 = vmatprep.subr.mxu0 %v2207
    %2799 = vmatpush1.msra.mxu0 %v2206
    %2800 = vmatprep.subr.mxu0 %v2205
    %2801 = vmatpush1.msra.mxu0 %v2204
    %2802 = vmatprep.subr.mxu0 %v2203
    %2803 = vmatpush1.msra.mxu0 %v2202
    %2804 = vmatprep.subr.mxu0 %v2201
    %2805 = vmatpush1.msra.mxu0 %v2200
    %2806 = vmatprep.subr.mxu0 %v2199
    %2807 = vmatpush1.msra.mxu0 %v2198
    %2808 = vmatprep.subr.mxu0 %v2197
    %2809 = vmatpush1.msra.mxu0 %v2196
    %2810 = vmatprep.subr.mxu0 %v2195
    %2811 = vmatpush1.msra.mxu0 %v2194
    %2812 = vmatprep.subr.mxu0 0.0
    %2813 = vmatpush2.msra.mxu0 0.0
    %2814 = vmatprep.subr.mxu0 0.0
    %2815 = vmatpush2.msra.mxu0 0.0
    %2816 = vmatprep.subr.mxu0 0.0
    %2817 = vmatpush2.msra.mxu0 0.0
    %2818 = vmatprep.subr.mxu0 0.0
    %2819 = vmatpush2.msra.mxu0 0.0
    %2820 = vmatprep.subr.mxu0 0.0
    %2821 = vmatpush2.msra.mxu0 0.0
    %2822 = vmatprep.subr.mxu0 0.0
    %2823 = vmatpush2.msra.mxu0 0.0
    %2824 = vmatprep.subr.mxu0 0.0
    %2825 = vmatpush2.msra.mxu0 0.0
    %2826 = vmatprep.subr.mxu0 0.0
    %2827 = vmatpush2.msra.mxu0 0.0
    %2828 = vmatprep.subr.mxu0 0.0
    %2829 = vmatpush2.msra.mxu0 0.0
    %2830 = vmatprep.subr.mxu0 0.0
    %2831 = vmatpush2.msra.mxu0 0.0
    %2832 = vmatprep.subr.mxu0 0.0
    %2833 = vmatpush2.msra.mxu0 0.0
    %2834 = vmatprep.subr.mxu0 0.0
    %2835 = vmatpush2.msra.mxu0 0.0
    %2836 = vmatprep.subr.mxu0 0.0
    %2837 = vmatpush2.msra.mxu0 0.0
    %2838 = vmatprep.subr.mxu0 0.0
    %2839 = vmatpush2.msra.mxu0 0.0
    %2840 = vmatprep.subr.mxu0 0.0
    %2841 = vmatpush2.msra.mxu0 0.0
    %2842 = vmatprep.subr.mxu0 0.0
    %2843 = vmatpush2.msra.mxu0 0.0
    %2844 = vmatprep.mubr.f32.mxu0 0.0
    %2845 = vmatmul.mubr.f32.gmra.mxu0 %v2778
    %v2846 = vpop.f32.mrf.mxu0
    %v2847 = vadd.f32 %v2316, %v2846
    %v2848 = vpop.f32.mrf.mxu0
    %v2849 = vadd.f32 %v2320, %v2848
    %2850 = vdwg.mxu0
    %v2852 = vrot.slane %v2847, 2
    %v2854 = vadd.f32 %v2302, %v2852
    %v2855 = vmul.f32 %v2854, 0.5
    %v2856 = vtanh.pop %v2855
    %v2857 = vadd.f32 %v2856, 1.0
    %v2858 = vmul.f32 %v2857, 0.5
    %2859 = vrot.lane.b32.xlu0 %v2852, 64
    %v2860 = vpop.permute.xlu0 %2859
    %v2862 = vmul.f32 %v2858, %v2860
    %2864 = vrot.lane.b32.xlu0 %v2862, 64
    %v2865 = vpop.permute.xlu0 %2864
    %v2867 = vadd.f32 %v2302, %v2865
    %v2868 = vtanh.pop %v2867
    %v2869 = vsub.f32 1.0, %v2858
    %2871 = vrot.lane.b32.xlu0 %v2868, 96
    %v2872 = vpop.permute.xlu0 %2871
    %v2874 = vmul.f32 %v2869, %v2872
    %v2875 = vrot.slane %v2773, 6
    %2876 = vrot.lane.b32.xlu0 %v2875, 32
    %v2877 = vpop.permute.xlu0 %2876
    %v2879 = vmul.f32 %v2858, %v2877
    %v2880 = vadd.f32 %v2874, %v2879
    %v2881 = vadd.f32 %v2308, %v2847
    %v2882 = vmul.f32 %v2881, 0.5
    %v2883 = vtanh.pop %v2882
    %v2884 = vadd.f32 %v2883, 1.0
    %v2885 = vmul.f32 %v2884, 0.5
    %v2886 = vadd.f32 %v2310, %v2849
    %v2887 = vmul.f32 %v2886, 0.5
    %v2888 = vtanh.pop %v2887
    %v2889 = vadd.f32 %v2888, 1.0
    %v2890 = vmul.f32 %v2889, 0.5
    %2892 = vrot.lane.b32.xlu0 %v2849, 64
    %v2893 = vpop.permute.xlu0 %2892
    %v2895 = vmul.f32 %v2885, %v2893
    %2897 = vrot.lane.b32.xlu0 %v2895, 64
    %v2898 = vpop.permute.xlu0 %2897
    %v2900 = vadd.f32 %v2310, %v2898
    %v2901 = vtanh.pop %v2900
    %v2902 = vsub.f32 1.0, %v2890
    %2904 = vrot.lane.b32.xlu0 %v2901, 96
    %v2905 = vpop.permute.xlu0 %2904
    %v2907 = vmul.f32 %v2902, %v2905
    %2908 = vrot.lane.b32.xlu0 %v2777, 96
    %v2909 = vpop.permute.xlu0 %2908
    %v2911 = vmul.f32 %v2890, %v2909
    %v2912 = vadd.f32 %v2907, %v2911
    %2914 = vrot.lane.b32.xlu0 %v2880, 96
    %v2915 = vpop.permute.xlu0 %2914
    %v2918 = vrot.slane %v2912, 2
    %2919 = vrot.lane.b32.xlu0 %v2918, 32
    %v2920 = vpop.permute.xlu0 %2919
    %v2922 = vsel %vm218, %v2915, %v2920
    %2923 = vst.msk [vmem:[#allocation2] sm:$0xc0] %vm2466, %v2915
    %2924 = vst.msk [vmem:[#allocation3 + $0x8] sm:$0x3] %vm2464, %v2912
    %v2926 = vrot.slane %v2922, 6
    %v2927 = vsel %vm1098, %v2926, 0
    %2929 = vmatprep.subr.mxu0 0.0
    %2930 = vmatpush1.msra.mxu0 0.0
    %2931 = vmatprep.subr.mxu0 0.0
    %2932 = vmatpush1.msra.mxu0 0.0
    %2933 = vmatprep.subr.mxu0 0.0
    %2934 = vmatpush1.msra.mxu0 0.0
    %2935 = vmatprep.subr.mxu0 0.0
    %2936 = vmatpush1.msra.mxu0 0.0
    %2937 = vmatprep.subr.mxu0 0.0
    %2938 = vmatpush1.msra.mxu0 0.0
    %2939 = vmatprep.subr.mxu0 0.0
    %2940 = vmatpush1.msra.mxu0 0.0
    %2941 = vmatprep.subr.mxu0 0.0
    %2942 = vmatpush1.msra.mxu0 0.0
    %2943 = vmatprep.subr.mxu0 0.0
    %2944 = vmatpush1.msra.mxu0 0.0
    %2945 = vmatprep.subr.mxu0 %v2209
    %2946 = vmatpush1.msra.mxu0 %v2208
    %2947 = vmatprep.subr.mxu0 %v2207
    %2948 = vmatpush1.msra.mxu0 %v2206
    %2949 = vmatprep.subr.mxu0 %v2205
    %2950 = vmatpush1.msra.mxu0 %v2204
    %2951 = vmatprep.subr.mxu0 %v2203
    %2952 = vmatpush1.msra.mxu0 %v2202
    %2953 = vmatprep.subr.mxu0 %v2201
    %2954 = vmatpush1.msra.mxu0 %v2200
    %2955 = vmatprep.subr.mxu0 %v2199
    %2956 = vmatpush1.msra.mxu0 %v2198
    %2957 = vmatprep.subr.mxu0 %v2197
    %2958 = vmatpush1.msra.mxu0 %v2196
    %2959 = vmatprep.subr.mxu0 %v2195
    %2960 = vmatpush1.msra.mxu0 %v2194
    %2961 = vmatprep.subr.mxu0 0.0
    %2962 = vmatpush2.msra.mxu0 0.0
    %2963 = vmatprep.subr.mxu0 0.0
    %2964 = vmatpush2.msra.mxu0 0.0
    %2965 = vmatprep.subr.mxu0 0.0
    %2966 = vmatpush2.msra.mxu0 0.0
    %2967 = vmatprep.subr.mxu0 0.0
    %2968 = vmatpush2.msra.mxu0 0.0
    %2969 = vmatprep.subr.mxu0 0.0
    %2970 = vmatpush2.msra.mxu0 0.0
    %2971 = vmatprep.subr.mxu0 0.0
    %2972 = vmatpush2.msra.mxu0 0.0
    %2973 = vmatprep.subr.mxu0 0.0
    %2974 = vmatpush2.msra.mxu0 0.0
    %2975 = vmatprep.subr.mxu0 0.0
    %2976 = vmatpush2.msra.mxu0 0.0
    %2977 = vmatprep.subr.mxu0 0.0
    %2978 = vmatpush2.msra.mxu0 0.0
    %2979 = vmatprep.subr.mxu0 0.0
    %2980 = vmatpush2.msra.mxu0 0.0
    %2981 = vmatprep.subr.mxu0 0.0
    %2982 = vmatpush2.msra.mxu0 0.0
    %2983 = vmatprep.subr.mxu0 0.0
    %2984 = vmatpush2.msra.mxu0 0.0
    %2985 = vmatprep.subr.mxu0 0.0
    %2986 = vmatpush2.msra.mxu0 0.0
    %2987 = vmatprep.subr.mxu0 0.0
    %2988 = vmatpush2.msra.mxu0 0.0
    %2989 = vmatprep.subr.mxu0 0.0
    %2990 = vmatpush2.msra.mxu0 0.0
    %2991 = vmatprep.subr.mxu0 0.0
    %2992 = vmatpush2.msra.mxu0 0.0
    %2993 = vmatprep.mubr.f32.mxu0 0.0
    %2994 = vmatmul.mubr.f32.gmra.mxu0 %v2927
    %v2995 = vpop.f32.mrf.mxu0
    %v2996 = vadd.f32 %v2316, %v2995
    %v2997 = vpop.f32.mrf.mxu0
    %v2998 = vadd.f32 %v2320, %v2997
    %2999 = vdwg.mxu0
    %v3000 = vadd.f32 %v2308, %v2996
    %v3001 = vmul.f32 %v3000, 0.5
    %v3002 = vtanh.pop %v3001
    %v3003 = vadd.f32 %v3002, 1.0
    %v3004 = vmul.f32 %v3003, 0.5
    %3006 = vrot.lane.b32.xlu0 %v2996, 64
    %v3007 = vpop.permute.xlu0 %3006
    %v3009 = vmul.f32 %v3004, %v3007
    %3011 = vrot.lane.b32.xlu0 %v3009, 64
    %v3012 = vpop.permute.xlu0 %3011
    %v3014 = vadd.f32 %v2308, %v3012
    %v3015 = vtanh.pop %v3014
    %v3016 = vsub.f32 1.0, %v3004
    %3018 = vrot.lane.b32.xlu0 %v3015, 96
    %v3019 = vpop.permute.xlu0 %3018
    %v3021 = vmul.f32 %v3016, %v3019
    %3022 = vrot.lane.b32.xlu0 %v2926, 32
    %v3023 = vpop.permute.xlu0 %3022
    %v3025 = vmul.f32 %v3004, %v3023
    %v3026 = vadd.f32 %v3021, %v3025
    %v3027 = vrot.slane %v2996, 2
    %v3029 = vadd.f32 %v2302, %v3027
    %v3030 = vmul.f32 %v3029, 0.5
    %v3031 = vtanh.pop %v3030
    %v3032 = vadd.f32 %v3031, 1.0
    %v3033 = vmul.f32 %v3032, 0.5
    %v3035 = vrot.slane %v2998, 2
    %v3037 = vadd.f32 %v2304, %v3035
    %v3038 = vmul.f32 %v3037, 0.5
    %v3039 = vtanh.pop %v3038
    %v3040 = vadd.f32 %v3039, 1.0
    %v3041 = vmul.f32 %v3040, 0.5
    %3042 = vrot.lane.b32.xlu0 %v3035, 64
    %v3043 = vpop.permute.xlu0 %3042
    %v3045 = vmul.f32 %v3033, %v3043
    %3047 = vrot.lane.b32.xlu0 %v3045, 64
    %v3048 = vpop.permute.xlu0 %3047
    %v3050 = vadd.f32 %v2304, %v3048
    %v3051 = vtanh.pop %v3050
    %v3052 = vsub.f32 1.0, %v3041
    %3054 = vrot.lane.b32.xlu0 %v3051, 96
    %v3055 = vpop.permute.xlu0 %3054
    %v3057 = vmul.f32 %v3052, %v3055
    %3058 = vrot.lane.b32.xlu0 %v2922, 96
    %v3059 = vpop.permute.xlu0 %3058
    %v3061 = vmul.f32 %v3041, %v3059
    %v3062 = vadd.f32 %v3057, %v3061
    %3064 = vrot.lane.b32.xlu0 %v3026, 96
    %v3065 = vpop.permute.xlu0 %3064
    %v3068 = vrot.slane %v3062, 6
    %3069 = vrot.lane.b32.xlu0 %v3068, 32
    %v3070 = vpop.permute.xlu0 %3069
    %v3072 = vsel %vm218, %v3065, %v3070
    %3073 = vst.msk [vmem:[#allocation2 + $0x8] sm:$0x3] %vm2464, %v3065
    %3074 = vst.msk [vmem:[#allocation3] sm:$0xc0] %vm2466, %v3062
    %v3076 = vsel %vm1098, %v3072, 0
    %3078 = vmatprep.subr.mxu0 0.0
    %3079 = vmatpush1.msra.mxu0 0.0
    %3080 = vmatprep.subr.mxu0 0.0
    %3081 = vmatpush1.msra.mxu0 0.0
    %3082 = vmatprep.subr.mxu0 0.0
    %3083 = vmatpush1.msra.mxu0 0.0
    %3084 = vmatprep.subr.mxu0 0.0
    %3085 = vmatpush1.msra.mxu0 0.0
    %3086 = vmatprep.subr.mxu0 0.0
    %3087 = vmatpush1.msra.mxu0 0.0
    %3088 = vmatprep.subr.mxu0 0.0
    %3089 = vmatpush1.msra.mxu0 0.0
    %3090 = vmatprep.subr.mxu0 0.0
    %3091 = vmatpush1.msra.mxu0 0.0
    %3092 = vmatprep.subr.mxu0 0.0
    %3093 = vmatpush1.msra.mxu0 0.0
    %3094 = vmatprep.subr.mxu0 %v2209
    %3095 = vmatpush1.msra.mxu0 %v2208
    %3096 = vmatprep.subr.mxu0 %v2207
    %3097 = vmatpush1.msra.mxu0 %v2206
    %3098 = vmatprep.subr.mxu0 %v2205
    %3099 = vmatpush1.msra.mxu0 %v2204
    %3100 = vmatprep.subr.mxu0 %v2203
    %3101 = vmatpush1.msra.mxu0 %v2202
    %3102 = vmatprep.subr.mxu0 %v2201
    %3103 = vmatpush1.msra.mxu0 %v2200
    %3104 = vmatprep.subr.mxu0 %v2199
    %3105 = vmatpush1.msra.mxu0 %v2198
    %3106 = vmatprep.subr.mxu0 %v2197
    %3107 = vmatpush1.msra.mxu0 %v2196
    %3108 = vmatprep.subr.mxu0 %v2195
    %3109 = vmatpush1.msra.mxu0 %v2194
    %3110 = vmatprep.subr.mxu0 0.0
    %3111 = vmatpush2.msra.mxu0 0.0
    %3112 = vmatprep.subr.mxu0 0.0
    %3113 = vmatpush2.msra.mxu0 0.0
    %3114 = vmatprep.subr.mxu0 0.0
    %3115 = vmatpush2.msra.mxu0 0.0
    %3116 = vmatprep.subr.mxu0 0.0
    %3117 = vmatpush2.msra.mxu0 0.0
    %3118 = vmatprep.subr.mxu0 0.0
    %3119 = vmatpush2.msra.mxu0 0.0
    %3120 = vmatprep.subr.mxu0 0.0
    %3121 = vmatpush2.msra.mxu0 0.0
    %3122 = vmatprep.subr.mxu0 0.0
    %3123 = vmatpush2.msra.mxu0 0.0
    %3124 = vmatprep.subr.mxu0 0.0
    %3125 = vmatpush2.msra.mxu0 0.0
    %3126 = vmatprep.subr.mxu0 0.0
    %3127 = vmatpush2.msra.mxu0 0.0
    %3128 = vmatprep.subr.mxu0 0.0
    %3129 = vmatpush2.msra.mxu0 0.0
    %3130 = vmatprep.subr.mxu0 0.0
    %3131 = vmatpush2.msra.mxu0 0.0
    %3132 = vmatprep.subr.mxu0 0.0
    %3133 = vmatpush2.msra.mxu0 0.0
    %3134 = vmatprep.subr.mxu0 0.0
    %3135 = vmatpush2.msra.mxu0 0.0
    %3136 = vmatprep.subr.mxu0 0.0
    %3137 = vmatpush2.msra.mxu0 0.0
    %3138 = vmatprep.subr.mxu0 0.0
    %3139 = vmatpush2.msra.mxu0 0.0
    %3140 = vmatprep.subr.mxu0 0.0
    %3141 = vmatpush2.msra.mxu0 0.0
    %3142 = vmatprep.mubr.f32.mxu0 0.0
    %3143 = vmatmul.mubr.f32.gmra.mxu0 %v3076
    %v3144 = vpop.f32.mrf.mxu0
    %v3145 = vadd.f32 %v2316, %v3144
    %v3146 = vpop.f32.mrf.mxu0
    %v3147 = vadd.f32 %v2320, %v3146
    %3148 = vdwg.mxu0
    %v3150 = vrot.slane %v3145, 6
    %v3152 = vadd.f32 %v2308, %v3150
    %v3153 = vmul.f32 %v3152, 0.5
    %v3154 = vtanh.pop %v3153
    %v3155 = vadd.f32 %v3154, 1.0
    %v3156 = vmul.f32 %v3155, 0.5
    %3157 = vrot.lane.b32.xlu0 %v3150, 64
    %v3158 = vpop.permute.xlu0 %3157
    %v3160 = vmul.f32 %v3156, %v3158
    %3162 = vrot.lane.b32.xlu0 %v3160, 64
    %v3163 = vpop.permute.xlu0 %3162
    %v3165 = vadd.f32 %v2308, %v3163
    %v3166 = vtanh.pop %v3165
    %v3167 = vsub.f32 1.0, %v3156
    %3169 = vrot.lane.b32.xlu0 %v3166, 96
    %v3170 = vpop.permute.xlu0 %3169
    %v3172 = vmul.f32 %v3167, %v3170
    %v3173 = vrot.slane %v3072, 6
    %3174 = vrot.lane.b32.xlu0 %v3173, 32
    %v3175 = vpop.permute.xlu0 %3174
    %v3177 = vmul.f32 %v3156, %v3175
    %v3178 = vadd.f32 %v3172, %v3177
    %v3179 = vrot.slane %v3145, 4
    %v3181 = vadd.f32 %v2302, %v3179
    %v3182 = vmul.f32 %v3181, 0.5
    %v3183 = vtanh.pop %v3182
    %v3184 = vadd.f32 %v3183, 1.0
    %v3185 = vmul.f32 %v3184, 0.5
    %v3187 = vrot.slane %v3147, 4
    %v3189 = vadd.f32 %v2304, %v3187
    %v3190 = vmul.f32 %v3189, 0.5
    %v3191 = vtanh.pop %v3190
    %v3192 = vadd.f32 %v3191, 1.0
    %v3193 = vmul.f32 %v3192, 0.5
    %3194 = vrot.lane.b32.xlu0 %v3187, 64
    %v3195 = vpop.permute.xlu0 %3194
    %v3197 = vmul.f32 %v3185, %v3195
    %3199 = vrot.lane.b32.xlu0 %v3197, 64
    %v3200 = vpop.permute.xlu0 %3199
    %v3202 = vadd.f32 %v2304, %v3200
    %v3203 = vtanh.pop %v3202
    %v3204 = vsub.f32 1.0, %v3193
    %3206 = vrot.lane.b32.xlu0 %v3203, 96
    %v3207 = vpop.permute.xlu0 %3206
    %v3209 = vmul.f32 %v3204, %v3207
    %v3210 = vrot.slane %v3072, 4
    %3211 = vrot.lane.b32.xlu0 %v3210, 96
    %v3212 = vpop.permute.xlu0 %3211
    %v3214 = vmul.f32 %v3193, %v3212
    %v3215 = vadd.f32 %v3209, %v3214
    %3217 = vrot.lane.b32.xlu0 %v3178, 96
    %v3218 = vpop.permute.xlu0 %3217
    %v3221 = vrot.slane %v3215, 2
    %3222 = vrot.lane.b32.xlu0 %v3221, 32
    %v3223 = vpop.permute.xlu0 %3222
    %v3225 = vsel %vm218, %v3218, %v3223
    %3226 = vst.msk [vmem:[#allocation2 + $0x8] sm:$0xc] %vm2619, %v3218
    %3227 = vst.msk [vmem:[#allocation3] sm:$0x30] %vm2621, %v3215
    %v3229 = vrot.slane %v3225, 2
    %v3230 = vsel %vm1098, %v3229, 0
    %3232 = vmatprep.subr.mxu0 0.0
    %3233 = vmatpush1.msra.mxu0 0.0
    %3234 = vmatprep.subr.mxu0 0.0
    %3235 = vmatpush1.msra.mxu0 0.0
    %3236 = vmatprep.subr.mxu0 0.0
    %3237 = vmatpush1.msra.mxu0 0.0
    %3238 = vmatprep.subr.mxu0 0.0
    %3239 = vmatpush1.msra.mxu0 0.0
    %3240 = vmatprep.subr.mxu0 0.0
    %3241 = vmatpush1.msra.mxu0 0.0
    %3242 = vmatprep.subr.mxu0 0.0
    %3243 = vmatpush1.msra.mxu0 0.0
    %3244 = vmatprep.subr.mxu0 0.0
    %3245 = vmatpush1.msra.mxu0 0.0
    %3246 = vmatprep.subr.mxu0 0.0
    %3247 = vmatpush1.msra.mxu0 0.0
    %3248 = vmatprep.subr.mxu0 %v2209
    %3249 = vmatpush1.msra.mxu0 %v2208
    %3250 = vmatprep.subr.mxu0 %v2207
    %3251 = vmatpush1.msra.mxu0 %v2206
    %3252 = vmatprep.subr.mxu0 %v2205
    %3253 = vmatpush1.msra.mxu0 %v2204
    %3254 = vmatprep.subr.mxu0 %v2203
    %3255 = vmatpush1.msra.mxu0 %v2202
    %3256 = vmatprep.subr.mxu0 %v2201
    %3257 = vmatpush1.msra.mxu0 %v2200
    %3258 = vmatprep.subr.mxu0 %v2199
    %3259 = vmatpush1.msra.mxu0 %v2198
    %3260 = vmatprep.subr.mxu0 %v2197
    %3261 = vmatpush1.msra.mxu0 %v2196
    %3262 = vmatprep.subr.mxu0 %v2195
    %3263 = vmatpush1.msra.mxu0 %v2194
    %3264 = vmatprep.subr.mxu0 0.0
    %3265 = vmatpush2.msra.mxu0 0.0
    %3266 = vmatprep.subr.mxu0 0.0
    %3267 = vmatpush2.msra.mxu0 0.0
    %3268 = vmatprep.subr.mxu0 0.0
    %3269 = vmatpush2.msra.mxu0 0.0
    %3270 = vmatprep.subr.mxu0 0.0
    %3271 = vmatpush2.msra.mxu0 0.0
    %3272 = vmatprep.subr.mxu0 0.0
    %3273 = vmatpush2.msra.mxu0 0.0
    %3274 = vmatprep.subr.mxu0 0.0
    %3275 = vmatpush2.msra.mxu0 0.0
    %3276 = vmatprep.subr.mxu0 0.0
    %3277 = vmatpush2.msra.mxu0 0.0
    %3278 = vmatprep.subr.mxu0 0.0
    %3279 = vmatpush2.msra.mxu0 0.0
    %3280 = vmatprep.subr.mxu0 0.0
    %3281 = vmatpush2.msra.mxu0 0.0
    %3282 = vmatprep.subr.mxu0 0.0
    %3283 = vmatpush2.msra.mxu0 0.0
    %3284 = vmatprep.subr.mxu0 0.0
    %3285 = vmatpush2.msra.mxu0 0.0
    %3286 = vmatprep.subr.mxu0 0.0
    %3287 = vmatpush2.msra.mxu0 0.0
    %3288 = vmatprep.subr.mxu0 0.0
    %3289 = vmatpush2.msra.mxu0 0.0
    %3290 = vmatprep.subr.mxu0 0.0
    %3291 = vmatpush2.msra.mxu0 0.0
    %3292 = vmatprep.subr.mxu0 0.0
    %3293 = vmatpush2.msra.mxu0 0.0
    %3294 = vmatprep.subr.mxu0 0.0
    %3295 = vmatpush2.msra.mxu0 0.0
    %3296 = vmatprep.mubr.f32.mxu0 0.0
    %3297 = vmatmul.mubr.f32.gmra.mxu0 %v3230
    %v3298 = vpop.f32.mrf.mxu0
    %v3299 = vadd.f32 %v2316, %v3298
    %v3300 = vpop.f32.mrf.mxu0
    %v3301 = vadd.f32 %v2320, %v3300
    %3302 = vdwg.mxu0
    %v3304 = vrot.slane %v3299, 4
    %v3306 = vadd.f32 %v2308, %v3304
    %v3307 = vmul.f32 %v3306, 0.5
    %v3308 = vtanh.pop %v3307
    %v3309 = vadd.f32 %v3308, 1.0
    %v3310 = vmul.f32 %v3309, 0.5
    %3311 = vrot.lane.b32.xlu0 %v3304, 64
    %v3312 = vpop.permute.xlu0 %3311
    %v3314 = vmul.f32 %v3310, %v3312
    %3316 = vrot.lane.b32.xlu0 %v3314, 64
    %v3317 = vpop.permute.xlu0 %3316
    %v3319 = vadd.f32 %v2308, %v3317
    %v3320 = vtanh.pop %v3319
    %v3321 = vsub.f32 1.0, %v3310
    %3323 = vrot.lane.b32.xlu0 %v3320, 96
    %v3324 = vpop.permute.xlu0 %3323
    %v3326 = vmul.f32 %v3321, %v3324
    %v3327 = vrot.slane %v3225, 6
    %3328 = vrot.lane.b32.xlu0 %v3327, 32
    %v3329 = vpop.permute.xlu0 %3328
    %v3331 = vmul.f32 %v3310, %v3329
    %v3332 = vadd.f32 %v3326, %v3331
    %v3333 = vrot.slane %v3299, 6
    %v3335 = vadd.f32 %v2302, %v3333
    %v3336 = vmul.f32 %v3335, 0.5
    %v3337 = vtanh.pop %v3336
    %v3338 = vadd.f32 %v3337, 1.0
    %v3339 = vmul.f32 %v3338, 0.5
    %v3341 = vrot.slane %v3301, 6
    %v3343 = vadd.f32 %v2304, %v3341
    %v3344 = vmul.f32 %v3343, 0.5
    %v3345 = vtanh.pop %v3344
    %v3346 = vadd.f32 %v3345, 1.0
    %v3347 = vmul.f32 %v3346, 0.5
    %3348 = vrot.lane.b32.xlu0 %v3341, 64
    %v3349 = vpop.permute.xlu0 %3348
    %v3351 = vmul.f32 %v3339, %v3349
    %3353 = vrot.lane.b32.xlu0 %v3351, 64
    %v3354 = vpop.permute.xlu0 %3353
    %v3356 = vadd.f32 %v2304, %v3354
    %v3357 = vtanh.pop %v3356
    %v3358 = vsub.f32 1.0, %v3347
    %3360 = vrot.lane.b32.xlu0 %v3357, 96
    %v3361 = vpop.permute.xlu0 %3360
    %v3363 = vmul.f32 %v3358, %v3361
    %3364 = vrot.lane.b32.xlu0 %v3225, 96
    %v3365 = vpop.permute.xlu0 %3364
    %v3367 = vmul.f32 %v3347, %v3365
    %v3368 = vadd.f32 %v3363, %v3367
    %3370 = vrot.lane.b32.xlu0 %v3332, 96
    %v3371 = vpop.permute.xlu0 %3370
    %v3374 = vrot.slane %v3368, 6
    %3375 = vrot.lane.b32.xlu0 %v3374, 32
    %v3376 = vpop.permute.xlu0 %3375
    %v3378 = vsel %vm218, %v3371, %v3376
    %3379 = vst.msk [vmem:[#allocation2 + $0x8] sm:$0x30] %vm2621, %v3371
    %3380 = vst.msk [vmem:[#allocation3] sm:$0xc] %vm2619, %v3368
    %v3382 = vrot.slane %v3378, 4
    %v3383 = vsel %vm1098, %v3382, 0
    %3385 = vmatprep.subr.mxu0 0.0
    %3386 = vmatpush1.msra.mxu0 0.0
    %3387 = vmatprep.subr.mxu0 0.0
    %3388 = vmatpush1.msra.mxu0 0.0
    %3389 = vmatprep.subr.mxu0 0.0
    %3390 = vmatpush1.msra.mxu0 0.0
    %3391 = vmatprep.subr.mxu0 0.0
    %3392 = vmatpush1.msra.mxu0 0.0
    %3393 = vmatprep.subr.mxu0 0.0
    %3394 = vmatpush1.msra.mxu0 0.0
    %3395 = vmatprep.subr.mxu0 0.0
    %3396 = vmatpush1.msra.mxu0 0.0
    %3397 = vmatprep.subr.mxu0 0.0
    %3398 = vmatpush1.msra.mxu0 0.0
    %3399 = vmatprep.subr.mxu0 0.0
    %3400 = vmatpush1.msra.mxu0 0.0
    %3401 = vmatprep.subr.mxu0 %v2209
    %3402 = vmatpush1.msra.mxu0 %v2208
    %3403 = vmatprep.subr.mxu0 %v2207
    %3404 = vmatpush1.msra.mxu0 %v2206
    %3405 = vmatprep.subr.mxu0 %v2205
    %3406 = vmatpush1.msra.mxu0 %v2204
    %3407 = vmatprep.subr.mxu0 %v2203
    %3408 = vmatpush1.msra.mxu0 %v2202
    %3409 = vmatprep.subr.mxu0 %v2201
    %3410 = vmatpush1.msra.mxu0 %v2200
    %3411 = vmatprep.subr.mxu0 %v2199
    %3412 = vmatpush1.msra.mxu0 %v2198
    %3413 = vmatprep.subr.mxu0 %v2197
    %3414 = vmatpush1.msra.mxu0 %v2196
    %3415 = vmatprep.subr.mxu0 %v2195
    %3416 = vmatpush1.msra.mxu0 %v2194
    %3417 = vmatprep.subr.mxu0 0.0
    %3418 = vmatpush2.msra.mxu0 0.0
    %3419 = vmatprep.subr.mxu0 0.0
    %3420 = vmatpush2.msra.mxu0 0.0
    %3421 = vmatprep.subr.mxu0 0.0
    %3422 = vmatpush2.msra.mxu0 0.0
    %3423 = vmatprep.subr.mxu0 0.0
    %3424 = vmatpush2.msra.mxu0 0.0
    %3425 = vmatprep.subr.mxu0 0.0
    %3426 = vmatpush2.msra.mxu0 0.0
    %3427 = vmatprep.subr.mxu0 0.0
    %3428 = vmatpush2.msra.mxu0 0.0
    %3429 = vmatprep.subr.mxu0 0.0
    %3430 = vmatpush2.msra.mxu0 0.0
    %3431 = vmatprep.subr.mxu0 0.0
    %3432 = vmatpush2.msra.mxu0 0.0
    %3433 = vmatprep.subr.mxu0 0.0
    %3434 = vmatpush2.msra.mxu0 0.0
    %3435 = vmatprep.subr.mxu0 0.0
    %3436 = vmatpush2.msra.mxu0 0.0
    %3437 = vmatprep.subr.mxu0 0.0
    %3438 = vmatpush2.msra.mxu0 0.0
    %3439 = vmatprep.subr.mxu0 0.0
    %3440 = vmatpush2.msra.mxu0 0.0
    %3441 = vmatprep.subr.mxu0 0.0
    %3442 = vmatpush2.msra.mxu0 0.0
    %3443 = vmatprep.subr.mxu0 0.0
    %3444 = vmatpush2.msra.mxu0 0.0
    %3445 = vmatprep.subr.mxu0 0.0
    %3446 = vmatpush2.msra.mxu0 0.0
    %3447 = vmatprep.subr.mxu0 0.0
    %3448 = vmatpush2.msra.mxu0 0.0
    %3449 = vmatprep.mubr.f32.mxu0 0.0
    %3450 = vmatmul.mubr.f32.gmra.mxu0 %v3383
    %v3451 = vpop.f32.mrf.mxu0
    %v3452 = vadd.f32 %v2316, %v3451
    %v3453 = vpop.f32.mrf.mxu0
    %v3454 = vadd.f32 %v2320, %v3453
    %3455 = vdwg.mxu0
    %v3457 = vrot.slane %v3452, 2
    %v3459 = vadd.f32 %v2308, %v3457
    %v3460 = vmul.f32 %v3459, 0.5
    %v3461 = vtanh.pop %v3460
    %v3462 = vadd.f32 %v3461, 1.0
    %v3463 = vmul.f32 %v3462, 0.5
    %3464 = vrot.lane.b32.xlu0 %v3457, 64
    %v3465 = vpop.permute.xlu0 %3464
    %v3467 = vmul.f32 %v3463, %v3465
    %3469 = vrot.lane.b32.xlu0 %v3467, 64
    %v3470 = vpop.permute.xlu0 %3469
    %v3472 = vadd.f32 %v2308, %v3470
    %v3473 = vtanh.pop %v3472
    %v3474 = vsub.f32 1.0, %v3463
    %3476 = vrot.lane.b32.xlu0 %v3473, 96
    %v3477 = vpop.permute.xlu0 %3476
    %v3479 = vmul.f32 %v3474, %v3477
    %v3480 = vrot.slane %v3378, 6
    %3481 = vrot.lane.b32.xlu0 %v3480, 32
    %v3482 = vpop.permute.xlu0 %3481
    %v3484 = vmul.f32 %v3463, %v3482
    %v3485 = vadd.f32 %v3479, %v3484
    %v3486 = vadd.f32 %v2302, %v3452
    %v3487 = vmul.f32 %v3486, 0.5
    %v3488 = vtanh.pop %v3487
    %v3489 = vadd.f32 %v3488, 1.0
    %v3490 = vmul.f32 %v3489, 0.5
    %v3491 = vadd.f32 %v2304, %v3454
    %v3492 = vmul.f32 %v3491, 0.5
    %v3493 = vtanh.pop %v3492
    %v3494 = vadd.f32 %v3493, 1.0
    %v3495 = vmul.f32 %v3494, 0.5
    %3497 = vrot.lane.b32.xlu0 %v3454, 64
    %v3498 = vpop.permute.xlu0 %3497
    %v3500 = vmul.f32 %v3490, %v3498
    %3502 = vrot.lane.b32.xlu0 %v3500, 64
    %v3503 = vpop.permute.xlu0 %3502
    %v3505 = vadd.f32 %v2304, %v3503
    %v3506 = vtanh.pop %v3505
    %v3507 = vsub.f32 1.0, %v3495
    %3509 = vrot.lane.b32.xlu0 %v3506, 96
    %v3510 = vpop.permute.xlu0 %3509
    %v3512 = vmul.f32 %v3507, %v3510
    %3513 = vrot.lane.b32.xlu0 %v3382, 96
    %v3514 = vpop.permute.xlu0 %3513
    %v3516 = vmul.f32 %v3495, %v3514
    %v3517 = vadd.f32 %v3512, %v3516
    %3519 = vrot.lane.b32.xlu0 %v3485, 96
    %v3520 = vpop.permute.xlu0 %3519
    %3522 = vst.msk [vmem:[#allocation2 + $0x8] sm:$0xc0] %vm2466, %v3520
    %3523 = vst.msk [vmem:[#allocation3] sm:$0x3] %vm2464, %v3517
    %s3524 = scalar_lea.vmem %s16, 2
    %v3525 = vld [vmem:[%s3524] sm:$0x3]
    %s3526 = scalar_lea.vmem %s17, 2
    %v3527 = vld [vmem:[%s3526] sm:$0x3]
    %s3528 = scalar_lea.vmem [#allocation19], 128
    %v3529 = vld [vmem:[%s3528] sm:$0xff]
    %v3530 = vld [vmem:[%s3528 + $0x8] sm:$0xff]
    %v3531 = vld [vmem:[%s3528 + $0x10] sm:$0xff]
    %v3532 = vld [vmem:[%s3528 + $0x18] sm:$0xff]
    %v3533 = vld [vmem:[%s3528 + $0x20] sm:$0xff]
    %v3534 = vld [vmem:[%s3528 + $0x28] sm:$0xff]
    %v3535 = vld [vmem:[%s3528 + $0x30] sm:$0xff]
    %v3536 = vld [vmem:[%s3528 + $0x38] sm:$0xff]
    %v3537 = vld [vmem:[%s3528 + $0x40] sm:$0xff]
    %v3538 = vld [vmem:[%s3528 + $0x48] sm:$0xff]
    %v3539 = vld [vmem:[%s3528 + $0x50] sm:$0xff]
    %v3540 = vld [vmem:[%s3528 + $0x58] sm:$0xff]
    %v3541 = vld [vmem:[%s3528 + $0x60] sm:$0xff]
    %v3542 = vld [vmem:[%s3528 + $0x68] sm:$0xff]
    %v3543 = vld [vmem:[%s3528 + $0x70] sm:$0xff]
    %v3544 = vld [vmem:[%s3528 + $0x78] sm:$0xff]
    %v3545 = vld [vmem:[#allocation18] sm:$0xff]
    %v3546 = vld [vmem:[#allocation18 + $0x8] sm:$0xff]
    %v3547 = vld [vmem:[#allocation18 + $0x10] sm:$0xff]
    %v3548 = vld [vmem:[#allocation18 + $0x18] sm:$0xff]
    %v3549 = vld [vmem:[#allocation18 + $0x20] sm:$0xff]
    %v3550 = vld [vmem:[#allocation18 + $0x28] sm:$0xff]
    %v3551 = vld [vmem:[#allocation18 + $0x30] sm:$0xff]
    %v3552 = vld [vmem:[#allocation18 + $0x38] sm:$0xff]
    %v3553 = vld [vmem:[#allocation18 + $0x40] sm:$0xff]
    %v3554 = vld [vmem:[#allocation18 + $0x48] sm:$0xff]
    %v3555 = vld [vmem:[#allocation18 + $0x50] sm:$0xff]
    %v3556 = vld [vmem:[#allocation18 + $0x58] sm:$0xff]
    %v3557 = vld [vmem:[#allocation18 + $0x60] sm:$0xff]
    %v3558 = vld [vmem:[#allocation18 + $0x68] sm:$0xff]
    %v3559 = vld [vmem:[#allocation18 + $0x70] sm:$0xff]
    %v3560 = vld [vmem:[#allocation18 + $0x78] sm:$0xff]
    %v3561 = vld [vmem:[#allocation2] sm:$0xff]
    %v3562 = vld [vmem:[#allocation2 + $0x8] sm:$0xff]
    %v3563 = vld [vmem:[#allocation3] sm:$0xff]
    %v3564 = vld [vmem:[#allocation3 + $0x8] sm:$0xff]
    %v3566 = vsel %vm218, %v3563, 0
    %v3569 = vsel %vm218, %v3564, 0
    %3571 = vmatprep.subr.mxu0 0.0
    %3572 = vmatpush1.msra.mxu0 0.0
    %3573 = vmatprep.subr.mxu0 0.0
    %3574 = vmatpush1.msra.mxu0 0.0
    %3575 = vmatprep.subr.mxu0 0.0
    %3576 = vmatpush1.msra.mxu0 0.0
    %3577 = vmatprep.subr.mxu0 0.0
    %3578 = vmatpush1.msra.mxu0 0.0
    %3579 = vmatprep.subr.mxu0 0.0
    %3580 = vmatpush1.msra.mxu0 0.0
    %3581 = vmatprep.subr.mxu0 0.0
    %3582 = vmatpush1.msra.mxu0 0.0
    %3583 = vmatprep.subr.mxu0 0.0
    %3584 = vmatpush1.msra.mxu0 0.0
    %3585 = vmatprep.subr.mxu0 0.0
    %3586 = vmatpush1.msra.mxu0 0.0
    %3587 = vmatprep.subr.mxu0 0.0
    %3588 = vmatpush1.msra.mxu0 0.0
    %3589 = vmatprep.subr.mxu0 0.0
    %3590 = vmatpush1.msra.mxu0 0.0
    %3591 = vmatprep.subr.mxu0 0.0
    %3592 = vmatpush1.msra.mxu0 0.0
    %3593 = vmatprep.subr.mxu0 0.0
    %3594 = vmatpush1.msra.mxu0 0.0
    %3595 = vmatprep.subr.mxu0 %v3560
    %3596 = vmatpush1.msra.mxu0 %v3559
    %3597 = vmatprep.subr.mxu0 %v3558
    %3598 = vmatpush1.msra.mxu0 %v3557
    %3599 = vmatprep.subr.mxu0 %v3556
    %3600 = vmatpush1.msra.mxu0 %v3555
    %3601 = vmatprep.subr.mxu0 %v3554
    %3602 = vmatpush1.msra.mxu0 %v3553
    %3603 = vmatprep.subr.mxu0 0.0
    %3604 = vmatpush2.msra.mxu0 0.0
    %3605 = vmatprep.subr.mxu0 0.0
    %3606 = vmatpush2.msra.mxu0 0.0
    %3607 = vmatprep.subr.mxu0 0.0
    %3608 = vmatpush2.msra.mxu0 0.0
    %3609 = vmatprep.subr.mxu0 0.0
    %3610 = vmatpush2.msra.mxu0 0.0
    %3611 = vmatprep.subr.mxu0 0.0
    %3612 = vmatpush2.msra.mxu0 0.0
    %3613 = vmatprep.subr.mxu0 0.0
    %3614 = vmatpush2.msra.mxu0 0.0
    %3615 = vmatprep.subr.mxu0 0.0
    %3616 = vmatpush2.msra.mxu0 0.0
    %3617 = vmatprep.subr.mxu0 0.0
    %3618 = vmatpush2.msra.mxu0 0.0
    %3619 = vmatprep.subr.mxu0 0.0
    %3620 = vmatpush2.msra.mxu0 0.0
    %3621 = vmatprep.subr.mxu0 0.0
    %3622 = vmatpush2.msra.mxu0 0.0
    %3623 = vmatprep.subr.mxu0 0.0
    %3624 = vmatpush2.msra.mxu0 0.0
    %3625 = vmatprep.subr.mxu0 0.0
    %3626 = vmatpush2.msra.mxu0 0.0
    %3627 = vmatprep.subr.mxu0 0.0
    %3628 = vmatpush2.msra.mxu0 0.0
    %3629 = vmatprep.subr.mxu0 0.0
    %3630 = vmatpush2.msra.mxu0 0.0
    %3631 = vmatprep.subr.mxu0 0.0
    %3632 = vmatpush2.msra.mxu0 0.0
    %3633 = vmatprep.subr.mxu0 0.0
    %3634 = vmatpush2.msra.mxu0 0.0
    %3635 = vmatprep.mubr.f32.mxu0 0.0
    %3636 = vmatmul.mubr.f32.gmra.mxu0 %v3566
    %v3637 = vpop.f32.mrf.mxu0
    %v3638 = vadd.f32 0.0, %v3637
    %v3639 = vpop.f32.mrf.mxu0
    %v3640 = vadd.f32 0.0, %v3639
    %3641 = vmatprep.mubr.f32.mxu0 0.0
    %3642 = vmatmul.mubr.f32.gmra.mxu0 %v3569
    %v3643 = vpop.f32.mrf.mxu0
    %v3644 = vadd.f32 0.0, %v3643
    %v3645 = vpop.f32.mrf.mxu0
    %v3646 = vadd.f32 0.0, %v3645
    %3647 = vdwg.mxu0
    %v3649 = vsel %vm218, %v3561, 0
    %v3652 = vsel %vm218, %v3562, 0
    %3654 = vmatprep.subr.mxu0 0.0
    %3655 = vmatpush1.msra.mxu0 0.0
    %3656 = vmatprep.subr.mxu0 0.0
    %3657 = vmatpush1.msra.mxu0 0.0
    %3658 = vmatprep.subr.mxu0 0.0
    %3659 = vmatpush1.msra.mxu0 0.0
    %3660 = vmatprep.subr.mxu0 0.0
    %3661 = vmatpush1.msra.mxu0 0.0
    %3662 = vmatprep.subr.mxu0 0.0
    %3663 = vmatpush1.msra.mxu0 0.0
    %3664 = vmatprep.subr.mxu0 0.0
    %3665 = vmatpush1.msra.mxu0 0.0
    %3666 = vmatprep.subr.mxu0 0.0
    %3667 = vmatpush1.msra.mxu0 0.0
    %3668 = vmatprep.subr.mxu0 0.0
    %3669 = vmatpush1.msra.mxu0 0.0
    %3670 = vmatprep.subr.mxu0 0.0
    %3671 = vmatpush1.msra.mxu0 0.0
    %3672 = vmatprep.subr.mxu0 0.0
    %3673 = vmatpush1.msra.mxu0 0.0
    %3674 = vmatprep.subr.mxu0 0.0
    %3675 = vmatpush1.msra.mxu0 0.0
    %3676 = vmatprep.subr.mxu0 0.0
    %3677 = vmatpush1.msra.mxu0 0.0
    %3678 = vmatprep.subr.mxu0 %v3552
    %3679 = vmatpush1.msra.mxu0 %v3551
    %3680 = vmatprep.subr.mxu0 %v3550
    %3681 = vmatpush1.msra.mxu0 %v3549
    %3682 = vmatprep.subr.mxu0 %v3548
    %3683 = vmatpush1.msra.mxu0 %v3547
    %3684 = vmatprep.subr.mxu0 %v3546
    %3685 = vmatpush1.msra.mxu0 %v3545
    %3686 = vmatprep.subr.mxu0 0.0
    %3687 = vmatpush2.msra.mxu0 0.0
    %3688 = vmatprep.subr.mxu0 0.0
    %3689 = vmatpush2.msra.mxu0 0.0
    %3690 = vmatprep.subr.mxu0 0.0
    %3691 = vmatpush2.msra.mxu0 0.0
    %3692 = vmatprep.subr.mxu0 0.0
    %3693 = vmatpush2.msra.mxu0 0.0
    %3694 = vmatprep.subr.mxu0 0.0
    %3695 = vmatpush2.msra.mxu0 0.0
    %3696 = vmatprep.subr.mxu0 0.0
    %3697 = vmatpush2.msra.mxu0 0.0
    %3698 = vmatprep.subr.mxu0 0.0
    %3699 = vmatpush2.msra.mxu0 0.0
    %3700 = vmatprep.subr.mxu0 0.0
    %3701 = vmatpush2.msra.mxu0 0.0
    %3702 = vmatprep.subr.mxu0 0.0
    %3703 = vmatpush2.msra.mxu0 0.0
    %3704 = vmatprep.subr.mxu0 0.0
    %3705 = vmatpush2.msra.mxu0 0.0
    %3706 = vmatprep.subr.mxu0 0.0
    %3707 = vmatpush2.msra.mxu0 0.0
    %3708 = vmatprep.subr.mxu0 0.0
    %3709 = vmatpush2.msra.mxu0 0.0
    %3710 = vmatprep.subr.mxu0 0.0
    %3711 = vmatpush2.msra.mxu0 0.0
    %3712 = vmatprep.subr.mxu0 0.0
    %3713 = vmatpush2.msra.mxu0 0.0
    %3714 = vmatprep.subr.mxu0 0.0
    %3715 = vmatpush2.msra.mxu0 0.0
    %3716 = vmatprep.subr.mxu0 0.0
    %3717 = vmatpush2.msra.mxu0 0.0
    %3718 = vmatprep.mubr.f32.mxu0 0.0
    %3719 = vmatmul.mubr.f32.gmra.mxu0 %v3649
    %v3720 = vpop.f32.mrf.mxu0
    %v3721 = vadd.f32 %v3638, %v3720
    %v3722 = vpop.f32.mrf.mxu0
    %v3723 = vadd.f32 %v3640, %v3722
    %3724 = vmatprep.mubr.f32.mxu0 0.0
    %3725 = vmatmul.mubr.f32.gmra.mxu0 %v3652
    %v3726 = vpop.f32.mrf.mxu0
    %v3727 = vadd.f32 %v3644, %v3726
    %v3728 = vpop.f32.mrf.mxu0
    %v3729 = vadd.f32 %v3646, %v3728
    %3730 = vdwg.mxu0
    %v3732 = vlaneseq
    %v3733 = vshrl.u32 %v3732, 7
    %v3734 = vsub.s32 0, %v3733
    %v3735 = vrot.slane %v3525, %v3734
    %v3736 = vlaneseq
    %v3737 = vshrl.u32 %v3736, 7
    %v3738 = vsub.s32 1, %v3737
    %v3739 = vrot.slane %v3525, %v3738
    %v3742 = vadd.f32 %v3721, %v3735
    %v3743 = vadd.f32 %v3723, %v3739
    %v3744 = vadd.f32 %v3727, %v3735
    %v3745 = vadd.f32 %v3729, %v3739
    %v3747 = vlaneseq
    %v3748 = vshrl.u32 %v3747, 7
    %v3749 = vsub.s32 0, %v3748
    %v3750 = vrot.slane %v3527, %v3749
    %v3751 = vlaneseq
    %v3752 = vshrl.u32 %v3751, 7
    %v3753 = vsub.s32 1, %v3752
    %v3754 = vrot.slane %v3527, %v3753
    %3757 = vmatprep.subr.mxu0 0.0
    %3758 = vmatpush1.msra.mxu0 0.0
    %3759 = vmatprep.subr.mxu0 0.0
    %3760 = vmatpush1.msra.mxu0 0.0
    %3761 = vmatprep.subr.mxu0 0.0
    %3762 = vmatpush1.msra.mxu0 0.0
    %3763 = vmatprep.subr.mxu0 0.0
    %3764 = vmatpush1.msra.mxu0 0.0
    %3765 = vmatprep.subr.mxu0 0.0
    %3766 = vmatpush1.msra.mxu0 0.0
    %3767 = vmatprep.subr.mxu0 0.0
    %3768 = vmatpush1.msra.mxu0 0.0
    %3769 = vmatprep.subr.mxu0 0.0
    %3770 = vmatpush1.msra.mxu0 0.0
    %3771 = vmatprep.subr.mxu0 0.0
    %3772 = vmatpush1.msra.mxu0 0.0
    %3773 = vmatprep.subr.mxu0 %v3544
    %3774 = vmatpush1.msra.mxu0 %v3543
    %3775 = vmatprep.subr.mxu0 %v3542
    %3776 = vmatpush1.msra.mxu0 %v3541
    %3777 = vmatprep.subr.mxu0 %v3540
    %3778 = vmatpush1.msra.mxu0 %v3539
    %3779 = vmatprep.subr.mxu0 %v3538
    %3780 = vmatpush1.msra.mxu0 %v3537
    %3781 = vmatprep.subr.mxu0 %v3536
    %3782 = vmatpush1.msra.mxu0 %v3535
    %3783 = vmatprep.subr.mxu0 %v3534
    %3784 = vmatpush1.msra.mxu0 %v3533
    %3785 = vmatprep.subr.mxu0 %v3532
    %3786 = vmatpush1.msra.mxu0 %v3531
    %3787 = vmatprep.subr.mxu0 %v3530
    %3788 = vmatpush1.msra.mxu0 %v3529
    %3789 = vmatprep.subr.mxu0 0.0
    %3790 = vmatpush2.msra.mxu0 0.0
    %3791 = vmatprep.subr.mxu0 0.0
    %3792 = vmatpush2.msra.mxu0 0.0
    %3793 = vmatprep.subr.mxu0 0.0
    %3794 = vmatpush2.msra.mxu0 0.0
    %3795 = vmatprep.subr.mxu0 0.0
    %3796 = vmatpush2.msra.mxu0 0.0
    %3797 = vmatprep.subr.mxu0 0.0
    %3798 = vmatpush2.msra.mxu0 0.0
    %3799 = vmatprep.subr.mxu0 0.0
    %3800 = vmatpush2.msra.mxu0 0.0
    %3801 = vmatprep.subr.mxu0 0.0
    %3802 = vmatpush2.msra.mxu0 0.0
    %3803 = vmatprep.subr.mxu0 0.0
    %3804 = vmatpush2.msra.mxu0 0.0
    %3805 = vmatprep.subr.mxu0 0.0
    %3806 = vmatpush2.msra.mxu0 0.0
    %3807 = vmatprep.subr.mxu0 0.0
    %3808 = vmatpush2.msra.mxu0 0.0
    %3809 = vmatprep.subr.mxu0 0.0
    %3810 = vmatpush2.msra.mxu0 0.0
    %3811 = vmatprep.subr.mxu0 0.0
    %3812 = vmatpush2.msra.mxu0 0.0
    %3813 = vmatprep.subr.mxu0 0.0
    %3814 = vmatpush2.msra.mxu0 0.0
    %3815 = vmatprep.subr.mxu0 0.0
    %3816 = vmatpush2.msra.mxu0 0.0
    %3817 = vmatprep.subr.mxu0 0.0
    %3818 = vmatpush2.msra.mxu0 0.0
    %3819 = vmatprep.subr.mxu0 0.0
    %3820 = vmatpush2.msra.mxu0 0.0
    %3821 = vmatprep.mubr.f32.mxu0 0.0
    %3822 = vmatmul.mubr.f32.gmra.mxu0 %v2324
    %v3823 = vpop.f32.mrf.mxu0
    %v3824 = vadd.f32 %v3750, %v3823
    %v3825 = vpop.f32.mrf.mxu0
    %v3826 = vadd.f32 %v3754, %v3825
    %3827 = vdwg.mxu0
    %v3828 = vadd.f32 %v3742, %v3824
    %v3829 = vmul.f32 %v3828, 0.5
    %v3830 = vtanh.pop %v3829
    %v3831 = vadd.f32 %v3830, 1.0
    %v3832 = vmul.f32 %v3831, 0.5
    %3834 = vrot.lane.b32.xlu0 %v3824, 64
    %v3835 = vpop.permute.xlu0 %3834
    %v3837 = vmul.f32 %v3832, %v3835
    %3839 = vrot.lane.b32.xlu0 %v3837, 64
    %v3840 = vpop.permute.xlu0 %3839
    %v3842 = vadd.f32 %v3742, %v3840
    %v3843 = vtanh.pop %v3842
    %v3844 = vsub.f32 1.0, %v3832
    %3846 = vrot.lane.b32.xlu0 %v3843, 96
    %v3847 = vpop.permute.xlu0 %3846
    %v3849 = vmul.f32 %v3844, %v3847
    %v3850 = vmul.f32 %v3832, 0.0
    %v3851 = vadd.f32 %v3849, %v3850
    %v3852 = vrot.slane %v3824, 2
    %v3854 = vadd.f32 %v3744, %v3852
    %v3855 = vmul.f32 %v3854, 0.5
    %v3856 = vtanh.pop %v3855
    %v3857 = vadd.f32 %v3856, 1.0
    %v3858 = vmul.f32 %v3857, 0.5
    %v3860 = vrot.slane %v3826, 2
    %v3862 = vadd.f32 %v3745, %v3860
    %v3863 = vmul.f32 %v3862, 0.5
    %v3864 = vtanh.pop %v3863
    %v3865 = vadd.f32 %v3864, 1.0
    %v3866 = vmul.f32 %v3865, 0.5
    %3867 = vrot.lane.b32.xlu0 %v3860, 64
    %v3868 = vpop.permute.xlu0 %3867
    %v3870 = vmul.f32 %v3858, %v3868
    %3872 = vrot.lane.b32.xlu0 %v3870, 64
    %v3873 = vpop.permute.xlu0 %3872
    %v3875 = vadd.f32 %v3745, %v3873
    %v3876 = vtanh.pop %v3875
    %v3877 = vsub.f32 1.0, %v3866
    %3879 = vrot.lane.b32.xlu0 %v3876, 96
    %v3880 = vpop.permute.xlu0 %3879
    %v3882 = vmul.f32 %v3877, %v3880
    %v3883 = vmul.f32 %v3866, 0.0
    %v3884 = vadd.f32 %v3882, %v3883
    %3886 = vrot.lane.b32.xlu0 %v3851, 96
    %v3887 = vpop.permute.xlu0 %3886
    %v3890 = vrot.slane %v3884, 6
    %3891 = vrot.lane.b32.xlu0 %v3890, 32
    %v3892 = vpop.permute.xlu0 %3891
    %v3894 = vsel %vm218, %v3887, %v3892
    %3895 = vst.msk [vmem:[#allocation2] sm:$0x3] %vm2464, %v3887
    %3896 = vst.msk [vmem:[#allocation3 + $0x8] sm:$0xc0] %vm2466, %v3884
    %v3898 = vsel %vm1098, %v3894, 0
    %3900 = vmatprep.subr.mxu0 0.0
    %3901 = vmatpush1.msra.mxu0 0.0
    %3902 = vmatprep.subr.mxu0 0.0
    %3903 = vmatpush1.msra.mxu0 0.0
    %3904 = vmatprep.subr.mxu0 0.0
    %3905 = vmatpush1.msra.mxu0 0.0
    %3906 = vmatprep.subr.mxu0 0.0
    %3907 = vmatpush1.msra.mxu0 0.0
    %3908 = vmatprep.subr.mxu0 0.0
    %3909 = vmatpush1.msra.mxu0 0.0
    %3910 = vmatprep.subr.mxu0 0.0
    %3911 = vmatpush1.msra.mxu0 0.0
    %3912 = vmatprep.subr.mxu0 0.0
    %3913 = vmatpush1.msra.mxu0 0.0
    %3914 = vmatprep.subr.mxu0 0.0
    %3915 = vmatpush1.msra.mxu0 0.0
    %3916 = vmatprep.subr.mxu0 %v3544
    %3917 = vmatpush1.msra.mxu0 %v3543
    %3918 = vmatprep.subr.mxu0 %v3542
    %3919 = vmatpush1.msra.mxu0 %v3541
    %3920 = vmatprep.subr.mxu0 %v3540
    %3921 = vmatpush1.msra.mxu0 %v3539
    %3922 = vmatprep.subr.mxu0 %v3538
    %3923 = vmatpush1.msra.mxu0 %v3537
    %3924 = vmatprep.subr.mxu0 %v3536
    %3925 = vmatpush1.msra.mxu0 %v3535
    %3926 = vmatprep.subr.mxu0 %v3534
    %3927 = vmatpush1.msra.mxu0 %v3533
    %3928 = vmatprep.subr.mxu0 %v3532
    %3929 = vmatpush1.msra.mxu0 %v3531
    %3930 = vmatprep.subr.mxu0 %v3530
    %3931 = vmatpush1.msra.mxu0 %v3529
    %3932 = vmatprep.subr.mxu0 0.0
    %3933 = vmatpush2.msra.mxu0 0.0
    %3934 = vmatprep.subr.mxu0 0.0
    %3935 = vmatpush2.msra.mxu0 0.0
    %3936 = vmatprep.subr.mxu0 0.0
    %3937 = vmatpush2.msra.mxu0 0.0
    %3938 = vmatprep.subr.mxu0 0.0
    %3939 = vmatpush2.msra.mxu0 0.0
    %3940 = vmatprep.subr.mxu0 0.0
    %3941 = vmatpush2.msra.mxu0 0.0
    %3942 = vmatprep.subr.mxu0 0.0
    %3943 = vmatpush2.msra.mxu0 0.0
    %3944 = vmatprep.subr.mxu0 0.0
    %3945 = vmatpush2.msra.mxu0 0.0
    %3946 = vmatprep.subr.mxu0 0.0
    %3947 = vmatpush2.msra.mxu0 0.0
    %3948 = vmatprep.subr.mxu0 0.0
    %3949 = vmatpush2.msra.mxu0 0.0
    %3950 = vmatprep.subr.mxu0 0.0
    %3951 = vmatpush2.msra.mxu0 0.0
    %3952 = vmatprep.subr.mxu0 0.0
    %3953 = vmatpush2.msra.mxu0 0.0
    %3954 = vmatprep.subr.mxu0 0.0
    %3955 = vmatpush2.msra.mxu0 0.0
    %3956 = vmatprep.subr.mxu0 0.0
    %3957 = vmatpush2.msra.mxu0 0.0
    %3958 = vmatprep.subr.mxu0 0.0
    %3959 = vmatpush2.msra.mxu0 0.0
    %3960 = vmatprep.subr.mxu0 0.0
    %3961 = vmatpush2.msra.mxu0 0.0
    %3962 = vmatprep.subr.mxu0 0.0
    %3963 = vmatpush2.msra.mxu0 0.0
    %3964 = vmatprep.mubr.f32.mxu0 0.0
    %3965 = vmatmul.mubr.f32.gmra.mxu0 %v3898
    %v3966 = vpop.f32.mrf.mxu0
    %v3967 = vadd.f32 %v3750, %v3966
    %v3968 = vpop.f32.mrf.mxu0
    %v3969 = vadd.f32 %v3754, %v3968
    %3970 = vdwg.mxu0
    %v3972 = vrot.slane %v3967, 6
    %v3974 = vadd.f32 %v3742, %v3972
    %v3975 = vmul.f32 %v3974, 0.5
    %v3976 = vtanh.pop %v3975
    %v3977 = vadd.f32 %v3976, 1.0
    %v3978 = vmul.f32 %v3977, 0.5
    %3979 = vrot.lane.b32.xlu0 %v3972, 64
    %v3980 = vpop.permute.xlu0 %3979
    %v3982 = vmul.f32 %v3978, %v3980
    %3984 = vrot.lane.b32.xlu0 %v3982, 64
    %v3985 = vpop.permute.xlu0 %3984
    %v3987 = vadd.f32 %v3742, %v3985
    %v3988 = vtanh.pop %v3987
    %v3989 = vsub.f32 1.0, %v3978
    %3991 = vrot.lane.b32.xlu0 %v3988, 96
    %v3992 = vpop.permute.xlu0 %3991
    %v3994 = vmul.f32 %v3989, %v3992
    %v3995 = vrot.slane %v3894, 6
    %3996 = vrot.lane.b32.xlu0 %v3995, 32
    %v3997 = vpop.permute.xlu0 %3996
    %v3999 = vmul.f32 %v3978, %v3997
    %v4000 = vadd.f32 %v3994, %v3999
    %v4001 = vrot.slane %v3967, 4
    %v4003 = vadd.f32 %v3744, %v4001
    %v4004 = vmul.f32 %v4003, 0.5
    %v4005 = vtanh.pop %v4004
    %v4006 = vadd.f32 %v4005, 1.0
    %v4007 = vmul.f32 %v4006, 0.5
    %v4009 = vrot.slane %v3969, 4
    %v4011 = vadd.f32 %v3745, %v4009
    %v4012 = vmul.f32 %v4011, 0.5
    %v4013 = vtanh.pop %v4012
    %v4014 = vadd.f32 %v4013, 1.0
    %v4015 = vmul.f32 %v4014, 0.5
    %4016 = vrot.lane.b32.xlu0 %v4009, 64
    %v4017 = vpop.permute.xlu0 %4016
    %v4019 = vmul.f32 %v4007, %v4017
    %4021 = vrot.lane.b32.xlu0 %v4019, 64
    %v4022 = vpop.permute.xlu0 %4021
    %v4024 = vadd.f32 %v3745, %v4022
    %v4025 = vtanh.pop %v4024
    %v4026 = vsub.f32 1.0, %v4015
    %4028 = vrot.lane.b32.xlu0 %v4025, 96
    %v4029 = vpop.permute.xlu0 %4028
    %v4031 = vmul.f32 %v4026, %v4029
    %v4032 = vrot.slane %v3894, 4
    %4033 = vrot.lane.b32.xlu0 %v4032, 96
    %v4034 = vpop.permute.xlu0 %4033
    %v4036 = vmul.f32 %v4015, %v4034
    %v4037 = vadd.f32 %v4031, %v4036
    %4039 = vrot.lane.b32.xlu0 %v4000, 96
    %v4040 = vpop.permute.xlu0 %4039
    %v4043 = vrot.slane %v4037, 2
    %4044 = vrot.lane.b32.xlu0 %v4043, 32
    %v4045 = vpop.permute.xlu0 %4044
    %v4047 = vsel %vm218, %v4040, %v4045
    %4048 = vst.msk [vmem:[#allocation2] sm:$0xc] %vm2619, %v4040
    %4049 = vst.msk [vmem:[#allocation3 + $0x8] sm:$0x30] %vm2621, %v4037
    %v4051 = vrot.slane %v4047, 2
    %v4052 = vsel %vm1098, %v4051, 0
    %4054 = vmatprep.subr.mxu0 0.0
    %4055 = vmatpush1.msra.mxu0 0.0
    %4056 = vmatprep.subr.mxu0 0.0
    %4057 = vmatpush1.msra.mxu0 0.0
    %4058 = vmatprep.subr.mxu0 0.0
    %4059 = vmatpush1.msra.mxu0 0.0
    %4060 = vmatprep.subr.mxu0 0.0
    %4061 = vmatpush1.msra.mxu0 0.0
    %4062 = vmatprep.subr.mxu0 0.0
    %4063 = vmatpush1.msra.mxu0 0.0
    %4064 = vmatprep.subr.mxu0 0.0
    %4065 = vmatpush1.msra.mxu0 0.0
    %4066 = vmatprep.subr.mxu0 0.0
    %4067 = vmatpush1.msra.mxu0 0.0
    %4068 = vmatprep.subr.mxu0 0.0
    %4069 = vmatpush1.msra.mxu0 0.0
    %4070 = vmatprep.subr.mxu0 %v3544
    %4071 = vmatpush1.msra.mxu0 %v3543
    %4072 = vmatprep.subr.mxu0 %v3542
    %4073 = vmatpush1.msra.mxu0 %v3541
    %4074 = vmatprep.subr.mxu0 %v3540
    %4075 = vmatpush1.msra.mxu0 %v3539
    %4076 = vmatprep.subr.mxu0 %v3538
    %4077 = vmatpush1.msra.mxu0 %v3537
    %4078 = vmatprep.subr.mxu0 %v3536
    %4079 = vmatpush1.msra.mxu0 %v3535
    %4080 = vmatprep.subr.mxu0 %v3534
    %4081 = vmatpush1.msra.mxu0 %v3533
    %4082 = vmatprep.subr.mxu0 %v3532
    %4083 = vmatpush1.msra.mxu0 %v3531
    %4084 = vmatprep.subr.mxu0 %v3530
    %4085 = vmatpush1.msra.mxu0 %v3529
    %4086 = vmatprep.subr.mxu0 0.0
    %4087 = vmatpush2.msra.mxu0 0.0
    %4088 = vmatprep.subr.mxu0 0.0
    %4089 = vmatpush2.msra.mxu0 0.0
    %4090 = vmatprep.subr.mxu0 0.0
    %4091 = vmatpush2.msra.mxu0 0.0
    %4092 = vmatprep.subr.mxu0 0.0
    %4093 = vmatpush2.msra.mxu0 0.0
    %4094 = vmatprep.subr.mxu0 0.0
    %4095 = vmatpush2.msra.mxu0 0.0
    %4096 = vmatprep.subr.mxu0 0.0
    %4097 = vmatpush2.msra.mxu0 0.0
    %4098 = vmatprep.subr.mxu0 0.0
    %4099 = vmatpush2.msra.mxu0 0.0
    %4100 = vmatprep.subr.mxu0 0.0
    %4101 = vmatpush2.msra.mxu0 0.0
    %4102 = vmatprep.subr.mxu0 0.0
    %4103 = vmatpush2.msra.mxu0 0.0
    %4104 = vmatprep.subr.mxu0 0.0
    %4105 = vmatpush2.msra.mxu0 0.0
    %4106 = vmatprep.subr.mxu0 0.0
    %4107 = vmatpush2.msra.mxu0 0.0
    %4108 = vmatprep.subr.mxu0 0.0
    %4109 = vmatpush2.msra.mxu0 0.0
    %4110 = vmatprep.subr.mxu0 0.0
    %4111 = vmatpush2.msra.mxu0 0.0
    %4112 = vmatprep.subr.mxu0 0.0
    %4113 = vmatpush2.msra.mxu0 0.0
    %4114 = vmatprep.subr.mxu0 0.0
    %4115 = vmatpush2.msra.mxu0 0.0
    %4116 = vmatprep.subr.mxu0 0.0
    %4117 = vmatpush2.msra.mxu0 0.0
    %4118 = vmatprep.mubr.f32.mxu0 0.0
    %4119 = vmatmul.mubr.f32.gmra.mxu0 %v4052
    %v4120 = vpop.f32.mrf.mxu0
    %v4121 = vadd.f32 %v3750, %v4120
    %v4122 = vpop.f32.mrf.mxu0
    %v4123 = vadd.f32 %v3754, %v4122
    %4124 = vdwg.mxu0
    %v4126 = vrot.slane %v4121, 4
    %v4128 = vadd.f32 %v3742, %v4126
    %v4129 = vmul.f32 %v4128, 0.5
    %v4130 = vtanh.pop %v4129
    %v4131 = vadd.f32 %v4130, 1.0
    %v4132 = vmul.f32 %v4131, 0.5
    %4133 = vrot.lane.b32.xlu0 %v4126, 64
    %v4134 = vpop.permute.xlu0 %4133
    %v4136 = vmul.f32 %v4132, %v4134
    %4138 = vrot.lane.b32.xlu0 %v4136, 64
    %v4139 = vpop.permute.xlu0 %4138
    %v4141 = vadd.f32 %v3742, %v4139
    %v4142 = vtanh.pop %v4141
    %v4143 = vsub.f32 1.0, %v4132
    %4145 = vrot.lane.b32.xlu0 %v4142, 96
    %v4146 = vpop.permute.xlu0 %4145
    %v4148 = vmul.f32 %v4143, %v4146
    %v4149 = vrot.slane %v4047, 6
    %4150 = vrot.lane.b32.xlu0 %v4149, 32
    %v4151 = vpop.permute.xlu0 %4150
    %v4153 = vmul.f32 %v4132, %v4151
    %v4154 = vadd.f32 %v4148, %v4153
    %v4155 = vrot.slane %v4121, 6
    %v4157 = vadd.f32 %v3744, %v4155
    %v4158 = vmul.f32 %v4157, 0.5
    %v4159 = vtanh.pop %v4158
    %v4160 = vadd.f32 %v4159, 1.0
    %v4161 = vmul.f32 %v4160, 0.5
    %v4163 = vrot.slane %v4123, 6
    %v4165 = vadd.f32 %v3745, %v4163
    %v4166 = vmul.f32 %v4165, 0.5
    %v4167 = vtanh.pop %v4166
    %v4168 = vadd.f32 %v4167, 1.0
    %v4169 = vmul.f32 %v4168, 0.5
    %4170 = vrot.lane.b32.xlu0 %v4163, 64
    %v4171 = vpop.permute.xlu0 %4170
    %v4173 = vmul.f32 %v4161, %v4171
    %4175 = vrot.lane.b32.xlu0 %v4173, 64
    %v4176 = vpop.permute.xlu0 %4175
    %v4178 = vadd.f32 %v3745, %v4176
    %v4179 = vtanh.pop %v4178
    %v4180 = vsub.f32 1.0, %v4169
    %4182 = vrot.lane.b32.xlu0 %v4179, 96
    %v4183 = vpop.permute.xlu0 %4182
    %v4185 = vmul.f32 %v4180, %v4183
    %4186 = vrot.lane.b32.xlu0 %v4047, 96
    %v4187 = vpop.permute.xlu0 %4186
    %v4189 = vmul.f32 %v4169, %v4187
    %v4190 = vadd.f32 %v4185, %v4189
    %4192 = vrot.lane.b32.xlu0 %v4154, 96
    %v4193 = vpop.permute.xlu0 %4192
    %v4196 = vrot.slane %v4190, 6
    %4197 = vrot.lane.b32.xlu0 %v4196, 32
    %v4198 = vpop.permute.xlu0 %4197
    %v4200 = vsel %vm218, %v4193, %v4198
    %4201 = vst.msk [vmem:[#allocation2] sm:$0x30] %vm2621, %v4193
    %4202 = vst.msk [vmem:[#allocation3 + $0x8] sm:$0xc] %vm2619, %v4190
    %v4204 = vrot.slane %v4200, 4
    %v4205 = vsel %vm1098, %v4204, 0
    %4207 = vmatprep.subr.mxu0 0.0
    %4208 = vmatpush1.msra.mxu0 0.0
    %4209 = vmatprep.subr.mxu0 0.0
    %4210 = vmatpush1.msra.mxu0 0.0
    %4211 = vmatprep.subr.mxu0 0.0
    %4212 = vmatpush1.msra.mxu0 0.0
    %4213 = vmatprep.subr.mxu0 0.0
    %4214 = vmatpush1.msra.mxu0 0.0
    %4215 = vmatprep.subr.mxu0 0.0
    %4216 = vmatpush1.msra.mxu0 0.0
    %4217 = vmatprep.subr.mxu0 0.0
    %4218 = vmatpush1.msra.mxu0 0.0
    %4219 = vmatprep.subr.mxu0 0.0
    %4220 = vmatpush1.msra.mxu0 0.0
    %4221 = vmatprep.subr.mxu0 0.0
    %4222 = vmatpush1.msra.mxu0 0.0
    %4223 = vmatprep.subr.mxu0 %v3544
    %4224 = vmatpush1.msra.mxu0 %v3543
    %4225 = vmatprep.subr.mxu0 %v3542
    %4226 = vmatpush1.msra.mxu0 %v3541
    %4227 = vmatprep.subr.mxu0 %v3540
    %4228 = vmatpush1.msra.mxu0 %v3539
    %4229 = vmatprep.subr.mxu0 %v3538
    %4230 = vmatpush1.msra.mxu0 %v3537
    %4231 = vmatprep.subr.mxu0 %v3536
    %4232 = vmatpush1.msra.mxu0 %v3535
    %4233 = vmatprep.subr.mxu0 %v3534
    %4234 = vmatpush1.msra.mxu0 %v3533
    %4235 = vmatprep.subr.mxu0 %v3532
    %4236 = vmatpush1.msra.mxu0 %v3531
    %4237 = vmatprep.subr.mxu0 %v3530
    %4238 = vmatpush1.msra.mxu0 %v3529
    %4239 = vmatprep.subr.mxu0 0.0
    %4240 = vmatpush2.msra.mxu0 0.0
    %4241 = vmatprep.subr.mxu0 0.0
    %4242 = vmatpush2.msra.mxu0 0.0
    %4243 = vmatprep.subr.mxu0 0.0
    %4244 = vmatpush2.msra.mxu0 0.0
    %4245 = vmatprep.subr.mxu0 0.0
    %4246 = vmatpush2.msra.mxu0 0.0
    %4247 = vmatprep.subr.mxu0 0.0
    %4248 = vmatpush2.msra.mxu0 0.0
    %4249 = vmatprep.subr.mxu0 0.0
    %4250 = vmatpush2.msra.mxu0 0.0
    %4251 = vmatprep.subr.mxu0 0.0
    %4252 = vmatpush2.msra.mxu0 0.0
    %4253 = vmatprep.subr.mxu0 0.0
    %4254 = vmatpush2.msra.mxu0 0.0
    %4255 = vmatprep.subr.mxu0 0.0
    %4256 = vmatpush2.msra.mxu0 0.0
    %4257 = vmatprep.subr.mxu0 0.0
    %4258 = vmatpush2.msra.mxu0 0.0
    %4259 = vmatprep.subr.mxu0 0.0
    %4260 = vmatpush2.msra.mxu0 0.0
    %4261 = vmatprep.subr.mxu0 0.0
    %4262 = vmatpush2.msra.mxu0 0.0
    %4263 = vmatprep.subr.mxu0 0.0
    %4264 = vmatpush2.msra.mxu0 0.0
    %4265 = vmatprep.subr.mxu0 0.0
    %4266 = vmatpush2.msra.mxu0 0.0
    %4267 = vmatprep.subr.mxu0 0.0
    %4268 = vmatpush2.msra.mxu0 0.0
    %4269 = vmatprep.subr.mxu0 0.0
    %4270 = vmatpush2.msra.mxu0 0.0
    %4271 = vmatprep.mubr.f32.mxu0 0.0
    %4272 = vmatmul.mubr.f32.gmra.mxu0 %v4205
    %v4273 = vpop.f32.mrf.mxu0
    %v4274 = vadd.f32 %v3750, %v4273
    %v4275 = vpop.f32.mrf.mxu0
    %v4276 = vadd.f32 %v3754, %v4275
    %4277 = vdwg.mxu0
    %v4279 = vrot.slane %v4274, 2
    %v4281 = vadd.f32 %v3742, %v4279
    %v4282 = vmul.f32 %v4281, 0.5
    %v4283 = vtanh.pop %v4282
    %v4284 = vadd.f32 %v4283, 1.0
    %v4285 = vmul.f32 %v4284, 0.5
    %4286 = vrot.lane.b32.xlu0 %v4279, 64
    %v4287 = vpop.permute.xlu0 %4286
    %v4289 = vmul.f32 %v4285, %v4287
    %4291 = vrot.lane.b32.xlu0 %v4289, 64
    %v4292 = vpop.permute.xlu0 %4291
    %v4294 = vadd.f32 %v3742, %v4292
    %v4295 = vtanh.pop %v4294
    %v4296 = vsub.f32 1.0, %v4285
    %4298 = vrot.lane.b32.xlu0 %v4295, 96
    %v4299 = vpop.permute.xlu0 %4298
    %v4301 = vmul.f32 %v4296, %v4299
    %v4302 = vrot.slane %v4200, 6
    %4303 = vrot.lane.b32.xlu0 %v4302, 32
    %v4304 = vpop.permute.xlu0 %4303
    %v4306 = vmul.f32 %v4285, %v4304
    %v4307 = vadd.f32 %v4301, %v4306
    %v4308 = vadd.f32 %v3744, %v4274
    %v4309 = vmul.f32 %v4308, 0.5
    %v4310 = vtanh.pop %v4309
    %v4311 = vadd.f32 %v4310, 1.0
    %v4312 = vmul.f32 %v4311, 0.5
    %v4313 = vadd.f32 %v3745, %v4276
    %v4314 = vmul.f32 %v4313, 0.5
    %v4315 = vtanh.pop %v4314
    %v4316 = vadd.f32 %v4315, 1.0
    %v4317 = vmul.f32 %v4316, 0.5
    %4319 = vrot.lane.b32.xlu0 %v4276, 64
    %v4320 = vpop.permute.xlu0 %4319
    %v4322 = vmul.f32 %v4312, %v4320
    %4324 = vrot.lane.b32.xlu0 %v4322, 64
    %v4325 = vpop.permute.xlu0 %4324
    %v4327 = vadd.f32 %v3745, %v4325
    %v4328 = vtanh.pop %v4327
    %v4329 = vsub.f32 1.0, %v4317
    %4331 = vrot.lane.b32.xlu0 %v4328, 96
    %v4332 = vpop.permute.xlu0 %4331
    %v4334 = vmul.f32 %v4329, %v4332
    %4335 = vrot.lane.b32.xlu0 %v4204, 96
    %v4336 = vpop.permute.xlu0 %4335
    %v4338 = vmul.f32 %v4317, %v4336
    %v4339 = vadd.f32 %v4334, %v4338
    %4341 = vrot.lane.b32.xlu0 %v4307, 96
    %v4342 = vpop.permute.xlu0 %4341
    %v4345 = vrot.slane %v4339, 2
    %4346 = vrot.lane.b32.xlu0 %v4345, 32
    %v4347 = vpop.permute.xlu0 %4346
    %v4349 = vsel %vm218, %v4342, %v4347
    %4350 = vst.msk [vmem:[#allocation2] sm:$0xc0] %vm2466, %v4342
    %4351 = vst.msk [vmem:[#allocation3 + $0x8] sm:$0x3] %vm2464, %v4339
    %v4353 = vrot.slane %v4349, 6
    %v4354 = vsel %vm1098, %v4353, 0
    %4356 = vmatprep.subr.mxu0 0.0
    %4357 = vmatpush1.msra.mxu0 0.0
    %4358 = vmatprep.subr.mxu0 0.0
    %4359 = vmatpush1.msra.mxu0 0.0
    %4360 = vmatprep.subr.mxu0 0.0
    %4361 = vmatpush1.msra.mxu0 0.0
    %4362 = vmatprep.subr.mxu0 0.0
    %4363 = vmatpush1.msra.mxu0 0.0
    %4364 = vmatprep.subr.mxu0 0.0
    %4365 = vmatpush1.msra.mxu0 0.0
    %4366 = vmatprep.subr.mxu0 0.0
    %4367 = vmatpush1.msra.mxu0 0.0
    %4368 = vmatprep.subr.mxu0 0.0
    %4369 = vmatpush1.msra.mxu0 0.0
    %4370 = vmatprep.subr.mxu0 0.0
    %4371 = vmatpush1.msra.mxu0 0.0
    %4372 = vmatprep.subr.mxu0 %v3544
    %4373 = vmatpush1.msra.mxu0 %v3543
    %4374 = vmatprep.subr.mxu0 %v3542
    %4375 = vmatpush1.msra.mxu0 %v3541
    %4376 = vmatprep.subr.mxu0 %v3540
    %4377 = vmatpush1.msra.mxu0 %v3539
    %4378 = vmatprep.subr.mxu0 %v3538
    %4379 = vmatpush1.msra.mxu0 %v3537
    %4380 = vmatprep.subr.mxu0 %v3536
    %4381 = vmatpush1.msra.mxu0 %v3535
    %4382 = vmatprep.subr.mxu0 %v3534
    %4383 = vmatpush1.msra.mxu0 %v3533
    %4384 = vmatprep.subr.mxu0 %v3532
    %4385 = vmatpush1.msra.mxu0 %v3531
    %4386 = vmatprep.subr.mxu0 %v3530
    %4387 = vmatpush1.msra.mxu0 %v3529
    %4388 = vmatprep.subr.mxu0 0.0
    %4389 = vmatpush2.msra.mxu0 0.0
    %4390 = vmatprep.subr.mxu0 0.0
    %4391 = vmatpush2.msra.mxu0 0.0
    %4392 = vmatprep.subr.mxu0 0.0
    %4393 = vmatpush2.msra.mxu0 0.0
    %4394 = vmatprep.subr.mxu0 0.0
    %4395 = vmatpush2.msra.mxu0 0.0
    %4396 = vmatprep.subr.mxu0 0.0
    %4397 = vmatpush2.msra.mxu0 0.0
    %4398 = vmatprep.subr.mxu0 0.0
    %4399 = vmatpush2.msra.mxu0 0.0
    %4400 = vmatprep.subr.mxu0 0.0
    %4401 = vmatpush2.msra.mxu0 0.0
    %4402 = vmatprep.subr.mxu0 0.0
    %4403 = vmatpush2.msra.mxu0 0.0
    %4404 = vmatprep.subr.mxu0 0.0
    %4405 = vmatpush2.msra.mxu0 0.0
    %4406 = vmatprep.subr.mxu0 0.0
    %4407 = vmatpush2.msra.mxu0 0.0
    %4408 = vmatprep.subr.mxu0 0.0
    %4409 = vmatpush2.msra.mxu0 0.0
    %4410 = vmatprep.subr.mxu0 0.0
    %4411 = vmatpush2.msra.mxu0 0.0
    %4412 = vmatprep.subr.mxu0 0.0
    %4413 = vmatpush2.msra.mxu0 0.0
    %4414 = vmatprep.subr.mxu0 0.0
    %4415 = vmatpush2.msra.mxu0 0.0
    %4416 = vmatprep.subr.mxu0 0.0
    %4417 = vmatpush2.msra.mxu0 0.0
    %4418 = vmatprep.subr.mxu0 0.0
    %4419 = vmatpush2.msra.mxu0 0.0
    %4420 = vmatprep.mubr.f32.mxu0 0.0
    %4421 = vmatmul.mubr.f32.gmra.mxu0 %v4354
    %v4422 = vpop.f32.mrf.mxu0
    %v4423 = vadd.f32 %v3750, %v4422
    %v4424 = vpop.f32.mrf.mxu0
    %v4425 = vadd.f32 %v3754, %v4424
    %4426 = vdwg.mxu0
    %v4427 = vadd.f32 %v3744, %v4423
    %v4428 = vmul.f32 %v4427, 0.5
    %v4429 = vtanh.pop %v4428
    %v4430 = vadd.f32 %v4429, 1.0
    %v4431 = vmul.f32 %v4430, 0.5
    %4433 = vrot.lane.b32.xlu0 %v4423, 64
    %v4434 = vpop.permute.xlu0 %4433
    %v4436 = vmul.f32 %v4431, %v4434
    %4438 = vrot.lane.b32.xlu0 %v4436, 64
    %v4439 = vpop.permute.xlu0 %4438
    %v4441 = vadd.f32 %v3744, %v4439
    %v4442 = vtanh.pop %v4441
    %v4443 = vsub.f32 1.0, %v4431
    %4445 = vrot.lane.b32.xlu0 %v4442, 96
    %v4446 = vpop.permute.xlu0 %4445
    %v4448 = vmul.f32 %v4443, %v4446
    %4449 = vrot.lane.b32.xlu0 %v4353, 32
    %v4450 = vpop.permute.xlu0 %4449
    %v4452 = vmul.f32 %v4431, %v4450
    %v4453 = vadd.f32 %v4448, %v4452
    %v4454 = vrot.slane %v4423, 2
    %v4456 = vadd.f32 %v3742, %v4454
    %v4457 = vmul.f32 %v4456, 0.5
    %v4458 = vtanh.pop %v4457
    %v4459 = vadd.f32 %v4458, 1.0
    %v4460 = vmul.f32 %v4459, 0.5
    %v4462 = vrot.slane %v4425, 2
    %v4464 = vadd.f32 %v3743, %v4462
    %v4465 = vmul.f32 %v4464, 0.5
    %v4466 = vtanh.pop %v4465
    %v4467 = vadd.f32 %v4466, 1.0
    %v4468 = vmul.f32 %v4467, 0.5
    %4469 = vrot.lane.b32.xlu0 %v4462, 64
    %v4470 = vpop.permute.xlu0 %4469
    %v4472 = vmul.f32 %v4460, %v4470
    %4474 = vrot.lane.b32.xlu0 %v4472, 64
    %v4475 = vpop.permute.xlu0 %4474
    %v4477 = vadd.f32 %v3743, %v4475
    %v4478 = vtanh.pop %v4477
    %v4479 = vsub.f32 1.0, %v4468
    %4481 = vrot.lane.b32.xlu0 %v4478, 96
    %v4482 = vpop.permute.xlu0 %4481
    %v4484 = vmul.f32 %v4479, %v4482
    %4485 = vrot.lane.b32.xlu0 %v4349, 96
    %v4486 = vpop.permute.xlu0 %4485
    %v4488 = vmul.f32 %v4468, %v4486
    %v4489 = vadd.f32 %v4484, %v4488
    %4491 = vrot.lane.b32.xlu0 %v4453, 96
    %v4492 = vpop.permute.xlu0 %4491
    %v4495 = vrot.slane %v4489, 6
    %4496 = vrot.lane.b32.xlu0 %v4495, 32
    %v4497 = vpop.permute.xlu0 %4496
    %v4499 = vsel %vm218, %v4492, %v4497
    %4500 = vst.msk [vmem:[#allocation2 + $0x8] sm:$0x3] %vm2464, %v4492
    %4501 = vst.msk [vmem:[#allocation3] sm:$0xc0] %vm2466, %v4489
    %v4503 = vsel %vm1098, %v4499, 0
    %4505 = vmatprep.subr.mxu0 0.0
    %4506 = vmatpush1.msra.mxu0 0.0
    %4507 = vmatprep.subr.mxu0 0.0
    %4508 = vmatpush1.msra.mxu0 0.0
    %4509 = vmatprep.subr.mxu0 0.0
    %4510 = vmatpush1.msra.mxu0 0.0
    %4511 = vmatprep.subr.mxu0 0.0
    %4512 = vmatpush1.msra.mxu0 0.0
    %4513 = vmatprep.subr.mxu0 0.0
    %4514 = vmatpush1.msra.mxu0 0.0
    %4515 = vmatprep.subr.mxu0 0.0
    %4516 = vmatpush1.msra.mxu0 0.0
    %4517 = vmatprep.subr.mxu0 0.0
    %4518 = vmatpush1.msra.mxu0 0.0
    %4519 = vmatprep.subr.mxu0 0.0
    %4520 = vmatpush1.msra.mxu0 0.0
    %4521 = vmatprep.subr.mxu0 %v3544
    %4522 = vmatpush1.msra.mxu0 %v3543
    %4523 = vmatprep.subr.mxu0 %v3542
    %4524 = vmatpush1.msra.mxu0 %v3541
    %4525 = vmatprep.subr.mxu0 %v3540
    %4526 = vmatpush1.msra.mxu0 %v3539
    %4527 = vmatprep.subr.mxu0 %v3538
    %4528 = vmatpush1.msra.mxu0 %v3537
    %4529 = vmatprep.subr.mxu0 %v3536
    %4530 = vmatpush1.msra.mxu0 %v3535
    %4531 = vmatprep.subr.mxu0 %v3534
    %4532 = vmatpush1.msra.mxu0 %v3533
    %4533 = vmatprep.subr.mxu0 %v3532
    %4534 = vmatpush1.msra.mxu0 %v3531
    %4535 = vmatprep.subr.mxu0 %v3530
    %4536 = vmatpush1.msra.mxu0 %v3529
    %4537 = vmatprep.subr.mxu0 0.0
    %4538 = vmatpush2.msra.mxu0 0.0
    %4539 = vmatprep.subr.mxu0 0.0
    %4540 = vmatpush2.msra.mxu0 0.0
    %4541 = vmatprep.subr.mxu0 0.0
    %4542 = vmatpush2.msra.mxu0 0.0
    %4543 = vmatprep.subr.mxu0 0.0
    %4544 = vmatpush2.msra.mxu0 0.0
    %4545 = vmatprep.subr.mxu0 0.0
    %4546 = vmatpush2.msra.mxu0 0.0
    %4547 = vmatprep.subr.mxu0 0.0
    %4548 = vmatpush2.msra.mxu0 0.0
    %4549 = vmatprep.subr.mxu0 0.0
    %4550 = vmatpush2.msra.mxu0 0.0
    %4551 = vmatprep.subr.mxu0 0.0
    %4552 = vmatpush2.msra.mxu0 0.0
    %4553 = vmatprep.subr.mxu0 0.0
    %4554 = vmatpush2.msra.mxu0 0.0
    %4555 = vmatprep.subr.mxu0 0.0
    %4556 = vmatpush2.msra.mxu0 0.0
    %4557 = vmatprep.subr.mxu0 0.0
    %4558 = vmatpush2.msra.mxu0 0.0
    %4559 = vmatprep.subr.mxu0 0.0
    %4560 = vmatpush2.msra.mxu0 0.0
    %4561 = vmatprep.subr.mxu0 0.0
    %4562 = vmatpush2.msra.mxu0 0.0
    %4563 = vmatprep.subr.mxu0 0.0
    %4564 = vmatpush2.msra.mxu0 0.0
    %4565 = vmatprep.subr.mxu0 0.0
    %4566 = vmatpush2.msra.mxu0 0.0
    %4567 = vmatprep.subr.mxu0 0.0
    %4568 = vmatpush2.msra.mxu0 0.0
    %4569 = vmatprep.mubr.f32.mxu0 0.0
    %4570 = vmatmul.mubr.f32.gmra.mxu0 %v4503
    %v4571 = vpop.f32.mrf.mxu0
    %v4572 = vadd.f32 %v3750, %v4571
    %v4573 = vpop.f32.mrf.mxu0
    %v4574 = vadd.f32 %v3754, %v4573
    %4575 = vdwg.mxu0
    %v4577 = vrot.slane %v4572, 6
    %v4579 = vadd.f32 %v3744, %v4577
    %v4580 = vmul.f32 %v4579, 0.5
    %v4581 = vtanh.pop %v4580
    %v4582 = vadd.f32 %v4581, 1.0
    %v4583 = vmul.f32 %v4582, 0.5
    %4584 = vrot.lane.b32.xlu0 %v4577, 64
    %v4585 = vpop.permute.xlu0 %4584
    %v4587 = vmul.f32 %v4583, %v4585
    %4589 = vrot.lane.b32.xlu0 %v4587, 64
    %v4590 = vpop.permute.xlu0 %4589
    %v4592 = vadd.f32 %v3744, %v4590
    %v4593 = vtanh.pop %v4592
    %v4594 = vsub.f32 1.0, %v4583
    %4596 = vrot.lane.b32.xlu0 %v4593, 96
    %v4597 = vpop.permute.xlu0 %4596
    %v4599 = vmul.f32 %v4594, %v4597
    %v4600 = vrot.slane %v4499, 6
    %4601 = vrot.lane.b32.xlu0 %v4600, 32
    %v4602 = vpop.permute.xlu0 %4601
    %v4604 = vmul.f32 %v4583, %v4602
    %v4605 = vadd.f32 %v4599, %v4604
    %v4606 = vrot.slane %v4572, 4
    %v4608 = vadd.f32 %v3742, %v4606
    %v4609 = vmul.f32 %v4608, 0.5
    %v4610 = vtanh.pop %v4609
    %v4611 = vadd.f32 %v4610, 1.0
    %v4612 = vmul.f32 %v4611, 0.5
    %v4614 = vrot.slane %v4574, 4
    %v4616 = vadd.f32 %v3743, %v4614
    %v4617 = vmul.f32 %v4616, 0.5
    %v4618 = vtanh.pop %v4617
    %v4619 = vadd.f32 %v4618, 1.0
    %v4620 = vmul.f32 %v4619, 0.5
    %4621 = vrot.lane.b32.xlu0 %v4614, 64
    %v4622 = vpop.permute.xlu0 %4621
    %v4624 = vmul.f32 %v4612, %v4622
    %4626 = vrot.lane.b32.xlu0 %v4624, 64
    %v4627 = vpop.permute.xlu0 %4626
    %v4629 = vadd.f32 %v3743, %v4627
    %v4630 = vtanh.pop %v4629
    %v4631 = vsub.f32 1.0, %v4620
    %4633 = vrot.lane.b32.xlu0 %v4630, 96
    %v4634 = vpop.permute.xlu0 %4633
    %v4636 = vmul.f32 %v4631, %v4634
    %v4637 = vrot.slane %v4499, 4
    %4638 = vrot.lane.b32.xlu0 %v4637, 96
    %v4639 = vpop.permute.xlu0 %4638
    %v4641 = vmul.f32 %v4620, %v4639
    %v4642 = vadd.f32 %v4636, %v4641
    %4644 = vrot.lane.b32.xlu0 %v4605, 96
    %v4645 = vpop.permute.xlu0 %4644
    %v4648 = vrot.slane %v4642, 2
    %4649 = vrot.lane.b32.xlu0 %v4648, 32
    %v4650 = vpop.permute.xlu0 %4649
    %v4652 = vsel %vm218, %v4645, %v4650
    %4653 = vst.msk [vmem:[#allocation2 + $0x8] sm:$0xc] %vm2619, %v4645
    %4654 = vst.msk [vmem:[#allocation3] sm:$0x30] %vm2621, %v4642
    %v4656 = vrot.slane %v4652, 2
    %v4657 = vsel %vm1098, %v4656, 0
    %4659 = vmatprep.subr.mxu0 0.0
    %4660 = vmatpush1.msra.mxu0 0.0
    %4661 = vmatprep.subr.mxu0 0.0
    %4662 = vmatpush1.msra.mxu0 0.0
    %4663 = vmatprep.subr.mxu0 0.0
    %4664 = vmatpush1.msra.mxu0 0.0
    %4665 = vmatprep.subr.mxu0 0.0
    %4666 = vmatpush1.msra.mxu0 0.0
    %4667 = vmatprep.subr.mxu0 0.0
    %4668 = vmatpush1.msra.mxu0 0.0
    %4669 = vmatprep.subr.mxu0 0.0
    %4670 = vmatpush1.msra.mxu0 0.0
    %4671 = vmatprep.subr.mxu0 0.0
    %4672 = vmatpush1.msra.mxu0 0.0
    %4673 = vmatprep.subr.mxu0 0.0
    %4674 = vmatpush1.msra.mxu0 0.0
    %4675 = vmatprep.subr.mxu0 %v3544
    %4676 = vmatpush1.msra.mxu0 %v3543
    %4677 = vmatprep.subr.mxu0 %v3542
    %4678 = vmatpush1.msra.mxu0 %v3541
    %4679 = vmatprep.subr.mxu0 %v3540
    %4680 = vmatpush1.msra.mxu0 %v3539
    %4681 = vmatprep.subr.mxu0 %v3538
    %4682 = vmatpush1.msra.mxu0 %v3537
    %4683 = vmatprep.subr.mxu0 %v3536
    %4684 = vmatpush1.msra.mxu0 %v3535
    %4685 = vmatprep.subr.mxu0 %v3534
    %4686 = vmatpush1.msra.mxu0 %v3533
    %4687 = vmatprep.subr.mxu0 %v3532
    %4688 = vmatpush1.msra.mxu0 %v3531
    %4689 = vmatprep.subr.mxu0 %v3530
    %4690 = vmatpush1.msra.mxu0 %v3529
    %4691 = vmatprep.subr.mxu0 0.0
    %4692 = vmatpush2.msra.mxu0 0.0
    %4693 = vmatprep.subr.mxu0 0.0
    %4694 = vmatpush2.msra.mxu0 0.0
    %4695 = vmatprep.subr.mxu0 0.0
    %4696 = vmatpush2.msra.mxu0 0.0
    %4697 = vmatprep.subr.mxu0 0.0
    %4698 = vmatpush2.msra.mxu0 0.0
    %4699 = vmatprep.subr.mxu0 0.0
    %4700 = vmatpush2.msra.mxu0 0.0
    %4701 = vmatprep.subr.mxu0 0.0
    %4702 = vmatpush2.msra.mxu0 0.0
    %4703 = vmatprep.subr.mxu0 0.0
    %4704 = vmatpush2.msra.mxu0 0.0
    %4705 = vmatprep.subr.mxu0 0.0
    %4706 = vmatpush2.msra.mxu0 0.0
    %4707 = vmatprep.subr.mxu0 0.0
    %4708 = vmatpush2.msra.mxu0 0.0
    %4709 = vmatprep.subr.mxu0 0.0
    %4710 = vmatpush2.msra.mxu0 0.0
    %4711 = vmatprep.subr.mxu0 0.0
    %4712 = vmatpush2.msra.mxu0 0.0
    %4713 = vmatprep.subr.mxu0 0.0
    %4714 = vmatpush2.msra.mxu0 0.0
    %4715 = vmatprep.subr.mxu0 0.0
    %4716 = vmatpush2.msra.mxu0 0.0
    %4717 = vmatprep.subr.mxu0 0.0
    %4718 = vmatpush2.msra.mxu0 0.0
    %4719 = vmatprep.subr.mxu0 0.0
    %4720 = vmatpush2.msra.mxu0 0.0
    %4721 = vmatprep.subr.mxu0 0.0
    %4722 = vmatpush2.msra.mxu0 0.0
    %4723 = vmatprep.mubr.f32.mxu0 0.0
    %4724 = vmatmul.mubr.f32.gmra.mxu0 %v4657
    %v4725 = vpop.f32.mrf.mxu0
    %v4726 = vadd.f32 %v3750, %v4725
    %v4727 = vpop.f32.mrf.mxu0
    %v4728 = vadd.f32 %v3754, %v4727
    %4729 = vdwg.mxu0
    %v4731 = vrot.slane %v4726, 4
    %v4733 = vadd.f32 %v3744, %v4731
    %v4734 = vmul.f32 %v4733, 0.5
    %v4735 = vtanh.pop %v4734
    %v4736 = vadd.f32 %v4735, 1.0
    %v4737 = vmul.f32 %v4736, 0.5
    %4738 = vrot.lane.b32.xlu0 %v4731, 64
    %v4739 = vpop.permute.xlu0 %4738
    %v4741 = vmul.f32 %v4737, %v4739
    %4743 = vrot.lane.b32.xlu0 %v4741, 64
    %v4744 = vpop.permute.xlu0 %4743
    %v4746 = vadd.f32 %v3744, %v4744
    %v4747 = vtanh.pop %v4746
    %v4748 = vsub.f32 1.0, %v4737
    %4750 = vrot.lane.b32.xlu0 %v4747, 96
    %v4751 = vpop.permute.xlu0 %4750
    %v4753 = vmul.f32 %v4748, %v4751
    %v4754 = vrot.slane %v4652, 6
    %4755 = vrot.lane.b32.xlu0 %v4754, 32
    %v4756 = vpop.permute.xlu0 %4755
    %v4758 = vmul.f32 %v4737, %v4756
    %v4759 = vadd.f32 %v4753, %v4758
    %v4760 = vrot.slane %v4726, 6
    %v4762 = vadd.f32 %v3742, %v4760
    %v4763 = vmul.f32 %v4762, 0.5
    %v4764 = vtanh.pop %v4763
    %v4765 = vadd.f32 %v4764, 1.0
    %v4766 = vmul.f32 %v4765, 0.5
    %v4768 = vrot.slane %v4728, 6
    %v4770 = vadd.f32 %v3743, %v4768
    %v4771 = vmul.f32 %v4770, 0.5
    %v4772 = vtanh.pop %v4771
    %v4773 = vadd.f32 %v4772, 1.0
    %v4774 = vmul.f32 %v4773, 0.5
    %4775 = vrot.lane.b32.xlu0 %v4768, 64
    %v4776 = vpop.permute.xlu0 %4775
    %v4778 = vmul.f32 %v4766, %v4776
    %4780 = vrot.lane.b32.xlu0 %v4778, 64
    %v4781 = vpop.permute.xlu0 %4780
    %v4783 = vadd.f32 %v3743, %v4781
    %v4784 = vtanh.pop %v4783
    %v4785 = vsub.f32 1.0, %v4774
    %4787 = vrot.lane.b32.xlu0 %v4784, 96
    %v4788 = vpop.permute.xlu0 %4787
    %v4790 = vmul.f32 %v4785, %v4788
    %4791 = vrot.lane.b32.xlu0 %v4652, 96
    %v4792 = vpop.permute.xlu0 %4791
    %v4794 = vmul.f32 %v4774, %v4792
    %v4795 = vadd.f32 %v4790, %v4794
    %4797 = vrot.lane.b32.xlu0 %v4759, 96
    %v4798 = vpop.permute.xlu0 %4797
    %v4801 = vrot.slane %v4795, 6
    %4802 = vrot.lane.b32.xlu0 %v4801, 32
    %v4803 = vpop.permute.xlu0 %4802
    %v4805 = vsel %vm218, %v4798, %v4803
    %4806 = vst.msk [vmem:[#allocation2 + $0x8] sm:$0x30] %vm2621, %v4798
    %4807 = vst.msk [vmem:[#allocation3] sm:$0xc] %vm2619, %v4795
    %v4809 = vrot.slane %v4805, 4
    %v4810 = vsel %vm1098, %v4809, 0
    %4812 = vmatprep.subr.mxu0 0.0
    %4813 = vmatpush1.msra.mxu0 0.0
    %4814 = vmatprep.subr.mxu0 0.0
    %4815 = vmatpush1.msra.mxu0 0.0
    %4816 = vmatprep.subr.mxu0 0.0
    %4817 = vmatpush1.msra.mxu0 0.0
    %4818 = vmatprep.subr.mxu0 0.0
    %4819 = vmatpush1.msra.mxu0 0.0
    %4820 = vmatprep.subr.mxu0 0.0
    %4821 = vmatpush1.msra.mxu0 0.0
    %4822 = vmatprep.subr.mxu0 0.0
    %4823 = vmatpush1.msra.mxu0 0.0
    %4824 = vmatprep.subr.mxu0 0.0
    %4825 = vmatpush1.msra.mxu0 0.0
    %4826 = vmatprep.subr.mxu0 0.0
    %4827 = vmatpush1.msra.mxu0 0.0
    %4828 = vmatprep.subr.mxu0 %v3544
    %4829 = vmatpush1.msra.mxu0 %v3543
    %4830 = vmatprep.subr.mxu0 %v3542
    %4831 = vmatpush1.msra.mxu0 %v3541
    %4832 = vmatprep.subr.mxu0 %v3540
    %4833 = vmatpush1.msra.mxu0 %v3539
    %4834 = vmatprep.subr.mxu0 %v3538
    %4835 = vmatpush1.msra.mxu0 %v3537
    %4836 = vmatprep.subr.mxu0 %v3536
    %4837 = vmatpush1.msra.mxu0 %v3535
    %4838 = vmatprep.subr.mxu0 %v3534
    %4839 = vmatpush1.msra.mxu0 %v3533
    %4840 = vmatprep.subr.mxu0 %v3532
    %4841 = vmatpush1.msra.mxu0 %v3531
    %4842 = vmatprep.subr.mxu0 %v3530
    %4843 = vmatpush1.msra.mxu0 %v3529
    %4844 = vmatprep.subr.mxu0 0.0
    %4845 = vmatpush2.msra.mxu0 0.0
    %4846 = vmatprep.subr.mxu0 0.0
    %4847 = vmatpush2.msra.mxu0 0.0
    %4848 = vmatprep.subr.mxu0 0.0
    %4849 = vmatpush2.msra.mxu0 0.0
    %4850 = vmatprep.subr.mxu0 0.0
    %4851 = vmatpush2.msra.mxu0 0.0
    %4852 = vmatprep.subr.mxu0 0.0
    %4853 = vmatpush2.msra.mxu0 0.0
    %4854 = vmatprep.subr.mxu0 0.0
    %4855 = vmatpush2.msra.mxu0 0.0
    %4856 = vmatprep.subr.mxu0 0.0
    %4857 = vmatpush2.msra.mxu0 0.0
    %4858 = vmatprep.subr.mxu0 0.0
    %4859 = vmatpush2.msra.mxu0 0.0
    %4860 = vmatprep.subr.mxu0 0.0
    %4861 = vmatpush2.msra.mxu0 0.0
    %4862 = vmatprep.subr.mxu0 0.0
    %4863 = vmatpush2.msra.mxu0 0.0
    %4864 = vmatprep.subr.mxu0 0.0
    %4865 = vmatpush2.msra.mxu0 0.0
    %4866 = vmatprep.subr.mxu0 0.0
    %4867 = vmatpush2.msra.mxu0 0.0
    %4868 = vmatprep.subr.mxu0 0.0
    %4869 = vmatpush2.msra.mxu0 0.0
    %4870 = vmatprep.subr.mxu0 0.0
    %4871 = vmatpush2.msra.mxu0 0.0
    %4872 = vmatprep.subr.mxu0 0.0
    %4873 = vmatpush2.msra.mxu0 0.0
    %4874 = vmatprep.subr.mxu0 0.0
    %4875 = vmatpush2.msra.mxu0 0.0
    %4876 = vmatprep.mubr.f32.mxu0 0.0
    %4877 = vmatmul.mubr.f32.gmra.mxu0 %v4810
    %v4878 = vpop.f32.mrf.mxu0
    %v4879 = vadd.f32 %v3750, %v4878
    %v4880 = vpop.f32.mrf.mxu0
    %v4881 = vadd.f32 %v3754, %v4880
    %4882 = vdwg.mxu0
    %v4884 = vrot.slane %v4879, 2
    %v4886 = vadd.f32 %v3744, %v4884
    %v4887 = vmul.f32 %v4886, 0.5
    %v4888 = vtanh.pop %v4887
    %v4889 = vadd.f32 %v4888, 1.0
    %v4890 = vmul.f32 %v4889, 0.5
    %4891 = vrot.lane.b32.xlu0 %v4884, 64
    %v4892 = vpop.permute.xlu0 %4891
    %v4894 = vmul.f32 %v4890, %v4892
    %4896 = vrot.lane.b32.xlu0 %v4894, 64
    %v4897 = vpop.permute.xlu0 %4896
    %v4899 = vadd.f32 %v3744, %v4897
    %v4900 = vtanh.pop %v4899
    %v4901 = vsub.f32 1.0, %v4890
    %4903 = vrot.lane.b32.xlu0 %v4900, 96
    %v4904 = vpop.permute.xlu0 %4903
    %v4906 = vmul.f32 %v4901, %v4904
    %v4907 = vrot.slane %v4805, 6
    %4908 = vrot.lane.b32.xlu0 %v4907, 32
    %v4909 = vpop.permute.xlu0 %4908
    %v4911 = vmul.f32 %v4890, %v4909
    %v4912 = vadd.f32 %v4906, %v4911
    %v4913 = vadd.f32 %v3742, %v4879
    %v4914 = vmul.f32 %v4913, 0.5
    %v4915 = vtanh.pop %v4914
    %v4916 = vadd.f32 %v4915, 1.0
    %v4917 = vmul.f32 %v4916, 0.5
    %v4918 = vadd.f32 %v3743, %v4881
    %v4919 = vmul.f32 %v4918, 0.5
    %v4920 = vtanh.pop %v4919
    %v4921 = vadd.f32 %v4920, 1.0
    %v4922 = vmul.f32 %v4921, 0.5
    %4924 = vrot.lane.b32.xlu0 %v4881, 64
    %v4925 = vpop.permute.xlu0 %4924
    %v4927 = vmul.f32 %v4917, %v4925
    %4929 = vrot.lane.b32.xlu0 %v4927, 64
    %v4930 = vpop.permute.xlu0 %4929
    %v4932 = vadd.f32 %v3743, %v4930
    %v4933 = vtanh.pop %v4932
    %v4934 = vsub.f32 1.0, %v4922
    %4936 = vrot.lane.b32.xlu0 %v4933, 96
    %v4937 = vpop.permute.xlu0 %4936
    %v4939 = vmul.f32 %v4934, %v4937
    %4940 = vrot.lane.b32.xlu0 %v4809, 96
    %v4941 = vpop.permute.xlu0 %4940
    %v4943 = vmul.f32 %v4922, %v4941
    %v4944 = vadd.f32 %v4939, %v4943
    %4946 = vrot.lane.b32.xlu0 %v4912, 96
    %v4947 = vpop.permute.xlu0 %4946
    %4949 = vst.msk [vmem:[#allocation2 + $0x8] sm:$0xc0] %vm2466, %v4947
    %4950 = vst.msk [vmem:[#allocation3] sm:$0x3] %vm2464, %v4944
    %s4951 = scalar_lea.vmem %s16, 4
    %v4952 = vld [vmem:[%s4951] sm:$0x3]
    %s4953 = scalar_lea.vmem %s17, 4
    %v4954 = vld [vmem:[%s4953] sm:$0x3]
    %s4955 = scalar_lea.vmem [#allocation19], 256
    %v4956 = vld [vmem:[%s4955] sm:$0xff]
    %v4957 = vld [vmem:[%s4955 + $0x8] sm:$0xff]
    %v4958 = vld [vmem:[%s4955 + $0x10] sm:$0xff]
    %v4959 = vld [vmem:[%s4955 + $0x18] sm:$0xff]
    %v4960 = vld [vmem:[%s4955 + $0x20] sm:$0xff]
    %v4961 = vld [vmem:[%s4955 + $0x28] sm:$0xff]
    %v4962 = vld [vmem:[%s4955 + $0x30] sm:$0xff]
    %v4963 = vld [vmem:[%s4955 + $0x38] sm:$0xff]
    %v4964 = vld [vmem:[%s4955 + $0x40] sm:$0xff]
    %v4965 = vld [vmem:[%s4955 + $0x48] sm:$0xff]
    %v4966 = vld [vmem:[%s4955 + $0x50] sm:$0xff]
    %v4967 = vld [vmem:[%s4955 + $0x58] sm:$0xff]
    %v4968 = vld [vmem:[%s4955 + $0x60] sm:$0xff]
    %v4969 = vld [vmem:[%s4955 + $0x68] sm:$0xff]
    %v4970 = vld [vmem:[%s4955 + $0x70] sm:$0xff]
    %v4971 = vld [vmem:[%s4955 + $0x78] sm:$0xff]
    %s4972 = scalar_lea.vmem [#allocation18], 128
    %v4973 = vld [vmem:[%s4972] sm:$0xff]
    %v4974 = vld [vmem:[%s4972 + $0x8] sm:$0xff]
    %v4975 = vld [vmem:[%s4972 + $0x10] sm:$0xff]
    %v4976 = vld [vmem:[%s4972 + $0x18] sm:$0xff]
    %v4977 = vld [vmem:[%s4972 + $0x20] sm:$0xff]
    %v4978 = vld [vmem:[%s4972 + $0x28] sm:$0xff]
    %v4979 = vld [vmem:[%s4972 + $0x30] sm:$0xff]
    %v4980 = vld [vmem:[%s4972 + $0x38] sm:$0xff]
    %v4981 = vld [vmem:[%s4972 + $0x40] sm:$0xff]
    %v4982 = vld [vmem:[%s4972 + $0x48] sm:$0xff]
    %v4983 = vld [vmem:[%s4972 + $0x50] sm:$0xff]
    %v4984 = vld [vmem:[%s4972 + $0x58] sm:$0xff]
    %v4985 = vld [vmem:[%s4972 + $0x60] sm:$0xff]
    %v4986 = vld [vmem:[%s4972 + $0x68] sm:$0xff]
    %v4987 = vld [vmem:[%s4972 + $0x70] sm:$0xff]
    %v4988 = vld [vmem:[%s4972 + $0x78] sm:$0xff]
    %v4989 = vld [vmem:[#allocation2] sm:$0xff]
    %v4990 = vld [vmem:[#allocation2 + $0x8] sm:$0xff]
    %v4991 = vld [vmem:[#allocation3] sm:$0xff]
    %v4992 = vld [vmem:[#allocation3 + $0x8] sm:$0xff]
    %v4994 = vsel %vm218, %v4991, 0
    %v4997 = vsel %vm218, %v4992, 0
    %4999 = vmatprep.subr.mxu0 0.0
    %5000 = vmatpush1.msra.mxu0 0.0
    %5001 = vmatprep.subr.mxu0 0.0
    %5002 = vmatpush1.msra.mxu0 0.0
    %5003 = vmatprep.subr.mxu0 0.0
    %5004 = vmatpush1.msra.mxu0 0.0
    %5005 = vmatprep.subr.mxu0 0.0
    %5006 = vmatpush1.msra.mxu0 0.0
    %5007 = vmatprep.subr.mxu0 0.0
    %5008 = vmatpush1.msra.mxu0 0.0
    %5009 = vmatprep.subr.mxu0 0.0
    %5010 = vmatpush1.msra.mxu0 0.0
    %5011 = vmatprep.subr.mxu0 0.0
    %5012 = vmatpush1.msra.mxu0 0.0
    %5013 = vmatprep.subr.mxu0 0.0
    %5014 = vmatpush1.msra.mxu0 0.0
    %5015 = vmatprep.subr.mxu0 0.0
    %5016 = vmatpush1.msra.mxu0 0.0
    %5017 = vmatprep.subr.mxu0 0.0
    %5018 = vmatpush1.msra.mxu0 0.0
    %5019 = vmatprep.subr.mxu0 0.0
    %5020 = vmatpush1.msra.mxu0 0.0
    %5021 = vmatprep.subr.mxu0 0.0
    %5022 = vmatpush1.msra.mxu0 0.0
    %5023 = vmatprep.subr.mxu0 %v4988
    %5024 = vmatpush1.msra.mxu0 %v4987
    %5025 = vmatprep.subr.mxu0 %v4986
    %5026 = vmatpush1.msra.mxu0 %v4985
    %5027 = vmatprep.subr.mxu0 %v4984
    %5028 = vmatpush1.msra.mxu0 %v4983
    %5029 = vmatprep.subr.mxu0 %v4982
    %5030 = vmatpush1.msra.mxu0 %v4981
    %5031 = vmatprep.subr.mxu0 0.0
    %5032 = vmatpush2.msra.mxu0 0.0
    %5033 = vmatprep.subr.mxu0 0.0
    %5034 = vmatpush2.msra.mxu0 0.0
    %5035 = vmatprep.subr.mxu0 0.0
    %5036 = vmatpush2.msra.mxu0 0.0
    %5037 = vmatprep.subr.mxu0 0.0
    %5038 = vmatpush2.msra.mxu0 0.0
    %5039 = vmatprep.subr.mxu0 0.0
    %5040 = vmatpush2.msra.mxu0 0.0
    %5041 = vmatprep.subr.mxu0 0.0
    %5042 = vmatpush2.msra.mxu0 0.0
    %5043 = vmatprep.subr.mxu0 0.0
    %5044 = vmatpush2.msra.mxu0 0.0
    %5045 = vmatprep.subr.mxu0 0.0
    %5046 = vmatpush2.msra.mxu0 0.0
    %5047 = vmatprep.subr.mxu0 0.0
    %5048 = vmatpush2.msra.mxu0 0.0
    %5049 = vmatprep.subr.mxu0 0.0
    %5050 = vmatpush2.msra.mxu0 0.0
    %5051 = vmatprep.subr.mxu0 0.0
    %5052 = vmatpush2.msra.mxu0 0.0
    %5053 = vmatprep.subr.mxu0 0.0
    %5054 = vmatpush2.msra.mxu0 0.0
    %5055 = vmatprep.subr.mxu0 0.0
    %5056 = vmatpush2.msra.mxu0 0.0
    %5057 = vmatprep.subr.mxu0 0.0
    %5058 = vmatpush2.msra.mxu0 0.0
    %5059 = vmatprep.subr.mxu0 0.0
    %5060 = vmatpush2.msra.mxu0 0.0
    %5061 = vmatprep.subr.mxu0 0.0
    %5062 = vmatpush2.msra.mxu0 0.0
    %5063 = vmatprep.mubr.f32.mxu0 0.0
    %5064 = vmatmul.mubr.f32.gmra.mxu0 %v4994
    %v5065 = vpop.f32.mrf.mxu0
    %v5066 = vadd.f32 0.0, %v5065
    %v5067 = vpop.f32.mrf.mxu0
    %v5068 = vadd.f32 0.0, %v5067
    %5069 = vmatprep.mubr.f32.mxu0 0.0
    %5070 = vmatmul.mubr.f32.gmra.mxu0 %v4997
    %v5071 = vpop.f32.mrf.mxu0
    %v5072 = vadd.f32 0.0, %v5071
    %v5073 = vpop.f32.mrf.mxu0
    %v5074 = vadd.f32 0.0, %v5073
    %5075 = vdwg.mxu0
    %v5077 = vsel %vm218, %v4989, 0
    %v5080 = vsel %vm218, %v4990, 0
    %5082 = vmatprep.subr.mxu0 0.0
    %5083 = vmatpush1.msra.mxu0 0.0
    %5084 = vmatprep.subr.mxu0 0.0
    %5085 = vmatpush1.msra.mxu0 0.0
    %5086 = vmatprep.subr.mxu0 0.0
    %5087 = vmatpush1.msra.mxu0 0.0
    %5088 = vmatprep.subr.mxu0 0.0
    %5089 = vmatpush1.msra.mxu0 0.0
    %5090 = vmatprep.subr.mxu0 0.0
    %5091 = vmatpush1.msra.mxu0 0.0
    %5092 = vmatprep.subr.mxu0 0.0
    %5093 = vmatpush1.msra.mxu0 0.0
    %5094 = vmatprep.subr.mxu0 0.0
    %5095 = vmatpush1.msra.mxu0 0.0
    %5096 = vmatprep.subr.mxu0 0.0
    %5097 = vmatpush1.msra.mxu0 0.0
    %5098 = vmatprep.subr.mxu0 0.0
    %5099 = vmatpush1.msra.mxu0 0.0
    %5100 = vmatprep.subr.mxu0 0.0
    %5101 = vmatpush1.msra.mxu0 0.0
    %5102 = vmatprep.subr.mxu0 0.0
    %5103 = vmatpush1.msra.mxu0 0.0
    %5104 = vmatprep.subr.mxu0 0.0
    %5105 = vmatpush1.msra.mxu0 0.0
    %5106 = vmatprep.subr.mxu0 %v4980
    %5107 = vmatpush1.msra.mxu0 %v4979
    %5108 = vmatprep.subr.mxu0 %v4978
    %5109 = vmatpush1.msra.mxu0 %v4977
    %5110 = vmatprep.subr.mxu0 %v4976
    %5111 = vmatpush1.msra.mxu0 %v4975
    %5112 = vmatprep.subr.mxu0 %v4974
    %5113 = vmatpush1.msra.mxu0 %v4973
    %5114 = vmatprep.subr.mxu0 0.0
    %5115 = vmatpush2.msra.mxu0 0.0
    %5116 = vmatprep.subr.mxu0 0.0
    %5117 = vmatpush2.msra.mxu0 0.0
    %5118 = vmatprep.subr.mxu0 0.0
    %5119 = vmatpush2.msra.mxu0 0.0
    %5120 = vmatprep.subr.mxu0 0.0
    %5121 = vmatpush2.msra.mxu0 0.0
    %5122 = vmatprep.subr.mxu0 0.0
    %5123 = vmatpush2.msra.mxu0 0.0
    %5124 = vmatprep.subr.mxu0 0.0
    %5125 = vmatpush2.msra.mxu0 0.0
    %5126 = vmatprep.subr.mxu0 0.0
    %5127 = vmatpush2.msra.mxu0 0.0
    %5128 = vmatprep.subr.mxu0 0.0
    %5129 = vmatpush2.msra.mxu0 0.0
    %5130 = vmatprep.subr.mxu0 0.0
    %5131 = vmatpush2.msra.mxu0 0.0
    %5132 = vmatprep.subr.mxu0 0.0
    %5133 = vmatpush2.msra.mxu0 0.0
    %5134 = vmatprep.subr.mxu0 0.0
    %5135 = vmatpush2.msra.mxu0 0.0
    %5136 = vmatprep.subr.mxu0 0.0
    %5137 = vmatpush2.msra.mxu0 0.0
    %5138 = vmatprep.subr.mxu0 0.0
    %5139 = vmatpush2.msra.mxu0 0.0
    %5140 = vmatprep.subr.mxu0 0.0
    %5141 = vmatpush2.msra.mxu0 0.0
    %5142 = vmatprep.subr.mxu0 0.0
    %5143 = vmatpush2.msra.mxu0 0.0
    %5144 = vmatprep.subr.mxu0 0.0
    %5145 = vmatpush2.msra.mxu0 0.0
    %5146 = vmatprep.mubr.f32.mxu0 0.0
    %5147 = vmatmul.mubr.f32.gmra.mxu0 %v5077
    %v5148 = vpop.f32.mrf.mxu0
    %v5149 = vadd.f32 %v5066, %v5148
    %v5150 = vpop.f32.mrf.mxu0
    %v5151 = vadd.f32 %v5068, %v5150
    %5152 = vmatprep.mubr.f32.mxu0 0.0
    %5153 = vmatmul.mubr.f32.gmra.mxu0 %v5080
    %v5154 = vpop.f32.mrf.mxu0
    %v5155 = vadd.f32 %v5072, %v5154
    %v5156 = vpop.f32.mrf.mxu0
    %v5157 = vadd.f32 %v5074, %v5156
    %5158 = vdwg.mxu0
    %v5160 = vlaneseq
    %v5161 = vshrl.u32 %v5160, 7
    %v5162 = vsub.s32 0, %v5161
    %v5163 = vrot.slane %v4952, %v5162
    %v5164 = vlaneseq
    %v5165 = vshrl.u32 %v5164, 7
    %v5166 = vsub.s32 1, %v5165
    %v5167 = vrot.slane %v4952, %v5166
    %v5170 = vadd.f32 %v5149, %v5163
    %v5171 = vadd.f32 %v5151, %v5167
    %v5172 = vadd.f32 %v5155, %v5163
    %v5173 = vadd.f32 %v5157, %v5167
    %v5175 = vlaneseq
    %v5176 = vshrl.u32 %v5175, 7
    %v5177 = vsub.s32 0, %v5176
    %v5178 = vrot.slane %v4954, %v5177
    %v5179 = vlaneseq
    %v5180 = vshrl.u32 %v5179, 7
    %v5181 = vsub.s32 1, %v5180
    %v5182 = vrot.slane %v4954, %v5181
    %5185 = vmatprep.subr.mxu0 0.0
    %5186 = vmatpush1.msra.mxu0 0.0
    %5187 = vmatprep.subr.mxu0 0.0
    %5188 = vmatpush1.msra.mxu0 0.0
    %5189 = vmatprep.subr.mxu0 0.0
    %5190 = vmatpush1.msra.mxu0 0.0
    %5191 = vmatprep.subr.mxu0 0.0
    %5192 = vmatpush1.msra.mxu0 0.0
    %5193 = vmatprep.subr.mxu0 0.0
    %5194 = vmatpush1.msra.mxu0 0.0
    %5195 = vmatprep.subr.mxu0 0.0
    %5196 = vmatpush1.msra.mxu0 0.0
    %5197 = vmatprep.subr.mxu0 0.0
    %5198 = vmatpush1.msra.mxu0 0.0
    %5199 = vmatprep.subr.mxu0 0.0
    %5200 = vmatpush1.msra.mxu0 0.0
    %5201 = vmatprep.subr.mxu0 %v4971
    %5202 = vmatpush1.msra.mxu0 %v4970
    %5203 = vmatprep.subr.mxu0 %v4969
    %5204 = vmatpush1.msra.mxu0 %v4968
    %5205 = vmatprep.subr.mxu0 %v4967
    %5206 = vmatpush1.msra.mxu0 %v4966
    %5207 = vmatprep.subr.mxu0 %v4965
    %5208 = vmatpush1.msra.mxu0 %v4964
    %5209 = vmatprep.subr.mxu0 %v4963
    %5210 = vmatpush1.msra.mxu0 %v4962
    %5211 = vmatprep.subr.mxu0 %v4961
    %5212 = vmatpush1.msra.mxu0 %v4960
    %5213 = vmatprep.subr.mxu0 %v4959
    %5214 = vmatpush1.msra.mxu0 %v4958
    %5215 = vmatprep.subr.mxu0 %v4957
    %5216 = vmatpush1.msra.mxu0 %v4956
    %5217 = vmatprep.subr.mxu0 0.0
    %5218 = vmatpush2.msra.mxu0 0.0
    %5219 = vmatprep.subr.mxu0 0.0
    %5220 = vmatpush2.msra.mxu0 0.0
    %5221 = vmatprep.subr.mxu0 0.0
    %5222 = vmatpush2.msra.mxu0 0.0
    %5223 = vmatprep.subr.mxu0 0.0
    %5224 = vmatpush2.msra.mxu0 0.0
    %5225 = vmatprep.subr.mxu0 0.0
    %5226 = vmatpush2.msra.mxu0 0.0
    %5227 = vmatprep.subr.mxu0 0.0
    %5228 = vmatpush2.msra.mxu0 0.0
    %5229 = vmatprep.subr.mxu0 0.0
    %5230 = vmatpush2.msra.mxu0 0.0
    %5231 = vmatprep.subr.mxu0 0.0
    %5232 = vmatpush2.msra.mxu0 0.0
    %5233 = vmatprep.subr.mxu0 0.0
    %5234 = vmatpush2.msra.mxu0 0.0
    %5235 = vmatprep.subr.mxu0 0.0
    %5236 = vmatpush2.msra.mxu0 0.0
    %5237 = vmatprep.subr.mxu0 0.0
    %5238 = vmatpush2.msra.mxu0 0.0
    %5239 = vmatprep.subr.mxu0 0.0
    %5240 = vmatpush2.msra.mxu0 0.0
    %5241 = vmatprep.subr.mxu0 0.0
    %5242 = vmatpush2.msra.mxu0 0.0
    %5243 = vmatprep.subr.mxu0 0.0
    %5244 = vmatpush2.msra.mxu0 0.0
    %5245 = vmatprep.subr.mxu0 0.0
    %5246 = vmatpush2.msra.mxu0 0.0
    %5247 = vmatprep.subr.mxu0 0.0
    %5248 = vmatpush2.msra.mxu0 0.0
    %5249 = vmatprep.mubr.f32.mxu0 0.0
    %5250 = vmatmul.mubr.f32.gmra.mxu0 %v2324
    %v5251 = vpop.f32.mrf.mxu0
    %v5252 = vadd.f32 %v5178, %v5251
    %v5253 = vpop.f32.mrf.mxu0
    %v5254 = vadd.f32 %v5182, %v5253
    %5255 = vdwg.mxu0
    %v5256 = vadd.f32 %v5170, %v5252
    %v5257 = vmul.f32 %v5256, 0.5
    %v5258 = vtanh.pop %v5257
    %v5259 = vadd.f32 %v5258, 1.0
    %v5260 = vmul.f32 %v5259, 0.5
    %5262 = vrot.lane.b32.xlu0 %v5252, 64
    %v5263 = vpop.permute.xlu0 %5262
    %v5265 = vmul.f32 %v5260, %v5263
    %5267 = vrot.lane.b32.xlu0 %v5265, 64
    %v5268 = vpop.permute.xlu0 %5267
    %v5270 = vadd.f32 %v5170, %v5268
    %v5271 = vtanh.pop %v5270
    %v5272 = vsub.f32 1.0, %v5260
    %5274 = vrot.lane.b32.xlu0 %v5271, 96
    %v5275 = vpop.permute.xlu0 %5274
    %v5277 = vmul.f32 %v5272, %v5275
    %v5278 = vmul.f32 %v5260, 0.0
    %v5279 = vadd.f32 %v5277, %v5278
    %v5280 = vrot.slane %v5252, 2
    %v5282 = vadd.f32 %v5172, %v5280
    %v5283 = vmul.f32 %v5282, 0.5
    %v5284 = vtanh.pop %v5283
    %v5285 = vadd.f32 %v5284, 1.0
    %v5286 = vmul.f32 %v5285, 0.5
    %v5288 = vrot.slane %v5254, 2
    %v5290 = vadd.f32 %v5173, %v5288
    %v5291 = vmul.f32 %v5290, 0.5
    %v5292 = vtanh.pop %v5291
    %v5293 = vadd.f32 %v5292, 1.0
    %v5294 = vmul.f32 %v5293, 0.5
    %5295 = vrot.lane.b32.xlu0 %v5288, 64
    %v5296 = vpop.permute.xlu0 %5295
    %v5298 = vmul.f32 %v5286, %v5296
    %5300 = vrot.lane.b32.xlu0 %v5298, 64
    %v5301 = vpop.permute.xlu0 %5300
    %v5303 = vadd.f32 %v5173, %v5301
    %v5304 = vtanh.pop %v5303
    %v5305 = vsub.f32 1.0, %v5294
    %5307 = vrot.lane.b32.xlu0 %v5304, 96
    %v5308 = vpop.permute.xlu0 %5307
    %v5310 = vmul.f32 %v5305, %v5308
    %v5311 = vmul.f32 %v5294, 0.0
    %v5312 = vadd.f32 %v5310, %v5311
    %5314 = vrot.lane.b32.xlu0 %v5279, 96
    %v5315 = vpop.permute.xlu0 %5314
    %v5318 = vrot.slane %v5312, 6
    %5319 = vrot.lane.b32.xlu0 %v5318, 32
    %v5320 = vpop.permute.xlu0 %5319
    %v5322 = vsel %vm218, %v5315, %v5320
    %v5324 = vsel %vm1098, %v5322, 0
    %5326 = vmatprep.subr.mxu0 0.0
    %5327 = vmatpush1.msra.mxu0 0.0
    %5328 = vmatprep.subr.mxu0 0.0
    %5329 = vmatpush1.msra.mxu0 0.0
    %5330 = vmatprep.subr.mxu0 0.0
    %5331 = vmatpush1.msra.mxu0 0.0
    %5332 = vmatprep.subr.mxu0 0.0
    %5333 = vmatpush1.msra.mxu0 0.0
    %5334 = vmatprep.subr.mxu0 0.0
    %5335 = vmatpush1.msra.mxu0 0.0
    %5336 = vmatprep.subr.mxu0 0.0
    %5337 = vmatpush1.msra.mxu0 0.0
    %5338 = vmatprep.subr.mxu0 0.0
    %5339 = vmatpush1.msra.mxu0 0.0
    %5340 = vmatprep.subr.mxu0 0.0
    %5341 = vmatpush1.msra.mxu0 0.0
    %5342 = vmatprep.subr.mxu0 %v4971
    %5343 = vmatpush1.msra.mxu0 %v4970
    %5344 = vmatprep.subr.mxu0 %v4969
    %5345 = vmatpush1.msra.mxu0 %v4968
    %5346 = vmatprep.subr.mxu0 %v4967
    %5347 = vmatpush1.msra.mxu0 %v4966
    %5348 = vmatprep.subr.mxu0 %v4965
    %5349 = vmatpush1.msra.mxu0 %v4964
    %5350 = vmatprep.subr.mxu0 %v4963
    %5351 = vmatpush1.msra.mxu0 %v4962
    %5352 = vmatprep.subr.mxu0 %v4961
    %5353 = vmatpush1.msra.mxu0 %v4960
    %5354 = vmatprep.subr.mxu0 %v4959
    %5355 = vmatpush1.msra.mxu0 %v4958
    %5356 = vmatprep.subr.mxu0 %v4957
    %5357 = vmatpush1.msra.mxu0 %v4956
    %5358 = vmatprep.subr.mxu0 0.0
    %5359 = vmatpush2.msra.mxu0 0.0
    %5360 = vmatprep.subr.mxu0 0.0
    %5361 = vmatpush2.msra.mxu0 0.0
    %5362 = vmatprep.subr.mxu0 0.0
    %5363 = vmatpush2.msra.mxu0 0.0
    %5364 = vmatprep.subr.mxu0 0.0
    %5365 = vmatpush2.msra.mxu0 0.0
    %5366 = vmatprep.subr.mxu0 0.0
    %5367 = vmatpush2.msra.mxu0 0.0
    %5368 = vmatprep.subr.mxu0 0.0
    %5369 = vmatpush2.msra.mxu0 0.0
    %5370 = vmatprep.subr.mxu0 0.0
    %5371 = vmatpush2.msra.mxu0 0.0
    %5372 = vmatprep.subr.mxu0 0.0
    %5373 = vmatpush2.msra.mxu0 0.0
    %5374 = vmatprep.subr.mxu0 0.0
    %5375 = vmatpush2.msra.mxu0 0.0
    %5376 = vmatprep.subr.mxu0 0.0
    %5377 = vmatpush2.msra.mxu0 0.0
    %5378 = vmatprep.subr.mxu0 0.0
    %5379 = vmatpush2.msra.mxu0 0.0
    %5380 = vmatprep.subr.mxu0 0.0
    %5381 = vmatpush2.msra.mxu0 0.0
    %5382 = vmatprep.subr.mxu0 0.0
    %5383 = vmatpush2.msra.mxu0 0.0
    %5384 = vmatprep.subr.mxu0 0.0
    %5385 = vmatpush2.msra.mxu0 0.0
    %5386 = vmatprep.subr.mxu0 0.0
    %5387 = vmatpush2.msra.mxu0 0.0
    %5388 = vmatprep.subr.mxu0 0.0
    %5389 = vmatpush2.msra.mxu0 0.0
    %5390 = vmatprep.mubr.f32.mxu0 0.0
    %5391 = vmatmul.mubr.f32.gmra.mxu0 %v5324
    %v5392 = vpop.f32.mrf.mxu0
    %v5393 = vadd.f32 %v5178, %v5392
    %v5394 = vpop.f32.mrf.mxu0
    %v5395 = vadd.f32 %v5182, %v5394
    %5396 = vdwg.mxu0
    %v5398 = vrot.slane %v5393, 6
    %v5400 = vadd.f32 %v5170, %v5398
    %v5401 = vmul.f32 %v5400, 0.5
    %v5402 = vtanh.pop %v5401
    %v5403 = vadd.f32 %v5402, 1.0
    %v5404 = vmul.f32 %v5403, 0.5
    %5405 = vrot.lane.b32.xlu0 %v5398, 64
    %v5406 = vpop.permute.xlu0 %5405
    %v5408 = vmul.f32 %v5404, %v5406
    %5410 = vrot.lane.b32.xlu0 %v5408, 64
    %v5411 = vpop.permute.xlu0 %5410
    %v5413 = vadd.f32 %v5170, %v5411
    %v5414 = vtanh.pop %v5413
    %v5415 = vsub.f32 1.0, %v5404
    %5417 = vrot.lane.b32.xlu0 %v5414, 96
    %v5418 = vpop.permute.xlu0 %5417
    %v5420 = vmul.f32 %v5415, %v5418
    %v5421 = vrot.slane %v5322, 6
    %5422 = vrot.lane.b32.xlu0 %v5421, 32
    %v5423 = vpop.permute.xlu0 %5422
    %v5425 = vmul.f32 %v5404, %v5423
    %v5426 = vadd.f32 %v5420, %v5425
    %v5427 = vrot.slane %v5393, 4
    %v5429 = vadd.f32 %v5172, %v5427
    %v5430 = vmul.f32 %v5429, 0.5
    %v5431 = vtanh.pop %v5430
    %v5432 = vadd.f32 %v5431, 1.0
    %v5433 = vmul.f32 %v5432, 0.5
    %v5435 = vrot.slane %v5395, 4
    %v5437 = vadd.f32 %v5173, %v5435
    %v5438 = vmul.f32 %v5437, 0.5
    %v5439 = vtanh.pop %v5438
    %v5440 = vadd.f32 %v5439, 1.0
    %v5441 = vmul.f32 %v5440, 0.5
    %5442 = vrot.lane.b32.xlu0 %v5435, 64
    %v5443 = vpop.permute.xlu0 %5442
    %v5445 = vmul.f32 %v5433, %v5443
    %5447 = vrot.lane.b32.xlu0 %v5445, 64
    %v5448 = vpop.permute.xlu0 %5447
    %v5450 = vadd.f32 %v5173, %v5448
    %v5451 = vtanh.pop %v5450
    %v5452 = vsub.f32 1.0, %v5441
    %5454 = vrot.lane.b32.xlu0 %v5451, 96
    %v5455 = vpop.permute.xlu0 %5454
    %v5457 = vmul.f32 %v5452, %v5455
    %v5458 = vrot.slane %v5322, 4
    %5459 = vrot.lane.b32.xlu0 %v5458, 96
    %v5460 = vpop.permute.xlu0 %5459
    %v5462 = vmul.f32 %v5441, %v5460
    %v5463 = vadd.f32 %v5457, %v5462
    %5465 = vrot.lane.b32.xlu0 %v5426, 96
    %v5466 = vpop.permute.xlu0 %5465
    %v5469 = vrot.slane %v5463, 2
    %5470 = vrot.lane.b32.xlu0 %v5469, 32
    %v5471 = vpop.permute.xlu0 %5470
    %v5473 = vsel %vm218, %v5466, %v5471
    %v5475 = vrot.slane %v5473, 2
    %v5476 = vsel %vm1098, %v5475, 0
    %5478 = vmatprep.subr.mxu0 0.0
    %5479 = vmatpush1.msra.mxu0 0.0
    %5480 = vmatprep.subr.mxu0 0.0
    %5481 = vmatpush1.msra.mxu0 0.0
    %5482 = vmatprep.subr.mxu0 0.0
    %5483 = vmatpush1.msra.mxu0 0.0
    %5484 = vmatprep.subr.mxu0 0.0
    %5485 = vmatpush1.msra.mxu0 0.0
    %5486 = vmatprep.subr.mxu0 0.0
    %5487 = vmatpush1.msra.mxu0 0.0
    %5488 = vmatprep.subr.mxu0 0.0
    %5489 = vmatpush1.msra.mxu0 0.0
    %5490 = vmatprep.subr.mxu0 0.0
    %5491 = vmatpush1.msra.mxu0 0.0
    %5492 = vmatprep.subr.mxu0 0.0
    %5493 = vmatpush1.msra.mxu0 0.0
    %5494 = vmatprep.subr.mxu0 %v4971
    %5495 = vmatpush1.msra.mxu0 %v4970
    %5496 = vmatprep.subr.mxu0 %v4969
    %5497 = vmatpush1.msra.mxu0 %v4968
    %5498 = vmatprep.subr.mxu0 %v4967
    %5499 = vmatpush1.msra.mxu0 %v4966
    %5500 = vmatprep.subr.mxu0 %v4965
    %5501 = vmatpush1.msra.mxu0 %v4964
    %5502 = vmatprep.subr.mxu0 %v4963
    %5503 = vmatpush1.msra.mxu0 %v4962
    %5504 = vmatprep.subr.mxu0 %v4961
    %5505 = vmatpush1.msra.mxu0 %v4960
    %5506 = vmatprep.subr.mxu0 %v4959
    %5507 = vmatpush1.msra.mxu0 %v4958
    %5508 = vmatprep.subr.mxu0 %v4957
    %5509 = vmatpush1.msra.mxu0 %v4956
    %5510 = vmatprep.subr.mxu0 0.0
    %5511 = vmatpush2.msra.mxu0 0.0
    %5512 = vmatprep.subr.mxu0 0.0
    %5513 = vmatpush2.msra.mxu0 0.0
    %5514 = vmatprep.subr.mxu0 0.0
    %5515 = vmatpush2.msra.mxu0 0.0
    %5516 = vmatprep.subr.mxu0 0.0
    %5517 = vmatpush2.msra.mxu0 0.0
    %5518 = vmatprep.subr.mxu0 0.0
    %5519 = vmatpush2.msra.mxu0 0.0
    %5520 = vmatprep.subr.mxu0 0.0
    %5521 = vmatpush2.msra.mxu0 0.0
    %5522 = vmatprep.subr.mxu0 0.0
    %5523 = vmatpush2.msra.mxu0 0.0
    %5524 = vmatprep.subr.mxu0 0.0
    %5525 = vmatpush2.msra.mxu0 0.0
    %5526 = vmatprep.subr.mxu0 0.0
    %5527 = vmatpush2.msra.mxu0 0.0
    %5528 = vmatprep.subr.mxu0 0.0
    %5529 = vmatpush2.msra.mxu0 0.0
    %5530 = vmatprep.subr.mxu0 0.0
    %5531 = vmatpush2.msra.mxu0 0.0
    %5532 = vmatprep.subr.mxu0 0.0
    %5533 = vmatpush2.msra.mxu0 0.0
    %5534 = vmatprep.subr.mxu0 0.0
    %5535 = vmatpush2.msra.mxu0 0.0
    %5536 = vmatprep.subr.mxu0 0.0
    %5537 = vmatpush2.msra.mxu0 0.0
    %5538 = vmatprep.subr.mxu0 0.0
    %5539 = vmatpush2.msra.mxu0 0.0
    %5540 = vmatprep.subr.mxu0 0.0
    %5541 = vmatpush2.msra.mxu0 0.0
    %5542 = vmatprep.mubr.f32.mxu0 0.0
    %5543 = vmatmul.mubr.f32.gmra.mxu0 %v5476
    %v5544 = vpop.f32.mrf.mxu0
    %v5545 = vadd.f32 %v5178, %v5544
    %v5546 = vpop.f32.mrf.mxu0
    %v5547 = vadd.f32 %v5182, %v5546
    %5548 = vdwg.mxu0
    %v5550 = vrot.slane %v5545, 4
    %v5552 = vadd.f32 %v5170, %v5550
    %v5553 = vmul.f32 %v5552, 0.5
    %v5554 = vtanh.pop %v5553
    %v5555 = vadd.f32 %v5554, 1.0
    %v5556 = vmul.f32 %v5555, 0.5
    %5557 = vrot.lane.b32.xlu0 %v5550, 64
    %v5558 = vpop.permute.xlu0 %5557
    %v5560 = vmul.f32 %v5556, %v5558
    %5562 = vrot.lane.b32.xlu0 %v5560, 64
    %v5563 = vpop.permute.xlu0 %5562
    %v5565 = vadd.f32 %v5170, %v5563
    %v5566 = vtanh.pop %v5565
    %v5567 = vsub.f32 1.0, %v5556
    %5569 = vrot.lane.b32.xlu0 %v5566, 96
    %v5570 = vpop.permute.xlu0 %5569
    %v5572 = vmul.f32 %v5567, %v5570
    %v5573 = vrot.slane %v5473, 6
    %5574 = vrot.lane.b32.xlu0 %v5573, 32
    %v5575 = vpop.permute.xlu0 %5574
    %v5577 = vmul.f32 %v5556, %v5575
    %v5578 = vadd.f32 %v5572, %v5577
    %v5579 = vrot.slane %v5545, 6
    %v5581 = vadd.f32 %v5172, %v5579
    %v5582 = vmul.f32 %v5581, 0.5
    %v5583 = vtanh.pop %v5582
    %v5584 = vadd.f32 %v5583, 1.0
    %v5585 = vmul.f32 %v5584, 0.5
    %v5587 = vrot.slane %v5547, 6
    %v5589 = vadd.f32 %v5173, %v5587
    %v5590 = vmul.f32 %v5589, 0.5
    %v5591 = vtanh.pop %v5590
    %v5592 = vadd.f32 %v5591, 1.0
    %v5593 = vmul.f32 %v5592, 0.5
    %5594 = vrot.lane.b32.xlu0 %v5587, 64
    %v5595 = vpop.permute.xlu0 %5594
    %v5597 = vmul.f32 %v5585, %v5595
    %5599 = vrot.lane.b32.xlu0 %v5597, 64
    %v5600 = vpop.permute.xlu0 %5599
    %v5602 = vadd.f32 %v5173, %v5600
    %v5603 = vtanh.pop %v5602
    %v5604 = vsub.f32 1.0, %v5593
    %5606 = vrot.lane.b32.xlu0 %v5603, 96
    %v5607 = vpop.permute.xlu0 %5606
    %v5609 = vmul.f32 %v5604, %v5607
    %5610 = vrot.lane.b32.xlu0 %v5473, 96
    %v5611 = vpop.permute.xlu0 %5610
    %v5613 = vmul.f32 %v5593, %v5611
    %v5614 = vadd.f32 %v5609, %v5613
    %5616 = vrot.lane.b32.xlu0 %v5578, 96
    %v5617 = vpop.permute.xlu0 %5616
    %v5620 = vrot.slane %v5614, 6
    %5621 = vrot.lane.b32.xlu0 %v5620, 32
    %v5622 = vpop.permute.xlu0 %5621
    %v5624 = vsel %vm218, %v5617, %v5622
    %v5626 = vrot.slane %v5624, 4
    %v5627 = vsel %vm1098, %v5626, 0
    %5629 = vmatprep.subr.mxu0 0.0
    %5630 = vmatpush1.msra.mxu0 0.0
    %5631 = vmatprep.subr.mxu0 0.0
    %5632 = vmatpush1.msra.mxu0 0.0
    %5633 = vmatprep.subr.mxu0 0.0
    %5634 = vmatpush1.msra.mxu0 0.0
    %5635 = vmatprep.subr.mxu0 0.0
    %5636 = vmatpush1.msra.mxu0 0.0
    %5637 = vmatprep.subr.mxu0 0.0
    %5638 = vmatpush1.msra.mxu0 0.0
    %5639 = vmatprep.subr.mxu0 0.0
    %5640 = vmatpush1.msra.mxu0 0.0
    %5641 = vmatprep.subr.mxu0 0.0
    %5642 = vmatpush1.msra.mxu0 0.0
    %5643 = vmatprep.subr.mxu0 0.0
    %5644 = vmatpush1.msra.mxu0 0.0
    %5645 = vmatprep.subr.mxu0 %v4971
    %5646 = vmatpush1.msra.mxu0 %v4970
    %5647 = vmatprep.subr.mxu0 %v4969
    %5648 = vmatpush1.msra.mxu0 %v4968
    %5649 = vmatprep.subr.mxu0 %v4967
    %5650 = vmatpush1.msra.mxu0 %v4966
    %5651 = vmatprep.subr.mxu0 %v4965
    %5652 = vmatpush1.msra.mxu0 %v4964
    %5653 = vmatprep.subr.mxu0 %v4963
    %5654 = vmatpush1.msra.mxu0 %v4962
    %5655 = vmatprep.subr.mxu0 %v4961
    %5656 = vmatpush1.msra.mxu0 %v4960
    %5657 = vmatprep.subr.mxu0 %v4959
    %5658 = vmatpush1.msra.mxu0 %v4958
    %5659 = vmatprep.subr.mxu0 %v4957
    %5660 = vmatpush1.msra.mxu0 %v4956
    %5661 = vmatprep.subr.mxu0 0.0
    %5662 = vmatpush2.msra.mxu0 0.0
    %5663 = vmatprep.subr.mxu0 0.0
    %5664 = vmatpush2.msra.mxu0 0.0
    %5665 = vmatprep.subr.mxu0 0.0
    %5666 = vmatpush2.msra.mxu0 0.0
    %5667 = vmatprep.subr.mxu0 0.0
    %5668 = vmatpush2.msra.mxu0 0.0
    %5669 = vmatprep.subr.mxu0 0.0
    %5670 = vmatpush2.msra.mxu0 0.0
    %5671 = vmatprep.subr.mxu0 0.0
    %5672 = vmatpush2.msra.mxu0 0.0
    %5673 = vmatprep.subr.mxu0 0.0
    %5674 = vmatpush2.msra.mxu0 0.0
    %5675 = vmatprep.subr.mxu0 0.0
    %5676 = vmatpush2.msra.mxu0 0.0
    %5677 = vmatprep.subr.mxu0 0.0
    %5678 = vmatpush2.msra.mxu0 0.0
    %5679 = vmatprep.subr.mxu0 0.0
    %5680 = vmatpush2.msra.mxu0 0.0
    %5681 = vmatprep.subr.mxu0 0.0
    %5682 = vmatpush2.msra.mxu0 0.0
    %5683 = vmatprep.subr.mxu0 0.0
    %5684 = vmatpush2.msra.mxu0 0.0
    %5685 = vmatprep.subr.mxu0 0.0
    %5686 = vmatpush2.msra.mxu0 0.0
    %5687 = vmatprep.subr.mxu0 0.0
    %5688 = vmatpush2.msra.mxu0 0.0
    %5689 = vmatprep.subr.mxu0 0.0
    %5690 = vmatpush2.msra.mxu0 0.0
    %5691 = vmatprep.subr.mxu0 0.0
    %5692 = vmatpush2.msra.mxu0 0.0
    %5693 = vmatprep.mubr.f32.mxu0 0.0
    %5694 = vmatmul.mubr.f32.gmra.mxu0 %v5627
    %v5695 = vpop.f32.mrf.mxu0
    %v5696 = vadd.f32 %v5178, %v5695
    %v5697 = vpop.f32.mrf.mxu0
    %v5698 = vadd.f32 %v5182, %v5697
    %5699 = vdwg.mxu0
    %v5701 = vrot.slane %v5696, 2
    %v5703 = vadd.f32 %v5170, %v5701
    %v5704 = vmul.f32 %v5703, 0.5
    %v5705 = vtanh.pop %v5704
    %v5706 = vadd.f32 %v5705, 1.0
    %v5707 = vmul.f32 %v5706, 0.5
    %5708 = vrot.lane.b32.xlu0 %v5701, 64
    %v5709 = vpop.permute.xlu0 %5708
    %v5711 = vmul.f32 %v5707, %v5709
    %5713 = vrot.lane.b32.xlu0 %v5711, 64
    %v5714 = vpop.permute.xlu0 %5713
    %v5716 = vadd.f32 %v5170, %v5714
    %v5717 = vtanh.pop %v5716
    %v5718 = vsub.f32 1.0, %v5707
    %5720 = vrot.lane.b32.xlu0 %v5717, 96
    %v5721 = vpop.permute.xlu0 %5720
    %v5723 = vmul.f32 %v5718, %v5721
    %v5724 = vrot.slane %v5624, 6
    %5725 = vrot.lane.b32.xlu0 %v5724, 32
    %v5726 = vpop.permute.xlu0 %5725
    %v5728 = vmul.f32 %v5707, %v5726
    %v5729 = vadd.f32 %v5723, %v5728
    %v5730 = vadd.f32 %v5172, %v5696
    %v5731 = vmul.f32 %v5730, 0.5
    %v5732 = vtanh.pop %v5731
    %v5733 = vadd.f32 %v5732, 1.0
    %v5734 = vmul.f32 %v5733, 0.5
    %v5735 = vadd.f32 %v5173, %v5698
    %v5736 = vmul.f32 %v5735, 0.5
    %v5737 = vtanh.pop %v5736
    %v5738 = vadd.f32 %v5737, 1.0
    %v5739 = vmul.f32 %v5738, 0.5
    %5741 = vrot.lane.b32.xlu0 %v5698, 64
    %v5742 = vpop.permute.xlu0 %5741
    %v5744 = vmul.f32 %v5734, %v5742
    %5746 = vrot.lane.b32.xlu0 %v5744, 64
    %v5747 = vpop.permute.xlu0 %5746
    %v5749 = vadd.f32 %v5173, %v5747
    %v5750 = vtanh.pop %v5749
    %v5751 = vsub.f32 1.0, %v5739
    %5753 = vrot.lane.b32.xlu0 %v5750, 96
    %v5754 = vpop.permute.xlu0 %5753
    %v5756 = vmul.f32 %v5751, %v5754
    %5757 = vrot.lane.b32.xlu0 %v5626, 96
    %v5758 = vpop.permute.xlu0 %5757
    %v5760 = vmul.f32 %v5739, %v5758
    %v5761 = vadd.f32 %v5756, %v5760
    %5763 = vrot.lane.b32.xlu0 %v5729, 96
    %v5764 = vpop.permute.xlu0 %5763
    %v5767 = vrot.slane %v5761, 2
    %5768 = vrot.lane.b32.xlu0 %v5767, 32
    %v5769 = vpop.permute.xlu0 %5768
    %v5771 = vsel %vm218, %v5764, %v5769
    %v5773 = vrot.slane %v5771, 6
    %v5774 = vsel %vm1098, %v5773, 0
    %5776 = vmatprep.subr.mxu0 0.0
    %5777 = vmatpush1.msra.mxu0 0.0
    %5778 = vmatprep.subr.mxu0 0.0
    %5779 = vmatpush1.msra.mxu0 0.0
    %5780 = vmatprep.subr.mxu0 0.0
    %5781 = vmatpush1.msra.mxu0 0.0
    %5782 = vmatprep.subr.mxu0 0.0
    %5783 = vmatpush1.msra.mxu0 0.0
    %5784 = vmatprep.subr.mxu0 0.0
    %5785 = vmatpush1.msra.mxu0 0.0
    %5786 = vmatprep.subr.mxu0 0.0
    %5787 = vmatpush1.msra.mxu0 0.0
    %5788 = vmatprep.subr.mxu0 0.0
    %5789 = vmatpush1.msra.mxu0 0.0
    %5790 = vmatprep.subr.mxu0 0.0
    %5791 = vmatpush1.msra.mxu0 0.0
    %5792 = vmatprep.subr.mxu0 %v4971
    %5793 = vmatpush1.msra.mxu0 %v4970
    %5794 = vmatprep.subr.mxu0 %v4969
    %5795 = vmatpush1.msra.mxu0 %v4968
    %5796 = vmatprep.subr.mxu0 %v4967
    %5797 = vmatpush1.msra.mxu0 %v4966
    %5798 = vmatprep.subr.mxu0 %v4965
    %5799 = vmatpush1.msra.mxu0 %v4964
    %5800 = vmatprep.subr.mxu0 %v4963
    %5801 = vmatpush1.msra.mxu0 %v4962
    %5802 = vmatprep.subr.mxu0 %v4961
    %5803 = vmatpush1.msra.mxu0 %v4960
    %5804 = vmatprep.subr.mxu0 %v4959
    %5805 = vmatpush1.msra.mxu0 %v4958
    %5806 = vmatprep.subr.mxu0 %v4957
    %5807 = vmatpush1.msra.mxu0 %v4956
    %5808 = vmatprep.subr.mxu0 0.0
    %5809 = vmatpush2.msra.mxu0 0.0
    %5810 = vmatprep.subr.mxu0 0.0
    %5811 = vmatpush2.msra.mxu0 0.0
    %5812 = vmatprep.subr.mxu0 0.0
    %5813 = vmatpush2.msra.mxu0 0.0
    %5814 = vmatprep.subr.mxu0 0.0
    %5815 = vmatpush2.msra.mxu0 0.0
    %5816 = vmatprep.subr.mxu0 0.0
    %5817 = vmatpush2.msra.mxu0 0.0
    %5818 = vmatprep.subr.mxu0 0.0
    %5819 = vmatpush2.msra.mxu0 0.0
    %5820 = vmatprep.subr.mxu0 0.0
    %5821 = vmatpush2.msra.mxu0 0.0
    %5822 = vmatprep.subr.mxu0 0.0
    %5823 = vmatpush2.msra.mxu0 0.0
    %5824 = vmatprep.subr.mxu0 0.0
    %5825 = vmatpush2.msra.mxu0 0.0
    %5826 = vmatprep.subr.mxu0 0.0
    %5827 = vmatpush2.msra.mxu0 0.0
    %5828 = vmatprep.subr.mxu0 0.0
    %5829 = vmatpush2.msra.mxu0 0.0
    %5830 = vmatprep.subr.mxu0 0.0
    %5831 = vmatpush2.msra.mxu0 0.0
    %5832 = vmatprep.subr.mxu0 0.0
    %5833 = vmatpush2.msra.mxu0 0.0
    %5834 = vmatprep.subr.mxu0 0.0
    %5835 = vmatpush2.msra.mxu0 0.0
    %5836 = vmatprep.subr.mxu0 0.0
    %5837 = vmatpush2.msra.mxu0 0.0
    %5838 = vmatprep.subr.mxu0 0.0
    %5839 = vmatpush2.msra.mxu0 0.0
    %5840 = vmatprep.mubr.f32.mxu0 0.0
    %5841 = vmatmul.mubr.f32.gmra.mxu0 %v5774
    %v5842 = vpop.f32.mrf.mxu0
    %v5843 = vadd.f32 %v5178, %v5842
    %v5844 = vpop.f32.mrf.mxu0
    %v5845 = vadd.f32 %v5182, %v5844
    %5846 = vdwg.mxu0
    %v5847 = vadd.f32 %v5172, %v5843
    %v5848 = vmul.f32 %v5847, 0.5
    %v5849 = vtanh.pop %v5848
    %v5850 = vadd.f32 %v5849, 1.0
    %v5851 = vmul.f32 %v5850, 0.5
    %5853 = vrot.lane.b32.xlu0 %v5843, 64
    %v5854 = vpop.permute.xlu0 %5853
    %v5856 = vmul.f32 %v5851, %v5854
    %5858 = vrot.lane.b32.xlu0 %v5856, 64
    %v5859 = vpop.permute.xlu0 %5858
    %v5861 = vadd.f32 %v5172, %v5859
    %v5862 = vtanh.pop %v5861
    %v5863 = vsub.f32 1.0, %v5851
    %5865 = vrot.lane.b32.xlu0 %v5862, 96
    %v5866 = vpop.permute.xlu0 %5865
    %v5868 = vmul.f32 %v5863, %v5866
    %5869 = vrot.lane.b32.xlu0 %v5773, 32
    %v5870 = vpop.permute.xlu0 %5869
    %v5872 = vmul.f32 %v5851, %v5870
    %v5873 = vadd.f32 %v5868, %v5872
    %v5874 = vrot.slane %v5843, 2
    %v5876 = vadd.f32 %v5170, %v5874
    %v5877 = vmul.f32 %v5876, 0.5
    %v5878 = vtanh.pop %v5877
    %v5879 = vadd.f32 %v5878, 1.0
    %v5880 = vmul.f32 %v5879, 0.5
    %v5882 = vrot.slane %v5845, 2
    %v5884 = vadd.f32 %v5171, %v5882
    %v5885 = vmul.f32 %v5884, 0.5
    %v5886 = vtanh.pop %v5885
    %v5887 = vadd.f32 %v5886, 1.0
    %v5888 = vmul.f32 %v5887, 0.5
    %5889 = vrot.lane.b32.xlu0 %v5882, 64
    %v5890 = vpop.permute.xlu0 %5889
    %v5892 = vmul.f32 %v5880, %v5890
    %5894 = vrot.lane.b32.xlu0 %v5892, 64
    %v5895 = vpop.permute.xlu0 %5894
    %v5897 = vadd.f32 %v5171, %v5895
    %v5898 = vtanh.pop %v5897
    %v5899 = vsub.f32 1.0, %v5888
    %5901 = vrot.lane.b32.xlu0 %v5898, 96
    %v5902 = vpop.permute.xlu0 %5901
    %v5904 = vmul.f32 %v5899, %v5902
    %5905 = vrot.lane.b32.xlu0 %v5771, 96
    %v5906 = vpop.permute.xlu0 %5905
    %v5908 = vmul.f32 %v5888, %v5906
    %v5909 = vadd.f32 %v5904, %v5908
    %5911 = vrot.lane.b32.xlu0 %v5873, 96
    %v5912 = vpop.permute.xlu0 %5911
    %v5915 = vrot.slane %v5909, 6
    %5916 = vrot.lane.b32.xlu0 %v5915, 32
    %v5917 = vpop.permute.xlu0 %5916
    %v5919 = vsel %vm218, %v5912, %v5917
    %v5921 = vsel %vm1098, %v5919, 0
    %5923 = vmatprep.subr.mxu0 0.0
    %5924 = vmatpush1.msra.mxu0 0.0
    %5925 = vmatprep.subr.mxu0 0.0
    %5926 = vmatpush1.msra.mxu0 0.0
    %5927 = vmatprep.subr.mxu0 0.0
    %5928 = vmatpush1.msra.mxu0 0.0
    %5929 = vmatprep.subr.mxu0 0.0
    %5930 = vmatpush1.msra.mxu0 0.0
    %5931 = vmatprep.subr.mxu0 0.0
    %5932 = vmatpush1.msra.mxu0 0.0
    %5933 = vmatprep.subr.mxu0 0.0
    %5934 = vmatpush1.msra.mxu0 0.0
    %5935 = vmatprep.subr.mxu0 0.0
    %5936 = vmatpush1.msra.mxu0 0.0
    %5937 = vmatprep.subr.mxu0 0.0
    %5938 = vmatpush1.msra.mxu0 0.0
    %5939 = vmatprep.subr.mxu0 %v4971
    %5940 = vmatpush1.msra.mxu0 %v4970
    %5941 = vmatprep.subr.mxu0 %v4969
    %5942 = vmatpush1.msra.mxu0 %v4968
    %5943 = vmatprep.subr.mxu0 %v4967
    %5944 = vmatpush1.msra.mxu0 %v4966
    %5945 = vmatprep.subr.mxu0 %v4965
    %5946 = vmatpush1.msra.mxu0 %v4964
    %5947 = vmatprep.subr.mxu0 %v4963
    %5948 = vmatpush1.msra.mxu0 %v4962
    %5949 = vmatprep.subr.mxu0 %v4961
    %5950 = vmatpush1.msra.mxu0 %v4960
    %5951 = vmatprep.subr.mxu0 %v4959
    %5952 = vmatpush1.msra.mxu0 %v4958
    %5953 = vmatprep.subr.mxu0 %v4957
    %5954 = vmatpush1.msra.mxu0 %v4956
    %5955 = vmatprep.subr.mxu0 0.0
    %5956 = vmatpush2.msra.mxu0 0.0
    %5957 = vmatprep.subr.mxu0 0.0
    %5958 = vmatpush2.msra.mxu0 0.0
    %5959 = vmatprep.subr.mxu0 0.0
    %5960 = vmatpush2.msra.mxu0 0.0
    %5961 = vmatprep.subr.mxu0 0.0
    %5962 = vmatpush2.msra.mxu0 0.0
    %5963 = vmatprep.subr.mxu0 0.0
    %5964 = vmatpush2.msra.mxu0 0.0
    %5965 = vmatprep.subr.mxu0 0.0
    %5966 = vmatpush2.msra.mxu0 0.0
    %5967 = vmatprep.subr.mxu0 0.0
    %5968 = vmatpush2.msra.mxu0 0.0
    %5969 = vmatprep.subr.mxu0 0.0
    %5970 = vmatpush2.msra.mxu0 0.0
    %5971 = vmatprep.subr.mxu0 0.0
    %5972 = vmatpush2.msra.mxu0 0.0
    %5973 = vmatprep.subr.mxu0 0.0
    %5974 = vmatpush2.msra.mxu0 0.0
    %5975 = vmatprep.subr.mxu0 0.0
    %5976 = vmatpush2.msra.mxu0 0.0
    %5977 = vmatprep.subr.mxu0 0.0
    %5978 = vmatpush2.msra.mxu0 0.0
    %5979 = vmatprep.subr.mxu0 0.0
    %5980 = vmatpush2.msra.mxu0 0.0
    %5981 = vmatprep.subr.mxu0 0.0
    %5982 = vmatpush2.msra.mxu0 0.0
    %5983 = vmatprep.subr.mxu0 0.0
    %5984 = vmatpush2.msra.mxu0 0.0
    %5985 = vmatprep.subr.mxu0 0.0
    %5986 = vmatpush2.msra.mxu0 0.0
    %5987 = vmatprep.mubr.f32.mxu0 0.0
    %5988 = vmatmul.mubr.f32.gmra.mxu0 %v5921
    %v5989 = vpop.f32.mrf.mxu0
    %v5990 = vadd.f32 %v5178, %v5989
    %v5991 = vpop.f32.mrf.mxu0
    %v5992 = vadd.f32 %v5182, %v5991
    %5993 = vdwg.mxu0
    %v5995 = vrot.slane %v5990, 6
    %v5997 = vadd.f32 %v5172, %v5995
    %v5998 = vmul.f32 %v5997, 0.5
    %v5999 = vtanh.pop %v5998
    %v6000 = vadd.f32 %v5999, 1.0
    %v6001 = vmul.f32 %v6000, 0.5
    %6002 = vrot.lane.b32.xlu0 %v5995, 64
    %v6003 = vpop.permute.xlu0 %6002
    %v6005 = vmul.f32 %v6001, %v6003
    %6007 = vrot.lane.b32.xlu0 %v6005, 64
    %v6008 = vpop.permute.xlu0 %6007
    %v6010 = vadd.f32 %v5172, %v6008
    %v6011 = vtanh.pop %v6010
    %v6012 = vsub.f32 1.0, %v6001
    %6014 = vrot.lane.b32.xlu0 %v6011, 96
    %v6015 = vpop.permute.xlu0 %6014
    %v6017 = vmul.f32 %v6012, %v6015
    %v6018 = vrot.slane %v5919, 6
    %6019 = vrot.lane.b32.xlu0 %v6018, 32
    %v6020 = vpop.permute.xlu0 %6019
    %v6022 = vmul.f32 %v6001, %v6020
    %v6023 = vadd.f32 %v6017, %v6022
    %v6024 = vrot.slane %v5990, 4
    %v6026 = vadd.f32 %v5170, %v6024
    %v6027 = vmul.f32 %v6026, 0.5
    %v6028 = vtanh.pop %v6027
    %v6029 = vadd.f32 %v6028, 1.0
    %v6030 = vmul.f32 %v6029, 0.5
    %v6032 = vrot.slane %v5992, 4
    %v6034 = vadd.f32 %v5171, %v6032
    %v6035 = vmul.f32 %v6034, 0.5
    %v6036 = vtanh.pop %v6035
    %v6037 = vadd.f32 %v6036, 1.0
    %v6038 = vmul.f32 %v6037, 0.5
    %6039 = vrot.lane.b32.xlu0 %v6032, 64
    %v6040 = vpop.permute.xlu0 %6039
    %v6042 = vmul.f32 %v6030, %v6040
    %6044 = vrot.lane.b32.xlu0 %v6042, 64
    %v6045 = vpop.permute.xlu0 %6044
    %v6047 = vadd.f32 %v5171, %v6045
    %v6048 = vtanh.pop %v6047
    %v6049 = vsub.f32 1.0, %v6038
    %6051 = vrot.lane.b32.xlu0 %v6048, 96
    %v6052 = vpop.permute.xlu0 %6051
    %v6054 = vmul.f32 %v6049, %v6052
    %v6055 = vrot.slane %v5919, 4
    %6056 = vrot.lane.b32.xlu0 %v6055, 96
    %v6057 = vpop.permute.xlu0 %6056
    %v6059 = vmul.f32 %v6038, %v6057
    %v6060 = vadd.f32 %v6054, %v6059
    %6062 = vrot.lane.b32.xlu0 %v6023, 96
    %v6063 = vpop.permute.xlu0 %6062
    %v6066 = vrot.slane %v6060, 2
    %6067 = vrot.lane.b32.xlu0 %v6066, 32
    %v6068 = vpop.permute.xlu0 %6067
    %v6070 = vsel %vm218, %v6063, %v6068
    %v6072 = vrot.slane %v6070, 2
    %v6073 = vsel %vm1098, %v6072, 0
    %6075 = vmatprep.subr.mxu0 0.0
    %6076 = vmatpush1.msra.mxu0 0.0
    %6077 = vmatprep.subr.mxu0 0.0
    %6078 = vmatpush1.msra.mxu0 0.0
    %6079 = vmatprep.subr.mxu0 0.0
    %6080 = vmatpush1.msra.mxu0 0.0
    %6081 = vmatprep.subr.mxu0 0.0
    %6082 = vmatpush1.msra.mxu0 0.0
    %6083 = vmatprep.subr.mxu0 0.0
    %6084 = vmatpush1.msra.mxu0 0.0
    %6085 = vmatprep.subr.mxu0 0.0
    %6086 = vmatpush1.msra.mxu0 0.0
    %6087 = vmatprep.subr.mxu0 0.0
    %6088 = vmatpush1.msra.mxu0 0.0
    %6089 = vmatprep.subr.mxu0 0.0
    %6090 = vmatpush1.msra.mxu0 0.0
    %6091 = vmatprep.subr.mxu0 %v4971
    %6092 = vmatpush1.msra.mxu0 %v4970
    %6093 = vmatprep.subr.mxu0 %v4969
    %6094 = vmatpush1.msra.mxu0 %v4968
    %6095 = vmatprep.subr.mxu0 %v4967
    %6096 = vmatpush1.msra.mxu0 %v4966
    %6097 = vmatprep.subr.mxu0 %v4965
    %6098 = vmatpush1.msra.mxu0 %v4964
    %6099 = vmatprep.subr.mxu0 %v4963
    %6100 = vmatpush1.msra.mxu0 %v4962
    %6101 = vmatprep.subr.mxu0 %v4961
    %6102 = vmatpush1.msra.mxu0 %v4960
    %6103 = vmatprep.subr.mxu0 %v4959
    %6104 = vmatpush1.msra.mxu0 %v4958
    %6105 = vmatprep.subr.mxu0 %v4957
    %6106 = vmatpush1.msra.mxu0 %v4956
    %6107 = vmatprep.subr.mxu0 0.0
    %6108 = vmatpush2.msra.mxu0 0.0
    %6109 = vmatprep.subr.mxu0 0.0
    %6110 = vmatpush2.msra.mxu0 0.0
    %6111 = vmatprep.subr.mxu0 0.0
    %6112 = vmatpush2.msra.mxu0 0.0
    %6113 = vmatprep.subr.mxu0 0.0
    %6114 = vmatpush2.msra.mxu0 0.0
    %6115 = vmatprep.subr.mxu0 0.0
    %6116 = vmatpush2.msra.mxu0 0.0
    %6117 = vmatprep.subr.mxu0 0.0
    %6118 = vmatpush2.msra.mxu0 0.0
    %6119 = vmatprep.subr.mxu0 0.0
    %6120 = vmatpush2.msra.mxu0 0.0
    %6121 = vmatprep.subr.mxu0 0.0
    %6122 = vmatpush2.msra.mxu0 0.0
    %6123 = vmatprep.subr.mxu0 0.0
    %6124 = vmatpush2.msra.mxu0 0.0
    %6125 = vmatprep.subr.mxu0 0.0
    %6126 = vmatpush2.msra.mxu0 0.0
    %6127 = vmatprep.subr.mxu0 0.0
    %6128 = vmatpush2.msra.mxu0 0.0
    %6129 = vmatprep.subr.mxu0 0.0
    %6130 = vmatpush2.msra.mxu0 0.0
    %6131 = vmatprep.subr.mxu0 0.0
    %6132 = vmatpush2.msra.mxu0 0.0
    %6133 = vmatprep.subr.mxu0 0.0
    %6134 = vmatpush2.msra.mxu0 0.0
    %6135 = vmatprep.subr.mxu0 0.0
    %6136 = vmatpush2.msra.mxu0 0.0
    %6137 = vmatprep.subr.mxu0 0.0
    %6138 = vmatpush2.msra.mxu0 0.0
    %6139 = vmatprep.mubr.f32.mxu0 0.0
    %6140 = vmatmul.mubr.f32.gmra.mxu0 %v6073
    %v6141 = vpop.f32.mrf.mxu0
    %v6142 = vadd.f32 %v5178, %v6141
    %v6143 = vpop.f32.mrf.mxu0
    %v6144 = vadd.f32 %v5182, %v6143
    %6145 = vdwg.mxu0
    %v6147 = vrot.slane %v6142, 4
    %v6149 = vadd.f32 %v5172, %v6147
    %v6150 = vmul.f32 %v6149, 0.5
    %v6151 = vtanh.pop %v6150
    %v6152 = vadd.f32 %v6151, 1.0
    %v6153 = vmul.f32 %v6152, 0.5
    %6154 = vrot.lane.b32.xlu0 %v6147, 64
    %v6155 = vpop.permute.xlu0 %6154
    %v6157 = vmul.f32 %v6153, %v6155
    %6159 = vrot.lane.b32.xlu0 %v6157, 64
    %v6160 = vpop.permute.xlu0 %6159
    %v6162 = vadd.f32 %v5172, %v6160
    %v6163 = vtanh.pop %v6162
    %v6164 = vsub.f32 1.0, %v6153
    %6166 = vrot.lane.b32.xlu0 %v6163, 96
    %v6167 = vpop.permute.xlu0 %6166
    %v6169 = vmul.f32 %v6164, %v6167
    %v6170 = vrot.slane %v6070, 6
    %6171 = vrot.lane.b32.xlu0 %v6170, 32
    %v6172 = vpop.permute.xlu0 %6171
    %v6174 = vmul.f32 %v6153, %v6172
    %v6175 = vadd.f32 %v6169, %v6174
    %v6176 = vrot.slane %v6142, 6
    %v6178 = vadd.f32 %v5170, %v6176
    %v6179 = vmul.f32 %v6178, 0.5
    %v6180 = vtanh.pop %v6179
    %v6181 = vadd.f32 %v6180, 1.0
    %v6182 = vmul.f32 %v6181, 0.5
    %v6184 = vrot.slane %v6144, 6
    %v6186 = vadd.f32 %v5171, %v6184
    %v6187 = vmul.f32 %v6186, 0.5
    %v6188 = vtanh.pop %v6187
    %v6189 = vadd.f32 %v6188, 1.0
    %v6190 = vmul.f32 %v6189, 0.5
    %6191 = vrot.lane.b32.xlu0 %v6184, 64
    %v6192 = vpop.permute.xlu0 %6191
    %v6194 = vmul.f32 %v6182, %v6192
    %6196 = vrot.lane.b32.xlu0 %v6194, 64
    %v6197 = vpop.permute.xlu0 %6196
    %v6199 = vadd.f32 %v5171, %v6197
    %v6200 = vtanh.pop %v6199
    %v6201 = vsub.f32 1.0, %v6190
    %6203 = vrot.lane.b32.xlu0 %v6200, 96
    %v6204 = vpop.permute.xlu0 %6203
    %v6206 = vmul.f32 %v6201, %v6204
    %6207 = vrot.lane.b32.xlu0 %v6070, 96
    %v6208 = vpop.permute.xlu0 %6207
    %v6210 = vmul.f32 %v6190, %v6208
    %v6211 = vadd.f32 %v6206, %v6210
    %6213 = vrot.lane.b32.xlu0 %v6175, 96
    %v6214 = vpop.permute.xlu0 %6213
    %v6217 = vrot.slane %v6211, 6
    %6218 = vrot.lane.b32.xlu0 %v6217, 32
    %v6219 = vpop.permute.xlu0 %6218
    %v6221 = vsel %vm218, %v6214, %v6219
    %v6223 = vrot.slane %v6221, 4
    %v6224 = vsel %vm1098, %v6223, 0
    %6226 = vmatprep.subr.mxu0 0.0
    %6227 = vmatpush1.msra.mxu0 0.0
    %6228 = vmatprep.subr.mxu0 0.0
    %6229 = vmatpush1.msra.mxu0 0.0
    %6230 = vmatprep.subr.mxu0 0.0
    %6231 = vmatpush1.msra.mxu0 0.0
    %6232 = vmatprep.subr.mxu0 0.0
    %6233 = vmatpush1.msra.mxu0 0.0
    %6234 = vmatprep.subr.mxu0 0.0
    %6235 = vmatpush1.msra.mxu0 0.0
    %6236 = vmatprep.subr.mxu0 0.0
    %6237 = vmatpush1.msra.mxu0 0.0
    %6238 = vmatprep.subr.mxu0 0.0
    %6239 = vmatpush1.msra.mxu0 0.0
    %6240 = vmatprep.subr.mxu0 0.0
    %6241 = vmatpush1.msra.mxu0 0.0
    %6242 = vmatprep.subr.mxu0 %v4971
    %6243 = vmatpush1.msra.mxu0 %v4970
    %6244 = vmatprep.subr.mxu0 %v4969
    %6245 = vmatpush1.msra.mxu0 %v4968
    %6246 = vmatprep.subr.mxu0 %v4967
    %6247 = vmatpush1.msra.mxu0 %v4966
    %6248 = vmatprep.subr.mxu0 %v4965
    %6249 = vmatpush1.msra.mxu0 %v4964
    %6250 = vmatprep.subr.mxu0 %v4963
    %6251 = vmatpush1.msra.mxu0 %v4962
    %6252 = vmatprep.subr.mxu0 %v4961
    %6253 = vmatpush1.msra.mxu0 %v4960
    %6254 = vmatprep.subr.mxu0 %v4959
    %6255 = vmatpush1.msra.mxu0 %v4958
    %6256 = vmatprep.subr.mxu0 %v4957
    %6257 = vmatpush1.msra.mxu0 %v4956
    %6258 = vmatprep.subr.mxu0 0.0
    %6259 = vmatpush2.msra.mxu0 0.0
    %6260 = vmatprep.subr.mxu0 0.0
    %6261 = vmatpush2.msra.mxu0 0.0
    %6262 = vmatprep.subr.mxu0 0.0
    %6263 = vmatpush2.msra.mxu0 0.0
    %6264 = vmatprep.subr.mxu0 0.0
    %6265 = vmatpush2.msra.mxu0 0.0
    %6266 = vmatprep.subr.mxu0 0.0
    %6267 = vmatpush2.msra.mxu0 0.0
    %6268 = vmatprep.subr.mxu0 0.0
    %6269 = vmatpush2.msra.mxu0 0.0
    %6270 = vmatprep.subr.mxu0 0.0
    %6271 = vmatpush2.msra.mxu0 0.0
    %6272 = vmatprep.subr.mxu0 0.0
    %6273 = vmatpush2.msra.mxu0 0.0
    %6274 = vmatprep.subr.mxu0 0.0
    %6275 = vmatpush2.msra.mxu0 0.0
    %6276 = vmatprep.subr.mxu0 0.0
    %6277 = vmatpush2.msra.mxu0 0.0
    %6278 = vmatprep.subr.mxu0 0.0
    %6279 = vmatpush2.msra.mxu0 0.0
    %6280 = vmatprep.subr.mxu0 0.0
    %6281 = vmatpush2.msra.mxu0 0.0
    %6282 = vmatprep.subr.mxu0 0.0
    %6283 = vmatpush2.msra.mxu0 0.0
    %6284 = vmatprep.subr.mxu0 0.0
    %6285 = vmatpush2.msra.mxu0 0.0
    %6286 = vmatprep.subr.mxu0 0.0
    %6287 = vmatpush2.msra.mxu0 0.0
    %6288 = vmatprep.subr.mxu0 0.0
    %6289 = vmatpush2.msra.mxu0 0.0
    %6290 = vmatprep.mubr.f32.mxu0 0.0
    %6291 = vmatmul.mubr.f32.gmra.mxu0 %v6224
    %v6292 = vpop.f32.mrf.mxu0
    %v6293 = vadd.f32 %v5178, %v6292
    %v6294 = vpop.f32.mrf.mxu0
    %v6295 = vadd.f32 %v5182, %v6294
    %6296 = vdwg.mxu0
    %v6298 = vrot.slane %v6293, 2
    %v6300 = vadd.f32 %v5172, %v6298
    %v6301 = vmul.f32 %v6300, 0.5
    %v6302 = vtanh.pop %v6301
    %v6303 = vadd.f32 %v6302, 1.0
    %v6304 = vmul.f32 %v6303, 0.5
    %6305 = vrot.lane.b32.xlu0 %v6298, 64
    %v6306 = vpop.permute.xlu0 %6305
    %v6308 = vmul.f32 %v6304, %v6306
    %6310 = vrot.lane.b32.xlu0 %v6308, 64
    %v6311 = vpop.permute.xlu0 %6310
    %v6313 = vadd.f32 %v5172, %v6311
    %v6314 = vtanh.pop %v6313
    %v6315 = vsub.f32 1.0, %v6304
    %6317 = vrot.lane.b32.xlu0 %v6314, 96
    %v6318 = vpop.permute.xlu0 %6317
    %v6320 = vmul.f32 %v6315, %v6318
    %v6321 = vrot.slane %v6221, 6
    %6322 = vrot.lane.b32.xlu0 %v6321, 32
    %v6323 = vpop.permute.xlu0 %6322
    %v6325 = vmul.f32 %v6304, %v6323
    %v6326 = vadd.f32 %v6320, %v6325
    %v6327 = vadd.f32 %v5170, %v6293
    %v6328 = vmul.f32 %v6327, 0.5
    %v6329 = vtanh.pop %v6328
    %v6330 = vadd.f32 %v6329, 1.0
    %v6331 = vmul.f32 %v6330, 0.5
    %v6332 = vadd.f32 %v5171, %v6295
    %v6333 = vmul.f32 %v6332, 0.5
    %v6334 = vtanh.pop %v6333
    %v6335 = vadd.f32 %v6334, 1.0
    %v6336 = vmul.f32 %v6335, 0.5
    %6338 = vrot.lane.b32.xlu0 %v6295, 64
    %v6339 = vpop.permute.xlu0 %6338
    %v6341 = vmul.f32 %v6331, %v6339
    %6343 = vrot.lane.b32.xlu0 %v6341, 64
    %v6344 = vpop.permute.xlu0 %6343
    %v6346 = vadd.f32 %v5171, %v6344
    %v6347 = vtanh.pop %v6346
    %v6348 = vsub.f32 1.0, %v6336
    %6350 = vrot.lane.b32.xlu0 %v6347, 96
    %v6351 = vpop.permute.xlu0 %6350
    %v6353 = vmul.f32 %v6348, %v6351
    %6354 = vrot.lane.b32.xlu0 %v6223, 96
    %v6355 = vpop.permute.xlu0 %6354
    %v6357 = vmul.f32 %v6336, %v6355
    %v6358 = vadd.f32 %v6353, %v6357
    %6360 = vrot.lane.b32.xlu0 %v6326, 96
    %v6361 = vpop.permute.xlu0 %6360
    %v6364 = vrot.slane %v6358, 2
    %6365 = vrot.lane.b32.xlu0 %v6364, 32
    %v6366 = vpop.permute.xlu0 %6365
    %v6368 = vsel %vm218, %v6361, %v6366
    %v6369 = vtanh.pop %v6368
    %v6370 = vld [vmem:[#allocation21] sm:$0xff]
    %v6371 = vld [vmem:[#allocation21 + $0x8] sm:$0xff]
    %v6372 = vld [vmem:[#allocation21 + $0x10] sm:$0xff]
    %v6373 = vld [vmem:[#allocation21 + $0x18] sm:$0xff]
    %v6374 = vld [vmem:[#allocation21 + $0x20] sm:$0xff]
    %v6375 = vld [vmem:[#allocation21 + $0x28] sm:$0xff]
    %v6376 = vld [vmem:[#allocation21 + $0x30] sm:$0xff]
    %v6377 = vld [vmem:[#allocation21 + $0x38] sm:$0xff]
    %v6379 = vrot.slane %v6369, 6
    %v6380 = vsel %vm218, %v6379, 0
    %6382 = vmatprep.subr.mxu0 0.0
    %6383 = vmatpush1.msra.mxu0 0.0
    %6384 = vmatprep.subr.mxu0 0.0
    %6385 = vmatpush1.msra.mxu0 0.0
    %6386 = vmatprep.subr.mxu0 0.0
    %6387 = vmatpush1.msra.mxu0 0.0
    %6388 = vmatprep.subr.mxu0 0.0
    %6389 = vmatpush1.msra.mxu0 0.0
    %6390 = vmatprep.subr.mxu0 0.0
    %6391 = vmatpush1.msra.mxu0 0.0
    %6392 = vmatprep.subr.mxu0 0.0
    %6393 = vmatpush1.msra.mxu0 0.0
    %6394 = vmatprep.subr.mxu0 0.0
    %6395 = vmatpush1.msra.mxu0 0.0
    %6396 = vmatprep.subr.mxu0 0.0
    %6397 = vmatpush1.msra.mxu0 0.0
    %6398 = vmatprep.subr.mxu0 0.0
    %6399 = vmatpush1.msra.mxu0 0.0
    %6400 = vmatprep.subr.mxu0 0.0
    %6401 = vmatpush1.msra.mxu0 0.0
    %6402 = vmatprep.subr.mxu0 0.0
    %6403 = vmatpush1.msra.mxu0 0.0
    %6404 = vmatprep.subr.mxu0 0.0
    %6405 = vmatpush1.msra.mxu0 0.0
    %6406 = vmatprep.subr.mxu0 0.0
    %6407 = vmatpush1.msra.mxu0 %v6377
    %6408 = vmatprep.subr.mxu0 0.0
    %6409 = vmatpush1.msra.mxu0 %v6376
    %6410 = vmatprep.subr.mxu0 0.0
    %6411 = vmatpush1.msra.mxu0 %v6375
    %6412 = vmatprep.subr.mxu0 0.0
    %6413 = vmatpush1.msra.mxu0 %v6374
    %6414 = vmatprep.subr.mxu0 0.0
    %6415 = vmatpush2.msra.mxu0 0.0
    %6416 = vmatprep.subr.mxu0 0.0
    %6417 = vmatpush2.msra.mxu0 0.0
    %6418 = vmatprep.subr.mxu0 0.0
    %6419 = vmatpush2.msra.mxu0 0.0
    %6420 = vmatprep.subr.mxu0 0.0
    %6421 = vmatpush2.msra.mxu0 0.0
    %6422 = vmatprep.subr.mxu0 0.0
    %6423 = vmatpush2.msra.mxu0 0.0
    %6424 = vmatprep.subr.mxu0 0.0
    %6425 = vmatpush2.msra.mxu0 0.0
    %6426 = vmatprep.subr.mxu0 0.0
    %6427 = vmatpush2.msra.mxu0 0.0
    %6428 = vmatprep.subr.mxu0 0.0
    %6429 = vmatpush2.msra.mxu0 0.0
    %6430 = vmatprep.subr.mxu0 0.0
    %6431 = vmatpush2.msra.mxu0 0.0
    %6432 = vmatprep.subr.mxu0 0.0
    %6433 = vmatpush2.msra.mxu0 0.0
    %6434 = vmatprep.subr.mxu0 0.0
    %6435 = vmatpush2.msra.mxu0 0.0
    %6436 = vmatprep.subr.mxu0 0.0
    %6437 = vmatpush2.msra.mxu0 0.0
    %6438 = vmatprep.subr.mxu0 0.0
    %6439 = vmatpush2.msra.mxu0 0.0
    %6440 = vmatprep.subr.mxu0 0.0
    %6441 = vmatpush2.msra.mxu0 0.0
    %6442 = vmatprep.subr.mxu0 0.0
    %6443 = vmatpush2.msra.mxu0 0.0
    %6444 = vmatprep.subr.mxu0 0.0
    %6445 = vmatpush2.msra.mxu0 0.0
    %6446 = vmatprep.mubr.f32.mxu0 0.0
    %6447 = vmatmul.mubr.f32.gmra.mxu0 %v6380
    %v6448 = vpop.f32.mrf.mxu0
    %v6449 = vadd.f32 0.0, %v6448
    %v6450 = vpop.f32.mrf.mxu0
    %6451 = vdwg.mxu0
    %6452 = vrot.lane.b32.xlu0 %v6379, 96
    %v6453 = vpop.permute.xlu0 %6452
    %v6454 = vsel %vm218, %v6453, 0
    %6456 = vmatprep.subr.mxu0 0.0
    %6457 = vmatpush1.msra.mxu0 0.0
    %6458 = vmatprep.subr.mxu0 0.0
    %6459 = vmatpush1.msra.mxu0 0.0
    %6460 = vmatprep.subr.mxu0 0.0
    %6461 = vmatpush1.msra.mxu0 0.0
    %6462 = vmatprep.subr.mxu0 0.0
    %6463 = vmatpush1.msra.mxu0 0.0
    %6464 = vmatprep.subr.mxu0 0.0
    %6465 = vmatpush1.msra.mxu0 0.0
    %6466 = vmatprep.subr.mxu0 0.0
    %6467 = vmatpush1.msra.mxu0 0.0
    %6468 = vmatprep.subr.mxu0 0.0
    %6469 = vmatpush1.msra.mxu0 0.0
    %6470 = vmatprep.subr.mxu0 0.0
    %6471 = vmatpush1.msra.mxu0 0.0
    %6472 = vmatprep.subr.mxu0 0.0
    %6473 = vmatpush1.msra.mxu0 0.0
    %6474 = vmatprep.subr.mxu0 0.0
    %6475 = vmatpush1.msra.mxu0 0.0
    %6476 = vmatprep.subr.mxu0 0.0
    %6477 = vmatpush1.msra.mxu0 0.0
    %6478 = vmatprep.subr.mxu0 0.0
    %6479 = vmatpush1.msra.mxu0 0.0
    %6480 = vmatprep.subr.mxu0 0.0
    %6481 = vmatpush1.msra.mxu0 %v6373
    %6482 = vmatprep.subr.mxu0 0.0
    %6483 = vmatpush1.msra.mxu0 %v6372
    %6484 = vmatprep.subr.mxu0 0.0
    %6485 = vmatpush1.msra.mxu0 %v6371
    %6486 = vmatprep.subr.mxu0 0.0
    %6487 = vmatpush1.msra.mxu0 %v6370
    %6488 = vmatprep.subr.mxu0 0.0
    %6489 = vmatpush2.msra.mxu0 0.0
    %6490 = vmatprep.subr.mxu0 0.0
    %6491 = vmatpush2.msra.mxu0 0.0
    %6492 = vmatprep.subr.mxu0 0.0
    %6493 = vmatpush2.msra.mxu0 0.0
    %6494 = vmatprep.subr.mxu0 0.0
    %6495 = vmatpush2.msra.mxu0 0.0
    %6496 = vmatprep.subr.mxu0 0.0
    %6497 = vmatpush2.msra.mxu0 0.0
    %6498 = vmatprep.subr.mxu0 0.0
    %6499 = vmatpush2.msra.mxu0 0.0
    %6500 = vmatprep.subr.mxu0 0.0
    %6501 = vmatpush2.msra.mxu0 0.0
    %6502 = vmatprep.subr.mxu0 0.0
    %6503 = vmatpush2.msra.mxu0 0.0
    %6504 = vmatprep.subr.mxu0 0.0
    %6505 = vmatpush2.msra.mxu0 0.0
    %6506 = vmatprep.subr.mxu0 0.0
    %6507 = vmatpush2.msra.mxu0 0.0
    %6508 = vmatprep.subr.mxu0 0.0
    %6509 = vmatpush2.msra.mxu0 0.0
    %6510 = vmatprep.subr.mxu0 0.0
    %6511 = vmatpush2.msra.mxu0 0.0
    %6512 = vmatprep.subr.mxu0 0.0
    %6513 = vmatpush2.msra.mxu0 0.0
    %6514 = vmatprep.subr.mxu0 0.0
    %6515 = vmatpush2.msra.mxu0 0.0
    %6516 = vmatprep.subr.mxu0 0.0
    %6517 = vmatpush2.msra.mxu0 0.0
    %6518 = vmatprep.subr.mxu0 0.0
    %6519 = vmatpush2.msra.mxu0 0.0
    %6520 = vmatprep.mubr.f32.mxu0 0.0
    %6521 = vmatmul.mubr.f32.gmra.mxu0 %v6454
    %v6522 = vpop.f32.mrf.mxu0
    %v6523 = vadd.f32 %v6449, %v6522
    %v6524 = vpop.f32.mrf.mxu0
    %6525 = vdwg.mxu0
    %v6526 = vld [vmem:[%s19] sm:$0x1]
    %v6528 = vlaneseq
    %v6529 = vshrl.u32 %v6528, 7
    %v6530 = vsub.s32 0, %v6529
    %v6531 = vrot.slane %v6526, %v6530
    %v6533 = vadd.f32 %v6523, %v6531
    %6534 = vst [vmem:[#allocation22] sm:$0x3] %v6533
    // Predicated region
    $region126: #{tpu_custom_call.1} parent=1 // pred_check
      _
    $region127: #{tpu_custom_call.1} parent=1 // pred_check_branch
      %6536 = sbr.rel (0) target = $region129
    $region128: #{tpu_custom_call.1} parent=1 // pred_region
      %s6538 = ssub.s32 32, 32
      %6539 = vsyncadd [#allocation6], %s6538
      %s6541 = sshll.u32 [#allocation22], 4
      %s6542 = int_to_ptr.vmem [resolvable:$true] %s6541
      %6544 = dma.vmem_to_hbm [thread:$0]  %s6542, 32, %s20, [#allocation6]
    $region129: #{tpu_custom_call.1} parent=1 // pred_fallthru
      _
    // Predicated region
    $region130: #{tpu_custom_call.1} parent=1 // pred_check
      _
    $region131: #{tpu_custom_call.1} parent=1 // pred_check_branch
      %6546 = sbr.rel (0) target = $region133
    $region132: #{tpu_custom_call.1} parent=1 // pred_region
      %6547 = dma.done [#allocation6], 32
    $region133: #{tpu_custom_call.1} parent=1 // pred_fallthru
      _
    %6548 = vsyncpa [#allocation5], 1
    %6549 = vsyncpa [#allocation8], 1
    %6550 = vsyncpa [#allocation11], 1
    %6551 = vsyncpa [#allocation14], 1
    %6552 = vsyncpa [#allocation17], 1
    %6553 = vsyncpa [#allocation20], 1
    %6554 = vsyncpa [#allocation6], 1

</llo_original>
